<compile_context>
chip_gen: v7x
topology: tpu7x:2x2x1
jax: 0.10.0
libtpu: 0.0.40
codegen_flags: <defaults>
</compile_context>

<pallas_src>
import jax
import jax.numpy as jnp
from jax.experimental import pallas as pl
from jax.experimental.pallas import tpu as pltpu


# ----------------------------------------------------------------------------
# Fused decoder kernel
# ----------------------------------------------------------------------------
def _fused_decoder_kernel(x_ref, wpre_ref, bpre_ref, w1_ref, b1_ref,
                          w2_ref, b2_ref, w3_ref, b3_ref, w4_ref, b4_ref,
                          o_ref, s1_ref, s2_ref):
    tm = x_ref.shape[0]
    f32 = jnp.float32
    bf16 = jnp.bfloat16

    # preconv: 1456 -> 728 (per input pixel)
    h0 = jnp.dot(x_ref[...], wpre_ref[...], preferred_element_type=f32)
    h0 = h0 + bpre_ref[...]

    # upconv1 packed: 728 -> 4*256   (columns = [sub-pixel p1, channel c1])
    h1 = jnp.dot(h0.astype(bf16), w1_ref[...], preferred_element_type=f32)
    h1 = (h1 + b1_ref[...]).astype(bf16)
    # fold sub-pixel p1 into rows: (tm, 4*256) -> (4*tm, 256)
    for p in range(4):
        s1_ref[pl.ds(p * tm, tm), :] = h1[:, p * 256:(p + 1) * 256]

    # upconv2 packed: 256 -> 4*128
    h2 = jnp.dot(s1_ref[...], w2_ref[...], preferred_element_type=f32)
    h2 = (h2 + b2_ref[...]).astype(bf16)
    # fold sub-pixel p2 into rows: (4*tm, 4*128) -> (16*tm, 128)
    for p in range(4):
        s2_ref[pl.ds(p * 4 * tm, 4 * tm), :] = h2[:, p * 128:(p + 1) * 128]

    # upconv3 packed: 128 -> 4*64    (columns = [p3, c3])
    h3 = jnp.dot(s2_ref[...], w3_ref[...], preferred_element_type=f32)
    h3 = (h3 + b3_ref[...]).astype(bf16)

    # upconv4 + final Conv2d(32,1) + sigmoid, folded: block-diagonal (256, 16)
    h4 = jnp.dot(h3, w4_ref[...], preferred_element_type=f32) + b4_ref[...]
    o_ref[...] = jax.nn.sigmoid(h4).astype(o_ref.dtype)


# ----------------------------------------------------------------------------
# Weight packing (done once, outside the kernel)
# ----------------------------------------------------------------------------
def _round_up(x, m):
    return ((x + m - 1) // m) * m


def _pack_convT(w):
    """PyTorch ConvTranspose2d weight (Cin, Cout, 2, 2) -> (Cin, 4*Cout)."""
    cin, cout = w.shape[0], w.shape[1]
    return jnp.transpose(w, (0, 2, 3, 1)).reshape(cin, 4 * cout)


def pack_decoder_params(params):
    f32 = jnp.float32
    bf16 = jnp.bfloat16

    wpre = jnp.transpose(params["preconv_w"])                       # (1456, 728)
    w1 = _pack_convT(params["up1_w"])                               # (728, 1024)
    w2 = _pack_convT(params["up2_w"])                               # (256, 512)
    w3 = _pack_convT(params["up3_w"])                               # (128, 256)

    # Fold final Conv2d(32, 1) + bias into upconv4 (exact: both are linear).
    wf = params["final_w"][0]                                       # (32,)
    w4f = jnp.einsum("cdab,d->cab", params["up4_w"], wf).reshape(64, 4)
    b4f = jnp.dot(wf, params["up4_b"]) + params["final_b"][0]
    # Block-diagonal over the 4 upconv3 sub-pixel groups: (4*64, 4*4).
    w4 = jnp.zeros((256, 16), f32)
    for p in range(4):
        w4 = w4.at[p * 64:(p + 1) * 64, p * 4:(p + 1) * 4].set(w4f)

    return {
        "wpre": wpre.astype(bf16),
        "bpre": params["preconv_b"].reshape(1, -1).astype(f32),
        "w1": w1.astype(bf16),
        "b1": jnp.tile(params["up1_b"], 4).reshape(1, -1).astype(f32),
        "w2": w2.astype(bf16),
        "b2": jnp.tile(params["up2_b"], 4).reshape(1, -1).astype(f32),
        "w3": w3.astype(bf16),
        "b3": jnp.tile(params["up3_b"], 4).reshape(1, -1).astype(f32),
        "w4": w4.astype(bf16),
        "b4": jnp.full((1, 16), b4f, f32),
    }


# ----------------------------------------------------------------------------
# Decoder forward (single fused pallas_call + one XLA de-interleave)
# ----------------------------------------------------------------------------
def decoder_forward(packed, x_nchw):
    n, cin, h, w = x_nchw.shape
    assert cin == 728 * 2

    # NCHW -> (M, Cin) rows of input pixels.
    xf = jnp.transpose(x_nchw, (0, 2, 3, 1)).reshape(n * h * w, cin)
    m = n * h * w

    # Tile over input pixels.  Keep >= 2 tiles when possible (both v7x TCs);
    # cap tm so the grown (16*tm, .) intermediates stay modest.
    tm = min(32, max(8, _round_up(-(-m // 2), 8)))
    mp = _round_up(m, tm)
    if mp != m:
        xf = jnp.pad(xf, ((0, mp - m), (0, 0)))
    xf = xf.astype(jnp.bfloat16)
    grid = mp // tm

    out = pl.pallas_call(
        _fused_decoder_kernel,
        out_shape=jax.ShapeDtypeStruct((16 * mp, 16), jnp.float32),
        grid_spec=pltpu.PrefetchScalarGridSpec(
            num_scalar_prefetch=0,
            grid=(grid,),
            in_specs=[
                pl.BlockSpec((tm, cin), lambda i: (i, 0)),       # x tile
                pl.BlockSpec((1456, 728), lambda i: (0, 0)),     # wpre
                pl.BlockSpec((1, 728), lambda i: (0, 0)),        # bpre
                pl.BlockSpec((728, 1024), lambda i: (0, 0)),     # w1 packed
                pl.BlockSpec((1, 1024), lambda i: (0, 0)),       # b1 packed
                pl.BlockSpec((256, 512), lambda i: (0, 0)),      # w2 packed
                pl.BlockSpec((1, 512), lambda i: (0, 0)),        # b2 packed
                pl.BlockSpec((128, 256), lambda i: (0, 0)),      # w3 packed
                pl.BlockSpec((1, 256), lambda i: (0, 0)),        # b3 packed
                pl.BlockSpec((256, 16), lambda i: (0, 0)),       # w4+final folded
                pl.BlockSpec((1, 16), lambda i: (0, 0)),         # b4+final folded
            ],
            out_specs=pl.BlockSpec((16 * tm, 16), lambda i: (i, 0)),
            scratch_shapes=[
                pltpu.VMEM((4 * tm, 256), jnp.bfloat16),
                pltpu.VMEM((16 * tm, 128), jnp.bfloat16),
            ],
        ),
        compiler_params=pltpu.CompilerParams(
            dimension_semantics=("parallel",)),
    )(xf, packed["wpre"], packed["bpre"], packed["w1"], packed["b1"],
      packed["w2"], packed["b2"], packed["w3"], packed["b3"],
      packed["w4"], packed["b4"])

    # Single spatial de-interleave of the tiny 1-channel output (layout only).
    # Kernel row layout within a tile:  p2*(4*tm) + p1*tm + r ; columns:
    # p3*4 + p4, where p_k = a_k*2 + b_k is the upconv_k sub-pixel and r the
    # local input-pixel index.  Final pixel = (16*i0 + 8a1+4a2+2a3+a4,
    #                                          16*j0 + 8b1+4b2+2b3+b4).
    t = mp // tm
    o = out.reshape(t, 2, 2, 2, 2, tm, 2, 2, 2, 2)   # (t,a2,b2,a1,b1,r,a3,b3,a4,b4)
    o = jnp.transpose(o, (0, 5, 3, 1, 6, 8, 4, 2, 7, 9))  # (t,r,a1..a4,b1..b4)
    o = o.reshape(mp, 16, 16)[:m].reshape(n, h, w, 16, 16)
    o = jnp.transpose(o, (0, 1, 3, 2, 4)).reshape(n, 16 * h, 16 * w)
    return o[:, None, :, :]


# ----------------------------------------------------------------------------
# Pure-JAX reference (mirrors the PyTorch module semantics)
# ----------------------------------------------------------------------------
def _ref_conv1x1(x, w, b):
    return jnp.einsum("nhwc,oc->nhwo", x, w) + b


def _ref_convT2x2(x, w, b):
    y = jnp.einsum("nhwc,cdab->nhwabd", x, w) + b
    nb, hh, ww, _, _, d = y.shape
    return jnp.transpose(y, (0, 1, 3, 2, 4, 5)).reshape(nb, 2 * hh, 2 * ww, d)


def ref_decoder_forward(params, x_nchw):
    x = jnp.transpose(x_nchw, (0, 2, 3, 1)).astype(jnp.float32)
    f = _ref_conv1x1(x, params["preconv_w"], params["preconv_b"])
    f = _ref_convT2x2(f, params["up1_w"], params["up1_b"])
    f = _ref_convT2x2(f, params["up2_w"], params["up2_b"])
    f = _ref_convT2x2(f, params["up3_w"], params["up3_b"])
    f = _ref_convT2x2(f, params["up4_w"], params["up4_b"])
    o = jax.nn.sigmoid(_ref_conv1x1(f, params["final_w"], params["final_b"]))
    return jnp.transpose(o, (0, 3, 1, 2))


# ----------------------------------------------------------------------------
# Deterministic synthetic parameters
# ----------------------------------------------------------------------------
def init_decoder_params(key):
    def dense_w(k, shape, fan_in):
        return (jax.random.normal(k, shape, jnp.float32)
                * (1.0 / jnp.sqrt(jnp.float32(fan_in))))

    keys = jax.random.split(key, 12)
    return {
        "preconv_w": dense_w(keys[0], (728, 1456), 1456),
        "preconv_b": 0.01 * jax.random.normal(keys[1], (728,), jnp.float32),
        "up1_w": dense_w(keys[2], (728, 256, 2, 2), 728 * 4),
        "up1_b": 0.01 * jax.random.normal(keys[3], (256,), jnp.float32),
        "up2_w": dense_w(keys[4], (256, 128, 2, 2), 256 * 4),
        "up2_b": 0.01 * jax.random.normal(keys[5], (128,), jnp.float32),
        "up3_w": dense_w(keys[6], (128, 64, 2, 2), 128 * 4),
        "up3_b": 0.01 * jax.random.normal(keys[7], (64,), jnp.float32),
        "up4_w": dense_w(keys[8], (64, 32, 2, 2), 64 * 4),
        "up4_b": 0.01 * jax.random.normal(keys[9], (32,), jnp.float32),
        "final_w": dense_w(keys[10], (1, 32), 32),
        "final_b": 0.01 * jax.random.normal(keys[11], (1,), jnp.float32),
    }


if __name__ == "__main__":
    key = jax.random.PRNGKey(0)
    pkey, xkey = jax.random.split(key)

    params = init_decoder_params(pkey)

    # Channel count fixed by the module (728*2); keep spatial small.
    batch, cin, h, w = 2, 728 * 2, 4, 4
    x = jax.random.normal(xkey, (batch, cin, h, w), jnp.float32)

    # The kernel runs weights/activations in bf16 (f32 accumulation); round
    # them once so the f32 XLA reference sees the same operands.
    def _q(a):
        return a.astype(jnp.bfloat16).astype(jnp.float32)

    params_q = {k: (_q(v) if k.endswith("_w") else v) for k, v in params.items()}
    x_q = _q(x)

    packed = pack_decoder_params(params_q)

    out = jax.block_until_ready(jax.jit(decoder_forward)(packed, x_q))

    assert out.shape == (batch, 1, h * 16, w * 16), out.shape
    assert bool(jnp.all(jnp.isfinite(out)))
    assert bool(jnp.all((out >= 0.0) & (out <= 1.0)))  # sigmoid range

    ref = jax.block_until_ready(jax.jit(ref_decoder_forward)(params_q, x_q))
    max_err = float(jnp.max(jnp.abs(out - ref)))
    assert max_err < 3e-2, max_err

    print("KERNEL_OK")
</pallas_src>

<mosaic_0001>
module attributes {stable_mosaic.version = 11 : i64} {
  func.func @_fused_decoder_kernel(%arg0: i32, %arg1: memref<16x1456xbf16, #tpu.memory_space<vmem>>, %arg2: memref<1456x728xbf16, #tpu.memory_space<vmem>>, %arg3: memref<1x728xf32, #tpu.memory_space<vmem>>, %arg4: memref<728x1024xbf16, #tpu.memory_space<vmem>>, %arg5: memref<1x1024xf32, #tpu.memory_space<vmem>>, %arg6: memref<256x512xbf16, #tpu.memory_space<vmem>>, %arg7: memref<1x512xf32, #tpu.memory_space<vmem>>, %arg8: memref<128x256xbf16, #tpu.memory_space<vmem>>, %arg9: memref<1x256xf32, #tpu.memory_space<vmem>>, %arg10: memref<256x16xbf16, #tpu.memory_space<vmem>>, %arg11: memref<1x16xf32, #tpu.memory_space<vmem>>, %arg12: memref<256x16xf32, #tpu.memory_space<vmem>>, %arg13: memref<64x256xbf16, #tpu.memory_space<vmem>>, %arg14: memref<256x128xbf16, #tpu.memory_space<vmem>>) attributes {dimension_semantics = [#tpu.dimension_semantics<parallel>], iteration_bounds = array<i64: 2>, scalar_prefetch = 0 : i64, scratch_operands = 2 : i64, tpu.core_type = #tpu.core_type<tc>, window_params = [{transform_indices = @transform_0, window_bounds = array<i64: 16, 1456>}, {pipeline_mode = #tpu.pipeline_mode<synchronous>, transform_indices = @transform_1, window_bounds = array<i64: 1456, 728>}, {pipeline_mode = #tpu.pipeline_mode<synchronous>, transform_indices = @transform_2, window_bounds = array<i64: 1, 728>}, {pipeline_mode = #tpu.pipeline_mode<synchronous>, transform_indices = @transform_3, window_bounds = array<i64: 728, 1024>}, {pipeline_mode = #tpu.pipeline_mode<synchronous>, transform_indices = @transform_4, window_bounds = array<i64: 1, 1024>}, {pipeline_mode = #tpu.pipeline_mode<synchronous>, transform_indices = @transform_5, window_bounds = array<i64: 256, 512>}, {pipeline_mode = #tpu.pipeline_mode<synchronous>, transform_indices = @transform_6, window_bounds = array<i64: 1, 512>}, {pipeline_mode = #tpu.pipeline_mode<synchronous>, transform_indices = @transform_7, window_bounds = array<i64: 128, 256>}, {pipeline_mode = #tpu.pipeline_mode<synchronous>, transform_indices = @transform_8, window_bounds = array<i64: 1, 256>}, {pipeline_mode = #tpu.pipeline_mode<synchronous>, transform_indices = @transform_9, window_bounds = array<i64: 256, 16>}, {pipeline_mode = #tpu.pipeline_mode<synchronous>, transform_indices = @transform_10, window_bounds = array<i64: 1, 16>}, {transform_indices = @transform_11, window_bounds = array<i64: 256, 16>}]} {
    %c0 = arith.constant 0 : index
    %c0_0 = arith.constant 0 : index
    %0 = vector.load %arg1[%c0, %c0_0] : memref<16x1456xbf16, #tpu.memory_space<vmem>>, vector<16x1456xbf16>
    %c0_1 = arith.constant 0 : index
    %c0_2 = arith.constant 0 : index
    %1 = vector.load %arg2[%c0_1, %c0_2] : memref<1456x728xbf16, #tpu.memory_space<vmem>>, vector<1456x728xbf16>
    %cst = arith.constant dense<0.000000e+00> : vector<16x728xf32>
    %2 = tpu.matmul %0, %1, %cst {dimension_numbers = #tpu.dot_dimension_numbers<[1], [0], [0], [1], [0, 0, 1, 1], [], []>} : vector<16x1456xbf16>, vector<1456x728xbf16>, vector<16x728xf32> -> vector<16x728xf32>
    %c0_3 = arith.constant 0 : index
    %c0_4 = arith.constant 0 : index
    %3 = vector.load %arg3[%c0_3, %c0_4] : memref<1x728xf32, #tpu.memory_space<vmem>>, vector<1x728xf32>
    %4 = vector.broadcast %3 : vector<1x728xf32> to vector<16x728xf32>
    %5 = arith.addf %2, %4 : vector<16x728xf32>
    %6 = arith.truncf %5 : vector<16x728xf32> to vector<16x728xbf16>
    %c0_5 = arith.constant 0 : index
    %c0_6 = arith.constant 0 : index
    %7 = vector.load %arg4[%c0_5, %c0_6] : memref<728x1024xbf16, #tpu.memory_space<vmem>>, vector<728x1024xbf16>
    %cst_7 = arith.constant dense<0.000000e+00> : vector<16x1024xf32>
    %8 = tpu.matmul %6, %7, %cst_7 {dimension_numbers = #tpu.dot_dimension_numbers<[1], [0], [0], [1], [0, 0, 1, 1], [], []>} : vector<16x728xbf16>, vector<728x1024xbf16>, vector<16x1024xf32> -> vector<16x1024xf32>
    %c0_8 = arith.constant 0 : index
    %c0_9 = arith.constant 0 : index
    %9 = vector.load %arg5[%c0_8, %c0_9] : memref<1x1024xf32, #tpu.memory_space<vmem>>, vector<1x1024xf32>
    %10 = vector.broadcast %9 : vector<1x1024xf32> to vector<16x1024xf32>
    %11 = arith.addf %8, %10 : vector<16x1024xf32>
    %12 = arith.truncf %11 : vector<16x1024xf32> to vector<16x1024xbf16>
    %13 = vector.extract_strided_slice %12 {offsets = [0, 0], sizes = [16, 256], strides = [1, 1]} : vector<16x1024xbf16> to vector<16x256xbf16>
    %c0_10 = arith.constant 0 : index
    %c0_11 = arith.constant 0 : index
    %14 = vector.load %arg13[%c0_10, %c0_11] : memref<64x256xbf16, #tpu.memory_space<vmem>>, vector<16x256xbf16>
    tpu.vector_store %arg13[%c0_10, %c0_11], %13 {strides = array<i32>} : memref<64x256xbf16, #tpu.memory_space<vmem>>, vector<16x256xbf16>,
    %15 = vector.extract_strided_slice %12 {offsets = [0, 256], sizes = [16, 256], strides = [1, 1]} : vector<16x1024xbf16> to vector<16x256xbf16>
    %c16 = arith.constant 16 : index
    %c0_12 = arith.constant 0 : index
    %16 = vector.load %arg13[%c16, %c0_12] : memref<64x256xbf16, #tpu.memory_space<vmem>>, vector<16x256xbf16>
    tpu.vector_store %arg13[%c16, %c0_12], %15 {strides = array<i32>} : memref<64x256xbf16, #tpu.memory_space<vmem>>, vector<16x256xbf16>,
    %17 = vector.extract_strided_slice %12 {offsets = [0, 512], sizes = [16, 256], strides = [1, 1]} : vector<16x1024xbf16> to vector<16x256xbf16>
    %c32 = arith.constant 32 : index
    %c0_13 = arith.constant 0 : index
    %18 = vector.load %arg13[%c32, %c0_13] : memref<64x256xbf16, #tpu.memory_space<vmem>>, vector<16x256xbf16>
    tpu.vector_store %arg13[%c32, %c0_13], %17 {strides = array<i32>} : memref<64x256xbf16, #tpu.memory_space<vmem>>, vector<16x256xbf16>,
    %19 = vector.extract_strided_slice %12 {offsets = [0, 768], sizes = [16, 256], strides = [1, 1]} : vector<16x1024xbf16> to vector<16x256xbf16>
    %c48 = arith.constant 48 : index
    %c0_14 = arith.constant 0 : index
    %20 = vector.load %arg13[%c48, %c0_14] : memref<64x256xbf16, #tpu.memory_space<vmem>>, vector<16x256xbf16>
    tpu.vector_store %arg13[%c48, %c0_14], %19 {strides = array<i32>} : memref<64x256xbf16, #tpu.memory_space<vmem>>, vector<16x256xbf16>,
    %c0_15 = arith.constant 0 : index
    %c0_16 = arith.constant 0 : index
    %21 = vector.load %arg13[%c0_15, %c0_16] : memref<64x256xbf16, #tpu.memory_space<vmem>>, vector<64x256xbf16>
    %c0_17 = arith.constant 0 : index
    %c0_18 = arith.constant 0 : index
    %22 = vector.load %arg6[%c0_17, %c0_18] : memref<256x512xbf16, #tpu.memory_space<vmem>>, vector<256x512xbf16>
    %cst_19 = arith.constant dense<0.000000e+00> : vector<64x512xf32>
    %23 = tpu.matmul %21, %22, %cst_19 {dimension_numbers = #tpu.dot_dimension_numbers<[1], [0], [0], [1], [0, 0, 1, 1], [], []>} : vector<64x256xbf16>, vector<256x512xbf16>, vector<64x512xf32> -> vector<64x512xf32>
    %c0_20 = arith.constant 0 : index
    %c0_21 = arith.constant 0 : index
    %24 = vector.load %arg7[%c0_20, %c0_21] : memref<1x512xf32, #tpu.memory_space<vmem>>, vector<1x512xf32>
    %25 = vector.broadcast %24 : vector<1x512xf32> to vector<64x512xf32>
    %26 = arith.addf %23, %25 : vector<64x512xf32>
    %27 = arith.truncf %26 : vector<64x512xf32> to vector<64x512xbf16>
    %28 = vector.extract_strided_slice %27 {offsets = [0, 0], sizes = [64, 128], strides = [1, 1]} : vector<64x512xbf16> to vector<64x128xbf16>
    %c0_22 = arith.constant 0 : index
    %c0_23 = arith.constant 0 : index
    %29 = vector.load %arg14[%c0_22, %c0_23] : memref<256x128xbf16, #tpu.memory_space<vmem>>, vector<64x128xbf16>
    tpu.vector_store %arg14[%c0_22, %c0_23], %28 {strides = array<i32>} : memref<256x128xbf16, #tpu.memory_space<vmem>>, vector<64x128xbf16>,
    %30 = vector.extract_strided_slice %27 {offsets = [0, 128], sizes = [64, 128], strides = [1, 1]} : vector<64x512xbf16> to vector<64x128xbf16>
    %c64 = arith.constant 64 : index
    %c0_24 = arith.constant 0 : index
    %31 = vector.load %arg14[%c64, %c0_24] : memref<256x128xbf16, #tpu.memory_space<vmem>>, vector<64x128xbf16>
    tpu.vector_store %arg14[%c64, %c0_24], %30 {strides = array<i32>} : memref<256x128xbf16, #tpu.memory_space<vmem>>, vector<64x128xbf16>,
    %32 = vector.extract_strided_slice %27 {offsets = [0, 256], sizes = [64, 128], strides = [1, 1]} : vector<64x512xbf16> to vector<64x128xbf16>
    %c128 = arith.constant 128 : index
    %c0_25 = arith.constant 0 : index
    %33 = vector.load %arg14[%c128, %c0_25] : memref<256x128xbf16, #tpu.memory_space<vmem>>, vector<64x128xbf16>
    tpu.vector_store %arg14[%c128, %c0_25], %32 {strides = array<i32>} : memref<256x128xbf16, #tpu.memory_space<vmem>>, vector<64x128xbf16>,
    %34 = vector.extract_strided_slice %27 {offsets = [0, 384], sizes = [64, 128], strides = [1, 1]} : vector<64x512xbf16> to vector<64x128xbf16>
    %c192 = arith.constant 192 : index
    %c0_26 = arith.constant 0 : index
    %35 = vector.load %arg14[%c192, %c0_26] : memref<256x128xbf16, #tpu.memory_space<vmem>>, vector<64x128xbf16>
    tpu.vector_store %arg14[%c192, %c0_26], %34 {strides = array<i32>} : memref<256x128xbf16, #tpu.memory_space<vmem>>, vector<64x128xbf16>,
    %c0_27 = arith.constant 0 : index
    %c0_28 = arith.constant 0 : index
    %36 = vector.load %arg14[%c0_27, %c0_28] : memref<256x128xbf16, #tpu.memory_space<vmem>>, vector<256x128xbf16>
    %c0_29 = arith.constant 0 : index
    %c0_30 = arith.constant 0 : index
    %37 = vector.load %arg8[%c0_29, %c0_30] : memref<128x256xbf16, #tpu.memory_space<vmem>>, vector<128x256xbf16>
    %cst_31 = arith.constant dense<0.000000e+00> : vector<256x256xf32>
    %38 = tpu.matmul %36, %37, %cst_31 {dimension_numbers = #tpu.dot_dimension_numbers<[1], [0], [0], [1], [0, 0, 1, 1], [], []>} : vector<256x128xbf16>, vector<128x256xbf16>, vector<256x256xf32> -> vector<256x256xf32>
    %c0_32 = arith.constant 0 : index
    %c0_33 = arith.constant 0 : index
    %39 = vector.load %arg9[%c0_32, %c0_33] : memref<1x256xf32, #tpu.memory_space<vmem>>, vector<1x256xf32>
    %40 = vector.broadcast %39 : vector<1x256xf32> to vector<256x256xf32>
    %41 = arith.addf %38, %40 : vector<256x256xf32>
    %42 = arith.truncf %41 : vector<256x256xf32> to vector<256x256xbf16>
    %c0_34 = arith.constant 0 : index
    %c0_35 = arith.constant 0 : index
    %43 = vector.load %arg10[%c0_34, %c0_35] : memref<256x16xbf16, #tpu.memory_space<vmem>>, vector<256x16xbf16>
    %cst_36 = arith.constant dense<0.000000e+00> : vector<256x16xf32>
    %44 = tpu.matmul %42, %43, %cst_36 {dimension_numbers = #tpu.dot_dimension_numbers<[1], [0], [0], [1], [0, 0, 1, 1], [], []>} : vector<256x256xbf16>, vector<256x16xbf16>, vector<256x16xf32> -> vector<256x16xf32>
    %c0_37 = arith.constant 0 : index
    %c0_38 = arith.constant 0 : index
    %45 = vector.load %arg11[%c0_37, %c0_38] : memref<1x16xf32, #tpu.memory_space<vmem>>, vector<1x16xf32>
    %46 = vector.broadcast %45 : vector<1x16xf32> to vector<256x16xf32>
    %47 = arith.addf %44, %46 : vector<256x16xf32>
    %48 = arith.negf %47 : vector<256x16xf32>
    %49 = math.exp %48 : vector<256x16xf32>
    %cst_39 = arith.constant 1.000000e+00 : f32
    %50 = vector.broadcast %cst_39 : f32 to vector<256x16xf32>
    %51 = arith.addf %50, %49 : vector<256x16xf32>
    %52 = arith.divf %50, %51 : vector<256x16xf32>
    %c0_40 = arith.constant 0 : index
    %c0_41 = arith.constant 0 : index
    %53 = vector.load %arg12[%c0_40, %c0_41] : memref<256x16xf32, #tpu.memory_space<vmem>>, vector<256x16xf32>
    tpu.vector_store %arg12[%c0_40, %c0_41], %52 {strides = array<i32>} : memref<256x16xf32, #tpu.memory_space<vmem>>, vector<256x16xf32>,
    return
  }
  func.func @transform_0(%arg0: i32) -> (i32, i32) {
    %c0_i32 = arith.constant 0 : i32
    %c0_i32_0 = arith.constant 0 : i32
    return %arg0, %c0_i32 : i32, i32
  }
  func.func @transform_1(%arg0: i32) -> (i32, i32) {
    %c0_i32 = arith.constant 0 : i32
    %c0_i32_0 = arith.constant 0 : i32
    %c0_i32_1 = arith.constant 0 : i32
    return %c0_i32, %c0_i32_0 : i32, i32
  }
  func.func @transform_2(%arg0: i32) -> (i32, i32) {
    %c0_i32 = arith.constant 0 : i32
    %c0_i32_0 = arith.constant 0 : i32
    %c0_i32_1 = arith.constant 0 : i32
    return %c0_i32, %c0_i32_0 : i32, i32
  }
  func.func @transform_3(%arg0: i32) -> (i32, i32) {
    %c0_i32 = arith.constant 0 : i32
    %c0_i32_0 = arith.constant 0 : i32
    %c0_i32_1 = arith.constant 0 : i32
    return %c0_i32, %c0_i32_0 : i32, i32
  }
  func.func @transform_4(%arg0: i32) -> (i32, i32) {
    %c0_i32 = arith.constant 0 : i32
    %c0_i32_0 = arith.constant 0 : i32
    %c0_i32_1 = arith.constant 0 : i32
    return %c0_i32, %c0_i32_0 : i32, i32
  }
  func.func @transform_5(%arg0: i32) -> (i32, i32) {
    %c0_i32 = arith.constant 0 : i32
    %c0_i32_0 = arith.constant 0 : i32
    %c0_i32_1 = arith.constant 0 : i32
    return %c0_i32, %c0_i32_0 : i32, i32
  }
  func.func @transform_6(%arg0: i32) -> (i32, i32) {
    %c0_i32 = arith.constant 0 : i32
    %c0_i32_0 = arith.constant 0 : i32
    %c0_i32_1 = arith.constant 0 : i32
    return %c0_i32, %c0_i32_0 : i32, i32
  }
  func.func @transform_7(%arg0: i32) -> (i32, i32) {
    %c0_i32 = arith.constant 0 : i32
    %c0_i32_0 = arith.constant 0 : i32
    %c0_i32_1 = arith.constant 0 : i32
    return %c0_i32, %c0_i32_0 : i32, i32
  }
  func.func @transform_8(%arg0: i32) -> (i32, i32) {
    %c0_i32 = arith.constant 0 : i32
    %c0_i32_0 = arith.constant 0 : i32
    %c0_i32_1 = arith.constant 0 : i32
    return %c0_i32, %c0_i32_0 : i32, i32
  }
  func.func @transform_9(%arg0: i32) -> (i32, i32) {
    %c0_i32 = arith.constant 0 : i32
    %c0_i32_0 = arith.constant 0 : i32
    %c0_i32_1 = arith.constant 0 : i32
    return %c0_i32, %c0_i32_0 : i32, i32
  }
  func.func @transform_10(%arg0: i32) -> (i32, i32) {
    %c0_i32 = arith.constant 0 : i32
    %c0_i32_0 = arith.constant 0 : i32
    %c0_i32_1 = arith.constant 0 : i32
    return %c0_i32, %c0_i32_0 : i32, i32
  }
  func.func @transform_11(%arg0: i32) -> (i32, i32) {
    %c0_i32 = arith.constant 0 : i32
    %c0_i32_0 = arith.constant 0 : i32
    return %arg0, %c0_i32 : i32, i32
  }
}

</mosaic_0001>

<llo_original>
// kernel: decoder_forward.1
$region0: #{decoder_forward.1}
  #allocation0 [shape = 'u32[]', space=smem, size = 0x4, offset = 0x4, fixed_abs, tag = 'smem constant byte address 0x4 - core index']
  #allocation1 [shape = 'u32[144,128]{1,0:T(1,128)}', space=vmem, size = 0x12000, scoped, tag = 'internal scratch']
  #allocation2 [shape = 'bf16[64,256]{1,0:T(16,128)(2,1)}', space=vmem, size = 0x8000, scoped, tag = 'scratch operand']
  #allocation3 [shape = 'bf16[256,128]{1,0:T(16,128)(2,1)}', space=vmem, size = 0x10000, scoped, tag = 'scratch operand']
  %s0 = inlined_call_operand.vmem [shape: bf16[32,1456], index: 0, kind: input, shape index: {}]
  %s1 = inlined_call_operand.hbm [shape: bf16[1456,728], index: 1, kind: input, shape index: {}]
  %s2 = inlined_call_operand.hbm [shape: f32[1,728], index: 2, kind: input, shape index: {}]
  %s3 = inlined_call_operand.hbm [shape: bf16[728,1024], index: 3, kind: input, shape index: {}]
  %s4 = inlined_call_operand.hbm [shape: f32[1,1024], index: 4, kind: input, shape index: {}]
  %s5 = inlined_call_operand.hbm [shape: bf16[256,512], index: 5, kind: input, shape index: {}]
  %s6 = inlined_call_operand.hbm [shape: f32[1,512], index: 6, kind: input, shape index: {}]
  %s7 = inlined_call_operand.hbm [shape: bf16[128,256], index: 7, kind: input, shape index: {}]
  %s8 = inlined_call_operand.hbm [shape: f32[1,256], index: 8, kind: input, shape index: {}]
  %s9 = inlined_call_operand.vmem [shape: bf16[256,16], index: 9, kind: input, shape index: {}]
  %s10 = inlined_call_operand.hbm [shape: f32[1,16], index: 10, kind: input, shape index: {}]
  %s11 = inlined_call_operand.vmem [shape: f32[512,16], index: 11, kind: output, shape index: {}]
  %s12 = sld [smem:[#allocation0]]
  $region113: #{decoder_forward.1} parent=0
    _
  %s14 = ssub.s32 1, %s12
  %s15 = scalar_select 0, %s14, %s12
  $region1: #{decoder_forward.1} parent=0
    #allocation4 [shape = 'u8[2236416]{0}', space=vmem, size = 0x222000, scoped, tag = 'input window, operand 1, single buffered']
    #allocation5 [shape = 's32[2]{0}', space=sflag, size = 0x8, scoped, tag = 'scoped memory for decoder_forward.1']
    #allocation6 [shape = 'u8[3072]{0}', space=vmem, size = 0xc00, scoped, tag = 'input window, operand 2, single buffered']
    #allocation7 [shape = 's32[1]{0}', space=sflag, size = 0x4, scoped, tag = 'scoped memory for decoder_forward.1']
    #allocation8 [shape = 'u8[1490944]{0}', space=vmem, size = 0x16c000, scoped, tag = 'input window, operand 3, single buffered']
    #allocation9 [shape = 'u8[4096]{0}', space=vmem, size = 0x1000, scoped, tag = 'input window, operand 4, single buffered']
    #allocation10 [shape = 's32[1]{0}', space=sflag, size = 0x4, scoped, tag = 'scoped memory for decoder_forward.1']
    #allocation11 [shape = 'u8[262144]{0}', space=vmem, size = 0x40000, scoped, tag = 'input window, operand 5, single buffered']
    #allocation12 [shape = 'u8[2048]{0}', space=vmem, size = 0x800, scoped, tag = 'input window, operand 6, single buffered']
    #allocation13 [shape = 's32[1]{0}', space=sflag, size = 0x4, scoped, tag = 'scoped memory for decoder_forward.1']
    #allocation14 [shape = 'u8[65536]{0}', space=vmem, size = 0x10000, scoped, tag = 'input window, operand 7, single buffered']
    #allocation15 [shape = 'u8[1024]{0}', space=vmem, size = 0x400, scoped, tag = 'input window, operand 8, single buffered']
    #allocation16 [shape = 's32[1]{0}', space=sflag, size = 0x4, scoped, tag = 'scoped memory for decoder_forward.1']
    #allocation17 [shape = 'u8[512]{0}', space=vmem, size = 0x400, scoped, tag = 'input window, operand 10, single buffered']
    %16 = vsyncpa [#allocation5], 0
    %17 = vsyncpa [#allocation7], 0
    %18 = vsyncpa [#allocation10], 0
    %19 = vsyncpa [#allocation13], 0
    %20 = vsyncpa [#allocation16], 0
    loop: start=0, step=1, limit=4
    $region2: #{decoder_forward.1} parent=1 // loop_pre_header
      _
    $region3: #{decoder_forward.1} parent=1 // loop_header
      %s22 = sphi 0, %s26
      %p23 = scmp.ge.s32.totalorder %s22, 4
      %s32 = sphi 0, %s34
      %s35 = sphi 0, %s32
      %s36 = sphi 0, %s35
      %s52 = sphi 0, %s36
      %s56 = sphi 0, %s56
      %s58 = sphi 0, %s56
      %s59 = sphi 0, %s58
      %s73 = sphi 0, %s59
      %s77 = sphi 0, %s77
      %s79 = sphi 0, %s77
      %s80 = sphi 0, %s79
      %s94 = sphi 0, %s80
      %s98 = sphi 0, %s98
      %s100 = sphi 0, %s98
      %s101 = sphi 0, %s100
      %s115 = sphi 0, %s101
      %s119 = sphi 0, %s119
      %s121 = sphi 0, %s119
      %s122 = sphi 0, %s121
      %s136 = sphi 0, %s122
      %s140 = sphi 0, %s140
      %s142 = sphi 0, %s140
      %s143 = sphi 0, %s142
      %s157 = sphi 0, %s143
      %s161 = sphi 0, %s161
      %s163 = sphi 0, %s161
      %s164 = sphi 0, %s163
      %s178 = sphi 0, %s164
      %s182 = sphi 0, %s182
      %s184 = sphi 0, %s182
      %s185 = sphi 0, %s184
      %s199 = sphi 0, %s185
      %s203 = sphi 0, %s203
      %s205 = sphi 0, %s203
      %s206 = sphi 0, %s205
      %s220 = sphi 0, %s206
      %s224 = sphi 0, %s224
      %s226 = sphi 0, %s224
      %s227 = sphi 0, %s226
      %s241 = sphi 0, %s227
      %s245 = sphi 0, %s245
      %s247 = sphi 0, %s245
      %s248 = sphi 0, %s247
      %s262 = sphi 0, %s248
      %s268 = sphi 0, %s270
      %s271 = sphi 0, %s268
      %s272 = sphi 0, %s271
      %s288 = sphi 0, %s272
    $region4: #{decoder_forward.1} parent=1 // loop_header_branch
      %25 = sbr.rel (%p23) target = $region8
    $region5: #{decoder_forward.1} parent=1 // loop_body
      %s27 = ssub.s32 %s22, 1
      %s28 = ssub.s32 %s22, 2
      %s29 = sadd.s32 %s22, 1
      %s30 = ssub.s32 %s22, %s29
      %p31 = scmp.eq.s32.totalorder %s30, 0
      %s33 = sadd.s32 %s32, 1
      %s34 = scalar_select %p31, %s32, %s33
      %p37 = pneg %p31
      %p38 = scmp.eq.s32.totalorder %s22, 1
      %p39 = por %p37, %p38
      %p40 = scmp.ne.s32.totalorder %s32, %s35
      %p41 = scmp.eq.s32.totalorder %s22, 0
      %p42 = por %p40, %p41
      %p43 = scmp.ne.s32.totalorder %s32, %s35
      %p44 = scmp.eq.s32.totalorder %s27, 1
      %p45 = por %p43, %p44
      %p46 = scmp.ne.s32.totalorder %s35, %s36
      %p47 = scmp.eq.s32.totalorder %s27, 0
      %p48 = por %p46, %p47
      %p49 = scmp.ne.s32.totalorder %s35, %s36
      %p50 = scmp.eq.s32.totalorder %s28, 1
      %p51 = por %p49, %p50
      %p53 = scmp.ne.s32.totalorder %s36, %s52
      %p54 = scmp.eq.s32.totalorder %s28, 0
      %p55 = por %p53, %p54
      %s57 = sadd.s32 %s56, 1
      %p60 = scmp.eq.s32.totalorder %s22, 1
      %p61 = scmp.ne.s32.totalorder %s56, %s58
      %p62 = scmp.eq.s32.totalorder %s22, 0
      %p63 = por %p61, %p62
      %p64 = scmp.ne.s32.totalorder %s56, %s58
      %p65 = scmp.eq.s32.totalorder %s27, 1
      %p66 = por %p64, %p65
      %p67 = scmp.ne.s32.totalorder %s58, %s59
      %p68 = scmp.eq.s32.totalorder %s27, 0
      %p69 = por %p67, %p68
      %p70 = scmp.ne.s32.totalorder %s58, %s59
      %p71 = scmp.eq.s32.totalorder %s28, 1
      %p72 = por %p70, %p71
      %p74 = scmp.ne.s32.totalorder %s59, %s73
      %p75 = scmp.eq.s32.totalorder %s28, 0
      %p76 = por %p74, %p75
      %s78 = sadd.s32 %s77, 1
      %p81 = scmp.eq.s32.totalorder %s22, 1
      %p82 = scmp.ne.s32.totalorder %s77, %s79
      %p83 = scmp.eq.s32.totalorder %s22, 0
      %p84 = por %p82, %p83
      %p85 = scmp.ne.s32.totalorder %s77, %s79
      %p86 = scmp.eq.s32.totalorder %s27, 1
      %p87 = por %p85, %p86
      %p88 = scmp.ne.s32.totalorder %s79, %s80
      %p89 = scmp.eq.s32.totalorder %s27, 0
      %p90 = por %p88, %p89
      %p91 = scmp.ne.s32.totalorder %s79, %s80
      %p92 = scmp.eq.s32.totalorder %s28, 1
      %p93 = por %p91, %p92
      %p95 = scmp.ne.s32.totalorder %s80, %s94
      %p96 = scmp.eq.s32.totalorder %s28, 0
      %p97 = por %p95, %p96
      %s99 = sadd.s32 %s98, 1
      %p102 = scmp.eq.s32.totalorder %s22, 1
      %p103 = scmp.ne.s32.totalorder %s98, %s100
      %p104 = scmp.eq.s32.totalorder %s22, 0
      %p105 = por %p103, %p104
      %p106 = scmp.ne.s32.totalorder %s98, %s100
      %p107 = scmp.eq.s32.totalorder %s27, 1
      %p108 = por %p106, %p107
      %p109 = scmp.ne.s32.totalorder %s100, %s101
      %p110 = scmp.eq.s32.totalorder %s27, 0
      %p111 = por %p109, %p110
      %p112 = scmp.ne.s32.totalorder %s100, %s101
      %p113 = scmp.eq.s32.totalorder %s28, 1
      %p114 = por %p112, %p113
      %p116 = scmp.ne.s32.totalorder %s101, %s115
      %p117 = scmp.eq.s32.totalorder %s28, 0
      %p118 = por %p116, %p117
      %s120 = sadd.s32 %s119, 1
      %p123 = scmp.eq.s32.totalorder %s22, 1
      %p124 = scmp.ne.s32.totalorder %s119, %s121
      %p125 = scmp.eq.s32.totalorder %s22, 0
      %p126 = por %p124, %p125
      %p127 = scmp.ne.s32.totalorder %s119, %s121
      %p128 = scmp.eq.s32.totalorder %s27, 1
      %p129 = por %p127, %p128
      %p130 = scmp.ne.s32.totalorder %s121, %s122
      %p131 = scmp.eq.s32.totalorder %s27, 0
      %p132 = por %p130, %p131
      %p133 = scmp.ne.s32.totalorder %s121, %s122
      %p134 = scmp.eq.s32.totalorder %s28, 1
      %p135 = por %p133, %p134
      %p137 = scmp.ne.s32.totalorder %s122, %s136
      %p138 = scmp.eq.s32.totalorder %s28, 0
      %p139 = por %p137, %p138
      %s141 = sadd.s32 %s140, 1
      %p144 = scmp.eq.s32.totalorder %s22, 1
      %p145 = scmp.ne.s32.totalorder %s140, %s142
      %p146 = scmp.eq.s32.totalorder %s22, 0
      %p147 = por %p145, %p146
      %p148 = scmp.ne.s32.totalorder %s140, %s142
      %p149 = scmp.eq.s32.totalorder %s27, 1
      %p150 = por %p148, %p149
      %p151 = scmp.ne.s32.totalorder %s142, %s143
      %p152 = scmp.eq.s32.totalorder %s27, 0
      %p153 = por %p151, %p152
      %p154 = scmp.ne.s32.totalorder %s142, %s143
      %p155 = scmp.eq.s32.totalorder %s28, 1
      %p156 = por %p154, %p155
      %p158 = scmp.ne.s32.totalorder %s143, %s157
      %p159 = scmp.eq.s32.totalorder %s28, 0
      %p160 = por %p158, %p159
      %s162 = sadd.s32 %s161, 1
      %p165 = scmp.eq.s32.totalorder %s22, 1
      %p166 = scmp.ne.s32.totalorder %s161, %s163
      %p167 = scmp.eq.s32.totalorder %s22, 0
      %p168 = por %p166, %p167
      %p169 = scmp.ne.s32.totalorder %s161, %s163
      %p170 = scmp.eq.s32.totalorder %s27, 1
      %p171 = por %p169, %p170
      %p172 = scmp.ne.s32.totalorder %s163, %s164
      %p173 = scmp.eq.s32.totalorder %s27, 0
      %p174 = por %p172, %p173
      %p175 = scmp.ne.s32.totalorder %s163, %s164
      %p176 = scmp.eq.s32.totalorder %s28, 1
      %p177 = por %p175, %p176
      %p179 = scmp.ne.s32.totalorder %s164, %s178
      %p180 = scmp.eq.s32.totalorder %s28, 0
      %p181 = por %p179, %p180
      %s183 = sadd.s32 %s182, 1
      %p186 = scmp.eq.s32.totalorder %s22, 1
      %p187 = scmp.ne.s32.totalorder %s182, %s184
      %p188 = scmp.eq.s32.totalorder %s22, 0
      %p189 = por %p187, %p188
      %p190 = scmp.ne.s32.totalorder %s182, %s184
      %p191 = scmp.eq.s32.totalorder %s27, 1
      %p192 = por %p190, %p191
      %p193 = scmp.ne.s32.totalorder %s184, %s185
      %p194 = scmp.eq.s32.totalorder %s27, 0
      %p195 = por %p193, %p194
      %p196 = scmp.ne.s32.totalorder %s184, %s185
      %p197 = scmp.eq.s32.totalorder %s28, 1
      %p198 = por %p196, %p197
      %p200 = scmp.ne.s32.totalorder %s185, %s199
      %p201 = scmp.eq.s32.totalorder %s28, 0
      %p202 = por %p200, %p201
      %s204 = sadd.s32 %s203, 1
      %p207 = scmp.eq.s32.totalorder %s22, 1
      %p208 = scmp.ne.s32.totalorder %s203, %s205
      %p209 = scmp.eq.s32.totalorder %s22, 0
      %p210 = por %p208, %p209
      %p211 = scmp.ne.s32.totalorder %s203, %s205
      %p212 = scmp.eq.s32.totalorder %s27, 1
      %p213 = por %p211, %p212
      %p214 = scmp.ne.s32.totalorder %s205, %s206
      %p215 = scmp.eq.s32.totalorder %s27, 0
      %p216 = por %p214, %p215
      %p217 = scmp.ne.s32.totalorder %s205, %s206
      %p218 = scmp.eq.s32.totalorder %s28, 1
      %p219 = por %p217, %p218
      %p221 = scmp.ne.s32.totalorder %s206, %s220
      %p222 = scmp.eq.s32.totalorder %s28, 0
      %p223 = por %p221, %p222
      %s225 = sadd.s32 %s224, 1
      %p228 = scmp.eq.s32.totalorder %s22, 1
      %p229 = scmp.ne.s32.totalorder %s224, %s226
      %p230 = scmp.eq.s32.totalorder %s22, 0
      %p231 = por %p229, %p230
      %p232 = scmp.ne.s32.totalorder %s224, %s226
      %p233 = scmp.eq.s32.totalorder %s27, 1
      %p234 = por %p232, %p233
      %p235 = scmp.ne.s32.totalorder %s226, %s227
      %p236 = scmp.eq.s32.totalorder %s27, 0
      %p237 = por %p235, %p236
      %p238 = scmp.ne.s32.totalorder %s226, %s227
      %p239 = scmp.eq.s32.totalorder %s28, 1
      %p240 = por %p238, %p239
      %p242 = scmp.ne.s32.totalorder %s227, %s241
      %p243 = scmp.eq.s32.totalorder %s28, 0
      %p244 = por %p242, %p243
      %s246 = sadd.s32 %s245, 1
      %p249 = scmp.eq.s32.totalorder %s22, 1
      %p250 = scmp.ne.s32.totalorder %s245, %s247
      %p251 = scmp.eq.s32.totalorder %s22, 0
      %p252 = por %p250, %p251
      %p253 = scmp.ne.s32.totalorder %s245, %s247
      %p254 = scmp.eq.s32.totalorder %s27, 1
      %p255 = por %p253, %p254
      %p256 = scmp.ne.s32.totalorder %s247, %s248
      %p257 = scmp.eq.s32.totalorder %s27, 0
      %p258 = por %p256, %p257
      %p259 = scmp.ne.s32.totalorder %s247, %s248
      %p260 = scmp.eq.s32.totalorder %s28, 1
      %p261 = por %p259, %p260
      %p263 = scmp.ne.s32.totalorder %s248, %s262
      %p264 = scmp.eq.s32.totalorder %s28, 0
      %p265 = por %p263, %p264
      %s266 = ssub.s32 %s22, %s29
      %p267 = scmp.eq.s32.totalorder %s266, 0
      %s269 = sadd.s32 %s268, 1
      %s270 = scalar_select %p267, %s268, %s269
      %p273 = pneg %p267
      %p274 = scmp.eq.s32.totalorder %s22, 1
      %p275 = por %p273, %p274
      %p276 = scmp.ne.s32.totalorder %s268, %s271
      %p277 = scmp.eq.s32.totalorder %s22, 0
      %p278 = por %p276, %p277
      %p279 = scmp.ne.s32.totalorder %s268, %s271
      %p280 = scmp.eq.s32.totalorder %s27, 1
      %p281 = por %p279, %p280
      %p282 = scmp.ne.s32.totalorder %s271, %s272
      %p283 = scmp.eq.s32.totalorder %s27, 0
      %p284 = por %p282, %p283
      %p285 = scmp.ne.s32.totalorder %s271, %s272
      %p286 = scmp.eq.s32.totalorder %s28, 1
      %p287 = por %p285, %p286
      %p289 = scmp.ne.s32.totalorder %s272, %s288
      %p290 = scmp.eq.s32.totalorder %s28, 0
      %p291 = por %p289, %p290
      %p292 = scmp.le.s32.totalorder 1, %s22
      %p293 = scmp.lt.s32.totalorder %s22, 3
      %p294 = pnand %p292, %p293
      %p295 = pneg %p294
      // Predicated region
      $region9: #{decoder_forward.1} parent=5 // pred_check
        _
      $region10: #{decoder_forward.1} parent=5 // pred_check_branch
        %297 = sbr.rel (%p294) target = $region12
      $region11: #{decoder_forward.1} parent=5 // pred_region
        %s298 = ssub.s32 %s22, 1
        // Predicated region
        $region13: #{decoder_forward.1} parent=11 // pred_check
          %p299 = pneg %p69
        $region14: #{decoder_forward.1} parent=11 // pred_check_branch
          %301 = sbr.rel (%p299) target = $region16
        $region15: #{decoder_forward.1} parent=11 // pred_region
          %s303 = ssub.s32 69888, 69888
          %304 = vsyncadd [#allocation5], %s303
          %s305 = sshll.u32 [#allocation4], 4
          %s306 = int_to_ptr.vmem [resolvable:$true] %s305
          %311 = dma.hbm_to_vmem [thread:$0]  %s1, 69888, %s306, [#allocation5], 384, 384, 24
        $region16: #{decoder_forward.1} parent=11 // pred_fallthru
          _
        // Predicated region
        $region17: #{decoder_forward.1} parent=11 // pred_check
          %p312 = pneg %p90
        $region18: #{decoder_forward.1} parent=11 // pred_check_branch
          %314 = sbr.rel (%p312) target = $region20
        $region19: #{decoder_forward.1} parent=11 // pred_region
          %s316 = ssub.s32 96, 96
          %317 = vsyncadd [#allocation7], %s316
          %s319 = sshll.u32 [#allocation6], 4
          %s320 = int_to_ptr.vmem [resolvable:$true] %s319
          %322 = dma.hbm_to_vmem [thread:$0]  %s2, 96, %s320, [#allocation7]
        $region20: #{decoder_forward.1} parent=11 // pred_fallthru
          _
        // Predicated region
        $region21: #{decoder_forward.1} parent=11 // pred_check
          %p323 = pneg %p111
        $region22: #{decoder_forward.1} parent=11 // pred_check_branch
          %325 = sbr.rel (%p323) target = $region24
        $region23: #{decoder_forward.1} parent=11 // pred_region
          %s327 = ssub.s32 46592, 46592
          %328 = vsyncadd [#allocation7], %s327
          %s329 = sshll.u32 [#allocation8], 4
          %s330 = int_to_ptr.vmem [resolvable:$true] %s329
          %335 = dma.hbm_to_vmem [thread:$0]  %s3, 46592, %s330, [#allocation7], 512, 512, 32
        $region24: #{decoder_forward.1} parent=11 // pred_fallthru
          _
        // Predicated region
        $region25: #{decoder_forward.1} parent=11 // pred_check
          %p336 = pneg %p132
        $region26: #{decoder_forward.1} parent=11 // pred_check_branch
          %338 = sbr.rel (%p336) target = $region28
        $region27: #{decoder_forward.1} parent=11 // pred_region
          %s340 = ssub.s32 128, 128
          %341 = vsyncadd [#allocation10], %s340
          %s343 = sshll.u32 [#allocation9], 4
          %s344 = int_to_ptr.vmem [resolvable:$true] %s343
          %346 = dma.hbm_to_vmem [thread:$0]  %s4, 128, %s344, [#allocation10]
        $region28: #{decoder_forward.1} parent=11 // pred_fallthru
          _
        // Predicated region
        $region29: #{decoder_forward.1} parent=11 // pred_check
          %p347 = pneg %p153
        $region30: #{decoder_forward.1} parent=11 // pred_check_branch
          %349 = sbr.rel (%p347) target = $region32
        $region31: #{decoder_forward.1} parent=11 // pred_region
          %s351 = ssub.s32 8192, 8192
          %352 = vsyncadd [#allocation10], %s351
          %s353 = sshll.u32 [#allocation11], 4
          %s354 = int_to_ptr.vmem [resolvable:$true] %s353
          %359 = dma.hbm_to_vmem [thread:$0]  %s5, 8192, %s354, [#allocation10], 256, 256, 16
        $region32: #{decoder_forward.1} parent=11 // pred_fallthru
          _
        // Predicated region
        $region33: #{decoder_forward.1} parent=11 // pred_check
          %p360 = pneg %p174
        $region34: #{decoder_forward.1} parent=11 // pred_check_branch
          %362 = sbr.rel (%p360) target = $region36
        $region35: #{decoder_forward.1} parent=11 // pred_region
          %s364 = ssub.s32 64, 64
          %365 = vsyncadd [#allocation13], %s364
          %s367 = sshll.u32 [#allocation12], 4
          %s368 = int_to_ptr.vmem [resolvable:$true] %s367
          %370 = dma.hbm_to_vmem [thread:$0]  %s6, 64, %s368, [#allocation13]
        $region36: #{decoder_forward.1} parent=11 // pred_fallthru
          _
        // Predicated region
        $region37: #{decoder_forward.1} parent=11 // pred_check
          %p371 = pneg %p195
        $region38: #{decoder_forward.1} parent=11 // pred_check_branch
          %373 = sbr.rel (%p371) target = $region40
        $region39: #{decoder_forward.1} parent=11 // pred_region
          %s375 = ssub.s32 2048, 2048
          %376 = vsyncadd [#allocation13], %s375
          %s377 = sshll.u32 [#allocation14], 4
          %s378 = int_to_ptr.vmem [resolvable:$true] %s377
          %383 = dma.hbm_to_vmem [thread:$0]  %s7, 2048, %s378, [#allocation13], 128, 128, 8
        $region40: #{decoder_forward.1} parent=11 // pred_fallthru
          _
        // Predicated region
        $region41: #{decoder_forward.1} parent=11 // pred_check
          %p384 = pneg %p216
        $region42: #{decoder_forward.1} parent=11 // pred_check_branch
          %386 = sbr.rel (%p384) target = $region44
        $region43: #{decoder_forward.1} parent=11 // pred_region
          %s388 = ssub.s32 32, 32
          %389 = vsyncadd [#allocation16], %s388
          %s391 = sshll.u32 [#allocation15], 4
          %s392 = int_to_ptr.vmem [resolvable:$true] %s391
          %394 = dma.hbm_to_vmem [thread:$0]  %s8, 32, %s392, [#allocation16]
        $region44: #{decoder_forward.1} parent=11 // pred_fallthru
          _
        // Predicated region
        $region45: #{decoder_forward.1} parent=11 // pred_check
          %p395 = pneg %p237
        $region46: #{decoder_forward.1} parent=11 // pred_check_branch
          %397 = sbr.rel (%p395) target = $region48
        $region47: #{decoder_forward.1} parent=11 // pred_region
          _
        $region48: #{decoder_forward.1} parent=11 // pred_fallthru
          _
        // Predicated region
        $region49: #{decoder_forward.1} parent=11 // pred_check
          %p398 = pneg %p258
        $region50: #{decoder_forward.1} parent=11 // pred_check_branch
          %400 = sbr.rel (%p398) target = $region52
        $region51: #{decoder_forward.1} parent=11 // pred_region
          %s402 = ssub.s32 16, 16
          %403 = vsyncadd [#allocation16], %s402
          %s405 = sshll.u32 [#allocation17], 4
          %s406 = int_to_ptr.vmem [resolvable:$true] %s405
          %408 = dma.hbm_to_vmem [thread:$0]  %s10, 16, %s406, [#allocation16]
        $region52: #{decoder_forward.1} parent=11 // pred_fallthru
          _
      $region12: #{decoder_forward.1} parent=5 // pred_fallthru
        _
      %p409 = scmp.lt.s32.totalorder %s22, 2
      // Predicated region
      $region53: #{decoder_forward.1} parent=5 // pred_check
        %p410 = pneg %p409
      $region54: #{decoder_forward.1} parent=5 // pred_check_branch
        %412 = sbr.rel (%p410) target = $region56
      $region55: #{decoder_forward.1} parent=5 // pred_region
        // Predicated region
        $region57: #{decoder_forward.1} parent=55 // pred_check
          %p413 = pneg %p42
        $region58: #{decoder_forward.1} parent=55 // pred_check_branch
          %415 = sbr.rel (%p413) target = $region60
        $region59: #{decoder_forward.1} parent=55 // pred_region
          %s416 = smul.u32 2, %s22
          %p417 = scmp.lt.s32.totalorder %s416, 3
          %s418 = scalar_select %p417, %s416, 3
          %s419 = smul.addr %s418, 12
          %s420 = smul.addr %s419, 4
          %s421 = scalar_lea.vmem %s0, %s420
          %s422 = smul.u32 2, %s22
        $region60: #{decoder_forward.1} parent=55 // pred_fallthru
          _
      $region56: #{decoder_forward.1} parent=5 // pred_fallthru
        _
      %p423 = scmp.le.s32.totalorder 1, %s22
      %p424 = scmp.lt.s32.totalorder %s22, 3
      %p425 = pnand %p423, %p424
      %p426 = pneg %p425
      // Predicated region
      $region61: #{decoder_forward.1} parent=5 // pred_check
        _
      $region62: #{decoder_forward.1} parent=5 // pred_check_branch
        %428 = sbr.rel (%p425) target = $region64
      $region63: #{decoder_forward.1} parent=5 // pred_region
        %s429 = ssub.s32 %s22, 1
        // Predicated region
        $region65: #{decoder_forward.1} parent=63 // pred_check
          %p430 = pneg %p69
        $region66: #{decoder_forward.1} parent=63 // pred_check_branch
          %432 = sbr.rel (%p430) target = $region68
        $region67: #{decoder_forward.1} parent=63 // pred_region
          %433 = dma.done [#allocation5], 69888
        $region68: #{decoder_forward.1} parent=63 // pred_fallthru
          _
        // Predicated region
        $region69: #{decoder_forward.1} parent=63 // pred_check
          %p434 = pneg %p90
        $region70: #{decoder_forward.1} parent=63 // pred_check_branch
          %436 = sbr.rel (%p434) target = $region72
        $region71: #{decoder_forward.1} parent=63 // pred_region
          %437 = dma.done [#allocation7], 96
        $region72: #{decoder_forward.1} parent=63 // pred_fallthru
          _
        // Predicated region
        $region73: #{decoder_forward.1} parent=63 // pred_check
          %p438 = pneg %p111
        $region74: #{decoder_forward.1} parent=63 // pred_check_branch
          %440 = sbr.rel (%p438) target = $region76
        $region75: #{decoder_forward.1} parent=63 // pred_region
          %441 = dma.done [#allocation7], 46592
        $region76: #{decoder_forward.1} parent=63 // pred_fallthru
          _
        // Predicated region
        $region77: #{decoder_forward.1} parent=63 // pred_check
          %p442 = pneg %p132
        $region78: #{decoder_forward.1} parent=63 // pred_check_branch
          %444 = sbr.rel (%p442) target = $region80
        $region79: #{decoder_forward.1} parent=63 // pred_region
          %445 = dma.done [#allocation10], 128
        $region80: #{decoder_forward.1} parent=63 // pred_fallthru
          _
        // Predicated region
        $region81: #{decoder_forward.1} parent=63 // pred_check
          %p446 = pneg %p153
        $region82: #{decoder_forward.1} parent=63 // pred_check_branch
          %448 = sbr.rel (%p446) target = $region84
        $region83: #{decoder_forward.1} parent=63 // pred_region
          %449 = dma.done [#allocation10], 8192
        $region84: #{decoder_forward.1} parent=63 // pred_fallthru
          _
        // Predicated region
        $region85: #{decoder_forward.1} parent=63 // pred_check
          %p450 = pneg %p174
        $region86: #{decoder_forward.1} parent=63 // pred_check_branch
          %452 = sbr.rel (%p450) target = $region88
        $region87: #{decoder_forward.1} parent=63 // pred_region
          %453 = dma.done [#allocation13], 64
        $region88: #{decoder_forward.1} parent=63 // pred_fallthru
          _
        // Predicated region
        $region89: #{decoder_forward.1} parent=63 // pred_check
          %p454 = pneg %p195
        $region90: #{decoder_forward.1} parent=63 // pred_check_branch
          %456 = sbr.rel (%p454) target = $region92
        $region91: #{decoder_forward.1} parent=63 // pred_region
          %457 = dma.done [#allocation13], 2048
        $region92: #{decoder_forward.1} parent=63 // pred_fallthru
          _
        // Predicated region
        $region93: #{decoder_forward.1} parent=63 // pred_check
          %p458 = pneg %p216
        $region94: #{decoder_forward.1} parent=63 // pred_check_branch
          %460 = sbr.rel (%p458) target = $region96
        $region95: #{decoder_forward.1} parent=63 // pred_region
          %461 = dma.done [#allocation16], 32
        $region96: #{decoder_forward.1} parent=63 // pred_fallthru
          _
        // Predicated region
        $region97: #{decoder_forward.1} parent=63 // pred_check
          %p462 = pneg %p258
        $region98: #{decoder_forward.1} parent=63 // pred_check_branch
          %464 = sbr.rel (%p462) target = $region100
        $region99: #{decoder_forward.1} parent=63 // pred_region
          %465 = dma.done [#allocation16], 16
        $region100: #{decoder_forward.1} parent=63 // pred_fallthru
          _
        %s466 = smul.u32 2, %s27
        %p467 = scmp.lt.s32.totalorder %s466, 3
        %s468 = scalar_select %p467, %s466, 3
        %s469 = smul.addr %s468, 12
        %s470 = smul.addr %s469, 4
        %s471 = scalar_lea.vmem %s0, %s470
        %p472 = pneg %p48
        %p473 = pneg %p45
        %p474 = pneg %p69
        %p475 = pneg %p66
        %p476 = pneg %p90
        %p477 = pneg %p87
        %p478 = pneg %p111
        %p479 = pneg %p108
        %p480 = pneg %p132
        %p481 = pneg %p129
        %p482 = pneg %p153
        %p483 = pneg %p150
        %p484 = pneg %p174
        %p485 = pneg %p171
        %p486 = pneg %p195
        %p487 = pneg %p192
        %p488 = pneg %p216
        %p489 = pneg %p213
        %p490 = pneg %p237
        %p491 = pneg %p234
        %p492 = pneg %p258
        %p493 = pneg %p255
        %p494 = pneg %p284
        %p495 = pneg %p281
        %s496 = smul.u32 32, %s27
        %p497 = scmp.lt.s32.totalorder %s496, 63
        %s498 = scalar_select %p497, %s496, 63
        %s499 = smul.addr %s498, 8
        %s500 = scalar_lea.vmem %s11, %s499
        %s501 = smul.u32 2, %s27
        %p502 = scmp.lt.s32.totalorder %s501, 3
        %s503 = scalar_select %p502, %s501, 3
        %s504 = smul.addr %s503, 12
        %s505 = smul.addr %s504, 4
        %s506 = scalar_lea.vmem %s0, %s505
        %s507 = smul.u32 2, %s27
        %s508 = smul.u32 32, %s27
        %p509 = scmp.lt.s32.totalorder %s508, 63
        %s510 = scalar_select %p509, %s508, 63
        %s511 = smul.addr %s510, 8
        %s512 = scalar_lea.vmem %s11, %s511
        %s513 = smul.u32 32, %s27
        %v515 = vld [vmem:[%s506] sm:$0xff]
        %v516 = vld [vmem:[%s506 + $0x8] sm:$0xff]
        %v517 = vld [vmem:[%s506 + $0x10] sm:$0xff]
        %v518 = vld [vmem:[%s506 + $0x18] sm:$0xff]
        %v519 = vld [vmem:[%s506 + $0x20] sm:$0xff]
        %v520 = vld [vmem:[%s506 + $0x28] sm:$0xff]
        %v521 = vld [vmem:[%s506 + $0x30] sm:$0xff]
        %v522 = vld [vmem:[%s506 + $0x38] sm:$0xff]
        %v523 = vld [vmem:[%s506 + $0x40] sm:$0xff]
        %v524 = vld [vmem:[%s506 + $0x48] sm:$0xff]
        %v525 = vld [vmem:[%s506 + $0x50] sm:$0xff]
        %v526 = vld [vmem:[%s506 + $0x58] sm:$0xff]
        %v527 = vld [vmem:[#allocation4] sm:$0xff]
        %v528 = vld [vmem:[#allocation4 + $0x8] sm:$0xff]
        %v529 = vld [vmem:[#allocation4 + $0x10] sm:$0xff]
        %v530 = vld [vmem:[#allocation4 + $0x18] sm:$0xff]
        %v531 = vld [vmem:[#allocation4 + $0x20] sm:$0xff]
        %v532 = vld [vmem:[#allocation4 + $0x28] sm:$0xff]
        %v533 = vld [vmem:[#allocation4 + $0x30] sm:$0xff]
        %v534 = vld [vmem:[#allocation4 + $0x38] sm:$0xff]
        %v535 = vld [vmem:[#allocation4 + $0x40] sm:$0xff]
        %v536 = vld [vmem:[#allocation4 + $0x48] sm:$0xff]
        %v537 = vld [vmem:[#allocation4 + $0x50] sm:$0xff]
        %v538 = vld [vmem:[#allocation4 + $0x58] sm:$0xff]
        %v539 = vld [vmem:[#allocation4 + $0x60] sm:$0xff]
        %v540 = vld [vmem:[#allocation4 + $0x68] sm:$0xff]
        %v541 = vld [vmem:[#allocation4 + $0x70] sm:$0xff]
        %v542 = vld [vmem:[#allocation4 + $0x78] sm:$0xff]
        %v543 = vld [vmem:[#allocation4 + $0x80] sm:$0xff]
        %v544 = vld [vmem:[#allocation4 + $0x88] sm:$0xff]
        %v545 = vld [vmem:[#allocation4 + $0x90] sm:$0xff]
        %v546 = vld [vmem:[#allocation4 + $0x98] sm:$0xff]
        %v547 = vld [vmem:[#allocation4 + $0xa0] sm:$0xff]
        %v548 = vld [vmem:[#allocation4 + $0xa8] sm:$0xff]
        %v549 = vld [vmem:[#allocation4 + $0xb0] sm:$0xff]
        %v550 = vld [vmem:[#allocation4 + $0xb8] sm:$0xff]
        %v551 = vld [vmem:[#allocation4 + $0xc0] sm:$0xff]
        %v552 = vld [vmem:[#allocation4 + $0xc8] sm:$0xff]
        %v553 = vld [vmem:[#allocation4 + $0xd0] sm:$0xff]
        %v554 = vld [vmem:[#allocation4 + $0xd8] sm:$0xff]
        %v555 = vld [vmem:[#allocation4 + $0xe0] sm:$0xff]
        %v556 = vld [vmem:[#allocation4 + $0xe8] sm:$0xff]
        %v557 = vld [vmem:[#allocation4 + $0xf0] sm:$0xff]
        %v558 = vld [vmem:[#allocation4 + $0xf8] sm:$0xff]
        %v559 = vld [vmem:[#allocation4 + $0x100] sm:$0xff]
        %v560 = vld [vmem:[#allocation4 + $0x108] sm:$0xff]
        %v561 = vld [vmem:[#allocation4 + $0x110] sm:$0xff]
        %v562 = vld [vmem:[#allocation4 + $0x118] sm:$0xff]
        %v563 = vld [vmem:[#allocation4 + $0x120] sm:$0xff]
        %v564 = vld [vmem:[#allocation4 + $0x128] sm:$0xff]
        %v565 = vld [vmem:[#allocation4 + $0x130] sm:$0xff]
        %v566 = vld [vmem:[#allocation4 + $0x138] sm:$0xff]
        %v567 = vld [vmem:[#allocation4 + $0x140] sm:$0xff]
        %v568 = vld [vmem:[#allocation4 + $0x148] sm:$0xff]
        %v569 = vld [vmem:[#allocation4 + $0x150] sm:$0xff]
        %v570 = vld [vmem:[#allocation4 + $0x158] sm:$0xff]
        %v571 = vld [vmem:[#allocation4 + $0x160] sm:$0xff]
        %v572 = vld [vmem:[#allocation4 + $0x168] sm:$0xff]
        %v573 = vld [vmem:[#allocation4 + $0x170] sm:$0xff]
        %v574 = vld [vmem:[#allocation4 + $0x178] sm:$0xff]
        %v575 = vld [vmem:[#allocation4 + $0x180] sm:$0xff]
        %v576 = vld [vmem:[#allocation4 + $0x188] sm:$0xff]
        %v577 = vld [vmem:[#allocation4 + $0x190] sm:$0xff]
        %v578 = vld [vmem:[#allocation4 + $0x198] sm:$0xff]
        %v579 = vld [vmem:[#allocation4 + $0x1a0] sm:$0xff]
        %v580 = vld [vmem:[#allocation4 + $0x1a8] sm:$0xff]
        %v581 = vld [vmem:[#allocation4 + $0x1b0] sm:$0xff]
        %v582 = vld [vmem:[#allocation4 + $0x1b8] sm:$0xff]
        %v583 = vld [vmem:[#allocation4 + $0x1c0] sm:$0xff]
        %v584 = vld [vmem:[#allocation4 + $0x1c8] sm:$0xff]
        %v585 = vld [vmem:[#allocation4 + $0x1d0] sm:$0xff]
        %v586 = vld [vmem:[#allocation4 + $0x1d8] sm:$0xff]
        %v587 = vld [vmem:[#allocation4 + $0x1e0] sm:$0xff]
        %v588 = vld [vmem:[#allocation4 + $0x1e8] sm:$0xff]
        %v589 = vld [vmem:[#allocation4 + $0x1f0] sm:$0xff]
        %v590 = vld [vmem:[#allocation4 + $0x1f8] sm:$0xff]
        %v591 = vld [vmem:[#allocation4 + $0x200] sm:$0xff]
        %v592 = vld [vmem:[#allocation4 + $0x208] sm:$0xff]
        %v593 = vld [vmem:[#allocation4 + $0x210] sm:$0xff]
        %v594 = vld [vmem:[#allocation4 + $0x218] sm:$0xff]
        %v595 = vld [vmem:[#allocation4 + $0x220] sm:$0xff]
        %v596 = vld [vmem:[#allocation4 + $0x228] sm:$0xff]
        %v597 = vld [vmem:[#allocation4 + $0x230] sm:$0xff]
        %v598 = vld [vmem:[#allocation4 + $0x238] sm:$0xff]
        %v599 = vld [vmem:[#allocation4 + $0x240] sm:$0xff]
        %v600 = vld [vmem:[#allocation4 + $0x248] sm:$0xff]
        %v601 = vld [vmem:[#allocation4 + $0x250] sm:$0xff]
        %v602 = vld [vmem:[#allocation4 + $0x258] sm:$0xff]
        %v603 = vld [vmem:[#allocation4 + $0x260] sm:$0xff]
        %v604 = vld [vmem:[#allocation4 + $0x268] sm:$0xff]
        %v605 = vld [vmem:[#allocation4 + $0x270] sm:$0xff]
        %v606 = vld [vmem:[#allocation4 + $0x278] sm:$0xff]
        %v607 = vld [vmem:[#allocation4 + $0x280] sm:$0xff]
        %v608 = vld [vmem:[#allocation4 + $0x288] sm:$0xff]
        %v609 = vld [vmem:[#allocation4 + $0x290] sm:$0xff]
        %v610 = vld [vmem:[#allocation4 + $0x298] sm:$0xff]
        %v611 = vld [vmem:[#allocation4 + $0x2a0] sm:$0xff]
        %v612 = vld [vmem:[#allocation4 + $0x2a8] sm:$0xff]
        %v613 = vld [vmem:[#allocation4 + $0x2b0] sm:$0xff]
        %v614 = vld [vmem:[#allocation4 + $0x2b8] sm:$0xff]
        %v615 = vld [vmem:[#allocation4 + $0x2c0] sm:$0xff]
        %v616 = vld [vmem:[#allocation4 + $0x2c8] sm:$0xff]
        %v617 = vld [vmem:[#allocation4 + $0x2d0] sm:$0xff]
        %v618 = vld [vmem:[#allocation4 + $0x2d8] sm:$0xff]
        %v619 = vld [vmem:[#allocation4 + $0x2e0] sm:$0xff]
        %v620 = vld [vmem:[#allocation4 + $0x2e8] sm:$0xff]
        %v621 = vld [vmem:[#allocation4 + $0x2f0] sm:$0xff]
        %v622 = vld [vmem:[#allocation4 + $0x2f8] sm:$0xff]
        %v623 = vld [vmem:[#allocation4 + $0x300] sm:$0xff]
        %v624 = vld [vmem:[#allocation4 + $0x308] sm:$0xff]
        %v625 = vld [vmem:[#allocation4 + $0x310] sm:$0xff]
        %v626 = vld [vmem:[#allocation4 + $0x318] sm:$0xff]
        %v627 = vld [vmem:[#allocation4 + $0x320] sm:$0xff]
        %v628 = vld [vmem:[#allocation4 + $0x328] sm:$0xff]
        %v629 = vld [vmem:[#allocation4 + $0x330] sm:$0xff]
        %v630 = vld [vmem:[#allocation4 + $0x338] sm:$0xff]
        %v631 = vld [vmem:[#allocation4 + $0x340] sm:$0xff]
        %v632 = vld [vmem:[#allocation4 + $0x348] sm:$0xff]
        %v633 = vld [vmem:[#allocation4 + $0x350] sm:$0xff]
        %v634 = vld [vmem:[#allocation4 + $0x358] sm:$0xff]
        %v635 = vld [vmem:[#allocation4 + $0x360] sm:$0xff]
        %v636 = vld [vmem:[#allocation4 + $0x368] sm:$0xff]
        %v637 = vld [vmem:[#allocation4 + $0x370] sm:$0xff]
        %v638 = vld [vmem:[#allocation4 + $0x378] sm:$0xff]
        %v639 = vld [vmem:[#allocation4 + $0x380] sm:$0xff]
        %v640 = vld [vmem:[#allocation4 + $0x388] sm:$0xff]
        %v641 = vld [vmem:[#allocation4 + $0x390] sm:$0xff]
        %v642 = vld [vmem:[#allocation4 + $0x398] sm:$0xff]
        %v643 = vld [vmem:[#allocation4 + $0x3a0] sm:$0xff]
        %v644 = vld [vmem:[#allocation4 + $0x3a8] sm:$0xff]
        %v645 = vld [vmem:[#allocation4 + $0x3b0] sm:$0xff]
        %v646 = vld [vmem:[#allocation4 + $0x3b8] sm:$0xff]
        %v647 = vld [vmem:[#allocation4 + $0x3c0] sm:$0xff]
        %v648 = vld [vmem:[#allocation4 + $0x3c8] sm:$0xff]
        %v649 = vld [vmem:[#allocation4 + $0x3d0] sm:$0xff]
        %v650 = vld [vmem:[#allocation4 + $0x3d8] sm:$0xff]
        %v651 = vld [vmem:[#allocation4 + $0x3e0] sm:$0xff]
        %v652 = vld [vmem:[#allocation4 + $0x3e8] sm:$0xff]
        %v653 = vld [vmem:[#allocation4 + $0x3f0] sm:$0xff]
        %v654 = vld [vmem:[#allocation4 + $0x3f8] sm:$0xff]
        %v655 = vld [vmem:[#allocation4 + $0x400] sm:$0xff]
        %v656 = vld [vmem:[#allocation4 + $0x408] sm:$0xff]
        %v657 = vld [vmem:[#allocation4 + $0x410] sm:$0xff]
        %v658 = vld [vmem:[#allocation4 + $0x418] sm:$0xff]
        %v659 = vld [vmem:[#allocation4 + $0x420] sm:$0xff]
        %v660 = vld [vmem:[#allocation4 + $0x428] sm:$0xff]
        %v661 = vld [vmem:[#allocation4 + $0x430] sm:$0xff]
        %v662 = vld [vmem:[#allocation4 + $0x438] sm:$0xff]
        %v663 = vld [vmem:[#allocation4 + $0x440] sm:$0xff]
        %v664 = vld [vmem:[#allocation4 + $0x448] sm:$0xff]
        %v665 = vld [vmem:[#allocation4 + $0x450] sm:$0xff]
        %v666 = vld [vmem:[#allocation4 + $0x458] sm:$0xff]
        %v667 = vld [vmem:[#allocation4 + $0x460] sm:$0xff]
        %v668 = vld [vmem:[#allocation4 + $0x468] sm:$0xff]
        %v669 = vld [vmem:[#allocation4 + $0x470] sm:$0xff]
        %v670 = vld [vmem:[#allocation4 + $0x478] sm:$0xff]
        %v671 = vld [vmem:[#allocation4 + $0x480] sm:$0xff]
        %v672 = vld [vmem:[#allocation4 + $0x488] sm:$0xff]
        %v673 = vld [vmem:[#allocation4 + $0x490] sm:$0xff]
        %v674 = vld [vmem:[#allocation4 + $0x498] sm:$0xff]
        %v675 = vld [vmem:[#allocation4 + $0x4a0] sm:$0xff]
        %v676 = vld [vmem:[#allocation4 + $0x4a8] sm:$0xff]
        %v677 = vld [vmem:[#allocation4 + $0x4b0] sm:$0xff]
        %v678 = vld [vmem:[#allocation4 + $0x4b8] sm:$0xff]
        %v679 = vld [vmem:[#allocation4 + $0x4c0] sm:$0xff]
        %v680 = vld [vmem:[#allocation4 + $0x4c8] sm:$0xff]
        %v681 = vld [vmem:[#allocation4 + $0x4d0] sm:$0xff]
        %v682 = vld [vmem:[#allocation4 + $0x4d8] sm:$0xff]
        %v683 = vld [vmem:[#allocation4 + $0x4e0] sm:$0xff]
        %v684 = vld [vmem:[#allocation4 + $0x4e8] sm:$0xff]
        %v685 = vld [vmem:[#allocation4 + $0x4f0] sm:$0xff]
        %v686 = vld [vmem:[#allocation4 + $0x4f8] sm:$0xff]
        %v687 = vld [vmem:[#allocation4 + $0x500] sm:$0xff]
        %v688 = vld [vmem:[#allocation4 + $0x508] sm:$0xff]
        %v689 = vld [vmem:[#allocation4 + $0x510] sm:$0xff]
        %v690 = vld [vmem:[#allocation4 + $0x518] sm:$0xff]
        %v691 = vld [vmem:[#allocation4 + $0x520] sm:$0xff]
        %v692 = vld [vmem:[#allocation4 + $0x528] sm:$0xff]
        %v693 = vld [vmem:[#allocation4 + $0x530] sm:$0xff]
        %v694 = vld [vmem:[#allocation4 + $0x538] sm:$0xff]
        %v695 = vld [vmem:[#allocation4 + $0x540] sm:$0xff]
        %v696 = vld [vmem:[#allocation4 + $0x548] sm:$0xff]
        %v697 = vld [vmem:[#allocation4 + $0x550] sm:$0xff]
        %v698 = vld [vmem:[#allocation4 + $0x558] sm:$0xff]
        %v699 = vld [vmem:[#allocation4 + $0x560] sm:$0xff]
        %v700 = vld [vmem:[#allocation4 + $0x568] sm:$0xff]
        %v701 = vld [vmem:[#allocation4 + $0x570] sm:$0xff]
        %v702 = vld [vmem:[#allocation4 + $0x578] sm:$0xff]
        %v703 = vld [vmem:[#allocation4 + $0x580] sm:$0xff]
        %v704 = vld [vmem:[#allocation4 + $0x588] sm:$0xff]
        %v705 = vld [vmem:[#allocation4 + $0x590] sm:$0xff]
        %v706 = vld [vmem:[#allocation4 + $0x598] sm:$0xff]
        %v707 = vld [vmem:[#allocation4 + $0x5a0] sm:$0xff]
        %v708 = vld [vmem:[#allocation4 + $0x5a8] sm:$0xff]
        %v709 = vld [vmem:[#allocation4 + $0x5b0] sm:$0xff]
        %v710 = vld [vmem:[#allocation4 + $0x5b8] sm:$0xff]
        %v711 = vld [vmem:[#allocation4 + $0x5c0] sm:$0xff]
        %v712 = vld [vmem:[#allocation4 + $0x5c8] sm:$0xff]
        %v713 = vld [vmem:[#allocation4 + $0x5d0] sm:$0xff]
        %v714 = vld [vmem:[#allocation4 + $0x5d8] sm:$0xff]
        %v715 = vld [vmem:[#allocation4 + $0x5e0] sm:$0xff]
        %v716 = vld [vmem:[#allocation4 + $0x5e8] sm:$0xff]
        %v717 = vld [vmem:[#allocation4 + $0x5f0] sm:$0xff]
        %v718 = vld [vmem:[#allocation4 + $0x5f8] sm:$0xff]
        %v719 = vld [vmem:[#allocation4 + $0x600] sm:$0xff]
        %v720 = vld [vmem:[#allocation4 + $0x608] sm:$0xff]
        %v721 = vld [vmem:[#allocation4 + $0x610] sm:$0xff]
        %v722 = vld [vmem:[#allocation4 + $0x618] sm:$0xff]
        %v723 = vld [vmem:[#allocation4 + $0x620] sm:$0xff]
        %v724 = vld [vmem:[#allocation4 + $0x628] sm:$0xff]
        %v725 = vld [vmem:[#allocation4 + $0x630] sm:$0xff]
        %v726 = vld [vmem:[#allocation4 + $0x638] sm:$0xff]
        %v727 = vld [vmem:[#allocation4 + $0x640] sm:$0xff]
        %v728 = vld [vmem:[#allocation4 + $0x648] sm:$0xff]
        %v729 = vld [vmem:[#allocation4 + $0x650] sm:$0xff]
        %v730 = vld [vmem:[#allocation4 + $0x658] sm:$0xff]
        %v731 = vld [vmem:[#allocation4 + $0x660] sm:$0xff]
        %v732 = vld [vmem:[#allocation4 + $0x668] sm:$0xff]
        %v733 = vld [vmem:[#allocation4 + $0x670] sm:$0xff]
        %v734 = vld [vmem:[#allocation4 + $0x678] sm:$0xff]
        %v735 = vld [vmem:[#allocation4 + $0x680] sm:$0xff]
        %v736 = vld [vmem:[#allocation4 + $0x688] sm:$0xff]
        %v737 = vld [vmem:[#allocation4 + $0x690] sm:$0xff]
        %v738 = vld [vmem:[#allocation4 + $0x698] sm:$0xff]
        %v739 = vld [vmem:[#allocation4 + $0x6a0] sm:$0xff]
        %v740 = vld [vmem:[#allocation4 + $0x6a8] sm:$0xff]
        %v741 = vld [vmem:[#allocation4 + $0x6b0] sm:$0xff]
        %v742 = vld [vmem:[#allocation4 + $0x6b8] sm:$0xff]
        %v743 = vld [vmem:[#allocation4 + $0x6c0] sm:$0xff]
        %v744 = vld [vmem:[#allocation4 + $0x6c8] sm:$0xff]
        %v745 = vld [vmem:[#allocation4 + $0x6d0] sm:$0xff]
        %v746 = vld [vmem:[#allocation4 + $0x6d8] sm:$0xff]
        %v747 = vld [vmem:[#allocation4 + $0x6e0] sm:$0xff]
        %v748 = vld [vmem:[#allocation4 + $0x6e8] sm:$0xff]
        %v749 = vld [vmem:[#allocation4 + $0x6f0] sm:$0xff]
        %v750 = vld [vmem:[#allocation4 + $0x6f8] sm:$0xff]
        %v751 = vld [vmem:[#allocation4 + $0x700] sm:$0xff]
        %v752 = vld [vmem:[#allocation4 + $0x708] sm:$0xff]
        %v753 = vld [vmem:[#allocation4 + $0x710] sm:$0xff]
        %v754 = vld [vmem:[#allocation4 + $0x718] sm:$0xff]
        %v755 = vld [vmem:[#allocation4 + $0x720] sm:$0xff]
        %v756 = vld [vmem:[#allocation4 + $0x728] sm:$0xff]
        %v757 = vld [vmem:[#allocation4 + $0x730] sm:$0xff]
        %v758 = vld [vmem:[#allocation4 + $0x738] sm:$0xff]
        %v759 = vld [vmem:[#allocation4 + $0x740] sm:$0xff]
        %v760 = vld [vmem:[#allocation4 + $0x748] sm:$0xff]
        %v761 = vld [vmem:[#allocation4 + $0x750] sm:$0xff]
        %v762 = vld [vmem:[#allocation4 + $0x758] sm:$0xff]
        %v763 = vld [vmem:[#allocation4 + $0x760] sm:$0xff]
        %v764 = vld [vmem:[#allocation4 + $0x768] sm:$0xff]
        %v765 = vld [vmem:[#allocation4 + $0x770] sm:$0xff]
        %v766 = vld [vmem:[#allocation4 + $0x778] sm:$0xff]
        %v767 = vld [vmem:[#allocation4 + $0x780] sm:$0xff]
        %v768 = vld [vmem:[#allocation4 + $0x788] sm:$0xff]
        %v769 = vld [vmem:[#allocation4 + $0x790] sm:$0xff]
        %v770 = vld [vmem:[#allocation4 + $0x798] sm:$0xff]
        %v771 = vld [vmem:[#allocation4 + $0x7a0] sm:$0xff]
        %v772 = vld [vmem:[#allocation4 + $0x7a8] sm:$0xff]
        %v773 = vld [vmem:[#allocation4 + $0x7b0] sm:$0xff]
        %v774 = vld [vmem:[#allocation4 + $0x7b8] sm:$0xff]
        %v775 = vld [vmem:[#allocation4 + $0x7c0] sm:$0xff]
        %v776 = vld [vmem:[#allocation4 + $0x7c8] sm:$0xff]
        %v777 = vld [vmem:[#allocation4 + $0x7d0] sm:$0xff]
        %v778 = vld [vmem:[#allocation4 + $0x7d8] sm:$0xff]
        %v779 = vld [vmem:[#allocation4 + $0x7e0] sm:$0xff]
        %v780 = vld [vmem:[#allocation4 + $0x7e8] sm:$0xff]
        %v781 = vld [vmem:[#allocation4 + $0x7f0] sm:$0xff]
        %v782 = vld [vmem:[#allocation4 + $0x7f8] sm:$0xff]
        %v783 = vld [vmem:[#allocation4 + $0x800] sm:$0xff]
        %v784 = vld [vmem:[#allocation4 + $0x808] sm:$0xff]
        %v785 = vld [vmem:[#allocation4 + $0x810] sm:$0xff]
        %v786 = vld [vmem:[#allocation4 + $0x818] sm:$0xff]
        %v787 = vld [vmem:[#allocation4 + $0x820] sm:$0xff]
        %v788 = vld [vmem:[#allocation4 + $0x828] sm:$0xff]
        %v789 = vld [vmem:[#allocation4 + $0x830] sm:$0xff]
        %v790 = vld [vmem:[#allocation4 + $0x838] sm:$0xff]
        %v791 = vld [vmem:[#allocation4 + $0x840] sm:$0xff]
        %v792 = vld [vmem:[#allocation4 + $0x848] sm:$0xff]
        %v793 = vld [vmem:[#allocation4 + $0x850] sm:$0xff]
        %v794 = vld [vmem:[#allocation4 + $0x858] sm:$0xff]
        %v795 = vld [vmem:[#allocation4 + $0x860] sm:$0xff]
        %v796 = vld [vmem:[#allocation4 + $0x868] sm:$0xff]
        %v797 = vld [vmem:[#allocation4 + $0x870] sm:$0xff]
        %v798 = vld [vmem:[#allocation4 + $0x878] sm:$0xff]
        %v799 = vld [vmem:[#allocation4 + $0x880] sm:$0xff]
        %v800 = vld [vmem:[#allocation4 + $0x888] sm:$0xff]
        %v801 = vld [vmem:[#allocation4 + $0x890] sm:$0xff]
        %v802 = vld [vmem:[#allocation4 + $0x898] sm:$0xff]
        %v803 = vld [vmem:[#allocation4 + $0x8a0] sm:$0xff]
        %v804 = vld [vmem:[#allocation4 + $0x8a8] sm:$0xff]
        %v805 = vld [vmem:[#allocation4 + $0x8b0] sm:$0xff]
        %v806 = vld [vmem:[#allocation4 + $0x8b8] sm:$0xff]
        %v807 = vld [vmem:[#allocation4 + $0x8c0] sm:$0xff]
        %v808 = vld [vmem:[#allocation4 + $0x8c8] sm:$0xff]
        %v809 = vld [vmem:[#allocation4 + $0x8d0] sm:$0xff]
        %v810 = vld [vmem:[#allocation4 + $0x8d8] sm:$0xff]
        %v811 = vld [vmem:[#allocation4 + $0x8e0] sm:$0xff]
        %v812 = vld [vmem:[#allocation4 + $0x8e8] sm:$0xff]
        %v813 = vld [vmem:[#allocation4 + $0x8f0] sm:$0xff]
        %v814 = vld [vmem:[#allocation4 + $0x8f8] sm:$0xff]
        %v815 = vld [vmem:[#allocation4 + $0x900] sm:$0xff]
        %v816 = vld [vmem:[#allocation4 + $0x908] sm:$0xff]
        %v817 = vld [vmem:[#allocation4 + $0x910] sm:$0xff]
        %v818 = vld [vmem:[#allocation4 + $0x918] sm:$0xff]
        %v819 = vld [vmem:[#allocation4 + $0x920] sm:$0xff]
        %v820 = vld [vmem:[#allocation4 + $0x928] sm:$0xff]
        %v821 = vld [vmem:[#allocation4 + $0x930] sm:$0xff]
        %v822 = vld [vmem:[#allocation4 + $0x938] sm:$0xff]
        %v823 = vld [vmem:[#allocation4 + $0x940] sm:$0xff]
        %v824 = vld [vmem:[#allocation4 + $0x948] sm:$0xff]
        %v825 = vld [vmem:[#allocation4 + $0x950] sm:$0xff]
        %v826 = vld [vmem:[#allocation4 + $0x958] sm:$0xff]
        %v827 = vld [vmem:[#allocation4 + $0x960] sm:$0xff]
        %v828 = vld [vmem:[#allocation4 + $0x968] sm:$0xff]
        %v829 = vld [vmem:[#allocation4 + $0x970] sm:$0xff]
        %v830 = vld [vmem:[#allocation4 + $0x978] sm:$0xff]
        %v831 = vld [vmem:[#allocation4 + $0x980] sm:$0xff]
        %v832 = vld [vmem:[#allocation4 + $0x988] sm:$0xff]
        %v833 = vld [vmem:[#allocation4 + $0x990] sm:$0xff]
        %v834 = vld [vmem:[#allocation4 + $0x998] sm:$0xff]
        %v835 = vld [vmem:[#allocation4 + $0x9a0] sm:$0xff]
        %v836 = vld [vmem:[#allocation4 + $0x9a8] sm:$0xff]
        %v837 = vld [vmem:[#allocation4 + $0x9b0] sm:$0xff]
        %v838 = vld [vmem:[#allocation4 + $0x9b8] sm:$0xff]
        %v839 = vld [vmem:[#allocation4 + $0x9c0] sm:$0xff]
        %v840 = vld [vmem:[#allocation4 + $0x9c8] sm:$0xff]
        %v841 = vld [vmem:[#allocation4 + $0x9d0] sm:$0xff]
        %v842 = vld [vmem:[#allocation4 + $0x9d8] sm:$0xff]
        %v843 = vld [vmem:[#allocation4 + $0x9e0] sm:$0xff]
        %v844 = vld [vmem:[#allocation4 + $0x9e8] sm:$0xff]
        %v845 = vld [vmem:[#allocation4 + $0x9f0] sm:$0xff]
        %v846 = vld [vmem:[#allocation4 + $0x9f8] sm:$0xff]
        %v847 = vld [vmem:[#allocation4 + $0xa00] sm:$0xff]
        %v848 = vld [vmem:[#allocation4 + $0xa08] sm:$0xff]
        %v849 = vld [vmem:[#allocation4 + $0xa10] sm:$0xff]
        %v850 = vld [vmem:[#allocation4 + $0xa18] sm:$0xff]
        %v851 = vld [vmem:[#allocation4 + $0xa20] sm:$0xff]
        %v852 = vld [vmem:[#allocation4 + $0xa28] sm:$0xff]
        %v853 = vld [vmem:[#allocation4 + $0xa30] sm:$0xff]
        %v854 = vld [vmem:[#allocation4 + $0xa38] sm:$0xff]
        %v855 = vld [vmem:[#allocation4 + $0xa40] sm:$0xff]
        %v856 = vld [vmem:[#allocation4 + $0xa48] sm:$0xff]
        %v857 = vld [vmem:[#allocation4 + $0xa50] sm:$0xff]
        %v858 = vld [vmem:[#allocation4 + $0xa58] sm:$0xff]
        %v859 = vld [vmem:[#allocation4 + $0xa60] sm:$0xff]
        %v860 = vld [vmem:[#allocation4 + $0xa68] sm:$0xff]
        %v861 = vld [vmem:[#allocation4 + $0xa70] sm:$0xff]
        %v862 = vld [vmem:[#allocation4 + $0xa78] sm:$0xff]
        %v863 = vld [vmem:[#allocation4 + $0xa80] sm:$0xff]
        %v864 = vld [vmem:[#allocation4 + $0xa88] sm:$0xff]
        %v865 = vld [vmem:[#allocation4 + $0xa90] sm:$0xff]
        %v866 = vld [vmem:[#allocation4 + $0xa98] sm:$0xff]
        %v867 = vld [vmem:[#allocation4 + $0xaa0] sm:$0xff]
        %v868 = vld [vmem:[#allocation4 + $0xaa8] sm:$0xff]
        %v869 = vld [vmem:[#allocation4 + $0xab0] sm:$0xff]
        %v870 = vld [vmem:[#allocation4 + $0xab8] sm:$0xff]
        %v871 = vld [vmem:[#allocation4 + $0xac0] sm:$0xff]
        %v872 = vld [vmem:[#allocation4 + $0xac8] sm:$0xff]
        %v873 = vld [vmem:[#allocation4 + $0xad0] sm:$0xff]
        %v874 = vld [vmem:[#allocation4 + $0xad8] sm:$0xff]
        %v875 = vld [vmem:[#allocation4 + $0xae0] sm:$0xff]
        %v876 = vld [vmem:[#allocation4 + $0xae8] sm:$0xff]
        %v877 = vld [vmem:[#allocation4 + $0xaf0] sm:$0xff]
        %v878 = vld [vmem:[#allocation4 + $0xaf8] sm:$0xff]
        %v879 = vld [vmem:[#allocation4 + $0xb00] sm:$0xff]
        %v880 = vld [vmem:[#allocation4 + $0xb08] sm:$0xff]
        %v881 = vld [vmem:[#allocation4 + $0xb10] sm:$0xff]
        %v882 = vld [vmem:[#allocation4 + $0xb18] sm:$0xff]
        %v883 = vld [vmem:[#allocation4 + $0xb20] sm:$0xff]
        %v884 = vld [vmem:[#allocation4 + $0xb28] sm:$0xff]
        %v885 = vld [vmem:[#allocation4 + $0xb30] sm:$0xff]
        %v886 = vld [vmem:[#allocation4 + $0xb38] sm:$0xff]
        %v887 = vld [vmem:[#allocation4 + $0xb40] sm:$0xff]
        %v888 = vld [vmem:[#allocation4 + $0xb48] sm:$0xff]
        %v889 = vld [vmem:[#allocation4 + $0xb50] sm:$0xff]
        %v890 = vld [vmem:[#allocation4 + $0xb58] sm:$0xff]
        %v891 = vld [vmem:[#allocation4 + $0xb60] sm:$0xff]
        %v892 = vld [vmem:[#allocation4 + $0xb68] sm:$0xff]
        %v893 = vld [vmem:[#allocation4 + $0xb70] sm:$0xff]
        %v894 = vld [vmem:[#allocation4 + $0xb78] sm:$0xff]
        %v895 = vld [vmem:[#allocation4 + $0xb80] sm:$0xff]
        %v896 = vld [vmem:[#allocation4 + $0xb88] sm:$0xff]
        %v897 = vld [vmem:[#allocation4 + $0xb90] sm:$0xff]
        %v898 = vld [vmem:[#allocation4 + $0xb98] sm:$0xff]
        %v899 = vld [vmem:[#allocation4 + $0xba0] sm:$0xff]
        %v900 = vld [vmem:[#allocation4 + $0xba8] sm:$0xff]
        %v901 = vld [vmem:[#allocation4 + $0xbb0] sm:$0xff]
        %v902 = vld [vmem:[#allocation4 + $0xbb8] sm:$0xff]
        %v903 = vld [vmem:[#allocation4 + $0xbc0] sm:$0xff]
        %v904 = vld [vmem:[#allocation4 + $0xbc8] sm:$0xff]
        %v905 = vld [vmem:[#allocation4 + $0xbd0] sm:$0xff]
        %v906 = vld [vmem:[#allocation4 + $0xbd8] sm:$0xff]
        %v907 = vld [vmem:[#allocation4 + $0xbe0] sm:$0xff]
        %v908 = vld [vmem:[#allocation4 + $0xbe8] sm:$0xff]
        %v909 = vld [vmem:[#allocation4 + $0xbf0] sm:$0xff]
        %v910 = vld [vmem:[#allocation4 + $0xbf8] sm:$0xff]
        %v911 = vld [vmem:[#allocation4 + $0xc00] sm:$0xff]
        %v912 = vld [vmem:[#allocation4 + $0xc08] sm:$0xff]
        %v913 = vld [vmem:[#allocation4 + $0xc10] sm:$0xff]
        %v914 = vld [vmem:[#allocation4 + $0xc18] sm:$0xff]
        %v915 = vld [vmem:[#allocation4 + $0xc20] sm:$0xff]
        %v916 = vld [vmem:[#allocation4 + $0xc28] sm:$0xff]
        %v917 = vld [vmem:[#allocation4 + $0xc30] sm:$0xff]
        %v918 = vld [vmem:[#allocation4 + $0xc38] sm:$0xff]
        %v919 = vld [vmem:[#allocation4 + $0xc40] sm:$0xff]
        %v920 = vld [vmem:[#allocation4 + $0xc48] sm:$0xff]
        %v921 = vld [vmem:[#allocation4 + $0xc50] sm:$0xff]
        %v922 = vld [vmem:[#allocation4 + $0xc58] sm:$0xff]
        %v923 = vld [vmem:[#allocation4 + $0xc60] sm:$0xff]
        %v924 = vld [vmem:[#allocation4 + $0xc68] sm:$0xff]
        %v925 = vld [vmem:[#allocation4 + $0xc70] sm:$0xff]
        %v926 = vld [vmem:[#allocation4 + $0xc78] sm:$0xff]
        %v927 = vld [vmem:[#allocation4 + $0xc80] sm:$0xff]
        %v928 = vld [vmem:[#allocation4 + $0xc88] sm:$0xff]
        %v929 = vld [vmem:[#allocation4 + $0xc90] sm:$0xff]
        %v930 = vld [vmem:[#allocation4 + $0xc98] sm:$0xff]
        %v931 = vld [vmem:[#allocation4 + $0xca0] sm:$0xff]
        %v932 = vld [vmem:[#allocation4 + $0xca8] sm:$0xff]
        %v933 = vld [vmem:[#allocation4 + $0xcb0] sm:$0xff]
        %v934 = vld [vmem:[#allocation4 + $0xcb8] sm:$0xff]
        %v935 = vld [vmem:[#allocation4 + $0xcc0] sm:$0xff]
        %v936 = vld [vmem:[#allocation4 + $0xcc8] sm:$0xff]
        %v937 = vld [vmem:[#allocation4 + $0xcd0] sm:$0xff]
        %v938 = vld [vmem:[#allocation4 + $0xcd8] sm:$0xff]
        %v939 = vld [vmem:[#allocation4 + $0xce0] sm:$0xff]
        %v940 = vld [vmem:[#allocation4 + $0xce8] sm:$0xff]
        %v941 = vld [vmem:[#allocation4 + $0xcf0] sm:$0xff]
        %v942 = vld [vmem:[#allocation4 + $0xcf8] sm:$0xff]
        %v943 = vld [vmem:[#allocation4 + $0xd00] sm:$0xff]
        %v944 = vld [vmem:[#allocation4 + $0xd08] sm:$0xff]
        %v945 = vld [vmem:[#allocation4 + $0xd10] sm:$0xff]
        %v946 = vld [vmem:[#allocation4 + $0xd18] sm:$0xff]
        %v947 = vld [vmem:[#allocation4 + $0xd20] sm:$0xff]
        %v948 = vld [vmem:[#allocation4 + $0xd28] sm:$0xff]
        %v949 = vld [vmem:[#allocation4 + $0xd30] sm:$0xff]
        %v950 = vld [vmem:[#allocation4 + $0xd38] sm:$0xff]
        %v951 = vld [vmem:[#allocation4 + $0xd40] sm:$0xff]
        %v952 = vld [vmem:[#allocation4 + $0xd48] sm:$0xff]
        %v953 = vld [vmem:[#allocation4 + $0xd50] sm:$0xff]
        %v954 = vld [vmem:[#allocation4 + $0xd58] sm:$0xff]
        %v955 = vld [vmem:[#allocation4 + $0xd60] sm:$0xff]
        %v956 = vld [vmem:[#allocation4 + $0xd68] sm:$0xff]
        %v957 = vld [vmem:[#allocation4 + $0xd70] sm:$0xff]
        %v958 = vld [vmem:[#allocation4 + $0xd78] sm:$0xff]
        %v959 = vld [vmem:[#allocation4 + $0xd80] sm:$0xff]
        %v960 = vld [vmem:[#allocation4 + $0xd88] sm:$0xff]
        %v961 = vld [vmem:[#allocation4 + $0xd90] sm:$0xff]
        %v962 = vld [vmem:[#allocation4 + $0xd98] sm:$0xff]
        %v963 = vld [vmem:[#allocation4 + $0xda0] sm:$0xff]
        %v964 = vld [vmem:[#allocation4 + $0xda8] sm:$0xff]
        %v965 = vld [vmem:[#allocation4 + $0xdb0] sm:$0xff]
        %v966 = vld [vmem:[#allocation4 + $0xdb8] sm:$0xff]
        %v967 = vld [vmem:[#allocation4 + $0xdc0] sm:$0xff]
        %v968 = vld [vmem:[#allocation4 + $0xdc8] sm:$0xff]
        %v969 = vld [vmem:[#allocation4 + $0xdd0] sm:$0xff]
        %v970 = vld [vmem:[#allocation4 + $0xdd8] sm:$0xff]
        %v971 = vld [vmem:[#allocation4 + $0xde0] sm:$0xff]
        %v972 = vld [vmem:[#allocation4 + $0xde8] sm:$0xff]
        %v973 = vld [vmem:[#allocation4 + $0xdf0] sm:$0xff]
        %v974 = vld [vmem:[#allocation4 + $0xdf8] sm:$0xff]
        %v975 = vld [vmem:[#allocation4 + $0xe00] sm:$0xff]
        %v976 = vld [vmem:[#allocation4 + $0xe08] sm:$0xff]
        %v977 = vld [vmem:[#allocation4 + $0xe10] sm:$0xff]
        %v978 = vld [vmem:[#allocation4 + $0xe18] sm:$0xff]
        %v979 = vld [vmem:[#allocation4 + $0xe20] sm:$0xff]
        %v980 = vld [vmem:[#allocation4 + $0xe28] sm:$0xff]
        %v981 = vld [vmem:[#allocation4 + $0xe30] sm:$0xff]
        %v982 = vld [vmem:[#allocation4 + $0xe38] sm:$0xff]
        %v983 = vld [vmem:[#allocation4 + $0xe40] sm:$0xff]
        %v984 = vld [vmem:[#allocation4 + $0xe48] sm:$0xff]
        %v985 = vld [vmem:[#allocation4 + $0xe50] sm:$0xff]
        %v986 = vld [vmem:[#allocation4 + $0xe58] sm:$0xff]
        %v987 = vld [vmem:[#allocation4 + $0xe60] sm:$0xff]
        %v988 = vld [vmem:[#allocation4 + $0xe68] sm:$0xff]
        %v989 = vld [vmem:[#allocation4 + $0xe70] sm:$0xff]
        %v990 = vld [vmem:[#allocation4 + $0xe78] sm:$0xff]
        %v991 = vld [vmem:[#allocation4 + $0xe80] sm:$0xff]
        %v992 = vld [vmem:[#allocation4 + $0xe88] sm:$0xff]
        %v993 = vld [vmem:[#allocation4 + $0xe90] sm:$0xff]
        %v994 = vld [vmem:[#allocation4 + $0xe98] sm:$0xff]
        %v995 = vld [vmem:[#allocation4 + $0xea0] sm:$0xff]
        %v996 = vld [vmem:[#allocation4 + $0xea8] sm:$0xff]
        %v997 = vld [vmem:[#allocation4 + $0xeb0] sm:$0xff]
        %v998 = vld [vmem:[#allocation4 + $0xeb8] sm:$0xff]
        %v999 = vld [vmem:[#allocation4 + $0xec0] sm:$0xff]
        %v1000 = vld [vmem:[#allocation4 + $0xec8] sm:$0xff]
        %v1001 = vld [vmem:[#allocation4 + $0xed0] sm:$0xff]
        %v1002 = vld [vmem:[#allocation4 + $0xed8] sm:$0xff]
        %v1003 = vld [vmem:[#allocation4 + $0xee0] sm:$0xff]
        %v1004 = vld [vmem:[#allocation4 + $0xee8] sm:$0xff]
        %v1005 = vld [vmem:[#allocation4 + $0xef0] sm:$0xff]
        %v1006 = vld [vmem:[#allocation4 + $0xef8] sm:$0xff]
        %v1007 = vld [vmem:[#allocation4 + $0xf00] sm:$0xff]
        %v1008 = vld [vmem:[#allocation4 + $0xf08] sm:$0xff]
        %v1009 = vld [vmem:[#allocation4 + $0xf10] sm:$0xff]
        %v1010 = vld [vmem:[#allocation4 + $0xf18] sm:$0xff]
        %v1011 = vld [vmem:[#allocation4 + $0xf20] sm:$0xff]
        %v1012 = vld [vmem:[#allocation4 + $0xf28] sm:$0xff]
        %v1013 = vld [vmem:[#allocation4 + $0xf30] sm:$0xff]
        %v1014 = vld [vmem:[#allocation4 + $0xf38] sm:$0xff]
        %v1015 = vld [vmem:[#allocation4 + $0xf40] sm:$0xff]
        %v1016 = vld [vmem:[#allocation4 + $0xf48] sm:$0xff]
        %v1017 = vld [vmem:[#allocation4 + $0xf50] sm:$0xff]
        %v1018 = vld [vmem:[#allocation4 + $0xf58] sm:$0xff]
        %v1019 = vld [vmem:[#allocation4 + $0xf60] sm:$0xff]
        %v1020 = vld [vmem:[#allocation4 + $0xf68] sm:$0xff]
        %v1021 = vld [vmem:[#allocation4 + $0xf70] sm:$0xff]
        %v1022 = vld [vmem:[#allocation4 + $0xf78] sm:$0xff]
        %v1023 = vld [vmem:[#allocation4 + $0xf80] sm:$0xff]
        %v1024 = vld [vmem:[#allocation4 + $0xf88] sm:$0xff]
        %v1025 = vld [vmem:[#allocation4 + $0xf90] sm:$0xff]
        %v1026 = vld [vmem:[#allocation4 + $0xf98] sm:$0xff]
        %v1027 = vld [vmem:[#allocation4 + $0xfa0] sm:$0xff]
        %v1028 = vld [vmem:[#allocation4 + $0xfa8] sm:$0xff]
        %v1029 = vld [vmem:[#allocation4 + $0xfb0] sm:$0xff]
        %v1030 = vld [vmem:[#allocation4 + $0xfb8] sm:$0xff]
        %v1031 = vld [vmem:[#allocation4 + $0xfc0] sm:$0xff]
        %v1032 = vld [vmem:[#allocation4 + $0xfc8] sm:$0xff]
        %v1033 = vld [vmem:[#allocation4 + $0xfd0] sm:$0xff]
        %v1034 = vld [vmem:[#allocation4 + $0xfd8] sm:$0xff]
        %v1035 = vld [vmem:[#allocation4 + $0xfe0] sm:$0xff]
        %v1036 = vld [vmem:[#allocation4 + $0xfe8] sm:$0xff]
        %v1037 = vld [vmem:[#allocation4 + $0xff0] sm:$0xff]
        %v1038 = vld [vmem:[#allocation4 + $0xff8] sm:$0xff]
        %v1039 = vld [vmem:[#allocation4 + $0x1000] sm:$0xff]
        %v1040 = vld [vmem:[#allocation4 + $0x1008] sm:$0xff]
        %v1041 = vld [vmem:[#allocation4 + $0x1010] sm:$0xff]
        %v1042 = vld [vmem:[#allocation4 + $0x1018] sm:$0xff]
        %v1043 = vld [vmem:[#allocation4 + $0x1020] sm:$0xff]
        %v1044 = vld [vmem:[#allocation4 + $0x1028] sm:$0xff]
        %v1045 = vld [vmem:[#allocation4 + $0x1030] sm:$0xff]
        %v1046 = vld [vmem:[#allocation4 + $0x1038] sm:$0xff]
        %v1047 = vld [vmem:[#allocation4 + $0x1040] sm:$0xff]
        %v1048 = vld [vmem:[#allocation4 + $0x1048] sm:$0xff]
        %v1049 = vld [vmem:[#allocation4 + $0x1050] sm:$0xff]
        %v1050 = vld [vmem:[#allocation4 + $0x1058] sm:$0xff]
        %v1051 = vld [vmem:[#allocation4 + $0x1060] sm:$0xff]
        %v1052 = vld [vmem:[#allocation4 + $0x1068] sm:$0xff]
        %v1053 = vld [vmem:[#allocation4 + $0x1070] sm:$0xff]
        %v1054 = vld [vmem:[#allocation4 + $0x1078] sm:$0xff]
        %v1055 = vld [vmem:[#allocation4 + $0x1080] sm:$0xff]
        %v1056 = vld [vmem:[#allocation4 + $0x1088] sm:$0xff]
        %v1057 = vld [vmem:[#allocation4 + $0x1090] sm:$0xff]
        %v1058 = vld [vmem:[#allocation4 + $0x1098] sm:$0xff]
        %v1059 = vld [vmem:[#allocation4 + $0x10a0] sm:$0xff]
        %v1060 = vld [vmem:[#allocation4 + $0x10a8] sm:$0xff]
        %v1061 = vld [vmem:[#allocation4 + $0x10b0] sm:$0xff]
        %v1062 = vld [vmem:[#allocation4 + $0x10b8] sm:$0xff]
        %v1063 = vld [vmem:[#allocation4 + $0x10c0] sm:$0xff]
        %v1064 = vld [vmem:[#allocation4 + $0x10c8] sm:$0xff]
        %v1065 = vld [vmem:[#allocation4 + $0x10d0] sm:$0xff]
        %v1066 = vld [vmem:[#allocation4 + $0x10d8] sm:$0xff]
        %v1067 = vld [vmem:[#allocation4 + $0x10e0] sm:$0xff]
        %v1068 = vld [vmem:[#allocation4 + $0x10e8] sm:$0xff]
        %v1069 = vld [vmem:[#allocation4 + $0x10f0] sm:$0xff]
        %v1070 = vld [vmem:[#allocation4 + $0x10f8] sm:$0xff]
        %v1071 = vld [vmem:[#allocation4 + $0x1100] sm:$0xff]
        %v1072 = vld [vmem:[#allocation4 + $0x1108] sm:$0xff]
        %v1073 = vld [vmem:[#allocation6] sm:$0x3f]
        %v1075 = vlaneseq
        %v1076 = vshrl.u32 %v1075, 7
        %v1077 = vsub.s32 0, %v1076
        %v1078 = vrot.slane %v1073, %v1077
        %v1079 = vlaneseq
        %v1080 = vshrl.u32 %v1079, 7
        %v1081 = vsub.s32 1, %v1080
        %v1082 = vrot.slane %v1073, %v1081
        %v1083 = vlaneseq
        %v1084 = vshrl.u32 %v1083, 7
        %v1085 = vsub.s32 2, %v1084
        %v1086 = vrot.slane %v1073, %v1085
        %v1087 = vlaneseq
        %v1088 = vshrl.u32 %v1087, 7
        %v1089 = vsub.s32 3, %v1088
        %v1090 = vrot.slane %v1073, %v1089
        %v1091 = vlaneseq
        %v1092 = vshrl.u32 %v1091, 7
        %v1093 = vsub.s32 4, %v1092
        %v1094 = vrot.slane %v1073, %v1093
        %v1095 = vlaneseq
        %v1096 = vshrl.u32 %v1095, 7
        %v1097 = vsub.s32 5, %v1096
        %v1098 = vrot.slane %v1073, %v1097
        %v1117 = vunpack.c.l.b16 %v515
        %v1118 = vunpack.c.h.b16 %v515
        %v1119 = vunpack.c.l.b16 %v516
        %v1120 = vunpack.c.h.b16 %v516
        %v1121 = vunpack.c.l.b16 %v517
        %v1122 = vunpack.c.h.b16 %v517
        %v1123 = vunpack.c.l.b16 %v518
        %v1124 = vunpack.c.h.b16 %v518
        %v1125 = vunpack.c.l.b16 %v519
        %v1126 = vunpack.c.h.b16 %v519
        %v1127 = vunpack.c.l.b16 %v520
        %v1128 = vunpack.c.h.b16 %v520
        %v1129 = vunpack.c.l.b16 %v521
        %v1130 = vunpack.c.h.b16 %v521
        %v1131 = vunpack.c.l.b16 %v522
        %v1132 = vunpack.c.h.b16 %v522
        %v1133 = vunpack.c.l.b16 %v523
        %v1134 = vunpack.c.h.b16 %v523
        %v1135 = vunpack.c.l.b16 %v524
        %v1136 = vunpack.c.h.b16 %v524
        %v1137 = vunpack.c.l.b16 %v525
        %v1138 = vunpack.c.h.b16 %v525
        %v1139 = vunpack.c.l.b16 %v526
        %v1140 = vunpack.c.h.b16 %v526
        %v1141 = vpack.c.b16 %v1129, %v1117
        %v1142 = vpack.c.b16 %v1130, %v1118
        %v1143 = vpack.c.b16 %v1131, %v1119
        %v1144 = vpack.c.b16 %v1132, %v1120
        %v1145 = vpack.c.b16 %v1133, %v1121
        %v1146 = vpack.c.b16 %v1134, %v1122
        %v1147 = vpack.c.b16 %v1135, %v1123
        %v1148 = vpack.c.b16 %v1136, %v1124
        %v1149 = vpack.c.b16 %v1137, %v1125
        %v1150 = vpack.c.b16 %v1138, %v1126
        %v1151 = vpack.c.b16 %v1139, %v1127
        %v1152 = vpack.c.b16 %v1140, %v1128
        %v1710 = vunpack.c.l.b16 %v527
        %v1711 = vunpack.c.h.b16 %v527
        %v1712 = vunpack.c.l.b16 %v528
        %v1713 = vunpack.c.h.b16 %v528
        %v1714 = vunpack.c.l.b16 %v529
        %v1715 = vunpack.c.h.b16 %v529
        %v1716 = vunpack.c.l.b16 %v530
        %v1717 = vunpack.c.h.b16 %v530
        %v1718 = vunpack.c.l.b16 %v531
        %v1719 = vunpack.c.h.b16 %v531
        %v1720 = vunpack.c.l.b16 %v532
        %v1721 = vunpack.c.h.b16 %v532
        %v1722 = vunpack.c.l.b16 %v533
        %v1723 = vunpack.c.h.b16 %v533
        %v1724 = vunpack.c.l.b16 %v534
        %v1725 = vunpack.c.h.b16 %v534
        %v1726 = vunpack.c.l.b16 %v535
        %v1727 = vunpack.c.h.b16 %v535
        %v1728 = vunpack.c.l.b16 %v536
        %v1729 = vunpack.c.h.b16 %v536
        %v1730 = vunpack.c.l.b16 %v537
        %v1731 = vunpack.c.h.b16 %v537
        %v1732 = vunpack.c.l.b16 %v538
        %v1733 = vunpack.c.h.b16 %v538
        %v1734 = vunpack.c.l.b16 %v539
        %v1735 = vunpack.c.h.b16 %v539
        %v1736 = vunpack.c.l.b16 %v540
        %v1737 = vunpack.c.h.b16 %v540
        %v1738 = vunpack.c.l.b16 %v541
        %v1739 = vunpack.c.h.b16 %v541
        %v1740 = vunpack.c.l.b16 %v542
        %v1741 = vunpack.c.h.b16 %v542
        %v1742 = vunpack.c.l.b16 %v543
        %v1743 = vunpack.c.h.b16 %v543
        %v1744 = vunpack.c.l.b16 %v544
        %v1745 = vunpack.c.h.b16 %v544
        %v1746 = vunpack.c.l.b16 %v545
        %v1747 = vunpack.c.h.b16 %v545
        %v1748 = vunpack.c.l.b16 %v546
        %v1749 = vunpack.c.h.b16 %v546
        %v1750 = vunpack.c.l.b16 %v547
        %v1751 = vunpack.c.h.b16 %v547
        %v1752 = vunpack.c.l.b16 %v548
        %v1753 = vunpack.c.h.b16 %v548
        %v1754 = vunpack.c.l.b16 %v549
        %v1755 = vunpack.c.h.b16 %v549
        %v1756 = vunpack.c.l.b16 %v550
        %v1757 = vunpack.c.h.b16 %v550
        %v1758 = vunpack.c.l.b16 %v551
        %v1759 = vunpack.c.h.b16 %v551
        %v1760 = vunpack.c.l.b16 %v552
        %v1761 = vunpack.c.h.b16 %v552
        %v1762 = vunpack.c.l.b16 %v553
        %v1763 = vunpack.c.h.b16 %v553
        %v1764 = vunpack.c.l.b16 %v554
        %v1765 = vunpack.c.h.b16 %v554
        %v1766 = vunpack.c.l.b16 %v555
        %v1767 = vunpack.c.h.b16 %v555
        %v1768 = vunpack.c.l.b16 %v556
        %v1769 = vunpack.c.h.b16 %v556
        %v1770 = vunpack.c.l.b16 %v557
        %v1771 = vunpack.c.h.b16 %v557
        %v1772 = vunpack.c.l.b16 %v558
        %v1773 = vunpack.c.h.b16 %v558
        %v1774 = vunpack.c.l.b16 %v559
        %v1775 = vunpack.c.h.b16 %v559
        %v1776 = vunpack.c.l.b16 %v560
        %v1777 = vunpack.c.h.b16 %v560
        %v1778 = vunpack.c.l.b16 %v561
        %v1779 = vunpack.c.h.b16 %v561
        %v1780 = vunpack.c.l.b16 %v562
        %v1781 = vunpack.c.h.b16 %v562
        %v1782 = vunpack.c.l.b16 %v563
        %v1783 = vunpack.c.h.b16 %v563
        %v1784 = vunpack.c.l.b16 %v564
        %v1785 = vunpack.c.h.b16 %v564
        %v1786 = vunpack.c.l.b16 %v565
        %v1787 = vunpack.c.h.b16 %v565
        %v1788 = vunpack.c.l.b16 %v566
        %v1789 = vunpack.c.h.b16 %v566
        %v1790 = vunpack.c.l.b16 %v567
        %v1791 = vunpack.c.h.b16 %v567
        %v1792 = vunpack.c.l.b16 %v568
        %v1793 = vunpack.c.h.b16 %v568
        %v1794 = vunpack.c.l.b16 %v569
        %v1795 = vunpack.c.h.b16 %v569
        %v1796 = vunpack.c.l.b16 %v570
        %v1797 = vunpack.c.h.b16 %v570
        %v1798 = vunpack.c.l.b16 %v571
        %v1799 = vunpack.c.h.b16 %v571
        %v1800 = vunpack.c.l.b16 %v572
        %v1801 = vunpack.c.h.b16 %v572
        %v1802 = vunpack.c.l.b16 %v573
        %v1803 = vunpack.c.h.b16 %v573
        %v1804 = vunpack.c.l.b16 %v574
        %v1805 = vunpack.c.h.b16 %v574
        %v1806 = vunpack.c.l.b16 %v575
        %v1807 = vunpack.c.h.b16 %v575
        %v1808 = vunpack.c.l.b16 %v576
        %v1809 = vunpack.c.h.b16 %v576
        %v1810 = vunpack.c.l.b16 %v577
        %v1811 = vunpack.c.h.b16 %v577
        %v1812 = vunpack.c.l.b16 %v578
        %v1813 = vunpack.c.h.b16 %v578
        %v1814 = vunpack.c.l.b16 %v579
        %v1815 = vunpack.c.h.b16 %v579
        %v1816 = vunpack.c.l.b16 %v580
        %v1817 = vunpack.c.h.b16 %v580
        %v1818 = vunpack.c.l.b16 %v581
        %v1819 = vunpack.c.h.b16 %v581
        %v1820 = vunpack.c.l.b16 %v582
        %v1821 = vunpack.c.h.b16 %v582
        %v1822 = vunpack.c.l.b16 %v583
        %v1823 = vunpack.c.h.b16 %v583
        %v1824 = vunpack.c.l.b16 %v584
        %v1825 = vunpack.c.h.b16 %v584
        %v1826 = vunpack.c.l.b16 %v585
        %v1827 = vunpack.c.h.b16 %v585
        %v1828 = vunpack.c.l.b16 %v586
        %v1829 = vunpack.c.h.b16 %v586
        %v1830 = vunpack.c.l.b16 %v587
        %v1831 = vunpack.c.h.b16 %v587
        %v1832 = vunpack.c.l.b16 %v588
        %v1833 = vunpack.c.h.b16 %v588
        %v1834 = vunpack.c.l.b16 %v589
        %v1835 = vunpack.c.h.b16 %v589
        %v1836 = vunpack.c.l.b16 %v590
        %v1837 = vunpack.c.h.b16 %v590
        %v1838 = vunpack.c.l.b16 %v591
        %v1839 = vunpack.c.h.b16 %v591
        %v1840 = vunpack.c.l.b16 %v592
        %v1841 = vunpack.c.h.b16 %v592
        %v1842 = vunpack.c.l.b16 %v593
        %v1843 = vunpack.c.h.b16 %v593
        %v1844 = vunpack.c.l.b16 %v594
        %v1845 = vunpack.c.h.b16 %v594
        %v1846 = vunpack.c.l.b16 %v595
        %v1847 = vunpack.c.h.b16 %v595
        %v1848 = vunpack.c.l.b16 %v596
        %v1849 = vunpack.c.h.b16 %v596
        %v1850 = vunpack.c.l.b16 %v597
        %v1851 = vunpack.c.h.b16 %v597
        %v1852 = vunpack.c.l.b16 %v598
        %v1853 = vunpack.c.h.b16 %v598
        %v1854 = vunpack.c.l.b16 %v599
        %v1855 = vunpack.c.h.b16 %v599
        %v1856 = vunpack.c.l.b16 %v600
        %v1857 = vunpack.c.h.b16 %v600
        %v1858 = vunpack.c.l.b16 %v601
        %v1859 = vunpack.c.h.b16 %v601
        %v1860 = vunpack.c.l.b16 %v602
        %v1861 = vunpack.c.h.b16 %v602
        %v1862 = vunpack.c.l.b16 %v603
        %v1863 = vunpack.c.h.b16 %v603
        %v1864 = vunpack.c.l.b16 %v604
        %v1865 = vunpack.c.h.b16 %v604
        %v1866 = vunpack.c.l.b16 %v605
        %v1867 = vunpack.c.h.b16 %v605
        %v1868 = vunpack.c.l.b16 %v606
        %v1869 = vunpack.c.h.b16 %v606
        %v1870 = vunpack.c.l.b16 %v607
        %v1871 = vunpack.c.h.b16 %v607
        %v1872 = vunpack.c.l.b16 %v608
        %v1873 = vunpack.c.h.b16 %v608
        %v1874 = vunpack.c.l.b16 %v609
        %v1875 = vunpack.c.h.b16 %v609
        %v1876 = vunpack.c.l.b16 %v610
        %v1877 = vunpack.c.h.b16 %v610
        %v1878 = vunpack.c.l.b16 %v611
        %v1879 = vunpack.c.h.b16 %v611
        %v1880 = vunpack.c.l.b16 %v612
        %v1881 = vunpack.c.h.b16 %v612
        %v1882 = vunpack.c.l.b16 %v613
        %v1883 = vunpack.c.h.b16 %v613
        %v1884 = vunpack.c.l.b16 %v614
        %v1885 = vunpack.c.h.b16 %v614
        %v1886 = vunpack.c.l.b16 %v615
        %v1887 = vunpack.c.h.b16 %v615
        %v1888 = vunpack.c.l.b16 %v616
        %v1889 = vunpack.c.h.b16 %v616
        %v1890 = vunpack.c.l.b16 %v617
        %v1891 = vunpack.c.h.b16 %v617
        %v1892 = vunpack.c.l.b16 %v618
        %v1893 = vunpack.c.h.b16 %v618
        %v1894 = vunpack.c.l.b16 %v619
        %v1895 = vunpack.c.h.b16 %v619
        %v1896 = vunpack.c.l.b16 %v620
        %v1897 = vunpack.c.h.b16 %v620
        %v1898 = vunpack.c.l.b16 %v621
        %v1899 = vunpack.c.h.b16 %v621
        %v1900 = vunpack.c.l.b16 %v622
        %v1901 = vunpack.c.h.b16 %v622
        %v1902 = vunpack.c.l.b16 %v623
        %v1903 = vunpack.c.h.b16 %v623
        %v1904 = vunpack.c.l.b16 %v624
        %v1905 = vunpack.c.h.b16 %v624
        %v1906 = vunpack.c.l.b16 %v625
        %v1907 = vunpack.c.h.b16 %v625
        %v1908 = vunpack.c.l.b16 %v626
        %v1909 = vunpack.c.h.b16 %v626
        %v1910 = vunpack.c.l.b16 %v627
        %v1911 = vunpack.c.h.b16 %v627
        %v1912 = vunpack.c.l.b16 %v628
        %v1913 = vunpack.c.h.b16 %v628
        %v1914 = vunpack.c.l.b16 %v629
        %v1915 = vunpack.c.h.b16 %v629
        %v1916 = vunpack.c.l.b16 %v630
        %v1917 = vunpack.c.h.b16 %v630
        %v1918 = vunpack.c.l.b16 %v631
        %v1919 = vunpack.c.h.b16 %v631
        %v1920 = vunpack.c.l.b16 %v632
        %v1921 = vunpack.c.h.b16 %v632
        %v1922 = vunpack.c.l.b16 %v633
        %v1923 = vunpack.c.h.b16 %v633
        %v1924 = vunpack.c.l.b16 %v634
        %v1925 = vunpack.c.h.b16 %v634
        %v1926 = vunpack.c.l.b16 %v635
        %v1927 = vunpack.c.h.b16 %v635
        %v1928 = vunpack.c.l.b16 %v636
        %v1929 = vunpack.c.h.b16 %v636
        %v1930 = vunpack.c.l.b16 %v637
        %v1931 = vunpack.c.h.b16 %v637
        %v1932 = vunpack.c.l.b16 %v638
        %v1933 = vunpack.c.h.b16 %v638
        %v1934 = vunpack.c.l.b16 %v639
        %v1935 = vunpack.c.h.b16 %v639
        %v1936 = vunpack.c.l.b16 %v640
        %v1937 = vunpack.c.h.b16 %v640
        %v1938 = vunpack.c.l.b16 %v641
        %v1939 = vunpack.c.h.b16 %v641
        %v1940 = vunpack.c.l.b16 %v642
        %v1941 = vunpack.c.h.b16 %v642
        %v1942 = vunpack.c.l.b16 %v643
        %v1943 = vunpack.c.h.b16 %v643
        %v1944 = vunpack.c.l.b16 %v644
        %v1945 = vunpack.c.h.b16 %v644
        %v1946 = vunpack.c.l.b16 %v645
        %v1947 = vunpack.c.h.b16 %v645
        %v1948 = vunpack.c.l.b16 %v646
        %v1949 = vunpack.c.h.b16 %v646
        %v1950 = vunpack.c.l.b16 %v647
        %v1951 = vunpack.c.h.b16 %v647
        %v1952 = vunpack.c.l.b16 %v648
        %v1953 = vunpack.c.h.b16 %v648
        %v1954 = vunpack.c.l.b16 %v649
        %v1955 = vunpack.c.h.b16 %v649
        %v1956 = vunpack.c.l.b16 %v650
        %v1957 = vunpack.c.h.b16 %v650
        %v1958 = vunpack.c.l.b16 %v651
        %v1959 = vunpack.c.h.b16 %v651
        %v1960 = vunpack.c.l.b16 %v652
        %v1961 = vunpack.c.h.b16 %v652
        %v1962 = vunpack.c.l.b16 %v653
        %v1963 = vunpack.c.h.b16 %v653
        %v1964 = vunpack.c.l.b16 %v654
        %v1965 = vunpack.c.h.b16 %v654
        %v1966 = vunpack.c.l.b16 %v655
        %v1967 = vunpack.c.h.b16 %v655
        %v1968 = vunpack.c.l.b16 %v656
        %v1969 = vunpack.c.h.b16 %v656
        %v1970 = vunpack.c.l.b16 %v657
        %v1971 = vunpack.c.h.b16 %v657
        %v1972 = vunpack.c.l.b16 %v658
        %v1973 = vunpack.c.h.b16 %v658
        %v1974 = vunpack.c.l.b16 %v659
        %v1975 = vunpack.c.h.b16 %v659
        %v1976 = vunpack.c.l.b16 %v660
        %v1977 = vunpack.c.h.b16 %v660
        %v1978 = vunpack.c.l.b16 %v661
        %v1979 = vunpack.c.h.b16 %v661
        %v1980 = vunpack.c.l.b16 %v662
        %v1981 = vunpack.c.h.b16 %v662
        %v1982 = vunpack.c.l.b16 %v663
        %v1983 = vunpack.c.h.b16 %v663
        %v1984 = vunpack.c.l.b16 %v664
        %v1985 = vunpack.c.h.b16 %v664
        %v1986 = vunpack.c.l.b16 %v665
        %v1987 = vunpack.c.h.b16 %v665
        %v1988 = vunpack.c.l.b16 %v666
        %v1989 = vunpack.c.h.b16 %v666
        %v1990 = vunpack.c.l.b16 %v667
        %v1991 = vunpack.c.h.b16 %v667
        %v1992 = vunpack.c.l.b16 %v668
        %v1993 = vunpack.c.h.b16 %v668
        %v1994 = vunpack.c.l.b16 %v669
        %v1995 = vunpack.c.h.b16 %v669
        %v1996 = vunpack.c.l.b16 %v670
        %v1997 = vunpack.c.h.b16 %v670
        %v1998 = vunpack.c.l.b16 %v671
        %v1999 = vunpack.c.h.b16 %v671
        %v2000 = vunpack.c.l.b16 %v672
        %v2001 = vunpack.c.h.b16 %v672
        %v2002 = vunpack.c.l.b16 %v673
        %v2003 = vunpack.c.h.b16 %v673
        %v2004 = vunpack.c.l.b16 %v674
        %v2005 = vunpack.c.h.b16 %v674
        %v2006 = vunpack.c.l.b16 %v675
        %v2007 = vunpack.c.h.b16 %v675
        %v2008 = vunpack.c.l.b16 %v676
        %v2009 = vunpack.c.h.b16 %v676
        %v2010 = vunpack.c.l.b16 %v677
        %v2011 = vunpack.c.h.b16 %v677
        %v2012 = vunpack.c.l.b16 %v678
        %v2013 = vunpack.c.h.b16 %v678
        %v2014 = vunpack.c.l.b16 %v679
        %v2015 = vunpack.c.h.b16 %v679
        %v2016 = vunpack.c.l.b16 %v680
        %v2017 = vunpack.c.h.b16 %v680
        %v2018 = vunpack.c.l.b16 %v681
        %v2019 = vunpack.c.h.b16 %v681
        %v2020 = vunpack.c.l.b16 %v682
        %v2021 = vunpack.c.h.b16 %v682
        %v2022 = vunpack.c.l.b16 %v683
        %v2023 = vunpack.c.h.b16 %v683
        %v2024 = vunpack.c.l.b16 %v684
        %v2025 = vunpack.c.h.b16 %v684
        %v2026 = vunpack.c.l.b16 %v685
        %v2027 = vunpack.c.h.b16 %v685
        %v2028 = vunpack.c.l.b16 %v686
        %v2029 = vunpack.c.h.b16 %v686
        %v2030 = vunpack.c.l.b16 %v687
        %v2031 = vunpack.c.h.b16 %v687
        %v2032 = vunpack.c.l.b16 %v688
        %v2033 = vunpack.c.h.b16 %v688
        %v2034 = vunpack.c.l.b16 %v689
        %v2035 = vunpack.c.h.b16 %v689
        %v2036 = vunpack.c.l.b16 %v690
        %v2037 = vunpack.c.h.b16 %v690
        %v2038 = vunpack.c.l.b16 %v691
        %v2039 = vunpack.c.h.b16 %v691
        %v2040 = vunpack.c.l.b16 %v692
        %v2041 = vunpack.c.h.b16 %v692
        %v2042 = vunpack.c.l.b16 %v693
        %v2043 = vunpack.c.h.b16 %v693
        %v2044 = vunpack.c.l.b16 %v694
        %v2045 = vunpack.c.h.b16 %v694
        %v2046 = vunpack.c.l.b16 %v695
        %v2047 = vunpack.c.h.b16 %v695
        %v2048 = vunpack.c.l.b16 %v696
        %v2049 = vunpack.c.h.b16 %v696
        %v2050 = vunpack.c.l.b16 %v697
        %v2051 = vunpack.c.h.b16 %v697
        %v2052 = vunpack.c.l.b16 %v698
        %v2053 = vunpack.c.h.b16 %v698
        %v2054 = vunpack.c.l.b16 %v699
        %v2055 = vunpack.c.h.b16 %v699
        %v2056 = vunpack.c.l.b16 %v700
        %v2057 = vunpack.c.h.b16 %v700
        %v2058 = vunpack.c.l.b16 %v701
        %v2059 = vunpack.c.h.b16 %v701
        %v2060 = vunpack.c.l.b16 %v702
        %v2061 = vunpack.c.h.b16 %v702
        %v2062 = vunpack.c.l.b16 %v703
        %v2063 = vunpack.c.h.b16 %v703
        %v2064 = vunpack.c.l.b16 %v704
        %v2065 = vunpack.c.h.b16 %v704
        %v2066 = vunpack.c.l.b16 %v705
        %v2067 = vunpack.c.h.b16 %v705
        %v2068 = vunpack.c.l.b16 %v706
        %v2069 = vunpack.c.h.b16 %v706
        %v2070 = vunpack.c.l.b16 %v707
        %v2071 = vunpack.c.h.b16 %v707
        %v2072 = vunpack.c.l.b16 %v708
        %v2073 = vunpack.c.h.b16 %v708
        %v2074 = vunpack.c.l.b16 %v709
        %v2075 = vunpack.c.h.b16 %v709
        %v2076 = vunpack.c.l.b16 %v710
        %v2077 = vunpack.c.h.b16 %v710
        %v2078 = vunpack.c.l.b16 %v711
        %v2079 = vunpack.c.h.b16 %v711
        %v2080 = vunpack.c.l.b16 %v712
        %v2081 = vunpack.c.h.b16 %v712
        %v2082 = vunpack.c.l.b16 %v713
        %v2083 = vunpack.c.h.b16 %v713
        %v2084 = vunpack.c.l.b16 %v714
        %v2085 = vunpack.c.h.b16 %v714
        %v2086 = vunpack.c.l.b16 %v715
        %v2087 = vunpack.c.h.b16 %v715
        %v2088 = vunpack.c.l.b16 %v716
        %v2089 = vunpack.c.h.b16 %v716
        %v2090 = vunpack.c.l.b16 %v717
        %v2091 = vunpack.c.h.b16 %v717
        %v2092 = vunpack.c.l.b16 %v718
        %v2093 = vunpack.c.h.b16 %v718
        %v2094 = vunpack.c.l.b16 %v719
        %v2095 = vunpack.c.h.b16 %v719
        %v2096 = vunpack.c.l.b16 %v720
        %v2097 = vunpack.c.h.b16 %v720
        %v2098 = vunpack.c.l.b16 %v721
        %v2099 = vunpack.c.h.b16 %v721
        %v2100 = vunpack.c.l.b16 %v722
        %v2101 = vunpack.c.h.b16 %v722
        %v2102 = vunpack.c.l.b16 %v723
        %v2103 = vunpack.c.h.b16 %v723
        %v2104 = vunpack.c.l.b16 %v724
        %v2105 = vunpack.c.h.b16 %v724
        %v2106 = vunpack.c.l.b16 %v725
        %v2107 = vunpack.c.h.b16 %v725
        %v2108 = vunpack.c.l.b16 %v726
        %v2109 = vunpack.c.h.b16 %v726
        %v2110 = vunpack.c.l.b16 %v727
        %v2111 = vunpack.c.h.b16 %v727
        %v2112 = vunpack.c.l.b16 %v728
        %v2113 = vunpack.c.h.b16 %v728
        %v2114 = vunpack.c.l.b16 %v729
        %v2115 = vunpack.c.h.b16 %v729
        %v2116 = vunpack.c.l.b16 %v730
        %v2117 = vunpack.c.h.b16 %v730
        %v2118 = vunpack.c.l.b16 %v731
        %v2119 = vunpack.c.h.b16 %v731
        %v2120 = vunpack.c.l.b16 %v732
        %v2121 = vunpack.c.h.b16 %v732
        %v2122 = vunpack.c.l.b16 %v733
        %v2123 = vunpack.c.h.b16 %v733
        %v2124 = vunpack.c.l.b16 %v734
        %v2125 = vunpack.c.h.b16 %v734
        %v2126 = vunpack.c.l.b16 %v735
        %v2127 = vunpack.c.h.b16 %v735
        %v2128 = vunpack.c.l.b16 %v736
        %v2129 = vunpack.c.h.b16 %v736
        %v2130 = vunpack.c.l.b16 %v737
        %v2131 = vunpack.c.h.b16 %v737
        %v2132 = vunpack.c.l.b16 %v738
        %v2133 = vunpack.c.h.b16 %v738
        %v2134 = vunpack.c.l.b16 %v739
        %v2135 = vunpack.c.h.b16 %v739
        %v2136 = vunpack.c.l.b16 %v740
        %v2137 = vunpack.c.h.b16 %v740
        %v2138 = vunpack.c.l.b16 %v741
        %v2139 = vunpack.c.h.b16 %v741
        %v2140 = vunpack.c.l.b16 %v742
        %v2141 = vunpack.c.h.b16 %v742
        %v2142 = vunpack.c.l.b16 %v743
        %v2143 = vunpack.c.h.b16 %v743
        %v2144 = vunpack.c.l.b16 %v744
        %v2145 = vunpack.c.h.b16 %v744
        %v2146 = vunpack.c.l.b16 %v745
        %v2147 = vunpack.c.h.b16 %v745
        %v2148 = vunpack.c.l.b16 %v746
        %v2149 = vunpack.c.h.b16 %v746
        %v2150 = vunpack.c.l.b16 %v747
        %v2151 = vunpack.c.h.b16 %v747
        %v2152 = vunpack.c.l.b16 %v748
        %v2153 = vunpack.c.h.b16 %v748
        %v2154 = vunpack.c.l.b16 %v749
        %v2155 = vunpack.c.h.b16 %v749
        %v2156 = vunpack.c.l.b16 %v750
        %v2157 = vunpack.c.h.b16 %v750
        %v2158 = vunpack.c.l.b16 %v751
        %v2159 = vunpack.c.h.b16 %v751
        %v2160 = vunpack.c.l.b16 %v752
        %v2161 = vunpack.c.h.b16 %v752
        %v2162 = vunpack.c.l.b16 %v753
        %v2163 = vunpack.c.h.b16 %v753
        %v2164 = vunpack.c.l.b16 %v754
        %v2165 = vunpack.c.h.b16 %v754
        %v2166 = vunpack.c.l.b16 %v755
        %v2167 = vunpack.c.h.b16 %v755
        %v2168 = vunpack.c.l.b16 %v756
        %v2169 = vunpack.c.h.b16 %v756
        %v2170 = vunpack.c.l.b16 %v757
        %v2171 = vunpack.c.h.b16 %v757
        %v2172 = vunpack.c.l.b16 %v758
        %v2173 = vunpack.c.h.b16 %v758
        %v2174 = vunpack.c.l.b16 %v759
        %v2175 = vunpack.c.h.b16 %v759
        %v2176 = vunpack.c.l.b16 %v760
        %v2177 = vunpack.c.h.b16 %v760
        %v2178 = vunpack.c.l.b16 %v761
        %v2179 = vunpack.c.h.b16 %v761
        %v2180 = vunpack.c.l.b16 %v762
        %v2181 = vunpack.c.h.b16 %v762
        %v2182 = vunpack.c.l.b16 %v763
        %v2183 = vunpack.c.h.b16 %v763
        %v2184 = vunpack.c.l.b16 %v764
        %v2185 = vunpack.c.h.b16 %v764
        %v2186 = vunpack.c.l.b16 %v765
        %v2187 = vunpack.c.h.b16 %v765
        %v2188 = vunpack.c.l.b16 %v766
        %v2189 = vunpack.c.h.b16 %v766
        %v2190 = vunpack.c.l.b16 %v767
        %v2191 = vunpack.c.h.b16 %v767
        %v2192 = vunpack.c.l.b16 %v768
        %v2193 = vunpack.c.h.b16 %v768
        %v2194 = vunpack.c.l.b16 %v769
        %v2195 = vunpack.c.h.b16 %v769
        %v2196 = vunpack.c.l.b16 %v770
        %v2197 = vunpack.c.h.b16 %v770
        %v2198 = vunpack.c.l.b16 %v771
        %v2199 = vunpack.c.h.b16 %v771
        %v2200 = vunpack.c.l.b16 %v772
        %v2201 = vunpack.c.h.b16 %v772
        %v2202 = vunpack.c.l.b16 %v773
        %v2203 = vunpack.c.h.b16 %v773
        %v2204 = vunpack.c.l.b16 %v774
        %v2205 = vunpack.c.h.b16 %v774
        %v2206 = vunpack.c.l.b16 %v775
        %v2207 = vunpack.c.h.b16 %v775
        %v2208 = vunpack.c.l.b16 %v776
        %v2209 = vunpack.c.h.b16 %v776
        %v2210 = vunpack.c.l.b16 %v777
        %v2211 = vunpack.c.h.b16 %v777
        %v2212 = vunpack.c.l.b16 %v778
        %v2213 = vunpack.c.h.b16 %v778
        %v2214 = vunpack.c.l.b16 %v779
        %v2215 = vunpack.c.h.b16 %v779
        %v2216 = vunpack.c.l.b16 %v780
        %v2217 = vunpack.c.h.b16 %v780
        %v2218 = vunpack.c.l.b16 %v781
        %v2219 = vunpack.c.h.b16 %v781
        %v2220 = vunpack.c.l.b16 %v782
        %v2221 = vunpack.c.h.b16 %v782
        %v2222 = vunpack.c.l.b16 %v783
        %v2223 = vunpack.c.h.b16 %v783
        %v2224 = vunpack.c.l.b16 %v784
        %v2225 = vunpack.c.h.b16 %v784
        %v2226 = vunpack.c.l.b16 %v785
        %v2227 = vunpack.c.h.b16 %v785
        %v2228 = vunpack.c.l.b16 %v786
        %v2229 = vunpack.c.h.b16 %v786
        %v2230 = vunpack.c.l.b16 %v787
        %v2231 = vunpack.c.h.b16 %v787
        %v2232 = vunpack.c.l.b16 %v788
        %v2233 = vunpack.c.h.b16 %v788
        %v2234 = vunpack.c.l.b16 %v789
        %v2235 = vunpack.c.h.b16 %v789
        %v2236 = vunpack.c.l.b16 %v790
        %v2237 = vunpack.c.h.b16 %v790
        %v2238 = vunpack.c.l.b16 %v791
        %v2239 = vunpack.c.h.b16 %v791
        %v2240 = vunpack.c.l.b16 %v792
        %v2241 = vunpack.c.h.b16 %v792
        %v2242 = vunpack.c.l.b16 %v793
        %v2243 = vunpack.c.h.b16 %v793
        %v2244 = vunpack.c.l.b16 %v794
        %v2245 = vunpack.c.h.b16 %v794
        %v2246 = vunpack.c.l.b16 %v795
        %v2247 = vunpack.c.h.b16 %v795
        %v2248 = vunpack.c.l.b16 %v796
        %v2249 = vunpack.c.h.b16 %v796
        %v2250 = vunpack.c.l.b16 %v797
        %v2251 = vunpack.c.h.b16 %v797
        %v2252 = vunpack.c.l.b16 %v798
        %v2253 = vunpack.c.h.b16 %v798
        %v2254 = vunpack.c.l.b16 %v799
        %v2255 = vunpack.c.h.b16 %v799
        %v2256 = vunpack.c.l.b16 %v800
        %v2257 = vunpack.c.h.b16 %v800
        %v2258 = vunpack.c.l.b16 %v801
        %v2259 = vunpack.c.h.b16 %v801
        %v2260 = vunpack.c.l.b16 %v802
        %v2261 = vunpack.c.h.b16 %v802
        %v2262 = vunpack.c.l.b16 %v803
        %v2263 = vunpack.c.h.b16 %v803
        %v2264 = vunpack.c.l.b16 %v804
        %v2265 = vunpack.c.h.b16 %v804
        %v2266 = vunpack.c.l.b16 %v805
        %v2267 = vunpack.c.h.b16 %v805
        %v2268 = vunpack.c.l.b16 %v806
        %v2269 = vunpack.c.h.b16 %v806
        %v2270 = vunpack.c.l.b16 %v807
        %v2271 = vunpack.c.h.b16 %v807
        %v2272 = vunpack.c.l.b16 %v808
        %v2273 = vunpack.c.h.b16 %v808
        %v2274 = vunpack.c.l.b16 %v809
        %v2275 = vunpack.c.h.b16 %v809
        %v2276 = vunpack.c.l.b16 %v810
        %v2277 = vunpack.c.h.b16 %v810
        %v2278 = vunpack.c.l.b16 %v811
        %v2279 = vunpack.c.h.b16 %v811
        %v2280 = vunpack.c.l.b16 %v812
        %v2281 = vunpack.c.h.b16 %v812
        %v2282 = vunpack.c.l.b16 %v813
        %v2283 = vunpack.c.h.b16 %v813
        %v2284 = vunpack.c.l.b16 %v814
        %v2285 = vunpack.c.h.b16 %v814
        %v2286 = vunpack.c.l.b16 %v815
        %v2287 = vunpack.c.h.b16 %v815
        %v2288 = vunpack.c.l.b16 %v816
        %v2289 = vunpack.c.h.b16 %v816
        %v2290 = vunpack.c.l.b16 %v817
        %v2291 = vunpack.c.h.b16 %v817
        %v2292 = vunpack.c.l.b16 %v818
        %v2293 = vunpack.c.h.b16 %v818
        %v2294 = vunpack.c.l.b16 %v819
        %v2295 = vunpack.c.h.b16 %v819
        %v2296 = vunpack.c.l.b16 %v820
        %v2297 = vunpack.c.h.b16 %v820
        %v2298 = vunpack.c.l.b16 %v821
        %v2299 = vunpack.c.h.b16 %v821
        %v2300 = vunpack.c.l.b16 %v822
        %v2301 = vunpack.c.h.b16 %v822
        %v2302 = vunpack.c.l.b16 %v823
        %v2303 = vunpack.c.h.b16 %v823
        %v2304 = vunpack.c.l.b16 %v824
        %v2305 = vunpack.c.h.b16 %v824
        %v2306 = vunpack.c.l.b16 %v825
        %v2307 = vunpack.c.h.b16 %v825
        %v2308 = vunpack.c.l.b16 %v826
        %v2309 = vunpack.c.h.b16 %v826
        %v2310 = vunpack.c.l.b16 %v827
        %v2311 = vunpack.c.h.b16 %v827
        %v2312 = vunpack.c.l.b16 %v828
        %v2313 = vunpack.c.h.b16 %v828
        %v2314 = vunpack.c.l.b16 %v829
        %v2315 = vunpack.c.h.b16 %v829
        %v2316 = vunpack.c.l.b16 %v830
        %v2317 = vunpack.c.h.b16 %v830
        %v2318 = vunpack.c.l.b16 %v831
        %v2319 = vunpack.c.h.b16 %v831
        %v2320 = vunpack.c.l.b16 %v832
        %v2321 = vunpack.c.h.b16 %v832
        %v2322 = vunpack.c.l.b16 %v833
        %v2323 = vunpack.c.h.b16 %v833
        %v2324 = vunpack.c.l.b16 %v834
        %v2325 = vunpack.c.h.b16 %v834
        %v2326 = vunpack.c.l.b16 %v835
        %v2327 = vunpack.c.h.b16 %v835
        %v2328 = vunpack.c.l.b16 %v836
        %v2329 = vunpack.c.h.b16 %v836
        %v2330 = vunpack.c.l.b16 %v837
        %v2331 = vunpack.c.h.b16 %v837
        %v2332 = vunpack.c.l.b16 %v838
        %v2333 = vunpack.c.h.b16 %v838
        %v2334 = vunpack.c.l.b16 %v839
        %v2335 = vunpack.c.h.b16 %v839
        %v2336 = vunpack.c.l.b16 %v840
        %v2337 = vunpack.c.h.b16 %v840
        %v2338 = vunpack.c.l.b16 %v841
        %v2339 = vunpack.c.h.b16 %v841
        %v2340 = vunpack.c.l.b16 %v842
        %v2341 = vunpack.c.h.b16 %v842
        %v2342 = vunpack.c.l.b16 %v843
        %v2343 = vunpack.c.h.b16 %v843
        %v2344 = vunpack.c.l.b16 %v844
        %v2345 = vunpack.c.h.b16 %v844
        %v2346 = vunpack.c.l.b16 %v845
        %v2347 = vunpack.c.h.b16 %v845
        %v2348 = vunpack.c.l.b16 %v846
        %v2349 = vunpack.c.h.b16 %v846
        %v2350 = vunpack.c.l.b16 %v847
        %v2351 = vunpack.c.h.b16 %v847
        %v2352 = vunpack.c.l.b16 %v848
        %v2353 = vunpack.c.h.b16 %v848
        %v2354 = vunpack.c.l.b16 %v849
        %v2355 = vunpack.c.h.b16 %v849
        %v2356 = vunpack.c.l.b16 %v850
        %v2357 = vunpack.c.h.b16 %v850
        %v2358 = vunpack.c.l.b16 %v851
        %v2359 = vunpack.c.h.b16 %v851
        %v2360 = vunpack.c.l.b16 %v852
        %v2361 = vunpack.c.h.b16 %v852
        %v2362 = vunpack.c.l.b16 %v853
        %v2363 = vunpack.c.h.b16 %v853
        %v2364 = vunpack.c.l.b16 %v854
        %v2365 = vunpack.c.h.b16 %v854
        %v2366 = vunpack.c.l.b16 %v855
        %v2367 = vunpack.c.h.b16 %v855
        %v2368 = vunpack.c.l.b16 %v856
        %v2369 = vunpack.c.h.b16 %v856
        %v2370 = vunpack.c.l.b16 %v857
        %v2371 = vunpack.c.h.b16 %v857
        %v2372 = vunpack.c.l.b16 %v858
        %v2373 = vunpack.c.h.b16 %v858
        %v2374 = vunpack.c.l.b16 %v859
        %v2375 = vunpack.c.h.b16 %v859
        %v2376 = vunpack.c.l.b16 %v860
        %v2377 = vunpack.c.h.b16 %v860
        %v2378 = vunpack.c.l.b16 %v861
        %v2379 = vunpack.c.h.b16 %v861
        %v2380 = vunpack.c.l.b16 %v862
        %v2381 = vunpack.c.h.b16 %v862
        %v2382 = vunpack.c.l.b16 %v863
        %v2383 = vunpack.c.h.b16 %v863
        %v2384 = vunpack.c.l.b16 %v864
        %v2385 = vunpack.c.h.b16 %v864
        %v2386 = vunpack.c.l.b16 %v865
        %v2387 = vunpack.c.h.b16 %v865
        %v2388 = vunpack.c.l.b16 %v866
        %v2389 = vunpack.c.h.b16 %v866
        %v2390 = vunpack.c.l.b16 %v867
        %v2391 = vunpack.c.h.b16 %v867
        %v2392 = vunpack.c.l.b16 %v868
        %v2393 = vunpack.c.h.b16 %v868
        %v2394 = vunpack.c.l.b16 %v869
        %v2395 = vunpack.c.h.b16 %v869
        %v2396 = vunpack.c.l.b16 %v870
        %v2397 = vunpack.c.h.b16 %v870
        %v2398 = vunpack.c.l.b16 %v871
        %v2399 = vunpack.c.h.b16 %v871
        %v2400 = vunpack.c.l.b16 %v872
        %v2401 = vunpack.c.h.b16 %v872
        %v2402 = vunpack.c.l.b16 %v873
        %v2403 = vunpack.c.h.b16 %v873
        %v2404 = vunpack.c.l.b16 %v874
        %v2405 = vunpack.c.h.b16 %v874
        %v2406 = vunpack.c.l.b16 %v875
        %v2407 = vunpack.c.h.b16 %v875
        %v2408 = vunpack.c.l.b16 %v876
        %v2409 = vunpack.c.h.b16 %v876
        %v2410 = vunpack.c.l.b16 %v877
        %v2411 = vunpack.c.h.b16 %v877
        %v2412 = vunpack.c.l.b16 %v878
        %v2413 = vunpack.c.h.b16 %v878
        %v2414 = vunpack.c.l.b16 %v879
        %v2415 = vunpack.c.h.b16 %v879
        %v2416 = vunpack.c.l.b16 %v880
        %v2417 = vunpack.c.h.b16 %v880
        %v2418 = vunpack.c.l.b16 %v881
        %v2419 = vunpack.c.h.b16 %v881
        %v2420 = vunpack.c.l.b16 %v882
        %v2421 = vunpack.c.h.b16 %v882
        %v2422 = vunpack.c.l.b16 %v883
        %v2423 = vunpack.c.h.b16 %v883
        %v2424 = vunpack.c.l.b16 %v884
        %v2425 = vunpack.c.h.b16 %v884
        %v2426 = vunpack.c.l.b16 %v885
        %v2427 = vunpack.c.h.b16 %v885
        %v2428 = vunpack.c.l.b16 %v886
        %v2429 = vunpack.c.h.b16 %v886
        %v2430 = vunpack.c.l.b16 %v887
        %v2431 = vunpack.c.h.b16 %v887
        %v2432 = vunpack.c.l.b16 %v888
        %v2433 = vunpack.c.h.b16 %v888
        %v2434 = vunpack.c.l.b16 %v889
        %v2435 = vunpack.c.h.b16 %v889
        %v2436 = vunpack.c.l.b16 %v890
        %v2437 = vunpack.c.h.b16 %v890
        %v2438 = vunpack.c.l.b16 %v891
        %v2439 = vunpack.c.h.b16 %v891
        %v2440 = vunpack.c.l.b16 %v892
        %v2441 = vunpack.c.h.b16 %v892
        %v2442 = vunpack.c.l.b16 %v893
        %v2443 = vunpack.c.h.b16 %v893
        %v2444 = vunpack.c.l.b16 %v894
        %v2445 = vunpack.c.h.b16 %v894
        %v2446 = vunpack.c.l.b16 %v895
        %v2447 = vunpack.c.h.b16 %v895
        %v2448 = vunpack.c.l.b16 %v896
        %v2449 = vunpack.c.h.b16 %v896
        %v2450 = vunpack.c.l.b16 %v897
        %v2451 = vunpack.c.h.b16 %v897
        %v2452 = vunpack.c.l.b16 %v898
        %v2453 = vunpack.c.h.b16 %v898
        %v2454 = vunpack.c.l.b16 %v899
        %v2455 = vunpack.c.h.b16 %v899
        %v2456 = vunpack.c.l.b16 %v900
        %v2457 = vunpack.c.h.b16 %v900
        %v2458 = vunpack.c.l.b16 %v901
        %v2459 = vunpack.c.h.b16 %v901
        %v2460 = vunpack.c.l.b16 %v902
        %v2461 = vunpack.c.h.b16 %v902
        %v2462 = vunpack.c.l.b16 %v903
        %v2463 = vunpack.c.h.b16 %v903
        %v2464 = vunpack.c.l.b16 %v904
        %v2465 = vunpack.c.h.b16 %v904
        %v2466 = vunpack.c.l.b16 %v905
        %v2467 = vunpack.c.h.b16 %v905
        %v2468 = vunpack.c.l.b16 %v906
        %v2469 = vunpack.c.h.b16 %v906
        %v2470 = vunpack.c.l.b16 %v907
        %v2471 = vunpack.c.h.b16 %v907
        %v2472 = vunpack.c.l.b16 %v908
        %v2473 = vunpack.c.h.b16 %v908
        %v2474 = vunpack.c.l.b16 %v909
        %v2475 = vunpack.c.h.b16 %v909
        %v2476 = vunpack.c.l.b16 %v910
        %v2477 = vunpack.c.h.b16 %v910
        %v2478 = vunpack.c.l.b16 %v911
        %v2479 = vunpack.c.h.b16 %v911
        %v2480 = vunpack.c.l.b16 %v912
        %v2481 = vunpack.c.h.b16 %v912
        %v2482 = vunpack.c.l.b16 %v913
        %v2483 = vunpack.c.h.b16 %v913
        %v2484 = vunpack.c.l.b16 %v914
        %v2485 = vunpack.c.h.b16 %v914
        %v2486 = vunpack.c.l.b16 %v915
        %v2487 = vunpack.c.h.b16 %v915
        %v2488 = vunpack.c.l.b16 %v916
        %v2489 = vunpack.c.h.b16 %v916
        %v2490 = vunpack.c.l.b16 %v917
        %v2491 = vunpack.c.h.b16 %v917
        %v2492 = vunpack.c.l.b16 %v918
        %v2493 = vunpack.c.h.b16 %v918
        %v2494 = vunpack.c.l.b16 %v919
        %v2495 = vunpack.c.h.b16 %v919
        %v2496 = vunpack.c.l.b16 %v920
        %v2497 = vunpack.c.h.b16 %v920
        %v2498 = vunpack.c.l.b16 %v921
        %v2499 = vunpack.c.h.b16 %v921
        %v2500 = vunpack.c.l.b16 %v922
        %v2501 = vunpack.c.h.b16 %v922
        %v2502 = vunpack.c.l.b16 %v923
        %v2503 = vunpack.c.h.b16 %v923
        %v2504 = vunpack.c.l.b16 %v924
        %v2505 = vunpack.c.h.b16 %v924
        %v2506 = vunpack.c.l.b16 %v925
        %v2507 = vunpack.c.h.b16 %v925
        %v2508 = vunpack.c.l.b16 %v926
        %v2509 = vunpack.c.h.b16 %v926
        %v2510 = vunpack.c.l.b16 %v927
        %v2511 = vunpack.c.h.b16 %v927
        %v2512 = vunpack.c.l.b16 %v928
        %v2513 = vunpack.c.h.b16 %v928
        %v2514 = vunpack.c.l.b16 %v929
        %v2515 = vunpack.c.h.b16 %v929
        %v2516 = vunpack.c.l.b16 %v930
        %v2517 = vunpack.c.h.b16 %v930
        %v2518 = vunpack.c.l.b16 %v931
        %v2519 = vunpack.c.h.b16 %v931
        %v2520 = vunpack.c.l.b16 %v932
        %v2521 = vunpack.c.h.b16 %v932
        %v2522 = vunpack.c.l.b16 %v933
        %v2523 = vunpack.c.h.b16 %v933
        %v2524 = vunpack.c.l.b16 %v934
        %v2525 = vunpack.c.h.b16 %v934
        %v2526 = vunpack.c.l.b16 %v935
        %v2527 = vunpack.c.h.b16 %v935
        %v2528 = vunpack.c.l.b16 %v936
        %v2529 = vunpack.c.h.b16 %v936
        %v2530 = vunpack.c.l.b16 %v937
        %v2531 = vunpack.c.h.b16 %v937
        %v2532 = vunpack.c.l.b16 %v938
        %v2533 = vunpack.c.h.b16 %v938
        %v2534 = vunpack.c.l.b16 %v939
        %v2535 = vunpack.c.h.b16 %v939
        %v2536 = vunpack.c.l.b16 %v940
        %v2537 = vunpack.c.h.b16 %v940
        %v2538 = vunpack.c.l.b16 %v941
        %v2539 = vunpack.c.h.b16 %v941
        %v2540 = vunpack.c.l.b16 %v942
        %v2541 = vunpack.c.h.b16 %v942
        %v2542 = vunpack.c.l.b16 %v943
        %v2543 = vunpack.c.h.b16 %v943
        %v2544 = vunpack.c.l.b16 %v944
        %v2545 = vunpack.c.h.b16 %v944
        %v2546 = vunpack.c.l.b16 %v945
        %v2547 = vunpack.c.h.b16 %v945
        %v2548 = vunpack.c.l.b16 %v946
        %v2549 = vunpack.c.h.b16 %v946
        %v2550 = vunpack.c.l.b16 %v947
        %v2551 = vunpack.c.h.b16 %v947
        %v2552 = vunpack.c.l.b16 %v948
        %v2553 = vunpack.c.h.b16 %v948
        %v2554 = vunpack.c.l.b16 %v949
        %v2555 = vunpack.c.h.b16 %v949
        %v2556 = vunpack.c.l.b16 %v950
        %v2557 = vunpack.c.h.b16 %v950
        %v2558 = vunpack.c.l.b16 %v951
        %v2559 = vunpack.c.h.b16 %v951
        %v2560 = vunpack.c.l.b16 %v952
        %v2561 = vunpack.c.h.b16 %v952
        %v2562 = vunpack.c.l.b16 %v953
        %v2563 = vunpack.c.h.b16 %v953
        %v2564 = vunpack.c.l.b16 %v954
        %v2565 = vunpack.c.h.b16 %v954
        %v2566 = vunpack.c.l.b16 %v955
        %v2567 = vunpack.c.h.b16 %v955
        %v2568 = vunpack.c.l.b16 %v956
        %v2569 = vunpack.c.h.b16 %v956
        %v2570 = vunpack.c.l.b16 %v957
        %v2571 = vunpack.c.h.b16 %v957
        %v2572 = vunpack.c.l.b16 %v958
        %v2573 = vunpack.c.h.b16 %v958
        %v2574 = vunpack.c.l.b16 %v959
        %v2575 = vunpack.c.h.b16 %v959
        %v2576 = vunpack.c.l.b16 %v960
        %v2577 = vunpack.c.h.b16 %v960
        %v2578 = vunpack.c.l.b16 %v961
        %v2579 = vunpack.c.h.b16 %v961
        %v2580 = vunpack.c.l.b16 %v962
        %v2581 = vunpack.c.h.b16 %v962
        %v2582 = vunpack.c.l.b16 %v963
        %v2583 = vunpack.c.h.b16 %v963
        %v2584 = vunpack.c.l.b16 %v964
        %v2585 = vunpack.c.h.b16 %v964
        %v2586 = vunpack.c.l.b16 %v965
        %v2587 = vunpack.c.h.b16 %v965
        %v2588 = vunpack.c.l.b16 %v966
        %v2589 = vunpack.c.h.b16 %v966
        %v2590 = vunpack.c.l.b16 %v967
        %v2591 = vunpack.c.h.b16 %v967
        %v2592 = vunpack.c.l.b16 %v968
        %v2593 = vunpack.c.h.b16 %v968
        %v2594 = vunpack.c.l.b16 %v969
        %v2595 = vunpack.c.h.b16 %v969
        %v2596 = vunpack.c.l.b16 %v970
        %v2597 = vunpack.c.h.b16 %v970
        %v2598 = vunpack.c.l.b16 %v971
        %v2599 = vunpack.c.h.b16 %v971
        %v2600 = vunpack.c.l.b16 %v972
        %v2601 = vunpack.c.h.b16 %v972
        %v2602 = vunpack.c.l.b16 %v973
        %v2603 = vunpack.c.h.b16 %v973
        %v2604 = vunpack.c.l.b16 %v974
        %v2605 = vunpack.c.h.b16 %v974
        %v2606 = vunpack.c.l.b16 %v975
        %v2607 = vunpack.c.h.b16 %v975
        %v2608 = vunpack.c.l.b16 %v976
        %v2609 = vunpack.c.h.b16 %v976
        %v2610 = vunpack.c.l.b16 %v977
        %v2611 = vunpack.c.h.b16 %v977
        %v2612 = vunpack.c.l.b16 %v978
        %v2613 = vunpack.c.h.b16 %v978
        %v2614 = vunpack.c.l.b16 %v979
        %v2615 = vunpack.c.h.b16 %v979
        %v2616 = vunpack.c.l.b16 %v980
        %v2617 = vunpack.c.h.b16 %v980
        %v2618 = vunpack.c.l.b16 %v981
        %v2619 = vunpack.c.h.b16 %v981
        %v2620 = vunpack.c.l.b16 %v982
        %v2621 = vunpack.c.h.b16 %v982
        %v2622 = vunpack.c.l.b16 %v983
        %v2623 = vunpack.c.h.b16 %v983
        %v2624 = vunpack.c.l.b16 %v984
        %v2625 = vunpack.c.h.b16 %v984
        %v2626 = vunpack.c.l.b16 %v985
        %v2627 = vunpack.c.h.b16 %v985
        %v2628 = vunpack.c.l.b16 %v986
        %v2629 = vunpack.c.h.b16 %v986
        %v2630 = vunpack.c.l.b16 %v987
        %v2631 = vunpack.c.h.b16 %v987
        %v2632 = vunpack.c.l.b16 %v988
        %v2633 = vunpack.c.h.b16 %v988
        %v2634 = vunpack.c.l.b16 %v989
        %v2635 = vunpack.c.h.b16 %v989
        %v2636 = vunpack.c.l.b16 %v990
        %v2637 = vunpack.c.h.b16 %v990
        %v2638 = vunpack.c.l.b16 %v991
        %v2639 = vunpack.c.h.b16 %v991
        %v2640 = vunpack.c.l.b16 %v992
        %v2641 = vunpack.c.h.b16 %v992
        %v2642 = vunpack.c.l.b16 %v993
        %v2643 = vunpack.c.h.b16 %v993
        %v2644 = vunpack.c.l.b16 %v994
        %v2645 = vunpack.c.h.b16 %v994
        %v2646 = vunpack.c.l.b16 %v995
        %v2647 = vunpack.c.h.b16 %v995
        %v2648 = vunpack.c.l.b16 %v996
        %v2649 = vunpack.c.h.b16 %v996
        %v2650 = vunpack.c.l.b16 %v997
        %v2651 = vunpack.c.h.b16 %v997
        %v2652 = vunpack.c.l.b16 %v998
        %v2653 = vunpack.c.h.b16 %v998
        %v2654 = vunpack.c.l.b16 %v999
        %v2655 = vunpack.c.h.b16 %v999
        %v2656 = vunpack.c.l.b16 %v1000
        %v2657 = vunpack.c.h.b16 %v1000
        %v2658 = vunpack.c.l.b16 %v1001
        %v2659 = vunpack.c.h.b16 %v1001
        %v2660 = vunpack.c.l.b16 %v1002
        %v2661 = vunpack.c.h.b16 %v1002
        %v2662 = vunpack.c.l.b16 %v1003
        %v2663 = vunpack.c.h.b16 %v1003
        %v2664 = vunpack.c.l.b16 %v1004
        %v2665 = vunpack.c.h.b16 %v1004
        %v2666 = vunpack.c.l.b16 %v1005
        %v2667 = vunpack.c.h.b16 %v1005
        %v2668 = vunpack.c.l.b16 %v1006
        %v2669 = vunpack.c.h.b16 %v1006
        %v2670 = vunpack.c.l.b16 %v1007
        %v2671 = vunpack.c.h.b16 %v1007
        %v2672 = vunpack.c.l.b16 %v1008
        %v2673 = vunpack.c.h.b16 %v1008
        %v2674 = vunpack.c.l.b16 %v1009
        %v2675 = vunpack.c.h.b16 %v1009
        %v2676 = vunpack.c.l.b16 %v1010
        %v2677 = vunpack.c.h.b16 %v1010
        %v2678 = vunpack.c.l.b16 %v1011
        %v2679 = vunpack.c.h.b16 %v1011
        %v2680 = vunpack.c.l.b16 %v1012
        %v2681 = vunpack.c.h.b16 %v1012
        %v2682 = vunpack.c.l.b16 %v1013
        %v2683 = vunpack.c.h.b16 %v1013
        %v2684 = vunpack.c.l.b16 %v1014
        %v2685 = vunpack.c.h.b16 %v1014
        %v2686 = vunpack.c.l.b16 %v1015
        %v2687 = vunpack.c.h.b16 %v1015
        %v2688 = vunpack.c.l.b16 %v1016
        %v2689 = vunpack.c.h.b16 %v1016
        %v2690 = vunpack.c.l.b16 %v1017
        %v2691 = vunpack.c.h.b16 %v1017
        %v2692 = vunpack.c.l.b16 %v1018
        %v2693 = vunpack.c.h.b16 %v1018
        %v2694 = vunpack.c.l.b16 %v1019
        %v2695 = vunpack.c.h.b16 %v1019
        %v2696 = vunpack.c.l.b16 %v1020
        %v2697 = vunpack.c.h.b16 %v1020
        %v2698 = vunpack.c.l.b16 %v1021
        %v2699 = vunpack.c.h.b16 %v1021
        %v2700 = vunpack.c.l.b16 %v1022
        %v2701 = vunpack.c.h.b16 %v1022
        %v2702 = vunpack.c.l.b16 %v1023
        %v2703 = vunpack.c.h.b16 %v1023
        %v2704 = vunpack.c.l.b16 %v1024
        %v2705 = vunpack.c.h.b16 %v1024
        %v2706 = vunpack.c.l.b16 %v1025
        %v2707 = vunpack.c.h.b16 %v1025
        %v2708 = vunpack.c.l.b16 %v1026
        %v2709 = vunpack.c.h.b16 %v1026
        %v2710 = vunpack.c.l.b16 %v1027
        %v2711 = vunpack.c.h.b16 %v1027
        %v2712 = vunpack.c.l.b16 %v1028
        %v2713 = vunpack.c.h.b16 %v1028
        %v2714 = vunpack.c.l.b16 %v1029
        %v2715 = vunpack.c.h.b16 %v1029
        %v2716 = vunpack.c.l.b16 %v1030
        %v2717 = vunpack.c.h.b16 %v1030
        %v2718 = vunpack.c.l.b16 %v1031
        %v2719 = vunpack.c.h.b16 %v1031
        %v2720 = vunpack.c.l.b16 %v1032
        %v2721 = vunpack.c.h.b16 %v1032
        %v2722 = vunpack.c.l.b16 %v1033
        %v2723 = vunpack.c.h.b16 %v1033
        %v2724 = vunpack.c.l.b16 %v1034
        %v2725 = vunpack.c.h.b16 %v1034
        %v2726 = vunpack.c.l.b16 %v1035
        %v2727 = vunpack.c.h.b16 %v1035
        %v2728 = vunpack.c.l.b16 %v1036
        %v2729 = vunpack.c.h.b16 %v1036
        %v2730 = vunpack.c.l.b16 %v1037
        %v2731 = vunpack.c.h.b16 %v1037
        %v2732 = vunpack.c.l.b16 %v1038
        %v2733 = vunpack.c.h.b16 %v1038
        %v2734 = vunpack.c.l.b16 %v1039
        %v2735 = vunpack.c.h.b16 %v1039
        %v2736 = vunpack.c.l.b16 %v1040
        %v2737 = vunpack.c.h.b16 %v1040
        %v2738 = vunpack.c.l.b16 %v1041
        %v2739 = vunpack.c.h.b16 %v1041
        %v2740 = vunpack.c.l.b16 %v1042
        %v2741 = vunpack.c.h.b16 %v1042
        %v2742 = vunpack.c.l.b16 %v1043
        %v2743 = vunpack.c.h.b16 %v1043
        %v2744 = vunpack.c.l.b16 %v1044
        %v2745 = vunpack.c.h.b16 %v1044
        %v2746 = vunpack.c.l.b16 %v1045
        %v2747 = vunpack.c.h.b16 %v1045
        %v2748 = vunpack.c.l.b16 %v1046
        %v2749 = vunpack.c.h.b16 %v1046
        %v2750 = vunpack.c.l.b16 %v1047
        %v2751 = vunpack.c.h.b16 %v1047
        %v2752 = vunpack.c.l.b16 %v1048
        %v2753 = vunpack.c.h.b16 %v1048
        %v2754 = vunpack.c.l.b16 %v1049
        %v2755 = vunpack.c.h.b16 %v1049
        %v2756 = vunpack.c.l.b16 %v1050
        %v2757 = vunpack.c.h.b16 %v1050
        %v2758 = vunpack.c.l.b16 %v1051
        %v2759 = vunpack.c.h.b16 %v1051
        %v2760 = vunpack.c.l.b16 %v1052
        %v2761 = vunpack.c.h.b16 %v1052
        %v2762 = vunpack.c.l.b16 %v1053
        %v2763 = vunpack.c.h.b16 %v1053
        %v2764 = vunpack.c.l.b16 %v1054
        %v2765 = vunpack.c.h.b16 %v1054
        %v2766 = vunpack.c.l.b16 %v1055
        %v2767 = vunpack.c.h.b16 %v1055
        %v2768 = vunpack.c.l.b16 %v1056
        %v2769 = vunpack.c.h.b16 %v1056
        %v2770 = vunpack.c.l.b16 %v1057
        %v2771 = vunpack.c.h.b16 %v1057
        %v2772 = vunpack.c.l.b16 %v1058
        %v2773 = vunpack.c.h.b16 %v1058
        %v2774 = vunpack.c.l.b16 %v1059
        %v2775 = vunpack.c.h.b16 %v1059
        %v2776 = vunpack.c.l.b16 %v1060
        %v2777 = vunpack.c.h.b16 %v1060
        %v2778 = vunpack.c.l.b16 %v1061
        %v2779 = vunpack.c.h.b16 %v1061
        %v2780 = vunpack.c.l.b16 %v1062
        %v2781 = vunpack.c.h.b16 %v1062
        %v2782 = vunpack.c.l.b16 %v1063
        %v2783 = vunpack.c.h.b16 %v1063
        %v2784 = vunpack.c.l.b16 %v1064
        %v2785 = vunpack.c.h.b16 %v1064
        %v2786 = vunpack.c.l.b16 %v1065
        %v2787 = vunpack.c.h.b16 %v1065
        %v2788 = vunpack.c.l.b16 %v1066
        %v2789 = vunpack.c.h.b16 %v1066
        %v2790 = vunpack.c.l.b16 %v1067
        %v2791 = vunpack.c.h.b16 %v1067
        %v2792 = vunpack.c.l.b16 %v1068
        %v2793 = vunpack.c.h.b16 %v1068
        %v2794 = vunpack.c.l.b16 %v1069
        %v2795 = vunpack.c.h.b16 %v1069
        %v2796 = vunpack.c.l.b16 %v1070
        %v2797 = vunpack.c.h.b16 %v1070
        %v2798 = vunpack.c.l.b16 %v1071
        %v2799 = vunpack.c.h.b16 %v1071
        %v2800 = vunpack.c.l.b16 %v1072
        %v2801 = vunpack.c.h.b16 %v1072
        %v2802 = vpack.c.b16 %v1716, %v1710
        %v2803 = vpack.c.b16 %v1717, %v1711
        %v2804 = vpack.c.b16 %v1718, %v1712
        %v2805 = vpack.c.b16 %v1719, %v1713
        %v2806 = vpack.c.b16 %v1720, %v1714
        %v2807 = vpack.c.b16 %v1721, %v1715
        %v2808 = vpack.c.b16 %v1728, %v1722
        %v2809 = vpack.c.b16 %v1729, %v1723
        %v2810 = vpack.c.b16 %v1730, %v1724
        %v2811 = vpack.c.b16 %v1731, %v1725
        %v2812 = vpack.c.b16 %v1732, %v1726
        %v2813 = vpack.c.b16 %v1733, %v1727
        %v2814 = vpack.c.b16 %v1740, %v1734
        %v2815 = vpack.c.b16 %v1741, %v1735
        %v2816 = vpack.c.b16 %v1742, %v1736
        %v2817 = vpack.c.b16 %v1743, %v1737
        %v2818 = vpack.c.b16 %v1744, %v1738
        %v2819 = vpack.c.b16 %v1745, %v1739
        %v2820 = vpack.c.b16 %v1752, %v1746
        %v2821 = vpack.c.b16 %v1753, %v1747
        %v2822 = vpack.c.b16 %v1754, %v1748
        %v2823 = vpack.c.b16 %v1755, %v1749
        %v2824 = vpack.c.b16 %v1756, %v1750
        %v2825 = vpack.c.b16 %v1757, %v1751
        %v2826 = vpack.c.b16 %v1764, %v1758
        %v2827 = vpack.c.b16 %v1765, %v1759
        %v2828 = vpack.c.b16 %v1766, %v1760
        %v2829 = vpack.c.b16 %v1767, %v1761
        %v2830 = vpack.c.b16 %v1768, %v1762
        %v2831 = vpack.c.b16 %v1769, %v1763
        %v2832 = vpack.c.b16 %v1776, %v1770
        %v2833 = vpack.c.b16 %v1777, %v1771
        %v2834 = vpack.c.b16 %v1778, %v1772
        %v2835 = vpack.c.b16 %v1779, %v1773
        %v2836 = vpack.c.b16 %v1780, %v1774
        %v2837 = vpack.c.b16 %v1781, %v1775
        %v2838 = vpack.c.b16 %v1788, %v1782
        %v2839 = vpack.c.b16 %v1789, %v1783
        %v2840 = vpack.c.b16 %v1790, %v1784
        %v2841 = vpack.c.b16 %v1791, %v1785
        %v2842 = vpack.c.b16 %v1792, %v1786
        %v2843 = vpack.c.b16 %v1793, %v1787
        %v2844 = vpack.c.b16 %v1800, %v1794
        %v2845 = vpack.c.b16 %v1801, %v1795
        %v2846 = vpack.c.b16 %v1802, %v1796
        %v2847 = vpack.c.b16 %v1803, %v1797
        %v2848 = vpack.c.b16 %v1804, %v1798
        %v2849 = vpack.c.b16 %v1805, %v1799
        %v2850 = vpack.c.b16 %v1812, %v1806
        %v2851 = vpack.c.b16 %v1813, %v1807
        %v2852 = vpack.c.b16 %v1814, %v1808
        %v2853 = vpack.c.b16 %v1815, %v1809
        %v2854 = vpack.c.b16 %v1816, %v1810
        %v2855 = vpack.c.b16 %v1817, %v1811
        %v2856 = vpack.c.b16 %v1824, %v1818
        %v2857 = vpack.c.b16 %v1825, %v1819
        %v2858 = vpack.c.b16 %v1826, %v1820
        %v2859 = vpack.c.b16 %v1827, %v1821
        %v2860 = vpack.c.b16 %v1828, %v1822
        %v2861 = vpack.c.b16 %v1829, %v1823
        %v2862 = vpack.c.b16 %v1836, %v1830
        %v2863 = vpack.c.b16 %v1837, %v1831
        %v2864 = vpack.c.b16 %v1838, %v1832
        %v2865 = vpack.c.b16 %v1839, %v1833
        %v2866 = vpack.c.b16 %v1840, %v1834
        %v2867 = vpack.c.b16 %v1841, %v1835
        %v2868 = vpack.c.b16 %v1848, %v1842
        %v2869 = vpack.c.b16 %v1849, %v1843
        %v2870 = vpack.c.b16 %v1850, %v1844
        %v2871 = vpack.c.b16 %v1851, %v1845
        %v2872 = vpack.c.b16 %v1852, %v1846
        %v2873 = vpack.c.b16 %v1853, %v1847
        %v2874 = vpack.c.b16 %v1860, %v1854
        %v2875 = vpack.c.b16 %v1861, %v1855
        %v2876 = vpack.c.b16 %v1862, %v1856
        %v2877 = vpack.c.b16 %v1863, %v1857
        %v2878 = vpack.c.b16 %v1864, %v1858
        %v2879 = vpack.c.b16 %v1865, %v1859
        %v2880 = vpack.c.b16 %v1872, %v1866
        %v2881 = vpack.c.b16 %v1873, %v1867
        %v2882 = vpack.c.b16 %v1874, %v1868
        %v2883 = vpack.c.b16 %v1875, %v1869
        %v2884 = vpack.c.b16 %v1876, %v1870
        %v2885 = vpack.c.b16 %v1877, %v1871
        %v2886 = vpack.c.b16 %v1884, %v1878
        %v2887 = vpack.c.b16 %v1885, %v1879
        %v2888 = vpack.c.b16 %v1886, %v1880
        %v2889 = vpack.c.b16 %v1887, %v1881
        %v2890 = vpack.c.b16 %v1888, %v1882
        %v2891 = vpack.c.b16 %v1889, %v1883
        %v2892 = vpack.c.b16 %v1896, %v1890
        %v2893 = vpack.c.b16 %v1897, %v1891
        %v2894 = vpack.c.b16 %v1898, %v1892
        %v2895 = vpack.c.b16 %v1899, %v1893
        %v2896 = vpack.c.b16 %v1900, %v1894
        %v2897 = vpack.c.b16 %v1901, %v1895
        %v2898 = vpack.c.b16 %v1908, %v1902
        %v2899 = vpack.c.b16 %v1909, %v1903
        %v2900 = vpack.c.b16 %v1910, %v1904
        %v2901 = vpack.c.b16 %v1911, %v1905
        %v2902 = vpack.c.b16 %v1912, %v1906
        %v2903 = vpack.c.b16 %v1913, %v1907
        %v2904 = vpack.c.b16 %v1920, %v1914
        %v2905 = vpack.c.b16 %v1921, %v1915
        %v2906 = vpack.c.b16 %v1922, %v1916
        %v2907 = vpack.c.b16 %v1923, %v1917
        %v2908 = vpack.c.b16 %v1924, %v1918
        %v2909 = vpack.c.b16 %v1925, %v1919
        %v2910 = vpack.c.b16 %v1932, %v1926
        %v2911 = vpack.c.b16 %v1933, %v1927
        %v2912 = vpack.c.b16 %v1934, %v1928
        %v2913 = vpack.c.b16 %v1935, %v1929
        %v2914 = vpack.c.b16 %v1936, %v1930
        %v2915 = vpack.c.b16 %v1937, %v1931
        %v2916 = vpack.c.b16 %v1944, %v1938
        %v2917 = vpack.c.b16 %v1945, %v1939
        %v2918 = vpack.c.b16 %v1946, %v1940
        %v2919 = vpack.c.b16 %v1947, %v1941
        %v2920 = vpack.c.b16 %v1948, %v1942
        %v2921 = vpack.c.b16 %v1949, %v1943
        %v2922 = vpack.c.b16 %v1956, %v1950
        %v2923 = vpack.c.b16 %v1957, %v1951
        %v2924 = vpack.c.b16 %v1958, %v1952
        %v2925 = vpack.c.b16 %v1959, %v1953
        %v2926 = vpack.c.b16 %v1960, %v1954
        %v2927 = vpack.c.b16 %v1961, %v1955
        %v2928 = vpack.c.b16 %v1968, %v1962
        %v2929 = vpack.c.b16 %v1969, %v1963
        %v2930 = vpack.c.b16 %v1970, %v1964
        %v2931 = vpack.c.b16 %v1971, %v1965
        %v2932 = vpack.c.b16 %v1972, %v1966
        %v2933 = vpack.c.b16 %v1973, %v1967
        %v2934 = vpack.c.b16 %v1980, %v1974
        %v2935 = vpack.c.b16 %v1981, %v1975
        %v2936 = vpack.c.b16 %v1982, %v1976
        %v2937 = vpack.c.b16 %v1983, %v1977
        %v2938 = vpack.c.b16 %v1984, %v1978
        %v2939 = vpack.c.b16 %v1985, %v1979
        %v2940 = vpack.c.b16 %v1992, %v1986
        %v2941 = vpack.c.b16 %v1993, %v1987
        %v2942 = vpack.c.b16 %v1994, %v1988
        %v2943 = vpack.c.b16 %v1995, %v1989
        %v2944 = vpack.c.b16 %v1996, %v1990
        %v2945 = vpack.c.b16 %v1997, %v1991
        %v2946 = vpack.c.b16 %v2004, %v1998
        %v2947 = vpack.c.b16 %v2005, %v1999
        %v2948 = vpack.c.b16 %v2006, %v2000
        %v2949 = vpack.c.b16 %v2007, %v2001
        %v2950 = vpack.c.b16 %v2008, %v2002
        %v2951 = vpack.c.b16 %v2009, %v2003
        %v2952 = vpack.c.b16 %v2016, %v2010
        %v2953 = vpack.c.b16 %v2017, %v2011
        %v2954 = vpack.c.b16 %v2018, %v2012
        %v2955 = vpack.c.b16 %v2019, %v2013
        %v2956 = vpack.c.b16 %v2020, %v2014
        %v2957 = vpack.c.b16 %v2021, %v2015
        %v2958 = vpack.c.b16 %v2028, %v2022
        %v2959 = vpack.c.b16 %v2029, %v2023
        %v2960 = vpack.c.b16 %v2030, %v2024
        %v2961 = vpack.c.b16 %v2031, %v2025
        %v2962 = vpack.c.b16 %v2032, %v2026
        %v2963 = vpack.c.b16 %v2033, %v2027
        %v2964 = vpack.c.b16 %v2040, %v2034
        %v2965 = vpack.c.b16 %v2041, %v2035
        %v2966 = vpack.c.b16 %v2042, %v2036
        %v2967 = vpack.c.b16 %v2043, %v2037
        %v2968 = vpack.c.b16 %v2044, %v2038
        %v2969 = vpack.c.b16 %v2045, %v2039
        %v2970 = vpack.c.b16 %v2052, %v2046
        %v2971 = vpack.c.b16 %v2053, %v2047
        %v2972 = vpack.c.b16 %v2054, %v2048
        %v2973 = vpack.c.b16 %v2055, %v2049
        %v2974 = vpack.c.b16 %v2056, %v2050
        %v2975 = vpack.c.b16 %v2057, %v2051
        %v2976 = vpack.c.b16 %v2064, %v2058
        %v2977 = vpack.c.b16 %v2065, %v2059
        %v2978 = vpack.c.b16 %v2066, %v2060
        %v2979 = vpack.c.b16 %v2067, %v2061
        %v2980 = vpack.c.b16 %v2068, %v2062
        %v2981 = vpack.c.b16 %v2069, %v2063
        %v2982 = vpack.c.b16 %v2076, %v2070
        %v2983 = vpack.c.b16 %v2077, %v2071
        %v2984 = vpack.c.b16 %v2078, %v2072
        %v2985 = vpack.c.b16 %v2079, %v2073
        %v2986 = vpack.c.b16 %v2080, %v2074
        %v2987 = vpack.c.b16 %v2081, %v2075
        %v2988 = vpack.c.b16 %v2088, %v2082
        %v2989 = vpack.c.b16 %v2089, %v2083
        %v2990 = vpack.c.b16 %v2090, %v2084
        %v2991 = vpack.c.b16 %v2091, %v2085
        %v2992 = vpack.c.b16 %v2092, %v2086
        %v2993 = vpack.c.b16 %v2093, %v2087
        %v2994 = vpack.c.b16 %v2100, %v2094
        %v2995 = vpack.c.b16 %v2101, %v2095
        %v2996 = vpack.c.b16 %v2102, %v2096
        %v2997 = vpack.c.b16 %v2103, %v2097
        %v2998 = vpack.c.b16 %v2104, %v2098
        %v2999 = vpack.c.b16 %v2105, %v2099
        %v3000 = vpack.c.b16 %v2112, %v2106
        %v3001 = vpack.c.b16 %v2113, %v2107
        %v3002 = vpack.c.b16 %v2114, %v2108
        %v3003 = vpack.c.b16 %v2115, %v2109
        %v3004 = vpack.c.b16 %v2116, %v2110
        %v3005 = vpack.c.b16 %v2117, %v2111
        %v3006 = vpack.c.b16 %v2124, %v2118
        %v3007 = vpack.c.b16 %v2125, %v2119
        %v3008 = vpack.c.b16 %v2126, %v2120
        %v3009 = vpack.c.b16 %v2127, %v2121
        %v3010 = vpack.c.b16 %v2128, %v2122
        %v3011 = vpack.c.b16 %v2129, %v2123
        %v3012 = vpack.c.b16 %v2136, %v2130
        %v3013 = vpack.c.b16 %v2137, %v2131
        %v3014 = vpack.c.b16 %v2138, %v2132
        %v3015 = vpack.c.b16 %v2139, %v2133
        %v3016 = vpack.c.b16 %v2140, %v2134
        %v3017 = vpack.c.b16 %v2141, %v2135
        %v3018 = vpack.c.b16 %v2148, %v2142
        %v3019 = vpack.c.b16 %v2149, %v2143
        %v3020 = vpack.c.b16 %v2150, %v2144
        %v3021 = vpack.c.b16 %v2151, %v2145
        %v3022 = vpack.c.b16 %v2152, %v2146
        %v3023 = vpack.c.b16 %v2153, %v2147
        %v3024 = vpack.c.b16 %v2160, %v2154
        %v3025 = vpack.c.b16 %v2161, %v2155
        %v3026 = vpack.c.b16 %v2162, %v2156
        %v3027 = vpack.c.b16 %v2163, %v2157
        %v3028 = vpack.c.b16 %v2164, %v2158
        %v3029 = vpack.c.b16 %v2165, %v2159
        %v3030 = vpack.c.b16 %v2172, %v2166
        %v3031 = vpack.c.b16 %v2173, %v2167
        %v3032 = vpack.c.b16 %v2174, %v2168
        %v3033 = vpack.c.b16 %v2175, %v2169
        %v3034 = vpack.c.b16 %v2176, %v2170
        %v3035 = vpack.c.b16 %v2177, %v2171
        %v3036 = vpack.c.b16 %v2184, %v2178
        %v3037 = vpack.c.b16 %v2185, %v2179
        %v3038 = vpack.c.b16 %v2186, %v2180
        %v3039 = vpack.c.b16 %v2187, %v2181
        %v3040 = vpack.c.b16 %v2188, %v2182
        %v3041 = vpack.c.b16 %v2189, %v2183
        %v3042 = vpack.c.b16 %v2196, %v2190
        %v3043 = vpack.c.b16 %v2197, %v2191
        %v3044 = vpack.c.b16 %v2198, %v2192
        %v3045 = vpack.c.b16 %v2199, %v2193
        %v3046 = vpack.c.b16 %v2200, %v2194
        %v3047 = vpack.c.b16 %v2201, %v2195
        %v3048 = vpack.c.b16 %v2208, %v2202
        %v3049 = vpack.c.b16 %v2209, %v2203
        %v3050 = vpack.c.b16 %v2210, %v2204
        %v3051 = vpack.c.b16 %v2211, %v2205
        %v3052 = vpack.c.b16 %v2212, %v2206
        %v3053 = vpack.c.b16 %v2213, %v2207
        %v3054 = vpack.c.b16 %v2220, %v2214
        %v3055 = vpack.c.b16 %v2221, %v2215
        %v3056 = vpack.c.b16 %v2222, %v2216
        %v3057 = vpack.c.b16 %v2223, %v2217
        %v3058 = vpack.c.b16 %v2224, %v2218
        %v3059 = vpack.c.b16 %v2225, %v2219
        %v3060 = vpack.c.b16 %v2232, %v2226
        %v3061 = vpack.c.b16 %v2233, %v2227
        %v3062 = vpack.c.b16 %v2234, %v2228
        %v3063 = vpack.c.b16 %v2235, %v2229
        %v3064 = vpack.c.b16 %v2236, %v2230
        %v3065 = vpack.c.b16 %v2237, %v2231
        %v3066 = vpack.c.b16 %v2244, %v2238
        %v3067 = vpack.c.b16 %v2245, %v2239
        %v3068 = vpack.c.b16 %v2246, %v2240
        %v3069 = vpack.c.b16 %v2247, %v2241
        %v3070 = vpack.c.b16 %v2248, %v2242
        %v3071 = vpack.c.b16 %v2249, %v2243
        %v3072 = vpack.c.b16 %v2256, %v2250
        %v3073 = vpack.c.b16 %v2257, %v2251
        %v3074 = vpack.c.b16 %v2258, %v2252
        %v3075 = vpack.c.b16 %v2259, %v2253
        %v3076 = vpack.c.b16 %v2260, %v2254
        %v3077 = vpack.c.b16 %v2261, %v2255
        %v3078 = vpack.c.b16 %v2268, %v2262
        %v3079 = vpack.c.b16 %v2269, %v2263
        %v3080 = vpack.c.b16 %v2270, %v2264
        %v3081 = vpack.c.b16 %v2271, %v2265
        %v3082 = vpack.c.b16 %v2272, %v2266
        %v3083 = vpack.c.b16 %v2273, %v2267
        %v3084 = vpack.c.b16 %v2280, %v2274
        %v3085 = vpack.c.b16 %v2281, %v2275
        %v3086 = vpack.c.b16 %v2282, %v2276
        %v3087 = vpack.c.b16 %v2283, %v2277
        %v3088 = vpack.c.b16 %v2284, %v2278
        %v3089 = vpack.c.b16 %v2285, %v2279
        %v3090 = vpack.c.b16 %v2292, %v2286
        %v3091 = vpack.c.b16 %v2293, %v2287
        %v3092 = vpack.c.b16 %v2294, %v2288
        %v3093 = vpack.c.b16 %v2295, %v2289
        %v3094 = vpack.c.b16 %v2296, %v2290
        %v3095 = vpack.c.b16 %v2297, %v2291
        %v3096 = vpack.c.b16 %v2304, %v2298
        %v3097 = vpack.c.b16 %v2305, %v2299
        %v3098 = vpack.c.b16 %v2306, %v2300
        %v3099 = vpack.c.b16 %v2307, %v2301
        %v3100 = vpack.c.b16 %v2308, %v2302
        %v3101 = vpack.c.b16 %v2309, %v2303
        %v3102 = vpack.c.b16 %v2316, %v2310
        %v3103 = vpack.c.b16 %v2317, %v2311
        %v3104 = vpack.c.b16 %v2318, %v2312
        %v3105 = vpack.c.b16 %v2319, %v2313
        %v3106 = vpack.c.b16 %v2320, %v2314
        %v3107 = vpack.c.b16 %v2321, %v2315
        %v3108 = vpack.c.b16 %v2328, %v2322
        %v3109 = vpack.c.b16 %v2329, %v2323
        %v3110 = vpack.c.b16 %v2330, %v2324
        %v3111 = vpack.c.b16 %v2331, %v2325
        %v3112 = vpack.c.b16 %v2332, %v2326
        %v3113 = vpack.c.b16 %v2333, %v2327
        %v3114 = vpack.c.b16 %v2340, %v2334
        %v3115 = vpack.c.b16 %v2341, %v2335
        %v3116 = vpack.c.b16 %v2342, %v2336
        %v3117 = vpack.c.b16 %v2343, %v2337
        %v3118 = vpack.c.b16 %v2344, %v2338
        %v3119 = vpack.c.b16 %v2345, %v2339
        %v3120 = vpack.c.b16 %v2352, %v2346
        %v3121 = vpack.c.b16 %v2353, %v2347
        %v3122 = vpack.c.b16 %v2354, %v2348
        %v3123 = vpack.c.b16 %v2355, %v2349
        %v3124 = vpack.c.b16 %v2356, %v2350
        %v3125 = vpack.c.b16 %v2357, %v2351
        %v3126 = vpack.c.b16 %v2364, %v2358
        %v3127 = vpack.c.b16 %v2365, %v2359
        %v3128 = vpack.c.b16 %v2366, %v2360
        %v3129 = vpack.c.b16 %v2367, %v2361
        %v3130 = vpack.c.b16 %v2368, %v2362
        %v3131 = vpack.c.b16 %v2369, %v2363
        %v3132 = vpack.c.b16 %v2376, %v2370
        %v3133 = vpack.c.b16 %v2377, %v2371
        %v3134 = vpack.c.b16 %v2378, %v2372
        %v3135 = vpack.c.b16 %v2379, %v2373
        %v3136 = vpack.c.b16 %v2380, %v2374
        %v3137 = vpack.c.b16 %v2381, %v2375
        %v3138 = vpack.c.b16 %v2388, %v2382
        %v3139 = vpack.c.b16 %v2389, %v2383
        %v3140 = vpack.c.b16 %v2390, %v2384
        %v3141 = vpack.c.b16 %v2391, %v2385
        %v3142 = vpack.c.b16 %v2392, %v2386
        %v3143 = vpack.c.b16 %v2393, %v2387
        %v3144 = vpack.c.b16 %v2400, %v2394
        %v3145 = vpack.c.b16 %v2401, %v2395
        %v3146 = vpack.c.b16 %v2402, %v2396
        %v3147 = vpack.c.b16 %v2403, %v2397
        %v3148 = vpack.c.b16 %v2404, %v2398
        %v3149 = vpack.c.b16 %v2405, %v2399
        %v3150 = vpack.c.b16 %v2412, %v2406
        %v3151 = vpack.c.b16 %v2413, %v2407
        %v3152 = vpack.c.b16 %v2414, %v2408
        %v3153 = vpack.c.b16 %v2415, %v2409
        %v3154 = vpack.c.b16 %v2416, %v2410
        %v3155 = vpack.c.b16 %v2417, %v2411
        %v3156 = vpack.c.b16 %v2424, %v2418
        %v3157 = vpack.c.b16 %v2425, %v2419
        %v3158 = vpack.c.b16 %v2426, %v2420
        %v3159 = vpack.c.b16 %v2427, %v2421
        %v3160 = vpack.c.b16 %v2428, %v2422
        %v3161 = vpack.c.b16 %v2429, %v2423
        %v3162 = vpack.c.b16 %v2436, %v2430
        %v3163 = vpack.c.b16 %v2437, %v2431
        %v3164 = vpack.c.b16 %v2438, %v2432
        %v3165 = vpack.c.b16 %v2439, %v2433
        %v3166 = vpack.c.b16 %v2440, %v2434
        %v3167 = vpack.c.b16 %v2441, %v2435
        %v3168 = vpack.c.b16 %v2448, %v2442
        %v3169 = vpack.c.b16 %v2449, %v2443
        %v3170 = vpack.c.b16 %v2450, %v2444
        %v3171 = vpack.c.b16 %v2451, %v2445
        %v3172 = vpack.c.b16 %v2452, %v2446
        %v3173 = vpack.c.b16 %v2453, %v2447
        %v3174 = vpack.c.b16 %v2460, %v2454
        %v3175 = vpack.c.b16 %v2461, %v2455
        %v3176 = vpack.c.b16 %v2462, %v2456
        %v3177 = vpack.c.b16 %v2463, %v2457
        %v3178 = vpack.c.b16 %v2464, %v2458
        %v3179 = vpack.c.b16 %v2465, %v2459
        %v3180 = vpack.c.b16 %v2472, %v2466
        %v3181 = vpack.c.b16 %v2473, %v2467
        %v3182 = vpack.c.b16 %v2474, %v2468
        %v3183 = vpack.c.b16 %v2475, %v2469
        %v3184 = vpack.c.b16 %v2476, %v2470
        %v3185 = vpack.c.b16 %v2477, %v2471
        %v3186 = vpack.c.b16 %v2484, %v2478
        %v3187 = vpack.c.b16 %v2485, %v2479
        %v3188 = vpack.c.b16 %v2486, %v2480
        %v3189 = vpack.c.b16 %v2487, %v2481
        %v3190 = vpack.c.b16 %v2488, %v2482
        %v3191 = vpack.c.b16 %v2489, %v2483
        %v3192 = vpack.c.b16 %v2496, %v2490
        %v3193 = vpack.c.b16 %v2497, %v2491
        %v3194 = vpack.c.b16 %v2498, %v2492
        %v3195 = vpack.c.b16 %v2499, %v2493
        %v3196 = vpack.c.b16 %v2500, %v2494
        %v3197 = vpack.c.b16 %v2501, %v2495
        %v3198 = vpack.c.b16 %v2508, %v2502
        %v3199 = vpack.c.b16 %v2509, %v2503
        %v3200 = vpack.c.b16 %v2510, %v2504
        %v3201 = vpack.c.b16 %v2511, %v2505
        %v3202 = vpack.c.b16 %v2512, %v2506
        %v3203 = vpack.c.b16 %v2513, %v2507
        %v3204 = vpack.c.b16 %v2520, %v2514
        %v3205 = vpack.c.b16 %v2521, %v2515
        %v3206 = vpack.c.b16 %v2522, %v2516
        %v3207 = vpack.c.b16 %v2523, %v2517
        %v3208 = vpack.c.b16 %v2524, %v2518
        %v3209 = vpack.c.b16 %v2525, %v2519
        %v3210 = vpack.c.b16 %v2532, %v2526
        %v3211 = vpack.c.b16 %v2533, %v2527
        %v3212 = vpack.c.b16 %v2534, %v2528
        %v3213 = vpack.c.b16 %v2535, %v2529
        %v3214 = vpack.c.b16 %v2536, %v2530
        %v3215 = vpack.c.b16 %v2537, %v2531
        %v3216 = vpack.c.b16 %v2544, %v2538
        %v3217 = vpack.c.b16 %v2545, %v2539
        %v3218 = vpack.c.b16 %v2546, %v2540
        %v3219 = vpack.c.b16 %v2547, %v2541
        %v3220 = vpack.c.b16 %v2548, %v2542
        %v3221 = vpack.c.b16 %v2549, %v2543
        %v3222 = vpack.c.b16 %v2556, %v2550
        %v3223 = vpack.c.b16 %v2557, %v2551
        %v3224 = vpack.c.b16 %v2558, %v2552
        %v3225 = vpack.c.b16 %v2559, %v2553
        %v3226 = vpack.c.b16 %v2560, %v2554
        %v3227 = vpack.c.b16 %v2561, %v2555
        %v3228 = vpack.c.b16 %v2568, %v2562
        %v3229 = vpack.c.b16 %v2569, %v2563
        %v3230 = vpack.c.b16 %v2570, %v2564
        %v3231 = vpack.c.b16 %v2571, %v2565
        %v3232 = vpack.c.b16 %v2572, %v2566
        %v3233 = vpack.c.b16 %v2573, %v2567
        %v3234 = vpack.c.b16 %v2580, %v2574
        %v3235 = vpack.c.b16 %v2581, %v2575
        %v3236 = vpack.c.b16 %v2582, %v2576
        %v3237 = vpack.c.b16 %v2583, %v2577
        %v3238 = vpack.c.b16 %v2584, %v2578
        %v3239 = vpack.c.b16 %v2585, %v2579
        %v3240 = vpack.c.b16 %v2592, %v2586
        %v3241 = vpack.c.b16 %v2593, %v2587
        %v3242 = vpack.c.b16 %v2594, %v2588
        %v3243 = vpack.c.b16 %v2595, %v2589
        %v3244 = vpack.c.b16 %v2596, %v2590
        %v3245 = vpack.c.b16 %v2597, %v2591
        %v3246 = vpack.c.b16 %v2604, %v2598
        %v3247 = vpack.c.b16 %v2605, %v2599
        %v3248 = vpack.c.b16 %v2606, %v2600
        %v3249 = vpack.c.b16 %v2607, %v2601
        %v3250 = vpack.c.b16 %v2608, %v2602
        %v3251 = vpack.c.b16 %v2609, %v2603
        %v3252 = vpack.c.b16 %v2616, %v2610
        %v3253 = vpack.c.b16 %v2617, %v2611
        %v3254 = vpack.c.b16 %v2618, %v2612
        %v3255 = vpack.c.b16 %v2619, %v2613
        %v3256 = vpack.c.b16 %v2620, %v2614
        %v3257 = vpack.c.b16 %v2621, %v2615
        %v3258 = vpack.c.b16 %v2628, %v2622
        %v3259 = vpack.c.b16 %v2629, %v2623
        %v3260 = vpack.c.b16 %v2630, %v2624
        %v3261 = vpack.c.b16 %v2631, %v2625
        %v3262 = vpack.c.b16 %v2632, %v2626
        %v3263 = vpack.c.b16 %v2633, %v2627
        %v3264 = vpack.c.b16 %v2640, %v2634
        %v3265 = vpack.c.b16 %v2641, %v2635
        %v3266 = vpack.c.b16 %v2642, %v2636
        %v3267 = vpack.c.b16 %v2643, %v2637
        %v3268 = vpack.c.b16 %v2644, %v2638
        %v3269 = vpack.c.b16 %v2645, %v2639
        %v3270 = vpack.c.b16 %v2652, %v2646
        %v3271 = vpack.c.b16 %v2653, %v2647
        %v3272 = vpack.c.b16 %v2654, %v2648
        %v3273 = vpack.c.b16 %v2655, %v2649
        %v3274 = vpack.c.b16 %v2656, %v2650
        %v3275 = vpack.c.b16 %v2657, %v2651
        %v3276 = vpack.c.b16 %v2664, %v2658
        %v3277 = vpack.c.b16 %v2665, %v2659
        %v3278 = vpack.c.b16 %v2666, %v2660
        %v3279 = vpack.c.b16 %v2667, %v2661
        %v3280 = vpack.c.b16 %v2668, %v2662
        %v3281 = vpack.c.b16 %v2669, %v2663
        %v3282 = vpack.c.b16 %v2676, %v2670
        %v3283 = vpack.c.b16 %v2677, %v2671
        %v3284 = vpack.c.b16 %v2678, %v2672
        %v3285 = vpack.c.b16 %v2679, %v2673
        %v3286 = vpack.c.b16 %v2680, %v2674
        %v3287 = vpack.c.b16 %v2681, %v2675
        %v3288 = vpack.c.b16 %v2688, %v2682
        %v3289 = vpack.c.b16 %v2689, %v2683
        %v3290 = vpack.c.b16 %v2690, %v2684
        %v3291 = vpack.c.b16 %v2691, %v2685
        %v3292 = vpack.c.b16 %v2692, %v2686
        %v3293 = vpack.c.b16 %v2693, %v2687
        %v3294 = vpack.c.b16 %v2700, %v2694
        %v3295 = vpack.c.b16 %v2701, %v2695
        %v3296 = vpack.c.b16 %v2702, %v2696
        %v3297 = vpack.c.b16 %v2703, %v2697
        %v3298 = vpack.c.b16 %v2704, %v2698
        %v3299 = vpack.c.b16 %v2705, %v2699
        %v3300 = vpack.c.b16 %v2712, %v2706
        %v3301 = vpack.c.b16 %v2713, %v2707
        %v3302 = vpack.c.b16 %v2714, %v2708
        %v3303 = vpack.c.b16 %v2715, %v2709
        %v3304 = vpack.c.b16 %v2716, %v2710
        %v3305 = vpack.c.b16 %v2717, %v2711
        %v3306 = vpack.c.b16 %v2724, %v2718
        %v3307 = vpack.c.b16 %v2725, %v2719
        %v3308 = vpack.c.b16 %v2726, %v2720
        %v3309 = vpack.c.b16 %v2727, %v2721
        %v3310 = vpack.c.b16 %v2728, %v2722
        %v3311 = vpack.c.b16 %v2729, %v2723
        %v3312 = vpack.c.b16 %v2736, %v2730
        %v3313 = vpack.c.b16 %v2737, %v2731
        %v3314 = vpack.c.b16 %v2738, %v2732
        %v3315 = vpack.c.b16 %v2739, %v2733
        %v3316 = vpack.c.b16 %v2740, %v2734
        %v3317 = vpack.c.b16 %v2741, %v2735
        %v3318 = vpack.c.b16 %v2748, %v2742
        %v3319 = vpack.c.b16 %v2749, %v2743
        %v3320 = vpack.c.b16 %v2750, %v2744
        %v3321 = vpack.c.b16 %v2751, %v2745
        %v3322 = vpack.c.b16 %v2752, %v2746
        %v3323 = vpack.c.b16 %v2753, %v2747
        %v3324 = vpack.c.b16 %v2760, %v2754
        %v3325 = vpack.c.b16 %v2761, %v2755
        %v3326 = vpack.c.b16 %v2762, %v2756
        %v3327 = vpack.c.b16 %v2763, %v2757
        %v3328 = vpack.c.b16 %v2764, %v2758
        %v3329 = vpack.c.b16 %v2765, %v2759
        %v3330 = vpack.c.b16 %v2772, %v2766
        %v3331 = vpack.c.b16 %v2773, %v2767
        %v3332 = vpack.c.b16 %v2774, %v2768
        %v3333 = vpack.c.b16 %v2775, %v2769
        %v3334 = vpack.c.b16 %v2776, %v2770
        %v3335 = vpack.c.b16 %v2777, %v2771
        %v3336 = vpack.c.b16 %v2784, %v2778
        %v3337 = vpack.c.b16 %v2785, %v2779
        %v3338 = vpack.c.b16 %v2786, %v2780
        %v3339 = vpack.c.b16 %v2787, %v2781
        %v3340 = vpack.c.b16 %v2788, %v2782
        %v3341 = vpack.c.b16 %v2789, %v2783
        %v3342 = vpack.c.b16 %v2796, %v2790
        %v3343 = vpack.c.b16 %v2797, %v2791
        %v3344 = vpack.c.b16 %v2798, %v2792
        %v3345 = vpack.c.b16 %v2799, %v2793
        %v3346 = vpack.c.b16 %v2800, %v2794
        %v3347 = vpack.c.b16 %v2801, %v2795
        %vm3894 = vcmask 392192
        %v3896 = vsel %vm3894, %v1152, 0
        %3898 = vmatprep.subr.bf16.mxu0 %v2803
        %3899 = vmatpush1.bf16.msra.mxu0 %v2802
        %3900 = vmatprep.subr.bf16.mxu0 %v2809
        %3901 = vmatpush1.bf16.msra.mxu0 %v2808
        %3902 = vmatprep.subr.bf16.mxu0 %v2815
        %3903 = vmatpush1.bf16.msra.mxu0 %v2814
        %3904 = vmatprep.subr.bf16.mxu0 %v2821
        %3905 = vmatpush1.bf16.msra.mxu0 %v2820
        %3906 = vmatprep.subr.bf16.mxu0 %v2827
        %3907 = vmatpush1.bf16.msra.mxu0 %v2826
        %3908 = vmatprep.subr.bf16.mxu0 %v2833
        %3909 = vmatpush1.bf16.msra.mxu0 %v2832
        %3910 = vmatprep.subr.bf16.mxu0 %v2839
        %3911 = vmatpush1.bf16.msra.mxu0 %v2838
        %3912 = vmatprep.subr.bf16.mxu0 %v2845
        %3913 = vmatpush1.bf16.msra.mxu0 %v2844
        %3914 = vmatprep.subr.bf16.mxu0 %v2851
        %3915 = vmatpush1.bf16.msra.mxu0 %v2850
        %3916 = vmatprep.subr.bf16.mxu0 %v2857
        %3917 = vmatpush1.bf16.msra.mxu0 %v2856
        %3918 = vmatprep.subr.bf16.mxu0 %v2863
        %3919 = vmatpush1.bf16.msra.mxu0 %v2862
        %3920 = vmatprep.subr.bf16.mxu0 %v2869
        %3921 = vmatpush1.bf16.msra.mxu0 %v2868
        %3922 = vmatprep.subr.bf16.mxu0 %v2875
        %3923 = vmatpush1.bf16.msra.mxu0 %v2874
        %3924 = vmatprep.subr.bf16.mxu0 %v2881
        %3925 = vmatpush1.bf16.msra.mxu0 %v2880
        %3926 = vmatprep.subr.bf16.mxu0 %v2887
        %3927 = vmatpush1.bf16.msra.mxu0 %v2886
        %3928 = vmatprep.subr.bf16.mxu0 %v2893
        %3929 = vmatpush1.bf16.msra.mxu0 %v2892
        %3930 = vmatprep.mubr.bf16.mxu0 %v1142
        %3931 = vmatmul.mubr.bf16.gmra.mrb[0].mxu0 %v1141
        %v3932 = vpop.f32.mrb[0].mxu0
        %v3933 = vadd.f32 %v1078, %v3932
        %v3934 = vpop.f32.mrb[0].mxu0
        %v3935 = vadd.f32 %v1082, %v3934
        %v3936 = vpop.f32.mrb[0].mxu0
        %v3937 = vadd.f32 %v1078, %v3936
        %v3938 = vpop.f32.mrb[0].mxu0
        %v3939 = vadd.f32 %v1082, %v3938
        %3940 = vdwg.mxu0
        %3941 = vmatprep.subr.bf16.mxu0 %v2899
        %3942 = vmatpush1.bf16.msra.mxu0 %v2898
        %3943 = vmatprep.subr.bf16.mxu0 %v2905
        %3944 = vmatpush1.bf16.msra.mxu0 %v2904
        %3945 = vmatprep.subr.bf16.mxu0 %v2911
        %3946 = vmatpush1.bf16.msra.mxu0 %v2910
        %3947 = vmatprep.subr.bf16.mxu0 %v2917
        %3948 = vmatpush1.bf16.msra.mxu0 %v2916
        %3949 = vmatprep.subr.bf16.mxu0 %v2923
        %3950 = vmatpush1.bf16.msra.mxu0 %v2922
        %3951 = vmatprep.subr.bf16.mxu0 %v2929
        %3952 = vmatpush1.bf16.msra.mxu0 %v2928
        %3953 = vmatprep.subr.bf16.mxu0 %v2935
        %3954 = vmatpush1.bf16.msra.mxu0 %v2934
        %3955 = vmatprep.subr.bf16.mxu0 %v2941
        %3956 = vmatpush1.bf16.msra.mxu0 %v2940
        %3957 = vmatprep.subr.bf16.mxu0 %v2947
        %3958 = vmatpush1.bf16.msra.mxu0 %v2946
        %3959 = vmatprep.subr.bf16.mxu0 %v2953
        %3960 = vmatpush1.bf16.msra.mxu0 %v2952
        %3961 = vmatprep.subr.bf16.mxu0 %v2959
        %3962 = vmatpush1.bf16.msra.mxu0 %v2958
        %3963 = vmatprep.subr.bf16.mxu0 %v2965
        %3964 = vmatpush1.bf16.msra.mxu0 %v2964
        %3965 = vmatprep.subr.bf16.mxu0 %v2971
        %3966 = vmatpush1.bf16.msra.mxu0 %v2970
        %3967 = vmatprep.subr.bf16.mxu0 %v2977
        %3968 = vmatpush1.bf16.msra.mxu0 %v2976
        %3969 = vmatprep.subr.bf16.mxu0 %v2983
        %3970 = vmatpush1.bf16.msra.mxu0 %v2982
        %3971 = vmatprep.subr.bf16.mxu0 %v2989
        %3972 = vmatpush1.bf16.msra.mxu0 %v2988
        %3973 = vmatprep.mubr.bf16.mxu0 %v1144
        %3974 = vmatmul.mubr.bf16.gmra.mrb[0].mxu0 %v1143
        %v3975 = vpop.f32.mrb[0].mxu0
        %v3976 = vadd.f32 %v3933, %v3975
        %v3977 = vpop.f32.mrb[0].mxu0
        %v3978 = vadd.f32 %v3935, %v3977
        %v3979 = vpop.f32.mrb[0].mxu0
        %v3980 = vadd.f32 %v3937, %v3979
        %v3981 = vpop.f32.mrb[0].mxu0
        %v3982 = vadd.f32 %v3939, %v3981
        %3983 = vdwg.mxu0
        %3984 = vmatprep.subr.bf16.mxu0 %v2995
        %3985 = vmatpush1.bf16.msra.mxu0 %v2994
        %3986 = vmatprep.subr.bf16.mxu0 %v3001
        %3987 = vmatpush1.bf16.msra.mxu0 %v3000
        %3988 = vmatprep.subr.bf16.mxu0 %v3007
        %3989 = vmatpush1.bf16.msra.mxu0 %v3006
        %3990 = vmatprep.subr.bf16.mxu0 %v3013
        %3991 = vmatpush1.bf16.msra.mxu0 %v3012
        %3992 = vmatprep.subr.bf16.mxu0 %v3019
        %3993 = vmatpush1.bf16.msra.mxu0 %v3018
        %3994 = vmatprep.subr.bf16.mxu0 %v3025
        %3995 = vmatpush1.bf16.msra.mxu0 %v3024
        %3996 = vmatprep.subr.bf16.mxu0 %v3031
        %3997 = vmatpush1.bf16.msra.mxu0 %v3030
        %3998 = vmatprep.subr.bf16.mxu0 %v3037
        %3999 = vmatpush1.bf16.msra.mxu0 %v3036
        %4000 = vmatprep.subr.bf16.mxu0 %v3043
        %4001 = vmatpush1.bf16.msra.mxu0 %v3042
        %4002 = vmatprep.subr.bf16.mxu0 %v3049
        %4003 = vmatpush1.bf16.msra.mxu0 %v3048
        %4004 = vmatprep.subr.bf16.mxu0 %v3055
        %4005 = vmatpush1.bf16.msra.mxu0 %v3054
        %4006 = vmatprep.subr.bf16.mxu0 %v3061
        %4007 = vmatpush1.bf16.msra.mxu0 %v3060
        %4008 = vmatprep.subr.bf16.mxu0 %v3067
        %4009 = vmatpush1.bf16.msra.mxu0 %v3066
        %4010 = vmatprep.subr.bf16.mxu0 %v3073
        %4011 = vmatpush1.bf16.msra.mxu0 %v3072
        %4012 = vmatprep.subr.bf16.mxu0 %v3079
        %4013 = vmatpush1.bf16.msra.mxu0 %v3078
        %4014 = vmatprep.subr.bf16.mxu0 %v3085
        %4015 = vmatpush1.bf16.msra.mxu0 %v3084
        %4016 = vmatprep.mubr.bf16.mxu0 %v1146
        %4017 = vmatmul.mubr.bf16.gmra.mrb[0].mxu0 %v1145
        %v4018 = vpop.f32.mrb[0].mxu0
        %v4019 = vadd.f32 %v3976, %v4018
        %v4020 = vpop.f32.mrb[0].mxu0
        %v4021 = vadd.f32 %v3978, %v4020
        %v4022 = vpop.f32.mrb[0].mxu0
        %v4023 = vadd.f32 %v3980, %v4022
        %v4024 = vpop.f32.mrb[0].mxu0
        %v4025 = vadd.f32 %v3982, %v4024
        %4026 = vdwg.mxu0
        %4027 = vmatprep.subr.bf16.mxu0 %v3091
        %4028 = vmatpush1.bf16.msra.mxu0 %v3090
        %4029 = vmatprep.subr.bf16.mxu0 %v3097
        %4030 = vmatpush1.bf16.msra.mxu0 %v3096
        %4031 = vmatprep.subr.bf16.mxu0 %v3103
        %4032 = vmatpush1.bf16.msra.mxu0 %v3102
        %4033 = vmatprep.subr.bf16.mxu0 %v3109
        %4034 = vmatpush1.bf16.msra.mxu0 %v3108
        %4035 = vmatprep.subr.bf16.mxu0 %v3115
        %4036 = vmatpush1.bf16.msra.mxu0 %v3114
        %4037 = vmatprep.subr.bf16.mxu0 %v3121
        %4038 = vmatpush1.bf16.msra.mxu0 %v3120
        %4039 = vmatprep.subr.bf16.mxu0 %v3127
        %4040 = vmatpush1.bf16.msra.mxu0 %v3126
        %4041 = vmatprep.subr.bf16.mxu0 %v3133
        %4042 = vmatpush1.bf16.msra.mxu0 %v3132
        %4043 = vmatprep.subr.bf16.mxu0 %v3139
        %4044 = vmatpush1.bf16.msra.mxu0 %v3138
        %4045 = vmatprep.subr.bf16.mxu0 %v3145
        %4046 = vmatpush1.bf16.msra.mxu0 %v3144
        %4047 = vmatprep.subr.bf16.mxu0 %v3151
        %4048 = vmatpush1.bf16.msra.mxu0 %v3150
        %4049 = vmatprep.subr.bf16.mxu0 %v3157
        %4050 = vmatpush1.bf16.msra.mxu0 %v3156
        %4051 = vmatprep.subr.bf16.mxu0 %v3163
        %4052 = vmatpush1.bf16.msra.mxu0 %v3162
        %4053 = vmatprep.subr.bf16.mxu0 %v3169
        %4054 = vmatpush1.bf16.msra.mxu0 %v3168
        %4055 = vmatprep.subr.bf16.mxu0 %v3175
        %4056 = vmatpush1.bf16.msra.mxu0 %v3174
        %4057 = vmatprep.subr.bf16.mxu0 %v3181
        %4058 = vmatpush1.bf16.msra.mxu0 %v3180
        %4059 = vmatprep.mubr.bf16.mxu0 %v1148
        %4060 = vmatmul.mubr.bf16.gmra.mrb[0].mxu0 %v1147
        %v4061 = vpop.f32.mrb[0].mxu0
        %v4062 = vadd.f32 %v4019, %v4061
        %v4063 = vpop.f32.mrb[0].mxu0
        %v4064 = vadd.f32 %v4021, %v4063
        %v4065 = vpop.f32.mrb[0].mxu0
        %v4066 = vadd.f32 %v4023, %v4065
        %v4067 = vpop.f32.mrb[0].mxu0
        %v4068 = vadd.f32 %v4025, %v4067
        %4069 = vdwg.mxu0
        %4070 = vmatprep.subr.bf16.mxu0 %v3187
        %4071 = vmatpush1.bf16.msra.mxu0 %v3186
        %4072 = vmatprep.subr.bf16.mxu0 %v3193
        %4073 = vmatpush1.bf16.msra.mxu0 %v3192
        %4074 = vmatprep.subr.bf16.mxu0 %v3199
        %4075 = vmatpush1.bf16.msra.mxu0 %v3198
        %4076 = vmatprep.subr.bf16.mxu0 %v3205
        %4077 = vmatpush1.bf16.msra.mxu0 %v3204
        %4078 = vmatprep.subr.bf16.mxu0 %v3211
        %4079 = vmatpush1.bf16.msra.mxu0 %v3210
        %4080 = vmatprep.subr.bf16.mxu0 %v3217
        %4081 = vmatpush1.bf16.msra.mxu0 %v3216
        %4082 = vmatprep.subr.bf16.mxu0 %v3223
        %4083 = vmatpush1.bf16.msra.mxu0 %v3222
        %4084 = vmatprep.subr.bf16.mxu0 %v3229
        %4085 = vmatpush1.bf16.msra.mxu0 %v3228
        %4086 = vmatprep.subr.bf16.mxu0 %v3235
        %4087 = vmatpush1.bf16.msra.mxu0 %v3234
        %4088 = vmatprep.subr.bf16.mxu0 %v3241
        %4089 = vmatpush1.bf16.msra.mxu0 %v3240
        %4090 = vmatprep.subr.bf16.mxu0 %v3247
        %4091 = vmatpush1.bf16.msra.mxu0 %v3246
        %4092 = vmatprep.subr.bf16.mxu0 %v3253
        %4093 = vmatpush1.bf16.msra.mxu0 %v3252
        %4094 = vmatprep.subr.bf16.mxu0 %v3259
        %4095 = vmatpush1.bf16.msra.mxu0 %v3258
        %4096 = vmatprep.subr.bf16.mxu0 %v3265
        %4097 = vmatpush1.bf16.msra.mxu0 %v3264
        %4098 = vmatprep.subr.bf16.mxu0 %v3271
        %4099 = vmatpush1.bf16.msra.mxu0 %v3270
        %4100 = vmatprep.subr.bf16.mxu0 %v3277
        %4101 = vmatpush1.bf16.msra.mxu0 %v3276
        %4102 = vmatprep.mubr.bf16.mxu0 %v1150
        %4103 = vmatmul.mubr.bf16.gmra.mrb[0].mxu0 %v1149
        %v4104 = vpop.f32.mrb[0].mxu0
        %v4105 = vadd.f32 %v4062, %v4104
        %v4106 = vpop.f32.mrb[0].mxu0
        %v4107 = vadd.f32 %v4064, %v4106
        %v4108 = vpop.f32.mrb[0].mxu0
        %v4109 = vadd.f32 %v4066, %v4108
        %v4110 = vpop.f32.mrb[0].mxu0
        %v4111 = vadd.f32 %v4068, %v4110
        %4112 = vdwg.mxu0
        %4113 = vmatprep.subr.bf16.mxu0 %v3283
        %4114 = vmatpush1.bf16.msra.mxu0 %v3282
        %4115 = vmatprep.subr.bf16.mxu0 %v3289
        %4116 = vmatpush1.bf16.msra.mxu0 %v3288
        %4117 = vmatprep.subr.bf16.mxu0 %v3295
        %4118 = vmatpush1.bf16.msra.mxu0 %v3294
        %4119 = vmatprep.subr.bf16.mxu0 %v3301
        %4120 = vmatpush1.bf16.msra.mxu0 %v3300
        %4121 = vmatprep.subr.bf16.mxu0 %v3307
        %4122 = vmatpush1.bf16.msra.mxu0 %v3306
        %4123 = vmatprep.subr.bf16.mxu0 %v3313
        %4124 = vmatpush1.bf16.msra.mxu0 %v3312
        %4125 = vmatprep.subr.bf16.mxu0 %v3319
        %4126 = vmatpush1.bf16.msra.mxu0 %v3318
        %4127 = vmatprep.subr.bf16.mxu0 %v3325
        %4128 = vmatpush1.bf16.msra.mxu0 %v3324
        %4129 = vmatprep.subr.bf16.mxu0 %v3331
        %4130 = vmatpush1.bf16.msra.mxu0 %v3330
        %4131 = vmatprep.subr.bf16.mxu0 %v3337
        %4132 = vmatpush1.bf16.msra.mxu0 %v3336
        %4133 = vmatprep.subr.bf16.mxu0 %v3343
        %4134 = vmatpush1.bf16.msra.mxu0 %v3342
        %4135 = vmatprep.subr.bf16.mxu0 0
        %4136 = vmatpush1.bf16.msra.mxu0 0
        %4137 = vmatprep.subr.bf16.mxu0 0
        %4138 = vmatpush1.bf16.msra.mxu0 0
        %4139 = vmatprep.subr.bf16.mxu0 0
        %4140 = vmatpush1.bf16.msra.mxu0 0
        %4141 = vmatprep.subr.bf16.mxu0 0
        %4142 = vmatpush1.bf16.msra.mxu0 0
        %4143 = vmatprep.subr.bf16.mxu0 0
        %4144 = vmatpush1.bf16.msra.mxu0 0
        %4145 = vmatprep.mubr.bf16.mxu0 %v3896
        %4146 = vmatmul.mubr.bf16.gmra.mrb[0].mxu0 %v1151
        %v4147 = vpop.f32.mrb[0].mxu0
        %v4148 = vadd.f32 %v4105, %v4147
        %v4149 = vpop.f32.mrb[0].mxu0
        %v4150 = vadd.f32 %v4107, %v4149
        %v4151 = vpop.f32.mrb[0].mxu0
        %v4152 = vadd.f32 %v4109, %v4151
        %v4153 = vpop.f32.mrb[0].mxu0
        %v4154 = vadd.f32 %v4111, %v4153
        %4155 = vdwg.mxu0
        %4156 = vmatprep.subr.bf16.mxu0 %v2805
        %4157 = vmatpush1.bf16.msra.mxu0 %v2804
        %4158 = vmatprep.subr.bf16.mxu0 %v2811
        %4159 = vmatpush1.bf16.msra.mxu0 %v2810
        %4160 = vmatprep.subr.bf16.mxu0 %v2817
        %4161 = vmatpush1.bf16.msra.mxu0 %v2816
        %4162 = vmatprep.subr.bf16.mxu0 %v2823
        %4163 = vmatpush1.bf16.msra.mxu0 %v2822
        %4164 = vmatprep.subr.bf16.mxu0 %v2829
        %4165 = vmatpush1.bf16.msra.mxu0 %v2828
        %4166 = vmatprep.subr.bf16.mxu0 %v2835
        %4167 = vmatpush1.bf16.msra.mxu0 %v2834
        %4168 = vmatprep.subr.bf16.mxu0 %v2841
        %4169 = vmatpush1.bf16.msra.mxu0 %v2840
        %4170 = vmatprep.subr.bf16.mxu0 %v2847
        %4171 = vmatpush1.bf16.msra.mxu0 %v2846
        %4172 = vmatprep.subr.bf16.mxu0 %v2853
        %4173 = vmatpush1.bf16.msra.mxu0 %v2852
        %4174 = vmatprep.subr.bf16.mxu0 %v2859
        %4175 = vmatpush1.bf16.msra.mxu0 %v2858
        %4176 = vmatprep.subr.bf16.mxu0 %v2865
        %4177 = vmatpush1.bf16.msra.mxu0 %v2864
        %4178 = vmatprep.subr.bf16.mxu0 %v2871
        %4179 = vmatpush1.bf16.msra.mxu0 %v2870
        %4180 = vmatprep.subr.bf16.mxu0 %v2877
        %4181 = vmatpush1.bf16.msra.mxu0 %v2876
        %4182 = vmatprep.subr.bf16.mxu0 %v2883
        %4183 = vmatpush1.bf16.msra.mxu0 %v2882
        %4184 = vmatprep.subr.bf16.mxu0 %v2889
        %4185 = vmatpush1.bf16.msra.mxu0 %v2888
        %4186 = vmatprep.subr.bf16.mxu0 %v2895
        %4187 = vmatpush1.bf16.msra.mxu0 %v2894
        %4188 = vmatprep.mubr.bf16.mxu0 %v1142
        %4189 = vmatmul.mubr.bf16.gmra.mrb[0].mxu0 %v1141
        %v4190 = vpop.f32.mrb[0].mxu0
        %v4191 = vadd.f32 %v1086, %v4190
        %v4192 = vpop.f32.mrb[0].mxu0
        %v4193 = vadd.f32 %v1090, %v4192
        %v4194 = vpop.f32.mrb[0].mxu0
        %v4195 = vadd.f32 %v1086, %v4194
        %v4196 = vpop.f32.mrb[0].mxu0
        %v4197 = vadd.f32 %v1090, %v4196
        %4198 = vdwg.mxu0
        %4199 = vmatprep.subr.bf16.mxu0 %v2901
        %4200 = vmatpush1.bf16.msra.mxu0 %v2900
        %4201 = vmatprep.subr.bf16.mxu0 %v2907
        %4202 = vmatpush1.bf16.msra.mxu0 %v2906
        %4203 = vmatprep.subr.bf16.mxu0 %v2913
        %4204 = vmatpush1.bf16.msra.mxu0 %v2912
        %4205 = vmatprep.subr.bf16.mxu0 %v2919
        %4206 = vmatpush1.bf16.msra.mxu0 %v2918
        %4207 = vmatprep.subr.bf16.mxu0 %v2925
        %4208 = vmatpush1.bf16.msra.mxu0 %v2924
        %4209 = vmatprep.subr.bf16.mxu0 %v2931
        %4210 = vmatpush1.bf16.msra.mxu0 %v2930
        %4211 = vmatprep.subr.bf16.mxu0 %v2937
        %4212 = vmatpush1.bf16.msra.mxu0 %v2936
        %4213 = vmatprep.subr.bf16.mxu0 %v2943
        %4214 = vmatpush1.bf16.msra.mxu0 %v2942
        %4215 = vmatprep.subr.bf16.mxu0 %v2949
        %4216 = vmatpush1.bf16.msra.mxu0 %v2948
        %4217 = vmatprep.subr.bf16.mxu0 %v2955
        %4218 = vmatpush1.bf16.msra.mxu0 %v2954
        %4219 = vmatprep.subr.bf16.mxu0 %v2961
        %4220 = vmatpush1.bf16.msra.mxu0 %v2960
        %4221 = vmatprep.subr.bf16.mxu0 %v2967
        %4222 = vmatpush1.bf16.msra.mxu0 %v2966
        %4223 = vmatprep.subr.bf16.mxu0 %v2973
        %4224 = vmatpush1.bf16.msra.mxu0 %v2972
        %4225 = vmatprep.subr.bf16.mxu0 %v2979
        %4226 = vmatpush1.bf16.msra.mxu0 %v2978
        %4227 = vmatprep.subr.bf16.mxu0 %v2985
        %4228 = vmatpush1.bf16.msra.mxu0 %v2984
        %4229 = vmatprep.subr.bf16.mxu0 %v2991
        %4230 = vmatpush1.bf16.msra.mxu0 %v2990
        %4231 = vmatprep.mubr.bf16.mxu0 %v1144
        %4232 = vmatmul.mubr.bf16.gmra.mrb[0].mxu0 %v1143
        %v4233 = vpop.f32.mrb[0].mxu0
        %v4234 = vadd.f32 %v4191, %v4233
        %v4235 = vpop.f32.mrb[0].mxu0
        %v4236 = vadd.f32 %v4193, %v4235
        %v4237 = vpop.f32.mrb[0].mxu0
        %v4238 = vadd.f32 %v4195, %v4237
        %v4239 = vpop.f32.mrb[0].mxu0
        %v4240 = vadd.f32 %v4197, %v4239
        %4241 = vdwg.mxu0
        %4242 = vmatprep.subr.bf16.mxu0 %v2997
        %4243 = vmatpush1.bf16.msra.mxu0 %v2996
        %4244 = vmatprep.subr.bf16.mxu0 %v3003
        %4245 = vmatpush1.bf16.msra.mxu0 %v3002
        %4246 = vmatprep.subr.bf16.mxu0 %v3009
        %4247 = vmatpush1.bf16.msra.mxu0 %v3008
        %4248 = vmatprep.subr.bf16.mxu0 %v3015
        %4249 = vmatpush1.bf16.msra.mxu0 %v3014
        %4250 = vmatprep.subr.bf16.mxu0 %v3021
        %4251 = vmatpush1.bf16.msra.mxu0 %v3020
        %4252 = vmatprep.subr.bf16.mxu0 %v3027
        %4253 = vmatpush1.bf16.msra.mxu0 %v3026
        %4254 = vmatprep.subr.bf16.mxu0 %v3033
        %4255 = vmatpush1.bf16.msra.mxu0 %v3032
        %4256 = vmatprep.subr.bf16.mxu0 %v3039
        %4257 = vmatpush1.bf16.msra.mxu0 %v3038
        %4258 = vmatprep.subr.bf16.mxu0 %v3045
        %4259 = vmatpush1.bf16.msra.mxu0 %v3044
        %4260 = vmatprep.subr.bf16.mxu0 %v3051
        %4261 = vmatpush1.bf16.msra.mxu0 %v3050
        %4262 = vmatprep.subr.bf16.mxu0 %v3057
        %4263 = vmatpush1.bf16.msra.mxu0 %v3056
        %4264 = vmatprep.subr.bf16.mxu0 %v3063
        %4265 = vmatpush1.bf16.msra.mxu0 %v3062
        %4266 = vmatprep.subr.bf16.mxu0 %v3069
        %4267 = vmatpush1.bf16.msra.mxu0 %v3068
        %4268 = vmatprep.subr.bf16.mxu0 %v3075
        %4269 = vmatpush1.bf16.msra.mxu0 %v3074
        %4270 = vmatprep.subr.bf16.mxu0 %v3081
        %4271 = vmatpush1.bf16.msra.mxu0 %v3080
        %4272 = vmatprep.subr.bf16.mxu0 %v3087
        %4273 = vmatpush1.bf16.msra.mxu0 %v3086
        %4274 = vmatprep.mubr.bf16.mxu0 %v1146
        %4275 = vmatmul.mubr.bf16.gmra.mrb[0].mxu0 %v1145
        %v4276 = vpop.f32.mrb[0].mxu0
        %v4277 = vadd.f32 %v4234, %v4276
        %v4278 = vpop.f32.mrb[0].mxu0
        %v4279 = vadd.f32 %v4236, %v4278
        %v4280 = vpop.f32.mrb[0].mxu0
        %v4281 = vadd.f32 %v4238, %v4280
        %v4282 = vpop.f32.mrb[0].mxu0
        %v4283 = vadd.f32 %v4240, %v4282
        %4284 = vdwg.mxu0
        %4285 = vmatprep.subr.bf16.mxu0 %v3093
        %4286 = vmatpush1.bf16.msra.mxu0 %v3092
        %4287 = vmatprep.subr.bf16.mxu0 %v3099
        %4288 = vmatpush1.bf16.msra.mxu0 %v3098
        %4289 = vmatprep.subr.bf16.mxu0 %v3105
        %4290 = vmatpush1.bf16.msra.mxu0 %v3104
        %4291 = vmatprep.subr.bf16.mxu0 %v3111
        %4292 = vmatpush1.bf16.msra.mxu0 %v3110
        %4293 = vmatprep.subr.bf16.mxu0 %v3117
        %4294 = vmatpush1.bf16.msra.mxu0 %v3116
        %4295 = vmatprep.subr.bf16.mxu0 %v3123
        %4296 = vmatpush1.bf16.msra.mxu0 %v3122
        %4297 = vmatprep.subr.bf16.mxu0 %v3129
        %4298 = vmatpush1.bf16.msra.mxu0 %v3128
        %4299 = vmatprep.subr.bf16.mxu0 %v3135
        %4300 = vmatpush1.bf16.msra.mxu0 %v3134
        %4301 = vmatprep.subr.bf16.mxu0 %v3141
        %4302 = vmatpush1.bf16.msra.mxu0 %v3140
        %4303 = vmatprep.subr.bf16.mxu0 %v3147
        %4304 = vmatpush1.bf16.msra.mxu0 %v3146
        %4305 = vmatprep.subr.bf16.mxu0 %v3153
        %4306 = vmatpush1.bf16.msra.mxu0 %v3152
        %4307 = vmatprep.subr.bf16.mxu0 %v3159
        %4308 = vmatpush1.bf16.msra.mxu0 %v3158
        %4309 = vmatprep.subr.bf16.mxu0 %v3165
        %4310 = vmatpush1.bf16.msra.mxu0 %v3164
        %4311 = vmatprep.subr.bf16.mxu0 %v3171
        %4312 = vmatpush1.bf16.msra.mxu0 %v3170
        %4313 = vmatprep.subr.bf16.mxu0 %v3177
        %4314 = vmatpush1.bf16.msra.mxu0 %v3176
        %4315 = vmatprep.subr.bf16.mxu0 %v3183
        %4316 = vmatpush1.bf16.msra.mxu0 %v3182
        %4317 = vmatprep.mubr.bf16.mxu0 %v1148
        %4318 = vmatmul.mubr.bf16.gmra.mrb[0].mxu0 %v1147
        %v4319 = vpop.f32.mrb[0].mxu0
        %v4320 = vadd.f32 %v4277, %v4319
        %v4321 = vpop.f32.mrb[0].mxu0
        %v4322 = vadd.f32 %v4279, %v4321
        %v4323 = vpop.f32.mrb[0].mxu0
        %v4324 = vadd.f32 %v4281, %v4323
        %v4325 = vpop.f32.mrb[0].mxu0
        %v4326 = vadd.f32 %v4283, %v4325
        %4327 = vdwg.mxu0
        %4328 = vmatprep.subr.bf16.mxu0 %v3189
        %4329 = vmatpush1.bf16.msra.mxu0 %v3188
        %4330 = vmatprep.subr.bf16.mxu0 %v3195
        %4331 = vmatpush1.bf16.msra.mxu0 %v3194
        %4332 = vmatprep.subr.bf16.mxu0 %v3201
        %4333 = vmatpush1.bf16.msra.mxu0 %v3200
        %4334 = vmatprep.subr.bf16.mxu0 %v3207
        %4335 = vmatpush1.bf16.msra.mxu0 %v3206
        %4336 = vmatprep.subr.bf16.mxu0 %v3213
        %4337 = vmatpush1.bf16.msra.mxu0 %v3212
        %4338 = vmatprep.subr.bf16.mxu0 %v3219
        %4339 = vmatpush1.bf16.msra.mxu0 %v3218
        %4340 = vmatprep.subr.bf16.mxu0 %v3225
        %4341 = vmatpush1.bf16.msra.mxu0 %v3224
        %4342 = vmatprep.subr.bf16.mxu0 %v3231
        %4343 = vmatpush1.bf16.msra.mxu0 %v3230
        %4344 = vmatprep.subr.bf16.mxu0 %v3237
        %4345 = vmatpush1.bf16.msra.mxu0 %v3236
        %4346 = vmatprep.subr.bf16.mxu0 %v3243
        %4347 = vmatpush1.bf16.msra.mxu0 %v3242
        %4348 = vmatprep.subr.bf16.mxu0 %v3249
        %4349 = vmatpush1.bf16.msra.mxu0 %v3248
        %4350 = vmatprep.subr.bf16.mxu0 %v3255
        %4351 = vmatpush1.bf16.msra.mxu0 %v3254
        %4352 = vmatprep.subr.bf16.mxu0 %v3261
        %4353 = vmatpush1.bf16.msra.mxu0 %v3260
        %4354 = vmatprep.subr.bf16.mxu0 %v3267
        %4355 = vmatpush1.bf16.msra.mxu0 %v3266
        %4356 = vmatprep.subr.bf16.mxu0 %v3273
        %4357 = vmatpush1.bf16.msra.mxu0 %v3272
        %4358 = vmatprep.subr.bf16.mxu0 %v3279
        %4359 = vmatpush1.bf16.msra.mxu0 %v3278
        %4360 = vmatprep.mubr.bf16.mxu0 %v1150
        %4361 = vmatmul.mubr.bf16.gmra.mrb[0].mxu0 %v1149
        %v4362 = vpop.f32.mrb[0].mxu0
        %v4363 = vadd.f32 %v4320, %v4362
        %v4364 = vpop.f32.mrb[0].mxu0
        %v4365 = vadd.f32 %v4322, %v4364
        %v4366 = vpop.f32.mrb[0].mxu0
        %v4367 = vadd.f32 %v4324, %v4366
        %v4368 = vpop.f32.mrb[0].mxu0
        %v4369 = vadd.f32 %v4326, %v4368
        %4370 = vdwg.mxu0
        %4371 = vmatprep.subr.bf16.mxu0 %v3285
        %4372 = vmatpush1.bf16.msra.mxu0 %v3284
        %4373 = vmatprep.subr.bf16.mxu0 %v3291
        %4374 = vmatpush1.bf16.msra.mxu0 %v3290
        %4375 = vmatprep.subr.bf16.mxu0 %v3297
        %4376 = vmatpush1.bf16.msra.mxu0 %v3296
        %4377 = vmatprep.subr.bf16.mxu0 %v3303
        %4378 = vmatpush1.bf16.msra.mxu0 %v3302
        %4379 = vmatprep.subr.bf16.mxu0 %v3309
        %4380 = vmatpush1.bf16.msra.mxu0 %v3308
        %4381 = vmatprep.subr.bf16.mxu0 %v3315
        %4382 = vmatpush1.bf16.msra.mxu0 %v3314
        %4383 = vmatprep.subr.bf16.mxu0 %v3321
        %4384 = vmatpush1.bf16.msra.mxu0 %v3320
        %4385 = vmatprep.subr.bf16.mxu0 %v3327
        %4386 = vmatpush1.bf16.msra.mxu0 %v3326
        %4387 = vmatprep.subr.bf16.mxu0 %v3333
        %4388 = vmatpush1.bf16.msra.mxu0 %v3332
        %4389 = vmatprep.subr.bf16.mxu0 %v3339
        %4390 = vmatpush1.bf16.msra.mxu0 %v3338
        %4391 = vmatprep.subr.bf16.mxu0 %v3345
        %4392 = vmatpush1.bf16.msra.mxu0 %v3344
        %4393 = vmatprep.subr.bf16.mxu0 0
        %4394 = vmatpush1.bf16.msra.mxu0 0
        %4395 = vmatprep.subr.bf16.mxu0 0
        %4396 = vmatpush1.bf16.msra.mxu0 0
        %4397 = vmatprep.subr.bf16.mxu0 0
        %4398 = vmatpush1.bf16.msra.mxu0 0
        %4399 = vmatprep.subr.bf16.mxu0 0
        %4400 = vmatpush1.bf16.msra.mxu0 0
        %4401 = vmatprep.subr.bf16.mxu0 0
        %4402 = vmatpush1.bf16.msra.mxu0 0
        %4403 = vmatprep.mubr.bf16.mxu0 %v3896
        %4404 = vmatmul.mubr.bf16.gmra.mrb[0].mxu0 %v1151
        %v4405 = vpop.f32.mrb[0].mxu0
        %v4406 = vadd.f32 %v4363, %v4405
        %v4407 = vpop.f32.mrb[0].mxu0
        %v4408 = vadd.f32 %v4365, %v4407
        %v4409 = vpop.f32.mrb[0].mxu0
        %v4410 = vadd.f32 %v4367, %v4409
        %v4411 = vpop.f32.mrb[0].mxu0
        %v4412 = vadd.f32 %v4369, %v4411
        %4413 = vdwg.mxu0
        %4414 = vmatprep.subr.bf16.mxu0 %v2807
        %4415 = vmatpush1.bf16.msra.mxu0 %v2806
        %4416 = vmatprep.subr.bf16.mxu0 %v2813
        %4417 = vmatpush1.bf16.msra.mxu0 %v2812
        %4418 = vmatprep.subr.bf16.mxu0 %v2819
        %4419 = vmatpush1.bf16.msra.mxu0 %v2818
        %4420 = vmatprep.subr.bf16.mxu0 %v2825
        %4421 = vmatpush1.bf16.msra.mxu0 %v2824
        %4422 = vmatprep.subr.bf16.mxu0 %v2831
        %4423 = vmatpush1.bf16.msra.mxu0 %v2830
        %4424 = vmatprep.subr.bf16.mxu0 %v2837
        %4425 = vmatpush1.bf16.msra.mxu0 %v2836
        %4426 = vmatprep.subr.bf16.mxu0 %v2843
        %4427 = vmatpush1.bf16.msra.mxu0 %v2842
        %4428 = vmatprep.subr.bf16.mxu0 %v2849
        %4429 = vmatpush1.bf16.msra.mxu0 %v2848
        %4430 = vmatprep.subr.bf16.mxu0 %v2855
        %4431 = vmatpush1.bf16.msra.mxu0 %v2854
        %4432 = vmatprep.subr.bf16.mxu0 %v2861
        %4433 = vmatpush1.bf16.msra.mxu0 %v2860
        %4434 = vmatprep.subr.bf16.mxu0 %v2867
        %4435 = vmatpush1.bf16.msra.mxu0 %v2866
        %4436 = vmatprep.subr.bf16.mxu0 %v2873
        %4437 = vmatpush1.bf16.msra.mxu0 %v2872
        %4438 = vmatprep.subr.bf16.mxu0 %v2879
        %4439 = vmatpush1.bf16.msra.mxu0 %v2878
        %4440 = vmatprep.subr.bf16.mxu0 %v2885
        %4441 = vmatpush1.bf16.msra.mxu0 %v2884
        %4442 = vmatprep.subr.bf16.mxu0 %v2891
        %4443 = vmatpush1.bf16.msra.mxu0 %v2890
        %4444 = vmatprep.subr.bf16.mxu0 %v2897
        %4445 = vmatpush1.bf16.msra.mxu0 %v2896
        %4446 = vmatprep.mubr.bf16.mxu0 %v1142
        %4447 = vmatmul.mubr.bf16.gmra.mrb[0].mxu0 %v1141
        %v4448 = vpop.f32.mrb[0].mxu0
        %v4449 = vadd.f32 %v1094, %v4448
        %v4450 = vpop.f32.mrb[0].mxu0
        %v4451 = vadd.f32 %v1098, %v4450
        %v4452 = vpop.f32.mrb[0].mxu0
        %v4453 = vadd.f32 %v1094, %v4452
        %v4454 = vpop.f32.mrb[0].mxu0
        %v4455 = vadd.f32 %v1098, %v4454
        %4456 = vdwg.mxu0
        %4457 = vmatprep.subr.bf16.mxu0 %v2903
        %4458 = vmatpush1.bf16.msra.mxu0 %v2902
        %4459 = vmatprep.subr.bf16.mxu0 %v2909
        %4460 = vmatpush1.bf16.msra.mxu0 %v2908
        %4461 = vmatprep.subr.bf16.mxu0 %v2915
        %4462 = vmatpush1.bf16.msra.mxu0 %v2914
        %4463 = vmatprep.subr.bf16.mxu0 %v2921
        %4464 = vmatpush1.bf16.msra.mxu0 %v2920
        %4465 = vmatprep.subr.bf16.mxu0 %v2927
        %4466 = vmatpush1.bf16.msra.mxu0 %v2926
        %4467 = vmatprep.subr.bf16.mxu0 %v2933
        %4468 = vmatpush1.bf16.msra.mxu0 %v2932
        %4469 = vmatprep.subr.bf16.mxu0 %v2939
        %4470 = vmatpush1.bf16.msra.mxu0 %v2938
        %4471 = vmatprep.subr.bf16.mxu0 %v2945
        %4472 = vmatpush1.bf16.msra.mxu0 %v2944
        %4473 = vmatprep.subr.bf16.mxu0 %v2951
        %4474 = vmatpush1.bf16.msra.mxu0 %v2950
        %4475 = vmatprep.subr.bf16.mxu0 %v2957
        %4476 = vmatpush1.bf16.msra.mxu0 %v2956
        %4477 = vmatprep.subr.bf16.mxu0 %v2963
        %4478 = vmatpush1.bf16.msra.mxu0 %v2962
        %4479 = vmatprep.subr.bf16.mxu0 %v2969
        %4480 = vmatpush1.bf16.msra.mxu0 %v2968
        %4481 = vmatprep.subr.bf16.mxu0 %v2975
        %4482 = vmatpush1.bf16.msra.mxu0 %v2974
        %4483 = vmatprep.subr.bf16.mxu0 %v2981
        %4484 = vmatpush1.bf16.msra.mxu0 %v2980
        %4485 = vmatprep.subr.bf16.mxu0 %v2987
        %4486 = vmatpush1.bf16.msra.mxu0 %v2986
        %4487 = vmatprep.subr.bf16.mxu0 %v2993
        %4488 = vmatpush1.bf16.msra.mxu0 %v2992
        %4489 = vmatprep.mubr.bf16.mxu0 %v1144
        %4490 = vmatmul.mubr.bf16.gmra.mrb[0].mxu0 %v1143
        %v4491 = vpop.f32.mrb[0].mxu0
        %v4492 = vadd.f32 %v4449, %v4491
        %v4493 = vpop.f32.mrb[0].mxu0
        %v4494 = vadd.f32 %v4451, %v4493
        %v4495 = vpop.f32.mrb[0].mxu0
        %v4496 = vadd.f32 %v4453, %v4495
        %v4497 = vpop.f32.mrb[0].mxu0
        %v4498 = vadd.f32 %v4455, %v4497
        %4499 = vdwg.mxu0
        %4500 = vmatprep.subr.bf16.mxu0 %v2999
        %4501 = vmatpush1.bf16.msra.mxu0 %v2998
        %4502 = vmatprep.subr.bf16.mxu0 %v3005
        %4503 = vmatpush1.bf16.msra.mxu0 %v3004
        %4504 = vmatprep.subr.bf16.mxu0 %v3011
        %4505 = vmatpush1.bf16.msra.mxu0 %v3010
        %4506 = vmatprep.subr.bf16.mxu0 %v3017
        %4507 = vmatpush1.bf16.msra.mxu0 %v3016
        %4508 = vmatprep.subr.bf16.mxu0 %v3023
        %4509 = vmatpush1.bf16.msra.mxu0 %v3022
        %4510 = vmatprep.subr.bf16.mxu0 %v3029
        %4511 = vmatpush1.bf16.msra.mxu0 %v3028
        %4512 = vmatprep.subr.bf16.mxu0 %v3035
        %4513 = vmatpush1.bf16.msra.mxu0 %v3034
        %4514 = vmatprep.subr.bf16.mxu0 %v3041
        %4515 = vmatpush1.bf16.msra.mxu0 %v3040
        %4516 = vmatprep.subr.bf16.mxu0 %v3047
        %4517 = vmatpush1.bf16.msra.mxu0 %v3046
        %4518 = vmatprep.subr.bf16.mxu0 %v3053
        %4519 = vmatpush1.bf16.msra.mxu0 %v3052
        %4520 = vmatprep.subr.bf16.mxu0 %v3059
        %4521 = vmatpush1.bf16.msra.mxu0 %v3058
        %4522 = vmatprep.subr.bf16.mxu0 %v3065
        %4523 = vmatpush1.bf16.msra.mxu0 %v3064
        %4524 = vmatprep.subr.bf16.mxu0 %v3071
        %4525 = vmatpush1.bf16.msra.mxu0 %v3070
        %4526 = vmatprep.subr.bf16.mxu0 %v3077
        %4527 = vmatpush1.bf16.msra.mxu0 %v3076
        %4528 = vmatprep.subr.bf16.mxu0 %v3083
        %4529 = vmatpush1.bf16.msra.mxu0 %v3082
        %4530 = vmatprep.subr.bf16.mxu0 %v3089
        %4531 = vmatpush1.bf16.msra.mxu0 %v3088
        %4532 = vmatprep.mubr.bf16.mxu0 %v1146
        %4533 = vmatmul.mubr.bf16.gmra.mrb[0].mxu0 %v1145
        %v4534 = vpop.f32.mrb[0].mxu0
        %v4535 = vadd.f32 %v4492, %v4534
        %v4536 = vpop.f32.mrb[0].mxu0
        %v4537 = vadd.f32 %v4494, %v4536
        %v4538 = vpop.f32.mrb[0].mxu0
        %v4539 = vadd.f32 %v4496, %v4538
        %v4540 = vpop.f32.mrb[0].mxu0
        %v4541 = vadd.f32 %v4498, %v4540
        %4542 = vdwg.mxu0
        %4543 = vmatprep.subr.bf16.mxu0 %v3095
        %4544 = vmatpush1.bf16.msra.mxu0 %v3094
        %4545 = vmatprep.subr.bf16.mxu0 %v3101
        %4546 = vmatpush1.bf16.msra.mxu0 %v3100
        %4547 = vmatprep.subr.bf16.mxu0 %v3107
        %4548 = vmatpush1.bf16.msra.mxu0 %v3106
        %4549 = vmatprep.subr.bf16.mxu0 %v3113
        %4550 = vmatpush1.bf16.msra.mxu0 %v3112
        %4551 = vmatprep.subr.bf16.mxu0 %v3119
        %4552 = vmatpush1.bf16.msra.mxu0 %v3118
        %4553 = vmatprep.subr.bf16.mxu0 %v3125
        %4554 = vmatpush1.bf16.msra.mxu0 %v3124
        %4555 = vmatprep.subr.bf16.mxu0 %v3131
        %4556 = vmatpush1.bf16.msra.mxu0 %v3130
        %4557 = vmatprep.subr.bf16.mxu0 %v3137
        %4558 = vmatpush1.bf16.msra.mxu0 %v3136
        %4559 = vmatprep.subr.bf16.mxu0 %v3143
        %4560 = vmatpush1.bf16.msra.mxu0 %v3142
        %4561 = vmatprep.subr.bf16.mxu0 %v3149
        %4562 = vmatpush1.bf16.msra.mxu0 %v3148
        %4563 = vmatprep.subr.bf16.mxu0 %v3155
        %4564 = vmatpush1.bf16.msra.mxu0 %v3154
        %4565 = vmatprep.subr.bf16.mxu0 %v3161
        %4566 = vmatpush1.bf16.msra.mxu0 %v3160
        %4567 = vmatprep.subr.bf16.mxu0 %v3167
        %4568 = vmatpush1.bf16.msra.mxu0 %v3166
        %4569 = vmatprep.subr.bf16.mxu0 %v3173
        %4570 = vmatpush1.bf16.msra.mxu0 %v3172
        %4571 = vmatprep.subr.bf16.mxu0 %v3179
        %4572 = vmatpush1.bf16.msra.mxu0 %v3178
        %4573 = vmatprep.subr.bf16.mxu0 %v3185
        %4574 = vmatpush1.bf16.msra.mxu0 %v3184
        %4575 = vmatprep.mubr.bf16.mxu0 %v1148
        %4576 = vmatmul.mubr.bf16.gmra.mrb[0].mxu0 %v1147
        %v4577 = vpop.f32.mrb[0].mxu0
        %v4578 = vadd.f32 %v4535, %v4577
        %v4579 = vpop.f32.mrb[0].mxu0
        %v4580 = vadd.f32 %v4537, %v4579
        %v4581 = vpop.f32.mrb[0].mxu0
        %v4582 = vadd.f32 %v4539, %v4581
        %v4583 = vpop.f32.mrb[0].mxu0
        %v4584 = vadd.f32 %v4541, %v4583
        %4585 = vdwg.mxu0
        %4586 = vmatprep.subr.bf16.mxu0 %v3191
        %4587 = vmatpush1.bf16.msra.mxu0 %v3190
        %4588 = vmatprep.subr.bf16.mxu0 %v3197
        %4589 = vmatpush1.bf16.msra.mxu0 %v3196
        %4590 = vmatprep.subr.bf16.mxu0 %v3203
        %4591 = vmatpush1.bf16.msra.mxu0 %v3202
        %4592 = vmatprep.subr.bf16.mxu0 %v3209
        %4593 = vmatpush1.bf16.msra.mxu0 %v3208
        %4594 = vmatprep.subr.bf16.mxu0 %v3215
        %4595 = vmatpush1.bf16.msra.mxu0 %v3214
        %4596 = vmatprep.subr.bf16.mxu0 %v3221
        %4597 = vmatpush1.bf16.msra.mxu0 %v3220
        %4598 = vmatprep.subr.bf16.mxu0 %v3227
        %4599 = vmatpush1.bf16.msra.mxu0 %v3226
        %4600 = vmatprep.subr.bf16.mxu0 %v3233
        %4601 = vmatpush1.bf16.msra.mxu0 %v3232
        %4602 = vmatprep.subr.bf16.mxu0 %v3239
        %4603 = vmatpush1.bf16.msra.mxu0 %v3238
        %4604 = vmatprep.subr.bf16.mxu0 %v3245
        %4605 = vmatpush1.bf16.msra.mxu0 %v3244
        %4606 = vmatprep.subr.bf16.mxu0 %v3251
        %4607 = vmatpush1.bf16.msra.mxu0 %v3250
        %4608 = vmatprep.subr.bf16.mxu0 %v3257
        %4609 = vmatpush1.bf16.msra.mxu0 %v3256
        %4610 = vmatprep.subr.bf16.mxu0 %v3263
        %4611 = vmatpush1.bf16.msra.mxu0 %v3262
        %4612 = vmatprep.subr.bf16.mxu0 %v3269
        %4613 = vmatpush1.bf16.msra.mxu0 %v3268
        %4614 = vmatprep.subr.bf16.mxu0 %v3275
        %4615 = vmatpush1.bf16.msra.mxu0 %v3274
        %4616 = vmatprep.subr.bf16.mxu0 %v3281
        %4617 = vmatpush1.bf16.msra.mxu0 %v3280
        %4618 = vmatprep.mubr.bf16.mxu0 %v1150
        %4619 = vmatmul.mubr.bf16.gmra.mrb[0].mxu0 %v1149
        %v4620 = vpop.f32.mrb[0].mxu0
        %v4621 = vadd.f32 %v4578, %v4620
        %v4622 = vpop.f32.mrb[0].mxu0
        %v4623 = vadd.f32 %v4580, %v4622
        %v4624 = vpop.f32.mrb[0].mxu0
        %v4625 = vadd.f32 %v4582, %v4624
        %v4626 = vpop.f32.mrb[0].mxu0
        %v4627 = vadd.f32 %v4584, %v4626
        %4628 = vdwg.mxu0
        %4629 = vmatprep.subr.bf16.mxu0 %v3287
        %4630 = vmatpush1.bf16.msra.mxu0 %v3286
        %4631 = vmatprep.subr.bf16.mxu0 %v3293
        %4632 = vmatpush1.bf16.msra.mxu0 %v3292
        %4633 = vmatprep.subr.bf16.mxu0 %v3299
        %4634 = vmatpush1.bf16.msra.mxu0 %v3298
        %4635 = vmatprep.subr.bf16.mxu0 %v3305
        %4636 = vmatpush1.bf16.msra.mxu0 %v3304
        %4637 = vmatprep.subr.bf16.mxu0 %v3311
        %4638 = vmatpush1.bf16.msra.mxu0 %v3310
        %4639 = vmatprep.subr.bf16.mxu0 %v3317
        %4640 = vmatpush1.bf16.msra.mxu0 %v3316
        %4641 = vmatprep.subr.bf16.mxu0 %v3323
        %4642 = vmatpush1.bf16.msra.mxu0 %v3322
        %4643 = vmatprep.subr.bf16.mxu0 %v3329
        %4644 = vmatpush1.bf16.msra.mxu0 %v3328
        %4645 = vmatprep.subr.bf16.mxu0 %v3335
        %4646 = vmatpush1.bf16.msra.mxu0 %v3334
        %4647 = vmatprep.subr.bf16.mxu0 %v3341
        %4648 = vmatpush1.bf16.msra.mxu0 %v3340
        %4649 = vmatprep.subr.bf16.mxu0 %v3347
        %4650 = vmatpush1.bf16.msra.mxu0 %v3346
        %4651 = vmatprep.subr.bf16.mxu0 0
        %4652 = vmatpush1.bf16.msra.mxu0 0
        %4653 = vmatprep.subr.bf16.mxu0 0
        %4654 = vmatpush1.bf16.msra.mxu0 0
        %4655 = vmatprep.subr.bf16.mxu0 0
        %4656 = vmatpush1.bf16.msra.mxu0 0
        %4657 = vmatprep.subr.bf16.mxu0 0
        %4658 = vmatpush1.bf16.msra.mxu0 0
        %4659 = vmatprep.subr.bf16.mxu0 0
        %4660 = vmatpush1.bf16.msra.mxu0 0
        %4661 = vmatprep.mubr.bf16.mxu0 %v3896
        %4662 = vmatmul.mubr.bf16.gmra.mrb[0].mxu0 %v1151
        %v4663 = vpop.f32.mrb[0].mxu0
        %v4664 = vadd.f32 %v4621, %v4663
        %v4665 = vpop.f32.mrb[0].mxu0
        %v4666 = vadd.f32 %v4623, %v4665
        %v4667 = vpop.f32.mrb[0].mxu0
        %v4668 = vadd.f32 %v4625, %v4667
        %v4669 = vpop.f32.mrb[0].mxu0
        %v4670 = vadd.f32 %v4627, %v4669
        %4671 = vdwg.mxu0
        %v4672 = vpack.c.bf16 %v4152, %v4148
        %v4673 = vpack.c.bf16 %v4154, %v4150
        %v4674 = vpack.c.bf16 %v4410, %v4406
        %v4675 = vpack.c.bf16 %v4412, %v4408
        %v4676 = vpack.c.bf16 %v4668, %v4664
        %v4677 = vpack.c.bf16 %v4670, %v4666
        %v4678 = vld [vmem:[#allocation8] sm:$0xff]
        %v4679 = vld [vmem:[#allocation8 + $0x8] sm:$0xff]
        %v4680 = vld [vmem:[#allocation8 + $0x10] sm:$0xff]
        %v4681 = vld [vmem:[#allocation8 + $0x18] sm:$0xff]
        %v4682 = vld [vmem:[#allocation8 + $0x20] sm:$0xff]
        %v4683 = vld [vmem:[#allocation8 + $0x28] sm:$0xff]
        %v4684 = vld [vmem:[#allocation8 + $0x30] sm:$0xff]
        %v4685 = vld [vmem:[#allocation8 + $0x38] sm:$0xff]
        %v4686 = vld [vmem:[#allocation8 + $0x40] sm:$0xff]
        %v4687 = vld [vmem:[#allocation8 + $0x48] sm:$0xff]
        %v4688 = vld [vmem:[#allocation8 + $0x50] sm:$0xff]
        %v4689 = vld [vmem:[#allocation8 + $0x58] sm:$0xff]
        %v4690 = vld [vmem:[#allocation8 + $0x60] sm:$0xff]
        %v4691 = vld [vmem:[#allocation8 + $0x68] sm:$0xff]
        %v4692 = vld [vmem:[#allocation8 + $0x70] sm:$0xff]
        %v4693 = vld [vmem:[#allocation8 + $0x78] sm:$0xff]
        %v4694 = vld [vmem:[#allocation8 + $0x80] sm:$0xff]
        %v4695 = vld [vmem:[#allocation8 + $0x88] sm:$0xff]
        %v4696 = vld [vmem:[#allocation8 + $0x90] sm:$0xff]
        %v4697 = vld [vmem:[#allocation8 + $0x98] sm:$0xff]
        %v4698 = vld [vmem:[#allocation8 + $0xa0] sm:$0xff]
        %v4699 = vld [vmem:[#allocation8 + $0xa8] sm:$0xff]
        %v4700 = vld [vmem:[#allocation8 + $0xb0] sm:$0xff]
        %v4701 = vld [vmem:[#allocation8 + $0xb8] sm:$0xff]
        %v4702 = vld [vmem:[#allocation8 + $0xc0] sm:$0xff]
        %v4703 = vld [vmem:[#allocation8 + $0xc8] sm:$0xff]
        %v4704 = vld [vmem:[#allocation8 + $0xd0] sm:$0xff]
        %v4705 = vld [vmem:[#allocation8 + $0xd8] sm:$0xff]
        %v4706 = vld [vmem:[#allocation8 + $0xe0] sm:$0xff]
        %v4707 = vld [vmem:[#allocation8 + $0xe8] sm:$0xff]
        %v4708 = vld [vmem:[#allocation8 + $0xf0] sm:$0xff]
        %v4709 = vld [vmem:[#allocation8 + $0xf8] sm:$0xff]
        %v4710 = vld [vmem:[#allocation8 + $0x100] sm:$0xff]
        %v4711 = vld [vmem:[#allocation8 + $0x108] sm:$0xff]
        %v4712 = vld [vmem:[#allocation8 + $0x110] sm:$0xff]
        %v4713 = vld [vmem:[#allocation8 + $0x118] sm:$0xff]
        %v4714 = vld [vmem:[#allocation8 + $0x120] sm:$0xff]
        %v4715 = vld [vmem:[#allocation8 + $0x128] sm:$0xff]
        %v4716 = vld [vmem:[#allocation8 + $0x130] sm:$0xff]
        %v4717 = vld [vmem:[#allocation8 + $0x138] sm:$0xff]
        %v4718 = vld [vmem:[#allocation8 + $0x140] sm:$0xff]
        %v4719 = vld [vmem:[#allocation8 + $0x148] sm:$0xff]
        %v4720 = vld [vmem:[#allocation8 + $0x150] sm:$0xff]
        %v4721 = vld [vmem:[#allocation8 + $0x158] sm:$0xff]
        %v4722 = vld [vmem:[#allocation8 + $0x160] sm:$0xff]
        %v4723 = vld [vmem:[#allocation8 + $0x168] sm:$0xff]
        %v4724 = vld [vmem:[#allocation8 + $0x170] sm:$0xff]
        %v4725 = vld [vmem:[#allocation8 + $0x178] sm:$0xff]
        %v4726 = vld [vmem:[#allocation8 + $0x180] sm:$0xff]
        %v4727 = vld [vmem:[#allocation8 + $0x188] sm:$0xff]
        %v4728 = vld [vmem:[#allocation8 + $0x190] sm:$0xff]
        %v4729 = vld [vmem:[#allocation8 + $0x198] sm:$0xff]
        %v4730 = vld [vmem:[#allocation8 + $0x1a0] sm:$0xff]
        %v4731 = vld [vmem:[#allocation8 + $0x1a8] sm:$0xff]
        %v4732 = vld [vmem:[#allocation8 + $0x1b0] sm:$0xff]
        %v4733 = vld [vmem:[#allocation8 + $0x1b8] sm:$0xff]
        %v4734 = vld [vmem:[#allocation8 + $0x1c0] sm:$0xff]
        %v4735 = vld [vmem:[#allocation8 + $0x1c8] sm:$0xff]
        %v4736 = vld [vmem:[#allocation8 + $0x1d0] sm:$0xff]
        %v4737 = vld [vmem:[#allocation8 + $0x1d8] sm:$0xff]
        %v4738 = vld [vmem:[#allocation8 + $0x1e0] sm:$0xff]
        %v4739 = vld [vmem:[#allocation8 + $0x1e8] sm:$0xff]
        %v4740 = vld [vmem:[#allocation8 + $0x1f0] sm:$0xff]
        %v4741 = vld [vmem:[#allocation8 + $0x1f8] sm:$0xff]
        %v4742 = vld [vmem:[#allocation8 + $0x200] sm:$0xff]
        %v4743 = vld [vmem:[#allocation8 + $0x208] sm:$0xff]
        %v4744 = vld [vmem:[#allocation8 + $0x210] sm:$0xff]
        %v4745 = vld [vmem:[#allocation8 + $0x218] sm:$0xff]
        %v4746 = vld [vmem:[#allocation8 + $0x220] sm:$0xff]
        %v4747 = vld [vmem:[#allocation8 + $0x228] sm:$0xff]
        %v4748 = vld [vmem:[#allocation8 + $0x230] sm:$0xff]
        %v4749 = vld [vmem:[#allocation8 + $0x238] sm:$0xff]
        %v4750 = vld [vmem:[#allocation8 + $0x240] sm:$0xff]
        %v4751 = vld [vmem:[#allocation8 + $0x248] sm:$0xff]
        %v4752 = vld [vmem:[#allocation8 + $0x250] sm:$0xff]
        %v4753 = vld [vmem:[#allocation8 + $0x258] sm:$0xff]
        %v4754 = vld [vmem:[#allocation8 + $0x260] sm:$0xff]
        %v4755 = vld [vmem:[#allocation8 + $0x268] sm:$0xff]
        %v4756 = vld [vmem:[#allocation8 + $0x270] sm:$0xff]
        %v4757 = vld [vmem:[#allocation8 + $0x278] sm:$0xff]
        %v4758 = vld [vmem:[#allocation8 + $0x280] sm:$0xff]
        %v4759 = vld [vmem:[#allocation8 + $0x288] sm:$0xff]
        %v4760 = vld [vmem:[#allocation8 + $0x290] sm:$0xff]
        %v4761 = vld [vmem:[#allocation8 + $0x298] sm:$0xff]
        %v4762 = vld [vmem:[#allocation8 + $0x2a0] sm:$0xff]
        %v4763 = vld [vmem:[#allocation8 + $0x2a8] sm:$0xff]
        %v4764 = vld [vmem:[#allocation8 + $0x2b0] sm:$0xff]
        %v4765 = vld [vmem:[#allocation8 + $0x2b8] sm:$0xff]
        %v4766 = vld [vmem:[#allocation8 + $0x2c0] sm:$0xff]
        %v4767 = vld [vmem:[#allocation8 + $0x2c8] sm:$0xff]
        %v4768 = vld [vmem:[#allocation8 + $0x2d0] sm:$0xff]
        %v4769 = vld [vmem:[#allocation8 + $0x2d8] sm:$0xff]
        %v4770 = vld [vmem:[#allocation8 + $0x2e0] sm:$0xff]
        %v4771 = vld [vmem:[#allocation8 + $0x2e8] sm:$0xff]
        %v4772 = vld [vmem:[#allocation8 + $0x2f0] sm:$0xff]
        %v4773 = vld [vmem:[#allocation8 + $0x2f8] sm:$0xff]
        %v4774 = vld [vmem:[#allocation8 + $0x300] sm:$0xff]
        %v4775 = vld [vmem:[#allocation8 + $0x308] sm:$0xff]
        %v4776 = vld [vmem:[#allocation8 + $0x310] sm:$0xff]
        %v4777 = vld [vmem:[#allocation8 + $0x318] sm:$0xff]
        %v4778 = vld [vmem:[#allocation8 + $0x320] sm:$0xff]
        %v4779 = vld [vmem:[#allocation8 + $0x328] sm:$0xff]
        %v4780 = vld [vmem:[#allocation8 + $0x330] sm:$0xff]
        %v4781 = vld [vmem:[#allocation8 + $0x338] sm:$0xff]
        %v4782 = vld [vmem:[#allocation8 + $0x340] sm:$0xff]
        %v4783 = vld [vmem:[#allocation8 + $0x348] sm:$0xff]
        %v4784 = vld [vmem:[#allocation8 + $0x350] sm:$0xff]
        %v4785 = vld [vmem:[#allocation8 + $0x358] sm:$0xff]
        %v4786 = vld [vmem:[#allocation8 + $0x360] sm:$0xff]
        %v4787 = vld [vmem:[#allocation8 + $0x368] sm:$0xff]
        %v4788 = vld [vmem:[#allocation8 + $0x370] sm:$0xff]
        %v4789 = vld [vmem:[#allocation8 + $0x378] sm:$0xff]
        %v4790 = vld [vmem:[#allocation8 + $0x380] sm:$0xff]
        %v4791 = vld [vmem:[#allocation8 + $0x388] sm:$0xff]
        %v4792 = vld [vmem:[#allocation8 + $0x390] sm:$0xff]
        %v4793 = vld [vmem:[#allocation8 + $0x398] sm:$0xff]
        %v4794 = vld [vmem:[#allocation8 + $0x3a0] sm:$0xff]
        %v4795 = vld [vmem:[#allocation8 + $0x3a8] sm:$0xff]
        %v4796 = vld [vmem:[#allocation8 + $0x3b0] sm:$0xff]
        %v4797 = vld [vmem:[#allocation8 + $0x3b8] sm:$0xff]
        %v4798 = vld [vmem:[#allocation8 + $0x3c0] sm:$0xff]
        %v4799 = vld [vmem:[#allocation8 + $0x3c8] sm:$0xff]
        %v4800 = vld [vmem:[#allocation8 + $0x3d0] sm:$0xff]
        %v4801 = vld [vmem:[#allocation8 + $0x3d8] sm:$0xff]
        %v4802 = vld [vmem:[#allocation8 + $0x3e0] sm:$0xff]
        %v4803 = vld [vmem:[#allocation8 + $0x3e8] sm:$0xff]
        %v4804 = vld [vmem:[#allocation8 + $0x3f0] sm:$0xff]
        %v4805 = vld [vmem:[#allocation8 + $0x3f8] sm:$0xff]
        %v4806 = vld [vmem:[#allocation8 + $0x400] sm:$0xff]
        %v4807 = vld [vmem:[#allocation8 + $0x408] sm:$0xff]
        %v4808 = vld [vmem:[#allocation8 + $0x410] sm:$0xff]
        %v4809 = vld [vmem:[#allocation8 + $0x418] sm:$0xff]
        %v4810 = vld [vmem:[#allocation8 + $0x420] sm:$0xff]
        %v4811 = vld [vmem:[#allocation8 + $0x428] sm:$0xff]
        %v4812 = vld [vmem:[#allocation8 + $0x430] sm:$0xff]
        %v4813 = vld [vmem:[#allocation8 + $0x438] sm:$0xff]
        %v4814 = vld [vmem:[#allocation8 + $0x440] sm:$0xff]
        %v4815 = vld [vmem:[#allocation8 + $0x448] sm:$0xff]
        %v4816 = vld [vmem:[#allocation8 + $0x450] sm:$0xff]
        %v4817 = vld [vmem:[#allocation8 + $0x458] sm:$0xff]
        %v4818 = vld [vmem:[#allocation8 + $0x460] sm:$0xff]
        %v4819 = vld [vmem:[#allocation8 + $0x468] sm:$0xff]
        %v4820 = vld [vmem:[#allocation8 + $0x470] sm:$0xff]
        %v4821 = vld [vmem:[#allocation8 + $0x478] sm:$0xff]
        %v4822 = vld [vmem:[#allocation8 + $0x480] sm:$0xff]
        %v4823 = vld [vmem:[#allocation8 + $0x488] sm:$0xff]
        %v4824 = vld [vmem:[#allocation8 + $0x490] sm:$0xff]
        %v4825 = vld [vmem:[#allocation8 + $0x498] sm:$0xff]
        %v4826 = vld [vmem:[#allocation8 + $0x4a0] sm:$0xff]
        %v4827 = vld [vmem:[#allocation8 + $0x4a8] sm:$0xff]
        %v4828 = vld [vmem:[#allocation8 + $0x4b0] sm:$0xff]
        %v4829 = vld [vmem:[#allocation8 + $0x4b8] sm:$0xff]
        %v4830 = vld [vmem:[#allocation8 + $0x4c0] sm:$0xff]
        %v4831 = vld [vmem:[#allocation8 + $0x4c8] sm:$0xff]
        %v4832 = vld [vmem:[#allocation8 + $0x4d0] sm:$0xff]
        %v4833 = vld [vmem:[#allocation8 + $0x4d8] sm:$0xff]
        %v4834 = vld [vmem:[#allocation8 + $0x4e0] sm:$0xff]
        %v4835 = vld [vmem:[#allocation8 + $0x4e8] sm:$0xff]
        %v4836 = vld [vmem:[#allocation8 + $0x4f0] sm:$0xff]
        %v4837 = vld [vmem:[#allocation8 + $0x4f8] sm:$0xff]
        %v4838 = vld [vmem:[#allocation8 + $0x500] sm:$0xff]
        %v4839 = vld [vmem:[#allocation8 + $0x508] sm:$0xff]
        %v4840 = vld [vmem:[#allocation8 + $0x510] sm:$0xff]
        %v4841 = vld [vmem:[#allocation8 + $0x518] sm:$0xff]
        %v4842 = vld [vmem:[#allocation8 + $0x520] sm:$0xff]
        %v4843 = vld [vmem:[#allocation8 + $0x528] sm:$0xff]
        %v4844 = vld [vmem:[#allocation8 + $0x530] sm:$0xff]
        %v4845 = vld [vmem:[#allocation8 + $0x538] sm:$0xff]
        %v4846 = vld [vmem:[#allocation8 + $0x540] sm:$0xff]
        %v4847 = vld [vmem:[#allocation8 + $0x548] sm:$0xff]
        %v4848 = vld [vmem:[#allocation8 + $0x550] sm:$0xff]
        %v4849 = vld [vmem:[#allocation8 + $0x558] sm:$0xff]
        %v4850 = vld [vmem:[#allocation8 + $0x560] sm:$0xff]
        %v4851 = vld [vmem:[#allocation8 + $0x568] sm:$0xff]
        %v4852 = vld [vmem:[#allocation8 + $0x570] sm:$0xff]
        %v4853 = vld [vmem:[#allocation8 + $0x578] sm:$0xff]
        %v4854 = vld [vmem:[#allocation8 + $0x580] sm:$0xff]
        %v4855 = vld [vmem:[#allocation8 + $0x588] sm:$0xff]
        %v4856 = vld [vmem:[#allocation8 + $0x590] sm:$0xff]
        %v4857 = vld [vmem:[#allocation8 + $0x598] sm:$0xff]
        %v4858 = vld [vmem:[#allocation8 + $0x5a0] sm:$0xff]
        %v4859 = vld [vmem:[#allocation8 + $0x5a8] sm:$0xff]
        %v4860 = vld [vmem:[#allocation8 + $0x5b0] sm:$0xff]
        %v4861 = vld [vmem:[#allocation8 + $0x5b8] sm:$0xff]
        %v4862 = vld [vmem:[#allocation8 + $0x5c0] sm:$0xff]
        %v4863 = vld [vmem:[#allocation8 + $0x5c8] sm:$0xff]
        %v4864 = vld [vmem:[#allocation8 + $0x5d0] sm:$0xff]
        %v4865 = vld [vmem:[#allocation8 + $0x5d8] sm:$0xff]
        %v4866 = vld [vmem:[#allocation8 + $0x5e0] sm:$0xff]
        %v4867 = vld [vmem:[#allocation8 + $0x5e8] sm:$0xff]
        %v4868 = vld [vmem:[#allocation8 + $0x5f0] sm:$0xff]
        %v4869 = vld [vmem:[#allocation8 + $0x5f8] sm:$0xff]
        %v4870 = vld [vmem:[#allocation8 + $0x600] sm:$0xff]
        %v4871 = vld [vmem:[#allocation8 + $0x608] sm:$0xff]
        %v4872 = vld [vmem:[#allocation8 + $0x610] sm:$0xff]
        %v4873 = vld [vmem:[#allocation8 + $0x618] sm:$0xff]
        %v4874 = vld [vmem:[#allocation8 + $0x620] sm:$0xff]
        %v4875 = vld [vmem:[#allocation8 + $0x628] sm:$0xff]
        %v4876 = vld [vmem:[#allocation8 + $0x630] sm:$0xff]
        %v4877 = vld [vmem:[#allocation8 + $0x638] sm:$0xff]
        %v4878 = vld [vmem:[#allocation8 + $0x640] sm:$0xff]
        %v4879 = vld [vmem:[#allocation8 + $0x648] sm:$0xff]
        %v4880 = vld [vmem:[#allocation8 + $0x650] sm:$0xff]
        %v4881 = vld [vmem:[#allocation8 + $0x658] sm:$0xff]
        %v4882 = vld [vmem:[#allocation8 + $0x660] sm:$0xff]
        %v4883 = vld [vmem:[#allocation8 + $0x668] sm:$0xff]
        %v4884 = vld [vmem:[#allocation8 + $0x670] sm:$0xff]
        %v4885 = vld [vmem:[#allocation8 + $0x678] sm:$0xff]
        %v4886 = vld [vmem:[#allocation8 + $0x680] sm:$0xff]
        %v4887 = vld [vmem:[#allocation8 + $0x688] sm:$0xff]
        %v4888 = vld [vmem:[#allocation8 + $0x690] sm:$0xff]
        %v4889 = vld [vmem:[#allocation8 + $0x698] sm:$0xff]
        %v4890 = vld [vmem:[#allocation8 + $0x6a0] sm:$0xff]
        %v4891 = vld [vmem:[#allocation8 + $0x6a8] sm:$0xff]
        %v4892 = vld [vmem:[#allocation8 + $0x6b0] sm:$0xff]
        %v4893 = vld [vmem:[#allocation8 + $0x6b8] sm:$0xff]
        %v4894 = vld [vmem:[#allocation8 + $0x6c0] sm:$0xff]
        %v4895 = vld [vmem:[#allocation8 + $0x6c8] sm:$0xff]
        %v4896 = vld [vmem:[#allocation8 + $0x6d0] sm:$0xff]
        %v4897 = vld [vmem:[#allocation8 + $0x6d8] sm:$0xff]
        %v4898 = vld [vmem:[#allocation8 + $0x6e0] sm:$0xff]
        %v4899 = vld [vmem:[#allocation8 + $0x6e8] sm:$0xff]
        %v4900 = vld [vmem:[#allocation8 + $0x6f0] sm:$0xff]
        %v4901 = vld [vmem:[#allocation8 + $0x6f8] sm:$0xff]
        %v4902 = vld [vmem:[#allocation8 + $0x700] sm:$0xff]
        %v4903 = vld [vmem:[#allocation8 + $0x708] sm:$0xff]
        %v4904 = vld [vmem:[#allocation8 + $0x710] sm:$0xff]
        %v4905 = vld [vmem:[#allocation8 + $0x718] sm:$0xff]
        %v4906 = vld [vmem:[#allocation8 + $0x720] sm:$0xff]
        %v4907 = vld [vmem:[#allocation8 + $0x728] sm:$0xff]
        %v4908 = vld [vmem:[#allocation8 + $0x730] sm:$0xff]
        %v4909 = vld [vmem:[#allocation8 + $0x738] sm:$0xff]
        %v4910 = vld [vmem:[#allocation8 + $0x740] sm:$0xff]
        %v4911 = vld [vmem:[#allocation8 + $0x748] sm:$0xff]
        %v4912 = vld [vmem:[#allocation8 + $0x750] sm:$0xff]
        %v4913 = vld [vmem:[#allocation8 + $0x758] sm:$0xff]
        %v4914 = vld [vmem:[#allocation8 + $0x760] sm:$0xff]
        %v4915 = vld [vmem:[#allocation8 + $0x768] sm:$0xff]
        %v4916 = vld [vmem:[#allocation8 + $0x770] sm:$0xff]
        %v4917 = vld [vmem:[#allocation8 + $0x778] sm:$0xff]
        %v4918 = vld [vmem:[#allocation8 + $0x780] sm:$0xff]
        %v4919 = vld [vmem:[#allocation8 + $0x788] sm:$0xff]
        %v4920 = vld [vmem:[#allocation8 + $0x790] sm:$0xff]
        %v4921 = vld [vmem:[#allocation8 + $0x798] sm:$0xff]
        %v4922 = vld [vmem:[#allocation8 + $0x7a0] sm:$0xff]
        %v4923 = vld [vmem:[#allocation8 + $0x7a8] sm:$0xff]
        %v4924 = vld [vmem:[#allocation8 + $0x7b0] sm:$0xff]
        %v4925 = vld [vmem:[#allocation8 + $0x7b8] sm:$0xff]
        %v4926 = vld [vmem:[#allocation8 + $0x7c0] sm:$0xff]
        %v4927 = vld [vmem:[#allocation8 + $0x7c8] sm:$0xff]
        %v4928 = vld [vmem:[#allocation8 + $0x7d0] sm:$0xff]
        %v4929 = vld [vmem:[#allocation8 + $0x7d8] sm:$0xff]
        %v4930 = vld [vmem:[#allocation8 + $0x7e0] sm:$0xff]
        %v4931 = vld [vmem:[#allocation8 + $0x7e8] sm:$0xff]
        %v4932 = vld [vmem:[#allocation8 + $0x7f0] sm:$0xff]
        %v4933 = vld [vmem:[#allocation8 + $0x7f8] sm:$0xff]
        %v4934 = vld [vmem:[#allocation8 + $0x800] sm:$0xff]
        %v4935 = vld [vmem:[#allocation8 + $0x808] sm:$0xff]
        %v4936 = vld [vmem:[#allocation8 + $0x810] sm:$0xff]
        %v4937 = vld [vmem:[#allocation8 + $0x818] sm:$0xff]
        %v4938 = vld [vmem:[#allocation8 + $0x820] sm:$0xff]
        %v4939 = vld [vmem:[#allocation8 + $0x828] sm:$0xff]
        %v4940 = vld [vmem:[#allocation8 + $0x830] sm:$0xff]
        %v4941 = vld [vmem:[#allocation8 + $0x838] sm:$0xff]
        %v4942 = vld [vmem:[#allocation8 + $0x840] sm:$0xff]
        %v4943 = vld [vmem:[#allocation8 + $0x848] sm:$0xff]
        %v4944 = vld [vmem:[#allocation8 + $0x850] sm:$0xff]
        %v4945 = vld [vmem:[#allocation8 + $0x858] sm:$0xff]
        %v4946 = vld [vmem:[#allocation8 + $0x860] sm:$0xff]
        %v4947 = vld [vmem:[#allocation8 + $0x868] sm:$0xff]
        %v4948 = vld [vmem:[#allocation8 + $0x870] sm:$0xff]
        %v4949 = vld [vmem:[#allocation8 + $0x878] sm:$0xff]
        %v4950 = vld [vmem:[#allocation8 + $0x880] sm:$0xff]
        %v4951 = vld [vmem:[#allocation8 + $0x888] sm:$0xff]
        %v4952 = vld [vmem:[#allocation8 + $0x890] sm:$0xff]
        %v4953 = vld [vmem:[#allocation8 + $0x898] sm:$0xff]
        %v4954 = vld [vmem:[#allocation8 + $0x8a0] sm:$0xff]
        %v4955 = vld [vmem:[#allocation8 + $0x8a8] sm:$0xff]
        %v4956 = vld [vmem:[#allocation8 + $0x8b0] sm:$0xff]
        %v4957 = vld [vmem:[#allocation8 + $0x8b8] sm:$0xff]
        %v4958 = vld [vmem:[#allocation8 + $0x8c0] sm:$0xff]
        %v4959 = vld [vmem:[#allocation8 + $0x8c8] sm:$0xff]
        %v4960 = vld [vmem:[#allocation8 + $0x8d0] sm:$0xff]
        %v4961 = vld [vmem:[#allocation8 + $0x8d8] sm:$0xff]
        %v4962 = vld [vmem:[#allocation8 + $0x8e0] sm:$0xff]
        %v4963 = vld [vmem:[#allocation8 + $0x8e8] sm:$0xff]
        %v4964 = vld [vmem:[#allocation8 + $0x8f0] sm:$0xff]
        %v4965 = vld [vmem:[#allocation8 + $0x8f8] sm:$0xff]
        %v4966 = vld [vmem:[#allocation8 + $0x900] sm:$0xff]
        %v4967 = vld [vmem:[#allocation8 + $0x908] sm:$0xff]
        %v4968 = vld [vmem:[#allocation8 + $0x910] sm:$0xff]
        %v4969 = vld [vmem:[#allocation8 + $0x918] sm:$0xff]
        %v4970 = vld [vmem:[#allocation8 + $0x920] sm:$0xff]
        %v4971 = vld [vmem:[#allocation8 + $0x928] sm:$0xff]
        %v4972 = vld [vmem:[#allocation8 + $0x930] sm:$0xff]
        %v4973 = vld [vmem:[#allocation8 + $0x938] sm:$0xff]
        %v4974 = vld [vmem:[#allocation8 + $0x940] sm:$0xff]
        %v4975 = vld [vmem:[#allocation8 + $0x948] sm:$0xff]
        %v4976 = vld [vmem:[#allocation8 + $0x950] sm:$0xff]
        %v4977 = vld [vmem:[#allocation8 + $0x958] sm:$0xff]
        %v4978 = vld [vmem:[#allocation8 + $0x960] sm:$0xff]
        %v4979 = vld [vmem:[#allocation8 + $0x968] sm:$0xff]
        %v4980 = vld [vmem:[#allocation8 + $0x970] sm:$0xff]
        %v4981 = vld [vmem:[#allocation8 + $0x978] sm:$0xff]
        %v4982 = vld [vmem:[#allocation8 + $0x980] sm:$0xff]
        %v4983 = vld [vmem:[#allocation8 + $0x988] sm:$0xff]
        %v4984 = vld [vmem:[#allocation8 + $0x990] sm:$0xff]
        %v4985 = vld [vmem:[#allocation8 + $0x998] sm:$0xff]
        %v4986 = vld [vmem:[#allocation8 + $0x9a0] sm:$0xff]
        %v4987 = vld [vmem:[#allocation8 + $0x9a8] sm:$0xff]
        %v4988 = vld [vmem:[#allocation8 + $0x9b0] sm:$0xff]
        %v4989 = vld [vmem:[#allocation8 + $0x9b8] sm:$0xff]
        %v4990 = vld [vmem:[#allocation8 + $0x9c0] sm:$0xff]
        %v4991 = vld [vmem:[#allocation8 + $0x9c8] sm:$0xff]
        %v4992 = vld [vmem:[#allocation8 + $0x9d0] sm:$0xff]
        %v4993 = vld [vmem:[#allocation8 + $0x9d8] sm:$0xff]
        %v4994 = vld [vmem:[#allocation8 + $0x9e0] sm:$0xff]
        %v4995 = vld [vmem:[#allocation8 + $0x9e8] sm:$0xff]
        %v4996 = vld [vmem:[#allocation8 + $0x9f0] sm:$0xff]
        %v4997 = vld [vmem:[#allocation8 + $0x9f8] sm:$0xff]
        %v4998 = vld [vmem:[#allocation8 + $0xa00] sm:$0xff]
        %v4999 = vld [vmem:[#allocation8 + $0xa08] sm:$0xff]
        %v5000 = vld [vmem:[#allocation8 + $0xa10] sm:$0xff]
        %v5001 = vld [vmem:[#allocation8 + $0xa18] sm:$0xff]
        %v5002 = vld [vmem:[#allocation8 + $0xa20] sm:$0xff]
        %v5003 = vld [vmem:[#allocation8 + $0xa28] sm:$0xff]
        %v5004 = vld [vmem:[#allocation8 + $0xa30] sm:$0xff]
        %v5005 = vld [vmem:[#allocation8 + $0xa38] sm:$0xff]
        %v5006 = vld [vmem:[#allocation8 + $0xa40] sm:$0xff]
        %v5007 = vld [vmem:[#allocation8 + $0xa48] sm:$0xff]
        %v5008 = vld [vmem:[#allocation8 + $0xa50] sm:$0xff]
        %v5009 = vld [vmem:[#allocation8 + $0xa58] sm:$0xff]
        %v5010 = vld [vmem:[#allocation8 + $0xa60] sm:$0xff]
        %v5011 = vld [vmem:[#allocation8 + $0xa68] sm:$0xff]
        %v5012 = vld [vmem:[#allocation8 + $0xa70] sm:$0xff]
        %v5013 = vld [vmem:[#allocation8 + $0xa78] sm:$0xff]
        %v5014 = vld [vmem:[#allocation8 + $0xa80] sm:$0xff]
        %v5015 = vld [vmem:[#allocation8 + $0xa88] sm:$0xff]
        %v5016 = vld [vmem:[#allocation8 + $0xa90] sm:$0xff]
        %v5017 = vld [vmem:[#allocation8 + $0xa98] sm:$0xff]
        %v5018 = vld [vmem:[#allocation8 + $0xaa0] sm:$0xff]
        %v5019 = vld [vmem:[#allocation8 + $0xaa8] sm:$0xff]
        %v5020 = vld [vmem:[#allocation8 + $0xab0] sm:$0xff]
        %v5021 = vld [vmem:[#allocation8 + $0xab8] sm:$0xff]
        %v5022 = vld [vmem:[#allocation8 + $0xac0] sm:$0xff]
        %v5023 = vld [vmem:[#allocation8 + $0xac8] sm:$0xff]
        %v5024 = vld [vmem:[#allocation8 + $0xad0] sm:$0xff]
        %v5025 = vld [vmem:[#allocation8 + $0xad8] sm:$0xff]
        %v5026 = vld [vmem:[#allocation8 + $0xae0] sm:$0xff]
        %v5027 = vld [vmem:[#allocation8 + $0xae8] sm:$0xff]
        %v5028 = vld [vmem:[#allocation8 + $0xaf0] sm:$0xff]
        %v5029 = vld [vmem:[#allocation8 + $0xaf8] sm:$0xff]
        %v5030 = vld [vmem:[#allocation8 + $0xb00] sm:$0xff]
        %v5031 = vld [vmem:[#allocation8 + $0xb08] sm:$0xff]
        %v5032 = vld [vmem:[#allocation8 + $0xb10] sm:$0xff]
        %v5033 = vld [vmem:[#allocation8 + $0xb18] sm:$0xff]
        %v5034 = vld [vmem:[#allocation8 + $0xb20] sm:$0xff]
        %v5035 = vld [vmem:[#allocation8 + $0xb28] sm:$0xff]
        %v5036 = vld [vmem:[#allocation8 + $0xb30] sm:$0xff]
        %v5037 = vld [vmem:[#allocation8 + $0xb38] sm:$0xff]
        %v5038 = vld [vmem:[#allocation8 + $0xb40] sm:$0xff]
        %v5039 = vld [vmem:[#allocation8 + $0xb48] sm:$0xff]
        %v5040 = vld [vmem:[#allocation8 + $0xb50] sm:$0xff]
        %v5041 = vld [vmem:[#allocation8 + $0xb58] sm:$0xff]
        %v5042 = vld [vmem:[#allocation9] sm:$0xff]
        %v5044 = vlaneseq
        %v5045 = vshrl.u32 %v5044, 7
        %v5046 = vsub.s32 0, %v5045
        %v5047 = vrot.slane %v5042, %v5046
        %v5048 = vlaneseq
        %v5049 = vshrl.u32 %v5048, 7
        %v5050 = vsub.s32 1, %v5049
        %v5051 = vrot.slane %v5042, %v5050
        %v5052 = vlaneseq
        %v5053 = vshrl.u32 %v5052, 7
        %v5054 = vsub.s32 2, %v5053
        %v5055 = vrot.slane %v5042, %v5054
        %v5056 = vlaneseq
        %v5057 = vshrl.u32 %v5056, 7
        %v5058 = vsub.s32 3, %v5057
        %v5059 = vrot.slane %v5042, %v5058
        %v5060 = vlaneseq
        %v5061 = vshrl.u32 %v5060, 7
        %v5062 = vsub.s32 4, %v5061
        %v5063 = vrot.slane %v5042, %v5062
        %v5064 = vlaneseq
        %v5065 = vshrl.u32 %v5064, 7
        %v5066 = vsub.s32 5, %v5065
        %v5067 = vrot.slane %v5042, %v5066
        %v5068 = vlaneseq
        %v5069 = vshrl.u32 %v5068, 7
        %v5070 = vsub.s32 6, %v5069
        %v5071 = vrot.slane %v5042, %v5070
        %v5072 = vlaneseq
        %v5073 = vshrl.u32 %v5072, 7
        %v5074 = vsub.s32 7, %v5073
        %v5075 = vrot.slane %v5042, %v5074
        %v5448 = vunpack.c.l.b16 %v4678
        %v5449 = vunpack.c.h.b16 %v4678
        %v5450 = vunpack.c.l.b16 %v4679
        %v5451 = vunpack.c.h.b16 %v4679
        %v5452 = vunpack.c.l.b16 %v4680
        %v5453 = vunpack.c.h.b16 %v4680
        %v5454 = vunpack.c.l.b16 %v4681
        %v5455 = vunpack.c.h.b16 %v4681
        %v5456 = vunpack.c.l.b16 %v4682
        %v5457 = vunpack.c.h.b16 %v4682
        %v5458 = vunpack.c.l.b16 %v4683
        %v5459 = vunpack.c.h.b16 %v4683
        %v5460 = vunpack.c.l.b16 %v4684
        %v5461 = vunpack.c.h.b16 %v4684
        %v5462 = vunpack.c.l.b16 %v4685
        %v5463 = vunpack.c.h.b16 %v4685
        %v5464 = vunpack.c.l.b16 %v4686
        %v5465 = vunpack.c.h.b16 %v4686
        %v5466 = vunpack.c.l.b16 %v4687
        %v5467 = vunpack.c.h.b16 %v4687
        %v5468 = vunpack.c.l.b16 %v4688
        %v5469 = vunpack.c.h.b16 %v4688
        %v5470 = vunpack.c.l.b16 %v4689
        %v5471 = vunpack.c.h.b16 %v4689
        %v5472 = vunpack.c.l.b16 %v4690
        %v5473 = vunpack.c.h.b16 %v4690
        %v5474 = vunpack.c.l.b16 %v4691
        %v5475 = vunpack.c.h.b16 %v4691
        %v5476 = vunpack.c.l.b16 %v4692
        %v5477 = vunpack.c.h.b16 %v4692
        %v5478 = vunpack.c.l.b16 %v4693
        %v5479 = vunpack.c.h.b16 %v4693
        %v5480 = vunpack.c.l.b16 %v4694
        %v5481 = vunpack.c.h.b16 %v4694
        %v5482 = vunpack.c.l.b16 %v4695
        %v5483 = vunpack.c.h.b16 %v4695
        %v5484 = vunpack.c.l.b16 %v4696
        %v5485 = vunpack.c.h.b16 %v4696
        %v5486 = vunpack.c.l.b16 %v4697
        %v5487 = vunpack.c.h.b16 %v4697
        %v5488 = vunpack.c.l.b16 %v4698
        %v5489 = vunpack.c.h.b16 %v4698
        %v5490 = vunpack.c.l.b16 %v4699
        %v5491 = vunpack.c.h.b16 %v4699
        %v5492 = vunpack.c.l.b16 %v4700
        %v5493 = vunpack.c.h.b16 %v4700
        %v5494 = vunpack.c.l.b16 %v4701
        %v5495 = vunpack.c.h.b16 %v4701
        %v5496 = vunpack.c.l.b16 %v4702
        %v5497 = vunpack.c.h.b16 %v4702
        %v5498 = vunpack.c.l.b16 %v4703
        %v5499 = vunpack.c.h.b16 %v4703
        %v5500 = vunpack.c.l.b16 %v4704
        %v5501 = vunpack.c.h.b16 %v4704
        %v5502 = vunpack.c.l.b16 %v4705
        %v5503 = vunpack.c.h.b16 %v4705
        %v5504 = vunpack.c.l.b16 %v4706
        %v5505 = vunpack.c.h.b16 %v4706
        %v5506 = vunpack.c.l.b16 %v4707
        %v5507 = vunpack.c.h.b16 %v4707
        %v5508 = vunpack.c.l.b16 %v4708
        %v5509 = vunpack.c.h.b16 %v4708
        %v5510 = vunpack.c.l.b16 %v4709
        %v5511 = vunpack.c.h.b16 %v4709
        %v5512 = vunpack.c.l.b16 %v4710
        %v5513 = vunpack.c.h.b16 %v4710
        %v5514 = vunpack.c.l.b16 %v4711
        %v5515 = vunpack.c.h.b16 %v4711
        %v5516 = vunpack.c.l.b16 %v4712
        %v5517 = vunpack.c.h.b16 %v4712
        %v5518 = vunpack.c.l.b16 %v4713
        %v5519 = vunpack.c.h.b16 %v4713
        %v5520 = vunpack.c.l.b16 %v4714
        %v5521 = vunpack.c.h.b16 %v4714
        %v5522 = vunpack.c.l.b16 %v4715
        %v5523 = vunpack.c.h.b16 %v4715
        %v5524 = vunpack.c.l.b16 %v4716
        %v5525 = vunpack.c.h.b16 %v4716
        %v5526 = vunpack.c.l.b16 %v4717
        %v5527 = vunpack.c.h.b16 %v4717
        %v5528 = vunpack.c.l.b16 %v4718
        %v5529 = vunpack.c.h.b16 %v4718
        %v5530 = vunpack.c.l.b16 %v4719
        %v5531 = vunpack.c.h.b16 %v4719
        %v5532 = vunpack.c.l.b16 %v4720
        %v5533 = vunpack.c.h.b16 %v4720
        %v5534 = vunpack.c.l.b16 %v4721
        %v5535 = vunpack.c.h.b16 %v4721
        %v5536 = vunpack.c.l.b16 %v4722
        %v5537 = vunpack.c.h.b16 %v4722
        %v5538 = vunpack.c.l.b16 %v4723
        %v5539 = vunpack.c.h.b16 %v4723
        %v5540 = vunpack.c.l.b16 %v4724
        %v5541 = vunpack.c.h.b16 %v4724
        %v5542 = vunpack.c.l.b16 %v4725
        %v5543 = vunpack.c.h.b16 %v4725
        %v5544 = vunpack.c.l.b16 %v4726
        %v5545 = vunpack.c.h.b16 %v4726
        %v5546 = vunpack.c.l.b16 %v4727
        %v5547 = vunpack.c.h.b16 %v4727
        %v5548 = vunpack.c.l.b16 %v4728
        %v5549 = vunpack.c.h.b16 %v4728
        %v5550 = vunpack.c.l.b16 %v4729
        %v5551 = vunpack.c.h.b16 %v4729
        %v5552 = vunpack.c.l.b16 %v4730
        %v5553 = vunpack.c.h.b16 %v4730
        %v5554 = vunpack.c.l.b16 %v4731
        %v5555 = vunpack.c.h.b16 %v4731
        %v5556 = vunpack.c.l.b16 %v4732
        %v5557 = vunpack.c.h.b16 %v4732
        %v5558 = vunpack.c.l.b16 %v4733
        %v5559 = vunpack.c.h.b16 %v4733
        %v5560 = vunpack.c.l.b16 %v4734
        %v5561 = vunpack.c.h.b16 %v4734
        %v5562 = vunpack.c.l.b16 %v4735
        %v5563 = vunpack.c.h.b16 %v4735
        %v5564 = vunpack.c.l.b16 %v4736
        %v5565 = vunpack.c.h.b16 %v4736
        %v5566 = vunpack.c.l.b16 %v4737
        %v5567 = vunpack.c.h.b16 %v4737
        %v5568 = vunpack.c.l.b16 %v4738
        %v5569 = vunpack.c.h.b16 %v4738
        %v5570 = vunpack.c.l.b16 %v4739
        %v5571 = vunpack.c.h.b16 %v4739
        %v5572 = vunpack.c.l.b16 %v4740
        %v5573 = vunpack.c.h.b16 %v4740
        %v5574 = vunpack.c.l.b16 %v4741
        %v5575 = vunpack.c.h.b16 %v4741
        %v5576 = vunpack.c.l.b16 %v4742
        %v5577 = vunpack.c.h.b16 %v4742
        %v5578 = vunpack.c.l.b16 %v4743
        %v5579 = vunpack.c.h.b16 %v4743
        %v5580 = vunpack.c.l.b16 %v4744
        %v5581 = vunpack.c.h.b16 %v4744
        %v5582 = vunpack.c.l.b16 %v4745
        %v5583 = vunpack.c.h.b16 %v4745
        %v5584 = vunpack.c.l.b16 %v4746
        %v5585 = vunpack.c.h.b16 %v4746
        %v5586 = vunpack.c.l.b16 %v4747
        %v5587 = vunpack.c.h.b16 %v4747
        %v5588 = vunpack.c.l.b16 %v4748
        %v5589 = vunpack.c.h.b16 %v4748
        %v5590 = vunpack.c.l.b16 %v4749
        %v5591 = vunpack.c.h.b16 %v4749
        %v5592 = vunpack.c.l.b16 %v4750
        %v5593 = vunpack.c.h.b16 %v4750
        %v5594 = vunpack.c.l.b16 %v4751
        %v5595 = vunpack.c.h.b16 %v4751
        %v5596 = vunpack.c.l.b16 %v4752
        %v5597 = vunpack.c.h.b16 %v4752
        %v5598 = vunpack.c.l.b16 %v4753
        %v5599 = vunpack.c.h.b16 %v4753
        %v5600 = vunpack.c.l.b16 %v4754
        %v5601 = vunpack.c.h.b16 %v4754
        %v5602 = vunpack.c.l.b16 %v4755
        %v5603 = vunpack.c.h.b16 %v4755
        %v5604 = vunpack.c.l.b16 %v4756
        %v5605 = vunpack.c.h.b16 %v4756
        %v5606 = vunpack.c.l.b16 %v4757
        %v5607 = vunpack.c.h.b16 %v4757
        %v5608 = vunpack.c.l.b16 %v4758
        %v5609 = vunpack.c.h.b16 %v4758
        %v5610 = vunpack.c.l.b16 %v4759
        %v5611 = vunpack.c.h.b16 %v4759
        %v5612 = vunpack.c.l.b16 %v4760
        %v5613 = vunpack.c.h.b16 %v4760
        %v5614 = vunpack.c.l.b16 %v4761
        %v5615 = vunpack.c.h.b16 %v4761
        %v5616 = vunpack.c.l.b16 %v4762
        %v5617 = vunpack.c.h.b16 %v4762
        %v5618 = vunpack.c.l.b16 %v4763
        %v5619 = vunpack.c.h.b16 %v4763
        %v5620 = vunpack.c.l.b16 %v4764
        %v5621 = vunpack.c.h.b16 %v4764
        %v5622 = vunpack.c.l.b16 %v4765
        %v5623 = vunpack.c.h.b16 %v4765
        %v5624 = vunpack.c.l.b16 %v4766
        %v5625 = vunpack.c.h.b16 %v4766
        %v5626 = vunpack.c.l.b16 %v4767
        %v5627 = vunpack.c.h.b16 %v4767
        %v5628 = vunpack.c.l.b16 %v4768
        %v5629 = vunpack.c.h.b16 %v4768
        %v5630 = vunpack.c.l.b16 %v4769
        %v5631 = vunpack.c.h.b16 %v4769
        %v5632 = vunpack.c.l.b16 %v4770
        %v5633 = vunpack.c.h.b16 %v4770
        %v5634 = vunpack.c.l.b16 %v4771
        %v5635 = vunpack.c.h.b16 %v4771
        %v5636 = vunpack.c.l.b16 %v4772
        %v5637 = vunpack.c.h.b16 %v4772
        %v5638 = vunpack.c.l.b16 %v4773
        %v5639 = vunpack.c.h.b16 %v4773
        %v5640 = vunpack.c.l.b16 %v4774
        %v5641 = vunpack.c.h.b16 %v4774
        %v5642 = vunpack.c.l.b16 %v4775
        %v5643 = vunpack.c.h.b16 %v4775
        %v5644 = vunpack.c.l.b16 %v4776
        %v5645 = vunpack.c.h.b16 %v4776
        %v5646 = vunpack.c.l.b16 %v4777
        %v5647 = vunpack.c.h.b16 %v4777
        %v5648 = vunpack.c.l.b16 %v4778
        %v5649 = vunpack.c.h.b16 %v4778
        %v5650 = vunpack.c.l.b16 %v4779
        %v5651 = vunpack.c.h.b16 %v4779
        %v5652 = vunpack.c.l.b16 %v4780
        %v5653 = vunpack.c.h.b16 %v4780
        %v5654 = vunpack.c.l.b16 %v4781
        %v5655 = vunpack.c.h.b16 %v4781
        %v5656 = vunpack.c.l.b16 %v4782
        %v5657 = vunpack.c.h.b16 %v4782
        %v5658 = vunpack.c.l.b16 %v4783
        %v5659 = vunpack.c.h.b16 %v4783
        %v5660 = vunpack.c.l.b16 %v4784
        %v5661 = vunpack.c.h.b16 %v4784
        %v5662 = vunpack.c.l.b16 %v4785
        %v5663 = vunpack.c.h.b16 %v4785
        %v5664 = vunpack.c.l.b16 %v4786
        %v5665 = vunpack.c.h.b16 %v4786
        %v5666 = vunpack.c.l.b16 %v4787
        %v5667 = vunpack.c.h.b16 %v4787
        %v5668 = vunpack.c.l.b16 %v4788
        %v5669 = vunpack.c.h.b16 %v4788
        %v5670 = vunpack.c.l.b16 %v4789
        %v5671 = vunpack.c.h.b16 %v4789
        %v5672 = vunpack.c.l.b16 %v4790
        %v5673 = vunpack.c.h.b16 %v4790
        %v5674 = vunpack.c.l.b16 %v4791
        %v5675 = vunpack.c.h.b16 %v4791
        %v5676 = vunpack.c.l.b16 %v4792
        %v5677 = vunpack.c.h.b16 %v4792
        %v5678 = vunpack.c.l.b16 %v4793
        %v5679 = vunpack.c.h.b16 %v4793
        %v5680 = vunpack.c.l.b16 %v4794
        %v5681 = vunpack.c.h.b16 %v4794
        %v5682 = vunpack.c.l.b16 %v4795
        %v5683 = vunpack.c.h.b16 %v4795
        %v5684 = vunpack.c.l.b16 %v4796
        %v5685 = vunpack.c.h.b16 %v4796
        %v5686 = vunpack.c.l.b16 %v4797
        %v5687 = vunpack.c.h.b16 %v4797
        %v5688 = vunpack.c.l.b16 %v4798
        %v5689 = vunpack.c.h.b16 %v4798
        %v5690 = vunpack.c.l.b16 %v4799
        %v5691 = vunpack.c.h.b16 %v4799
        %v5692 = vunpack.c.l.b16 %v4800
        %v5693 = vunpack.c.h.b16 %v4800
        %v5694 = vunpack.c.l.b16 %v4801
        %v5695 = vunpack.c.h.b16 %v4801
        %v5696 = vunpack.c.l.b16 %v4802
        %v5697 = vunpack.c.h.b16 %v4802
        %v5698 = vunpack.c.l.b16 %v4803
        %v5699 = vunpack.c.h.b16 %v4803
        %v5700 = vunpack.c.l.b16 %v4804
        %v5701 = vunpack.c.h.b16 %v4804
        %v5702 = vunpack.c.l.b16 %v4805
        %v5703 = vunpack.c.h.b16 %v4805
        %v5704 = vunpack.c.l.b16 %v4806
        %v5705 = vunpack.c.h.b16 %v4806
        %v5706 = vunpack.c.l.b16 %v4807
        %v5707 = vunpack.c.h.b16 %v4807
        %v5708 = vunpack.c.l.b16 %v4808
        %v5709 = vunpack.c.h.b16 %v4808
        %v5710 = vunpack.c.l.b16 %v4809
        %v5711 = vunpack.c.h.b16 %v4809
        %v5712 = vunpack.c.l.b16 %v4810
        %v5713 = vunpack.c.h.b16 %v4810
        %v5714 = vunpack.c.l.b16 %v4811
        %v5715 = vunpack.c.h.b16 %v4811
        %v5716 = vunpack.c.l.b16 %v4812
        %v5717 = vunpack.c.h.b16 %v4812
        %v5718 = vunpack.c.l.b16 %v4813
        %v5719 = vunpack.c.h.b16 %v4813
        %v5720 = vunpack.c.l.b16 %v4814
        %v5721 = vunpack.c.h.b16 %v4814
        %v5722 = vunpack.c.l.b16 %v4815
        %v5723 = vunpack.c.h.b16 %v4815
        %v5724 = vunpack.c.l.b16 %v4816
        %v5725 = vunpack.c.h.b16 %v4816
        %v5726 = vunpack.c.l.b16 %v4817
        %v5727 = vunpack.c.h.b16 %v4817
        %v5728 = vunpack.c.l.b16 %v4818
        %v5729 = vunpack.c.h.b16 %v4818
        %v5730 = vunpack.c.l.b16 %v4819
        %v5731 = vunpack.c.h.b16 %v4819
        %v5732 = vunpack.c.l.b16 %v4820
        %v5733 = vunpack.c.h.b16 %v4820
        %v5734 = vunpack.c.l.b16 %v4821
        %v5735 = vunpack.c.h.b16 %v4821
        %v5736 = vunpack.c.l.b16 %v4822
        %v5737 = vunpack.c.h.b16 %v4822
        %v5738 = vunpack.c.l.b16 %v4823
        %v5739 = vunpack.c.h.b16 %v4823
        %v5740 = vunpack.c.l.b16 %v4824
        %v5741 = vunpack.c.h.b16 %v4824
        %v5742 = vunpack.c.l.b16 %v4825
        %v5743 = vunpack.c.h.b16 %v4825
        %v5744 = vunpack.c.l.b16 %v4826
        %v5745 = vunpack.c.h.b16 %v4826
        %v5746 = vunpack.c.l.b16 %v4827
        %v5747 = vunpack.c.h.b16 %v4827
        %v5748 = vunpack.c.l.b16 %v4828
        %v5749 = vunpack.c.h.b16 %v4828
        %v5750 = vunpack.c.l.b16 %v4829
        %v5751 = vunpack.c.h.b16 %v4829
        %v5752 = vunpack.c.l.b16 %v4830
        %v5753 = vunpack.c.h.b16 %v4830
        %v5754 = vunpack.c.l.b16 %v4831
        %v5755 = vunpack.c.h.b16 %v4831
        %v5756 = vunpack.c.l.b16 %v4832
        %v5757 = vunpack.c.h.b16 %v4832
        %v5758 = vunpack.c.l.b16 %v4833
        %v5759 = vunpack.c.h.b16 %v4833
        %v5760 = vunpack.c.l.b16 %v4834
        %v5761 = vunpack.c.h.b16 %v4834
        %v5762 = vunpack.c.l.b16 %v4835
        %v5763 = vunpack.c.h.b16 %v4835
        %v5764 = vunpack.c.l.b16 %v4836
        %v5765 = vunpack.c.h.b16 %v4836
        %v5766 = vunpack.c.l.b16 %v4837
        %v5767 = vunpack.c.h.b16 %v4837
        %v5768 = vunpack.c.l.b16 %v4838
        %v5769 = vunpack.c.h.b16 %v4838
        %v5770 = vunpack.c.l.b16 %v4839
        %v5771 = vunpack.c.h.b16 %v4839
        %v5772 = vunpack.c.l.b16 %v4840
        %v5773 = vunpack.c.h.b16 %v4840
        %v5774 = vunpack.c.l.b16 %v4841
        %v5775 = vunpack.c.h.b16 %v4841
        %v5776 = vunpack.c.l.b16 %v4842
        %v5777 = vunpack.c.h.b16 %v4842
        %v5778 = vunpack.c.l.b16 %v4843
        %v5779 = vunpack.c.h.b16 %v4843
        %v5780 = vunpack.c.l.b16 %v4844
        %v5781 = vunpack.c.h.b16 %v4844
        %v5782 = vunpack.c.l.b16 %v4845
        %v5783 = vunpack.c.h.b16 %v4845
        %v5784 = vunpack.c.l.b16 %v4846
        %v5785 = vunpack.c.h.b16 %v4846
        %v5786 = vunpack.c.l.b16 %v4847
        %v5787 = vunpack.c.h.b16 %v4847
        %v5788 = vunpack.c.l.b16 %v4848
        %v5789 = vunpack.c.h.b16 %v4848
        %v5790 = vunpack.c.l.b16 %v4849
        %v5791 = vunpack.c.h.b16 %v4849
        %v5792 = vunpack.c.l.b16 %v4850
        %v5793 = vunpack.c.h.b16 %v4850
        %v5794 = vunpack.c.l.b16 %v4851
        %v5795 = vunpack.c.h.b16 %v4851
        %v5796 = vunpack.c.l.b16 %v4852
        %v5797 = vunpack.c.h.b16 %v4852
        %v5798 = vunpack.c.l.b16 %v4853
        %v5799 = vunpack.c.h.b16 %v4853
        %v5800 = vunpack.c.l.b16 %v4854
        %v5801 = vunpack.c.h.b16 %v4854
        %v5802 = vunpack.c.l.b16 %v4855
        %v5803 = vunpack.c.h.b16 %v4855
        %v5804 = vunpack.c.l.b16 %v4856
        %v5805 = vunpack.c.h.b16 %v4856
        %v5806 = vunpack.c.l.b16 %v4857
        %v5807 = vunpack.c.h.b16 %v4857
        %v5808 = vunpack.c.l.b16 %v4858
        %v5809 = vunpack.c.h.b16 %v4858
        %v5810 = vunpack.c.l.b16 %v4859
        %v5811 = vunpack.c.h.b16 %v4859
        %v5812 = vunpack.c.l.b16 %v4860
        %v5813 = vunpack.c.h.b16 %v4860
        %v5814 = vunpack.c.l.b16 %v4861
        %v5815 = vunpack.c.h.b16 %v4861
        %v5816 = vunpack.c.l.b16 %v4862
        %v5817 = vunpack.c.h.b16 %v4862
        %v5818 = vunpack.c.l.b16 %v4863
        %v5819 = vunpack.c.h.b16 %v4863
        %v5820 = vunpack.c.l.b16 %v4864
        %v5821 = vunpack.c.h.b16 %v4864
        %v5822 = vunpack.c.l.b16 %v4865
        %v5823 = vunpack.c.h.b16 %v4865
        %v5824 = vunpack.c.l.b16 %v4866
        %v5825 = vunpack.c.h.b16 %v4866
        %v5826 = vunpack.c.l.b16 %v4867
        %v5827 = vunpack.c.h.b16 %v4867
        %v5828 = vunpack.c.l.b16 %v4868
        %v5829 = vunpack.c.h.b16 %v4868
        %v5830 = vunpack.c.l.b16 %v4869
        %v5831 = vunpack.c.h.b16 %v4869
        %v5832 = vunpack.c.l.b16 %v4870
        %v5833 = vunpack.c.h.b16 %v4870
        %v5834 = vunpack.c.l.b16 %v4871
        %v5835 = vunpack.c.h.b16 %v4871
        %v5836 = vunpack.c.l.b16 %v4872
        %v5837 = vunpack.c.h.b16 %v4872
        %v5838 = vunpack.c.l.b16 %v4873
        %v5839 = vunpack.c.h.b16 %v4873
        %v5840 = vunpack.c.l.b16 %v4874
        %v5841 = vunpack.c.h.b16 %v4874
        %v5842 = vunpack.c.l.b16 %v4875
        %v5843 = vunpack.c.h.b16 %v4875
        %v5844 = vunpack.c.l.b16 %v4876
        %v5845 = vunpack.c.h.b16 %v4876
        %v5846 = vunpack.c.l.b16 %v4877
        %v5847 = vunpack.c.h.b16 %v4877
        %v5848 = vunpack.c.l.b16 %v4878
        %v5849 = vunpack.c.h.b16 %v4878
        %v5850 = vunpack.c.l.b16 %v4879
        %v5851 = vunpack.c.h.b16 %v4879
        %v5852 = vunpack.c.l.b16 %v4880
        %v5853 = vunpack.c.h.b16 %v4880
        %v5854 = vunpack.c.l.b16 %v4881
        %v5855 = vunpack.c.h.b16 %v4881
        %v5856 = vunpack.c.l.b16 %v4882
        %v5857 = vunpack.c.h.b16 %v4882
        %v5858 = vunpack.c.l.b16 %v4883
        %v5859 = vunpack.c.h.b16 %v4883
        %v5860 = vunpack.c.l.b16 %v4884
        %v5861 = vunpack.c.h.b16 %v4884
        %v5862 = vunpack.c.l.b16 %v4885
        %v5863 = vunpack.c.h.b16 %v4885
        %v5864 = vunpack.c.l.b16 %v4886
        %v5865 = vunpack.c.h.b16 %v4886
        %v5866 = vunpack.c.l.b16 %v4887
        %v5867 = vunpack.c.h.b16 %v4887
        %v5868 = vunpack.c.l.b16 %v4888
        %v5869 = vunpack.c.h.b16 %v4888
        %v5870 = vunpack.c.l.b16 %v4889
        %v5871 = vunpack.c.h.b16 %v4889
        %v5872 = vunpack.c.l.b16 %v4890
        %v5873 = vunpack.c.h.b16 %v4890
        %v5874 = vunpack.c.l.b16 %v4891
        %v5875 = vunpack.c.h.b16 %v4891
        %v5876 = vunpack.c.l.b16 %v4892
        %v5877 = vunpack.c.h.b16 %v4892
        %v5878 = vunpack.c.l.b16 %v4893
        %v5879 = vunpack.c.h.b16 %v4893
        %v5880 = vunpack.c.l.b16 %v4894
        %v5881 = vunpack.c.h.b16 %v4894
        %v5882 = vunpack.c.l.b16 %v4895
        %v5883 = vunpack.c.h.b16 %v4895
        %v5884 = vunpack.c.l.b16 %v4896
        %v5885 = vunpack.c.h.b16 %v4896
        %v5886 = vunpack.c.l.b16 %v4897
        %v5887 = vunpack.c.h.b16 %v4897
        %v5888 = vunpack.c.l.b16 %v4898
        %v5889 = vunpack.c.h.b16 %v4898
        %v5890 = vunpack.c.l.b16 %v4899
        %v5891 = vunpack.c.h.b16 %v4899
        %v5892 = vunpack.c.l.b16 %v4900
        %v5893 = vunpack.c.h.b16 %v4900
        %v5894 = vunpack.c.l.b16 %v4901
        %v5895 = vunpack.c.h.b16 %v4901
        %v5896 = vunpack.c.l.b16 %v4902
        %v5897 = vunpack.c.h.b16 %v4902
        %v5898 = vunpack.c.l.b16 %v4903
        %v5899 = vunpack.c.h.b16 %v4903
        %v5900 = vunpack.c.l.b16 %v4904
        %v5901 = vunpack.c.h.b16 %v4904
        %v5902 = vunpack.c.l.b16 %v4905
        %v5903 = vunpack.c.h.b16 %v4905
        %v5904 = vunpack.c.l.b16 %v4906
        %v5905 = vunpack.c.h.b16 %v4906
        %v5906 = vunpack.c.l.b16 %v4907
        %v5907 = vunpack.c.h.b16 %v4907
        %v5908 = vunpack.c.l.b16 %v4908
        %v5909 = vunpack.c.h.b16 %v4908
        %v5910 = vunpack.c.l.b16 %v4909
        %v5911 = vunpack.c.h.b16 %v4909
        %v5912 = vunpack.c.l.b16 %v4910
        %v5913 = vunpack.c.h.b16 %v4910
        %v5914 = vunpack.c.l.b16 %v4911
        %v5915 = vunpack.c.h.b16 %v4911
        %v5916 = vunpack.c.l.b16 %v4912
        %v5917 = vunpack.c.h.b16 %v4912
        %v5918 = vunpack.c.l.b16 %v4913
        %v5919 = vunpack.c.h.b16 %v4913
        %v5920 = vunpack.c.l.b16 %v4914
        %v5921 = vunpack.c.h.b16 %v4914
        %v5922 = vunpack.c.l.b16 %v4915
        %v5923 = vunpack.c.h.b16 %v4915
        %v5924 = vunpack.c.l.b16 %v4916
        %v5925 = vunpack.c.h.b16 %v4916
        %v5926 = vunpack.c.l.b16 %v4917
        %v5927 = vunpack.c.h.b16 %v4917
        %v5928 = vunpack.c.l.b16 %v4918
        %v5929 = vunpack.c.h.b16 %v4918
        %v5930 = vunpack.c.l.b16 %v4919
        %v5931 = vunpack.c.h.b16 %v4919
        %v5932 = vunpack.c.l.b16 %v4920
        %v5933 = vunpack.c.h.b16 %v4920
        %v5934 = vunpack.c.l.b16 %v4921
        %v5935 = vunpack.c.h.b16 %v4921
        %v5936 = vunpack.c.l.b16 %v4922
        %v5937 = vunpack.c.h.b16 %v4922
        %v5938 = vunpack.c.l.b16 %v4923
        %v5939 = vunpack.c.h.b16 %v4923
        %v5940 = vunpack.c.l.b16 %v4924
        %v5941 = vunpack.c.h.b16 %v4924
        %v5942 = vunpack.c.l.b16 %v4925
        %v5943 = vunpack.c.h.b16 %v4925
        %v5944 = vunpack.c.l.b16 %v4926
        %v5945 = vunpack.c.h.b16 %v4926
        %v5946 = vunpack.c.l.b16 %v4927
        %v5947 = vunpack.c.h.b16 %v4927
        %v5948 = vunpack.c.l.b16 %v4928
        %v5949 = vunpack.c.h.b16 %v4928
        %v5950 = vunpack.c.l.b16 %v4929
        %v5951 = vunpack.c.h.b16 %v4929
        %v5952 = vunpack.c.l.b16 %v4930
        %v5953 = vunpack.c.h.b16 %v4930
        %v5954 = vunpack.c.l.b16 %v4931
        %v5955 = vunpack.c.h.b16 %v4931
        %v5956 = vunpack.c.l.b16 %v4932
        %v5957 = vunpack.c.h.b16 %v4932
        %v5958 = vunpack.c.l.b16 %v4933
        %v5959 = vunpack.c.h.b16 %v4933
        %v5960 = vunpack.c.l.b16 %v4934
        %v5961 = vunpack.c.h.b16 %v4934
        %v5962 = vunpack.c.l.b16 %v4935
        %v5963 = vunpack.c.h.b16 %v4935
        %v5964 = vunpack.c.l.b16 %v4936
        %v5965 = vunpack.c.h.b16 %v4936
        %v5966 = vunpack.c.l.b16 %v4937
        %v5967 = vunpack.c.h.b16 %v4937
        %v5968 = vunpack.c.l.b16 %v4938
        %v5969 = vunpack.c.h.b16 %v4938
        %v5970 = vunpack.c.l.b16 %v4939
        %v5971 = vunpack.c.h.b16 %v4939
        %v5972 = vunpack.c.l.b16 %v4940
        %v5973 = vunpack.c.h.b16 %v4940
        %v5974 = vunpack.c.l.b16 %v4941
        %v5975 = vunpack.c.h.b16 %v4941
        %v5976 = vunpack.c.l.b16 %v4942
        %v5977 = vunpack.c.h.b16 %v4942
        %v5978 = vunpack.c.l.b16 %v4943
        %v5979 = vunpack.c.h.b16 %v4943
        %v5980 = vunpack.c.l.b16 %v4944
        %v5981 = vunpack.c.h.b16 %v4944
        %v5982 = vunpack.c.l.b16 %v4945
        %v5983 = vunpack.c.h.b16 %v4945
        %v5984 = vunpack.c.l.b16 %v4946
        %v5985 = vunpack.c.h.b16 %v4946
        %v5986 = vunpack.c.l.b16 %v4947
        %v5987 = vunpack.c.h.b16 %v4947
        %v5988 = vunpack.c.l.b16 %v4948
        %v5989 = vunpack.c.h.b16 %v4948
        %v5990 = vunpack.c.l.b16 %v4949
        %v5991 = vunpack.c.h.b16 %v4949
        %v5992 = vunpack.c.l.b16 %v4950
        %v5993 = vunpack.c.h.b16 %v4950
        %v5994 = vunpack.c.l.b16 %v4951
        %v5995 = vunpack.c.h.b16 %v4951
        %v5996 = vunpack.c.l.b16 %v4952
        %v5997 = vunpack.c.h.b16 %v4952
        %v5998 = vunpack.c.l.b16 %v4953
        %v5999 = vunpack.c.h.b16 %v4953
        %v6000 = vunpack.c.l.b16 %v4954
        %v6001 = vunpack.c.h.b16 %v4954
        %v6002 = vunpack.c.l.b16 %v4955
        %v6003 = vunpack.c.h.b16 %v4955
        %v6004 = vunpack.c.l.b16 %v4956
        %v6005 = vunpack.c.h.b16 %v4956
        %v6006 = vunpack.c.l.b16 %v4957
        %v6007 = vunpack.c.h.b16 %v4957
        %v6008 = vunpack.c.l.b16 %v4958
        %v6009 = vunpack.c.h.b16 %v4958
        %v6010 = vunpack.c.l.b16 %v4959
        %v6011 = vunpack.c.h.b16 %v4959
        %v6012 = vunpack.c.l.b16 %v4960
        %v6013 = vunpack.c.h.b16 %v4960
        %v6014 = vunpack.c.l.b16 %v4961
        %v6015 = vunpack.c.h.b16 %v4961
        %v6016 = vunpack.c.l.b16 %v4962
        %v6017 = vunpack.c.h.b16 %v4962
        %v6018 = vunpack.c.l.b16 %v4963
        %v6019 = vunpack.c.h.b16 %v4963
        %v6020 = vunpack.c.l.b16 %v4964
        %v6021 = vunpack.c.h.b16 %v4964
        %v6022 = vunpack.c.l.b16 %v4965
        %v6023 = vunpack.c.h.b16 %v4965
        %v6024 = vunpack.c.l.b16 %v4966
        %v6025 = vunpack.c.h.b16 %v4966
        %v6026 = vunpack.c.l.b16 %v4967
        %v6027 = vunpack.c.h.b16 %v4967
        %v6028 = vunpack.c.l.b16 %v4968
        %v6029 = vunpack.c.h.b16 %v4968
        %v6030 = vunpack.c.l.b16 %v4969
        %v6031 = vunpack.c.h.b16 %v4969
        %v6032 = vunpack.c.l.b16 %v4970
        %v6033 = vunpack.c.h.b16 %v4970
        %v6034 = vunpack.c.l.b16 %v4971
        %v6035 = vunpack.c.h.b16 %v4971
        %v6036 = vunpack.c.l.b16 %v4972
        %v6037 = vunpack.c.h.b16 %v4972
        %v6038 = vunpack.c.l.b16 %v4973
        %v6039 = vunpack.c.h.b16 %v4973
        %v6040 = vunpack.c.l.b16 %v4974
        %v6041 = vunpack.c.h.b16 %v4974
        %v6042 = vunpack.c.l.b16 %v4975
        %v6043 = vunpack.c.h.b16 %v4975
        %v6044 = vunpack.c.l.b16 %v4976
        %v6045 = vunpack.c.h.b16 %v4976
        %v6046 = vunpack.c.l.b16 %v4977
        %v6047 = vunpack.c.h.b16 %v4977
        %v6048 = vunpack.c.l.b16 %v4978
        %v6049 = vunpack.c.h.b16 %v4978
        %v6050 = vunpack.c.l.b16 %v4979
        %v6051 = vunpack.c.h.b16 %v4979
        %v6052 = vunpack.c.l.b16 %v4980
        %v6053 = vunpack.c.h.b16 %v4980
        %v6054 = vunpack.c.l.b16 %v4981
        %v6055 = vunpack.c.h.b16 %v4981
        %v6056 = vunpack.c.l.b16 %v4982
        %v6057 = vunpack.c.h.b16 %v4982
        %v6058 = vunpack.c.l.b16 %v4983
        %v6059 = vunpack.c.h.b16 %v4983
        %v6060 = vunpack.c.l.b16 %v4984
        %v6061 = vunpack.c.h.b16 %v4984
        %v6062 = vunpack.c.l.b16 %v4985
        %v6063 = vunpack.c.h.b16 %v4985
        %v6064 = vunpack.c.l.b16 %v4986
        %v6065 = vunpack.c.h.b16 %v4986
        %v6066 = vunpack.c.l.b16 %v4987
        %v6067 = vunpack.c.h.b16 %v4987
        %v6068 = vunpack.c.l.b16 %v4988
        %v6069 = vunpack.c.h.b16 %v4988
        %v6070 = vunpack.c.l.b16 %v4989
        %v6071 = vunpack.c.h.b16 %v4989
        %v6072 = vunpack.c.l.b16 %v4990
        %v6073 = vunpack.c.h.b16 %v4990
        %v6074 = vunpack.c.l.b16 %v4991
        %v6075 = vunpack.c.h.b16 %v4991
        %v6076 = vunpack.c.l.b16 %v4992
        %v6077 = vunpack.c.h.b16 %v4992
        %v6078 = vunpack.c.l.b16 %v4993
        %v6079 = vunpack.c.h.b16 %v4993
        %v6080 = vunpack.c.l.b16 %v4994
        %v6081 = vunpack.c.h.b16 %v4994
        %v6082 = vunpack.c.l.b16 %v4995
        %v6083 = vunpack.c.h.b16 %v4995
        %v6084 = vunpack.c.l.b16 %v4996
        %v6085 = vunpack.c.h.b16 %v4996
        %v6086 = vunpack.c.l.b16 %v4997
        %v6087 = vunpack.c.h.b16 %v4997
        %v6088 = vunpack.c.l.b16 %v4998
        %v6089 = vunpack.c.h.b16 %v4998
        %v6090 = vunpack.c.l.b16 %v4999
        %v6091 = vunpack.c.h.b16 %v4999
        %v6092 = vunpack.c.l.b16 %v5000
        %v6093 = vunpack.c.h.b16 %v5000
        %v6094 = vunpack.c.l.b16 %v5001
        %v6095 = vunpack.c.h.b16 %v5001
        %v6096 = vunpack.c.l.b16 %v5002
        %v6097 = vunpack.c.h.b16 %v5002
        %v6098 = vunpack.c.l.b16 %v5003
        %v6099 = vunpack.c.h.b16 %v5003
        %v6100 = vunpack.c.l.b16 %v5004
        %v6101 = vunpack.c.h.b16 %v5004
        %v6102 = vunpack.c.l.b16 %v5005
        %v6103 = vunpack.c.h.b16 %v5005
        %v6104 = vunpack.c.l.b16 %v5006
        %v6105 = vunpack.c.h.b16 %v5006
        %v6106 = vunpack.c.l.b16 %v5007
        %v6107 = vunpack.c.h.b16 %v5007
        %v6108 = vunpack.c.l.b16 %v5008
        %v6109 = vunpack.c.h.b16 %v5008
        %v6110 = vunpack.c.l.b16 %v5009
        %v6111 = vunpack.c.h.b16 %v5009
        %v6112 = vunpack.c.l.b16 %v5010
        %v6113 = vunpack.c.h.b16 %v5010
        %v6114 = vunpack.c.l.b16 %v5011
        %v6115 = vunpack.c.h.b16 %v5011
        %v6116 = vunpack.c.l.b16 %v5012
        %v6117 = vunpack.c.h.b16 %v5012
        %v6118 = vunpack.c.l.b16 %v5013
        %v6119 = vunpack.c.h.b16 %v5013
        %v6120 = vunpack.c.l.b16 %v5014
        %v6121 = vunpack.c.h.b16 %v5014
        %v6122 = vunpack.c.l.b16 %v5015
        %v6123 = vunpack.c.h.b16 %v5015
        %v6124 = vunpack.c.l.b16 %v5016
        %v6125 = vunpack.c.h.b16 %v5016
        %v6126 = vunpack.c.l.b16 %v5017
        %v6127 = vunpack.c.h.b16 %v5017
        %v6128 = vunpack.c.l.b16 %v5018
        %v6129 = vunpack.c.h.b16 %v5018
        %v6130 = vunpack.c.l.b16 %v5019
        %v6131 = vunpack.c.h.b16 %v5019
        %v6132 = vunpack.c.l.b16 %v5020
        %v6133 = vunpack.c.h.b16 %v5020
        %v6134 = vunpack.c.l.b16 %v5021
        %v6135 = vunpack.c.h.b16 %v5021
        %v6136 = vunpack.c.l.b16 %v5022
        %v6137 = vunpack.c.h.b16 %v5022
        %v6138 = vunpack.c.l.b16 %v5023
        %v6139 = vunpack.c.h.b16 %v5023
        %v6140 = vunpack.c.l.b16 %v5024
        %v6141 = vunpack.c.h.b16 %v5024
        %v6142 = vunpack.c.l.b16 %v5025
        %v6143 = vunpack.c.h.b16 %v5025
        %v6144 = vunpack.c.l.b16 %v5026
        %v6145 = vunpack.c.h.b16 %v5026
        %v6146 = vunpack.c.l.b16 %v5027
        %v6147 = vunpack.c.h.b16 %v5027
        %v6148 = vunpack.c.l.b16 %v5028
        %v6149 = vunpack.c.h.b16 %v5028
        %v6150 = vunpack.c.l.b16 %v5029
        %v6151 = vunpack.c.h.b16 %v5029
        %v6152 = vunpack.c.l.b16 %v5030
        %v6153 = vunpack.c.h.b16 %v5030
        %v6154 = vunpack.c.l.b16 %v5031
        %v6155 = vunpack.c.h.b16 %v5031
        %v6156 = vunpack.c.l.b16 %v5032
        %v6157 = vunpack.c.h.b16 %v5032
        %v6158 = vunpack.c.l.b16 %v5033
        %v6159 = vunpack.c.h.b16 %v5033
        %v6160 = vunpack.c.l.b16 %v5034
        %v6161 = vunpack.c.h.b16 %v5034
        %v6162 = vunpack.c.l.b16 %v5035
        %v6163 = vunpack.c.h.b16 %v5035
        %v6164 = vunpack.c.l.b16 %v5036
        %v6165 = vunpack.c.h.b16 %v5036
        %v6166 = vunpack.c.l.b16 %v5037
        %v6167 = vunpack.c.h.b16 %v5037
        %v6168 = vunpack.c.l.b16 %v5038
        %v6169 = vunpack.c.h.b16 %v5038
        %v6170 = vunpack.c.l.b16 %v5039
        %v6171 = vunpack.c.h.b16 %v5039
        %v6172 = vunpack.c.l.b16 %v5040
        %v6173 = vunpack.c.h.b16 %v5040
        %v6174 = vunpack.c.l.b16 %v5041
        %v6175 = vunpack.c.h.b16 %v5041
        %v6176 = vpack.c.b16 %v5456, %v5448
        %v6177 = vpack.c.b16 %v5457, %v5449
        %v6178 = vpack.c.b16 %v5458, %v5450
        %v6179 = vpack.c.b16 %v5459, %v5451
        %v6180 = vpack.c.b16 %v5460, %v5452
        %v6181 = vpack.c.b16 %v5461, %v5453
        %v6182 = vpack.c.b16 %v5462, %v5454
        %v6183 = vpack.c.b16 %v5463, %v5455
        %v6184 = vpack.c.b16 %v5472, %v5464
        %v6185 = vpack.c.b16 %v5473, %v5465
        %v6186 = vpack.c.b16 %v5474, %v5466
        %v6187 = vpack.c.b16 %v5475, %v5467
        %v6188 = vpack.c.b16 %v5476, %v5468
        %v6189 = vpack.c.b16 %v5477, %v5469
        %v6190 = vpack.c.b16 %v5478, %v5470
        %v6191 = vpack.c.b16 %v5479, %v5471
        %v6192 = vpack.c.b16 %v5488, %v5480
        %v6193 = vpack.c.b16 %v5489, %v5481
        %v6194 = vpack.c.b16 %v5490, %v5482
        %v6195 = vpack.c.b16 %v5491, %v5483
        %v6196 = vpack.c.b16 %v5492, %v5484
        %v6197 = vpack.c.b16 %v5493, %v5485
        %v6198 = vpack.c.b16 %v5494, %v5486
        %v6199 = vpack.c.b16 %v5495, %v5487
        %v6200 = vpack.c.b16 %v5504, %v5496
        %v6201 = vpack.c.b16 %v5505, %v5497
        %v6202 = vpack.c.b16 %v5506, %v5498
        %v6203 = vpack.c.b16 %v5507, %v5499
        %v6204 = vpack.c.b16 %v5508, %v5500
        %v6205 = vpack.c.b16 %v5509, %v5501
        %v6206 = vpack.c.b16 %v5510, %v5502
        %v6207 = vpack.c.b16 %v5511, %v5503
        %v6208 = vpack.c.b16 %v5520, %v5512
        %v6209 = vpack.c.b16 %v5521, %v5513
        %v6210 = vpack.c.b16 %v5522, %v5514
        %v6211 = vpack.c.b16 %v5523, %v5515
        %v6212 = vpack.c.b16 %v5524, %v5516
        %v6213 = vpack.c.b16 %v5525, %v5517
        %v6214 = vpack.c.b16 %v5526, %v5518
        %v6215 = vpack.c.b16 %v5527, %v5519
        %v6216 = vpack.c.b16 %v5536, %v5528
        %v6217 = vpack.c.b16 %v5537, %v5529
        %v6218 = vpack.c.b16 %v5538, %v5530
        %v6219 = vpack.c.b16 %v5539, %v5531
        %v6220 = vpack.c.b16 %v5540, %v5532
        %v6221 = vpack.c.b16 %v5541, %v5533
        %v6222 = vpack.c.b16 %v5542, %v5534
        %v6223 = vpack.c.b16 %v5543, %v5535
        %v6224 = vpack.c.b16 %v5552, %v5544
        %v6225 = vpack.c.b16 %v5553, %v5545
        %v6226 = vpack.c.b16 %v5554, %v5546
        %v6227 = vpack.c.b16 %v5555, %v5547
        %v6228 = vpack.c.b16 %v5556, %v5548
        %v6229 = vpack.c.b16 %v5557, %v5549
        %v6230 = vpack.c.b16 %v5558, %v5550
        %v6231 = vpack.c.b16 %v5559, %v5551
        %v6232 = vpack.c.b16 %v5568, %v5560
        %v6233 = vpack.c.b16 %v5569, %v5561
        %v6234 = vpack.c.b16 %v5570, %v5562
        %v6235 = vpack.c.b16 %v5571, %v5563
        %v6236 = vpack.c.b16 %v5572, %v5564
        %v6237 = vpack.c.b16 %v5573, %v5565
        %v6238 = vpack.c.b16 %v5574, %v5566
        %v6239 = vpack.c.b16 %v5575, %v5567
        %v6240 = vpack.c.b16 %v5584, %v5576
        %v6241 = vpack.c.b16 %v5585, %v5577
        %v6242 = vpack.c.b16 %v5586, %v5578
        %v6243 = vpack.c.b16 %v5587, %v5579
        %v6244 = vpack.c.b16 %v5588, %v5580
        %v6245 = vpack.c.b16 %v5589, %v5581
        %v6246 = vpack.c.b16 %v5590, %v5582
        %v6247 = vpack.c.b16 %v5591, %v5583
        %v6248 = vpack.c.b16 %v5600, %v5592
        %v6249 = vpack.c.b16 %v5601, %v5593
        %v6250 = vpack.c.b16 %v5602, %v5594
        %v6251 = vpack.c.b16 %v5603, %v5595
        %v6252 = vpack.c.b16 %v5604, %v5596
        %v6253 = vpack.c.b16 %v5605, %v5597
        %v6254 = vpack.c.b16 %v5606, %v5598
        %v6255 = vpack.c.b16 %v5607, %v5599
        %v6256 = vpack.c.b16 %v5616, %v5608
        %v6257 = vpack.c.b16 %v5617, %v5609
        %v6258 = vpack.c.b16 %v5618, %v5610
        %v6259 = vpack.c.b16 %v5619, %v5611
        %v6260 = vpack.c.b16 %v5620, %v5612
        %v6261 = vpack.c.b16 %v5621, %v5613
        %v6262 = vpack.c.b16 %v5622, %v5614
        %v6263 = vpack.c.b16 %v5623, %v5615
        %v6264 = vpack.c.b16 %v5632, %v5624
        %v6265 = vpack.c.b16 %v5633, %v5625
        %v6266 = vpack.c.b16 %v5634, %v5626
        %v6267 = vpack.c.b16 %v5635, %v5627
        %v6268 = vpack.c.b16 %v5636, %v5628
        %v6269 = vpack.c.b16 %v5637, %v5629
        %v6270 = vpack.c.b16 %v5638, %v5630
        %v6271 = vpack.c.b16 %v5639, %v5631
        %v6272 = vpack.c.b16 %v5648, %v5640
        %v6273 = vpack.c.b16 %v5649, %v5641
        %v6274 = vpack.c.b16 %v5650, %v5642
        %v6275 = vpack.c.b16 %v5651, %v5643
        %v6276 = vpack.c.b16 %v5652, %v5644
        %v6277 = vpack.c.b16 %v5653, %v5645
        %v6278 = vpack.c.b16 %v5654, %v5646
        %v6279 = vpack.c.b16 %v5655, %v5647
        %v6280 = vpack.c.b16 %v5664, %v5656
        %v6281 = vpack.c.b16 %v5665, %v5657
        %v6282 = vpack.c.b16 %v5666, %v5658
        %v6283 = vpack.c.b16 %v5667, %v5659
        %v6284 = vpack.c.b16 %v5668, %v5660
        %v6285 = vpack.c.b16 %v5669, %v5661
        %v6286 = vpack.c.b16 %v5670, %v5662
        %v6287 = vpack.c.b16 %v5671, %v5663
        %v6288 = vpack.c.b16 %v5680, %v5672
        %v6289 = vpack.c.b16 %v5681, %v5673
        %v6290 = vpack.c.b16 %v5682, %v5674
        %v6291 = vpack.c.b16 %v5683, %v5675
        %v6292 = vpack.c.b16 %v5684, %v5676
        %v6293 = vpack.c.b16 %v5685, %v5677
        %v6294 = vpack.c.b16 %v5686, %v5678
        %v6295 = vpack.c.b16 %v5687, %v5679
        %v6296 = vpack.c.b16 %v5696, %v5688
        %v6297 = vpack.c.b16 %v5697, %v5689
        %v6298 = vpack.c.b16 %v5698, %v5690
        %v6299 = vpack.c.b16 %v5699, %v5691
        %v6300 = vpack.c.b16 %v5700, %v5692
        %v6301 = vpack.c.b16 %v5701, %v5693
        %v6302 = vpack.c.b16 %v5702, %v5694
        %v6303 = vpack.c.b16 %v5703, %v5695
        %v6304 = vpack.c.b16 %v5712, %v5704
        %v6305 = vpack.c.b16 %v5713, %v5705
        %v6306 = vpack.c.b16 %v5714, %v5706
        %v6307 = vpack.c.b16 %v5715, %v5707
        %v6308 = vpack.c.b16 %v5716, %v5708
        %v6309 = vpack.c.b16 %v5717, %v5709
        %v6310 = vpack.c.b16 %v5718, %v5710
        %v6311 = vpack.c.b16 %v5719, %v5711
        %v6312 = vpack.c.b16 %v5728, %v5720
        %v6313 = vpack.c.b16 %v5729, %v5721
        %v6314 = vpack.c.b16 %v5730, %v5722
        %v6315 = vpack.c.b16 %v5731, %v5723
        %v6316 = vpack.c.b16 %v5732, %v5724
        %v6317 = vpack.c.b16 %v5733, %v5725
        %v6318 = vpack.c.b16 %v5734, %v5726
        %v6319 = vpack.c.b16 %v5735, %v5727
        %v6320 = vpack.c.b16 %v5744, %v5736
        %v6321 = vpack.c.b16 %v5745, %v5737
        %v6322 = vpack.c.b16 %v5746, %v5738
        %v6323 = vpack.c.b16 %v5747, %v5739
        %v6324 = vpack.c.b16 %v5748, %v5740
        %v6325 = vpack.c.b16 %v5749, %v5741
        %v6326 = vpack.c.b16 %v5750, %v5742
        %v6327 = vpack.c.b16 %v5751, %v5743
        %v6328 = vpack.c.b16 %v5760, %v5752
        %v6329 = vpack.c.b16 %v5761, %v5753
        %v6330 = vpack.c.b16 %v5762, %v5754
        %v6331 = vpack.c.b16 %v5763, %v5755
        %v6332 = vpack.c.b16 %v5764, %v5756
        %v6333 = vpack.c.b16 %v5765, %v5757
        %v6334 = vpack.c.b16 %v5766, %v5758
        %v6335 = vpack.c.b16 %v5767, %v5759
        %v6336 = vpack.c.b16 %v5776, %v5768
        %v6337 = vpack.c.b16 %v5777, %v5769
        %v6338 = vpack.c.b16 %v5778, %v5770
        %v6339 = vpack.c.b16 %v5779, %v5771
        %v6340 = vpack.c.b16 %v5780, %v5772
        %v6341 = vpack.c.b16 %v5781, %v5773
        %v6342 = vpack.c.b16 %v5782, %v5774
        %v6343 = vpack.c.b16 %v5783, %v5775
        %v6344 = vpack.c.b16 %v5792, %v5784
        %v6345 = vpack.c.b16 %v5793, %v5785
        %v6346 = vpack.c.b16 %v5794, %v5786
        %v6347 = vpack.c.b16 %v5795, %v5787
        %v6348 = vpack.c.b16 %v5796, %v5788
        %v6349 = vpack.c.b16 %v5797, %v5789
        %v6350 = vpack.c.b16 %v5798, %v5790
        %v6351 = vpack.c.b16 %v5799, %v5791
        %v6352 = vpack.c.b16 %v5808, %v5800
        %v6353 = vpack.c.b16 %v5809, %v5801
        %v6354 = vpack.c.b16 %v5810, %v5802
        %v6355 = vpack.c.b16 %v5811, %v5803
        %v6356 = vpack.c.b16 %v5812, %v5804
        %v6357 = vpack.c.b16 %v5813, %v5805
        %v6358 = vpack.c.b16 %v5814, %v5806
        %v6359 = vpack.c.b16 %v5815, %v5807
        %v6360 = vpack.c.b16 %v5824, %v5816
        %v6361 = vpack.c.b16 %v5825, %v5817
        %v6362 = vpack.c.b16 %v5826, %v5818
        %v6363 = vpack.c.b16 %v5827, %v5819
        %v6364 = vpack.c.b16 %v5828, %v5820
        %v6365 = vpack.c.b16 %v5829, %v5821
        %v6366 = vpack.c.b16 %v5830, %v5822
        %v6367 = vpack.c.b16 %v5831, %v5823
        %v6368 = vpack.c.b16 %v5840, %v5832
        %v6369 = vpack.c.b16 %v5841, %v5833
        %v6370 = vpack.c.b16 %v5842, %v5834
        %v6371 = vpack.c.b16 %v5843, %v5835
        %v6372 = vpack.c.b16 %v5844, %v5836
        %v6373 = vpack.c.b16 %v5845, %v5837
        %v6374 = vpack.c.b16 %v5846, %v5838
        %v6375 = vpack.c.b16 %v5847, %v5839
        %v6376 = vpack.c.b16 %v5856, %v5848
        %v6377 = vpack.c.b16 %v5857, %v5849
        %v6378 = vpack.c.b16 %v5858, %v5850
        %v6379 = vpack.c.b16 %v5859, %v5851
        %v6380 = vpack.c.b16 %v5860, %v5852
        %v6381 = vpack.c.b16 %v5861, %v5853
        %v6382 = vpack.c.b16 %v5862, %v5854
        %v6383 = vpack.c.b16 %v5863, %v5855
        %v6384 = vpack.c.b16 %v5872, %v5864
        %v6385 = vpack.c.b16 %v5873, %v5865
        %v6386 = vpack.c.b16 %v5874, %v5866
        %v6387 = vpack.c.b16 %v5875, %v5867
        %v6388 = vpack.c.b16 %v5876, %v5868
        %v6389 = vpack.c.b16 %v5877, %v5869
        %v6390 = vpack.c.b16 %v5878, %v5870
        %v6391 = vpack.c.b16 %v5879, %v5871
        %v6392 = vpack.c.b16 %v5888, %v5880
        %v6393 = vpack.c.b16 %v5889, %v5881
        %v6394 = vpack.c.b16 %v5890, %v5882
        %v6395 = vpack.c.b16 %v5891, %v5883
        %v6396 = vpack.c.b16 %v5892, %v5884
        %v6397 = vpack.c.b16 %v5893, %v5885
        %v6398 = vpack.c.b16 %v5894, %v5886
        %v6399 = vpack.c.b16 %v5895, %v5887
        %v6400 = vpack.c.b16 %v5904, %v5896
        %v6401 = vpack.c.b16 %v5905, %v5897
        %v6402 = vpack.c.b16 %v5906, %v5898
        %v6403 = vpack.c.b16 %v5907, %v5899
        %v6404 = vpack.c.b16 %v5908, %v5900
        %v6405 = vpack.c.b16 %v5909, %v5901
        %v6406 = vpack.c.b16 %v5910, %v5902
        %v6407 = vpack.c.b16 %v5911, %v5903
        %v6408 = vpack.c.b16 %v5920, %v5912
        %v6409 = vpack.c.b16 %v5921, %v5913
        %v6410 = vpack.c.b16 %v5922, %v5914
        %v6411 = vpack.c.b16 %v5923, %v5915
        %v6412 = vpack.c.b16 %v5924, %v5916
        %v6413 = vpack.c.b16 %v5925, %v5917
        %v6414 = vpack.c.b16 %v5926, %v5918
        %v6415 = vpack.c.b16 %v5927, %v5919
        %v6416 = vpack.c.b16 %v5936, %v5928
        %v6417 = vpack.c.b16 %v5937, %v5929
        %v6418 = vpack.c.b16 %v5938, %v5930
        %v6419 = vpack.c.b16 %v5939, %v5931
        %v6420 = vpack.c.b16 %v5940, %v5932
        %v6421 = vpack.c.b16 %v5941, %v5933
        %v6422 = vpack.c.b16 %v5942, %v5934
        %v6423 = vpack.c.b16 %v5943, %v5935
        %v6424 = vpack.c.b16 %v5952, %v5944
        %v6425 = vpack.c.b16 %v5953, %v5945
        %v6426 = vpack.c.b16 %v5954, %v5946
        %v6427 = vpack.c.b16 %v5955, %v5947
        %v6428 = vpack.c.b16 %v5956, %v5948
        %v6429 = vpack.c.b16 %v5957, %v5949
        %v6430 = vpack.c.b16 %v5958, %v5950
        %v6431 = vpack.c.b16 %v5959, %v5951
        %v6432 = vpack.c.b16 %v5968, %v5960
        %v6433 = vpack.c.b16 %v5969, %v5961
        %v6434 = vpack.c.b16 %v5970, %v5962
        %v6435 = vpack.c.b16 %v5971, %v5963
        %v6436 = vpack.c.b16 %v5972, %v5964
        %v6437 = vpack.c.b16 %v5973, %v5965
        %v6438 = vpack.c.b16 %v5974, %v5966
        %v6439 = vpack.c.b16 %v5975, %v5967
        %v6440 = vpack.c.b16 %v5984, %v5976
        %v6441 = vpack.c.b16 %v5985, %v5977
        %v6442 = vpack.c.b16 %v5986, %v5978
        %v6443 = vpack.c.b16 %v5987, %v5979
        %v6444 = vpack.c.b16 %v5988, %v5980
        %v6445 = vpack.c.b16 %v5989, %v5981
        %v6446 = vpack.c.b16 %v5990, %v5982
        %v6447 = vpack.c.b16 %v5991, %v5983
        %v6448 = vpack.c.b16 %v6000, %v5992
        %v6449 = vpack.c.b16 %v6001, %v5993
        %v6450 = vpack.c.b16 %v6002, %v5994
        %v6451 = vpack.c.b16 %v6003, %v5995
        %v6452 = vpack.c.b16 %v6004, %v5996
        %v6453 = vpack.c.b16 %v6005, %v5997
        %v6454 = vpack.c.b16 %v6006, %v5998
        %v6455 = vpack.c.b16 %v6007, %v5999
        %v6456 = vpack.c.b16 %v6016, %v6008
        %v6457 = vpack.c.b16 %v6017, %v6009
        %v6458 = vpack.c.b16 %v6018, %v6010
        %v6459 = vpack.c.b16 %v6019, %v6011
        %v6460 = vpack.c.b16 %v6020, %v6012
        %v6461 = vpack.c.b16 %v6021, %v6013
        %v6462 = vpack.c.b16 %v6022, %v6014
        %v6463 = vpack.c.b16 %v6023, %v6015
        %v6464 = vpack.c.b16 %v6032, %v6024
        %v6465 = vpack.c.b16 %v6033, %v6025
        %v6466 = vpack.c.b16 %v6034, %v6026
        %v6467 = vpack.c.b16 %v6035, %v6027
        %v6468 = vpack.c.b16 %v6036, %v6028
        %v6469 = vpack.c.b16 %v6037, %v6029
        %v6470 = vpack.c.b16 %v6038, %v6030
        %v6471 = vpack.c.b16 %v6039, %v6031
        %v6472 = vpack.c.b16 %v6048, %v6040
        %v6473 = vpack.c.b16 %v6049, %v6041
        %v6474 = vpack.c.b16 %v6050, %v6042
        %v6475 = vpack.c.b16 %v6051, %v6043
        %v6476 = vpack.c.b16 %v6052, %v6044
        %v6477 = vpack.c.b16 %v6053, %v6045
        %v6478 = vpack.c.b16 %v6054, %v6046
        %v6479 = vpack.c.b16 %v6055, %v6047
        %v6480 = vpack.c.b16 %v6064, %v6056
        %v6481 = vpack.c.b16 %v6065, %v6057
        %v6482 = vpack.c.b16 %v6066, %v6058
        %v6483 = vpack.c.b16 %v6067, %v6059
        %v6484 = vpack.c.b16 %v6068, %v6060
        %v6485 = vpack.c.b16 %v6069, %v6061
        %v6486 = vpack.c.b16 %v6070, %v6062
        %v6487 = vpack.c.b16 %v6071, %v6063
        %v6488 = vpack.c.b16 %v6080, %v6072
        %v6489 = vpack.c.b16 %v6081, %v6073
        %v6490 = vpack.c.b16 %v6082, %v6074
        %v6491 = vpack.c.b16 %v6083, %v6075
        %v6492 = vpack.c.b16 %v6084, %v6076
        %v6493 = vpack.c.b16 %v6085, %v6077
        %v6494 = vpack.c.b16 %v6086, %v6078
        %v6495 = vpack.c.b16 %v6087, %v6079
        %v6496 = vpack.c.b16 %v6096, %v6088
        %v6497 = vpack.c.b16 %v6097, %v6089
        %v6498 = vpack.c.b16 %v6098, %v6090
        %v6499 = vpack.c.b16 %v6099, %v6091
        %v6500 = vpack.c.b16 %v6100, %v6092
        %v6501 = vpack.c.b16 %v6101, %v6093
        %v6502 = vpack.c.b16 %v6102, %v6094
        %v6503 = vpack.c.b16 %v6103, %v6095
        %v6504 = vpack.c.b16 %v6112, %v6104
        %v6505 = vpack.c.b16 %v6113, %v6105
        %v6506 = vpack.c.b16 %v6114, %v6106
        %v6507 = vpack.c.b16 %v6115, %v6107
        %v6508 = vpack.c.b16 %v6116, %v6108
        %v6509 = vpack.c.b16 %v6117, %v6109
        %v6510 = vpack.c.b16 %v6118, %v6110
        %v6511 = vpack.c.b16 %v6119, %v6111
        %v6512 = vpack.c.b16 %v6128, %v6120
        %v6513 = vpack.c.b16 %v6129, %v6121
        %v6514 = vpack.c.b16 %v6130, %v6122
        %v6515 = vpack.c.b16 %v6131, %v6123
        %v6516 = vpack.c.b16 %v6132, %v6124
        %v6517 = vpack.c.b16 %v6133, %v6125
        %v6518 = vpack.c.b16 %v6134, %v6126
        %v6519 = vpack.c.b16 %v6135, %v6127
        %v6520 = vpack.c.b16 %v6144, %v6136
        %v6521 = vpack.c.b16 %v6145, %v6137
        %v6522 = vpack.c.b16 %v6146, %v6138
        %v6523 = vpack.c.b16 %v6147, %v6139
        %v6524 = vpack.c.b16 %v6148, %v6140
        %v6525 = vpack.c.b16 %v6149, %v6141
        %v6526 = vpack.c.b16 %v6150, %v6142
        %v6527 = vpack.c.b16 %v6151, %v6143
        %v6528 = vpack.c.b16 %v6160, %v6152
        %v6529 = vpack.c.b16 %v6161, %v6153
        %v6530 = vpack.c.b16 %v6162, %v6154
        %v6531 = vpack.c.b16 %v6163, %v6155
        %v6532 = vpack.c.b16 %v6164, %v6156
        %v6533 = vpack.c.b16 %v6165, %v6157
        %v6534 = vpack.c.b16 %v6166, %v6158
        %v6535 = vpack.c.b16 %v6167, %v6159
        %v6536 = vpack.c.b16 %v6168, %v6168
        %v6537 = vpack.c.b16 %v6169, %v6169
        %v6538 = vpack.c.b16 %v6170, %v6170
        %v6539 = vpack.c.b16 %v6171, %v6171
        %v6540 = vpack.c.b16 %v6172, %v6172
        %v6541 = vpack.c.b16 %v6173, %v6173
        %v6542 = vpack.c.b16 %v6174, %v6174
        %v6543 = vpack.c.b16 %v6175, %v6175
        %vm6904 = vcmask 719872
        %v6906 = vsel %vm6904, %v4677, 0
        %vm6908 = vcmask 1043456
        %v6910 = vsel %vm6908, %v6536, 0
        %v6913 = vsel %vm6908, %v6537, 0
        %v6916 = vsel %vm6908, %v6538, 0
        %v6919 = vsel %vm6908, %v6539, 0
        %v6922 = vsel %vm6908, %v6540, 0
        %v6925 = vsel %vm6908, %v6541, 0
        %v6928 = vsel %vm6908, %v6542, 0
        %v6931 = vsel %vm6908, %v6543, 0
        %6933 = vmatprep.subr.bf16.mxu0 %v6177
        %6934 = vmatpush1.bf16.msra.mxu0 %v6176
        %6935 = vmatprep.subr.bf16.mxu0 %v6185
        %6936 = vmatpush1.bf16.msra.mxu0 %v6184
        %6937 = vmatprep.subr.bf16.mxu0 %v6193
        %6938 = vmatpush1.bf16.msra.mxu0 %v6192
        %6939 = vmatprep.subr.bf16.mxu0 %v6201
        %6940 = vmatpush1.bf16.msra.mxu0 %v6200
        %6941 = vmatprep.subr.bf16.mxu0 %v6209
        %6942 = vmatpush1.bf16.msra.mxu0 %v6208
        %6943 = vmatprep.subr.bf16.mxu0 %v6217
        %6944 = vmatpush1.bf16.msra.mxu0 %v6216
        %6945 = vmatprep.subr.bf16.mxu0 %v6225
        %6946 = vmatpush1.bf16.msra.mxu0 %v6224
        %6947 = vmatprep.subr.bf16.mxu0 %v6233
        %6948 = vmatpush1.bf16.msra.mxu0 %v6232
        %6949 = vmatprep.subr.bf16.mxu0 %v6241
        %6950 = vmatpush1.bf16.msra.mxu0 %v6240
        %6951 = vmatprep.subr.bf16.mxu0 %v6249
        %6952 = vmatpush1.bf16.msra.mxu0 %v6248
        %6953 = vmatprep.subr.bf16.mxu0 %v6257
        %6954 = vmatpush1.bf16.msra.mxu0 %v6256
        %6955 = vmatprep.subr.bf16.mxu0 %v6265
        %6956 = vmatpush1.bf16.msra.mxu0 %v6264
        %6957 = vmatprep.subr.bf16.mxu0 %v6273
        %6958 = vmatpush1.bf16.msra.mxu0 %v6272
        %6959 = vmatprep.subr.bf16.mxu0 %v6281
        %6960 = vmatpush1.bf16.msra.mxu0 %v6280
        %6961 = vmatprep.subr.bf16.mxu0 %v6289
        %6962 = vmatpush1.bf16.msra.mxu0 %v6288
        %6963 = vmatprep.subr.bf16.mxu0 %v6297
        %6964 = vmatpush1.bf16.msra.mxu0 %v6296
        %6965 = vmatprep.mubr.bf16.mxu0 %v4673
        %6966 = vmatmul.mubr.bf16.gmra.mrb[0].mxu0 %v4672
        %v6967 = vpop.f32.mrb[0].mxu0
        %v6968 = vadd.f32 %v5047, %v6967
        %v6969 = vpop.f32.mrb[0].mxu0
        %v6970 = vadd.f32 %v5051, %v6969
        %v6971 = vpop.f32.mrb[0].mxu0
        %v6972 = vadd.f32 %v5047, %v6971
        %v6973 = vpop.f32.mrb[0].mxu0
        %v6974 = vadd.f32 %v5051, %v6973
        %6975 = vdwg.mxu0
        %6976 = vmatprep.subr.bf16.mxu0 %v6305
        %6977 = vmatpush1.bf16.msra.mxu0 %v6304
        %6978 = vmatprep.subr.bf16.mxu0 %v6313
        %6979 = vmatpush1.bf16.msra.mxu0 %v6312
        %6980 = vmatprep.subr.bf16.mxu0 %v6321
        %6981 = vmatpush1.bf16.msra.mxu0 %v6320
        %6982 = vmatprep.subr.bf16.mxu0 %v6329
        %6983 = vmatpush1.bf16.msra.mxu0 %v6328
        %6984 = vmatprep.subr.bf16.mxu0 %v6337
        %6985 = vmatpush1.bf16.msra.mxu0 %v6336
        %6986 = vmatprep.subr.bf16.mxu0 %v6345
        %6987 = vmatpush1.bf16.msra.mxu0 %v6344
        %6988 = vmatprep.subr.bf16.mxu0 %v6353
        %6989 = vmatpush1.bf16.msra.mxu0 %v6352
        %6990 = vmatprep.subr.bf16.mxu0 %v6361
        %6991 = vmatpush1.bf16.msra.mxu0 %v6360
        %6992 = vmatprep.subr.bf16.mxu0 %v6369
        %6993 = vmatpush1.bf16.msra.mxu0 %v6368
        %6994 = vmatprep.subr.bf16.mxu0 %v6377
        %6995 = vmatpush1.bf16.msra.mxu0 %v6376
        %6996 = vmatprep.subr.bf16.mxu0 %v6385
        %6997 = vmatpush1.bf16.msra.mxu0 %v6384
        %6998 = vmatprep.subr.bf16.mxu0 %v6393
        %6999 = vmatpush1.bf16.msra.mxu0 %v6392
        %7000 = vmatprep.subr.bf16.mxu0 %v6401
        %7001 = vmatpush1.bf16.msra.mxu0 %v6400
        %7002 = vmatprep.subr.bf16.mxu0 %v6409
        %7003 = vmatpush1.bf16.msra.mxu0 %v6408
        %7004 = vmatprep.subr.bf16.mxu0 %v6417
        %7005 = vmatpush1.bf16.msra.mxu0 %v6416
        %7006 = vmatprep.subr.bf16.mxu0 %v6425
        %7007 = vmatpush1.bf16.msra.mxu0 %v6424
        %7008 = vmatprep.mubr.bf16.mxu0 %v4675
        %7009 = vmatmul.mubr.bf16.gmra.mrb[0].mxu0 %v4674
        %v7010 = vpop.f32.mrb[0].mxu0
        %v7011 = vadd.f32 %v6968, %v7010
        %v7012 = vpop.f32.mrb[0].mxu0
        %v7013 = vadd.f32 %v6970, %v7012
        %v7014 = vpop.f32.mrb[0].mxu0
        %v7015 = vadd.f32 %v6972, %v7014
        %v7016 = vpop.f32.mrb[0].mxu0
        %v7017 = vadd.f32 %v6974, %v7016
        %7018 = vdwg.mxu0
        %7019 = vmatprep.subr.bf16.mxu0 %v6433
        %7020 = vmatpush1.bf16.msra.mxu0 %v6432
        %7021 = vmatprep.subr.bf16.mxu0 %v6441
        %7022 = vmatpush1.bf16.msra.mxu0 %v6440
        %7023 = vmatprep.subr.bf16.mxu0 %v6449
        %7024 = vmatpush1.bf16.msra.mxu0 %v6448
        %7025 = vmatprep.subr.bf16.mxu0 %v6457
        %7026 = vmatpush1.bf16.msra.mxu0 %v6456
        %7027 = vmatprep.subr.bf16.mxu0 %v6465
        %7028 = vmatpush1.bf16.msra.mxu0 %v6464
        %7029 = vmatprep.subr.bf16.mxu0 %v6473
        %7030 = vmatpush1.bf16.msra.mxu0 %v6472
        %7031 = vmatprep.subr.bf16.mxu0 %v6481
        %7032 = vmatpush1.bf16.msra.mxu0 %v6480
        %7033 = vmatprep.subr.bf16.mxu0 %v6489
        %7034 = vmatpush1.bf16.msra.mxu0 %v6488
        %7035 = vmatprep.subr.bf16.mxu0 %v6497
        %7036 = vmatpush1.bf16.msra.mxu0 %v6496
        %7037 = vmatprep.subr.bf16.mxu0 %v6505
        %7038 = vmatpush1.bf16.msra.mxu0 %v6504
        %7039 = vmatprep.subr.bf16.mxu0 %v6513
        %7040 = vmatpush1.bf16.msra.mxu0 %v6512
        %7041 = vmatprep.subr.bf16.mxu0 %v6521
        %7042 = vmatpush1.bf16.msra.mxu0 %v6520
        %7043 = vmatprep.subr.bf16.mxu0 %v6529
        %7044 = vmatpush1.bf16.msra.mxu0 %v6528
        %7045 = vmatprep.subr.bf16.mxu0 %v6913
        %7046 = vmatpush1.bf16.msra.mxu0 %v6910
        %7047 = vmatprep.subr.bf16.mxu0 0
        %7048 = vmatpush1.bf16.msra.mxu0 0
        %7049 = vmatprep.subr.bf16.mxu0 0
        %7050 = vmatpush1.bf16.msra.mxu0 0
        %7051 = vmatprep.mubr.bf16.mxu0 %v6906
        %7052 = vmatmul.mubr.bf16.gmra.mrb[0].mxu0 %v4676
        %v7053 = vpop.f32.mrb[0].mxu0
        %v7054 = vadd.f32 %v7011, %v7053
        %v7055 = vpop.f32.mrb[0].mxu0
        %v7056 = vadd.f32 %v7013, %v7055
        %v7057 = vpop.f32.mrb[0].mxu0
        %v7058 = vadd.f32 %v7015, %v7057
        %v7059 = vpop.f32.mrb[0].mxu0
        %v7060 = vadd.f32 %v7017, %v7059
        %7061 = vdwg.mxu0
        %7062 = vmatprep.subr.bf16.mxu0 %v6179
        %7063 = vmatpush1.bf16.msra.mxu0 %v6178
        %7064 = vmatprep.subr.bf16.mxu0 %v6187
        %7065 = vmatpush1.bf16.msra.mxu0 %v6186
        %7066 = vmatprep.subr.bf16.mxu0 %v6195
        %7067 = vmatpush1.bf16.msra.mxu0 %v6194
        %7068 = vmatprep.subr.bf16.mxu0 %v6203
        %7069 = vmatpush1.bf16.msra.mxu0 %v6202
        %7070 = vmatprep.subr.bf16.mxu0 %v6211
        %7071 = vmatpush1.bf16.msra.mxu0 %v6210
        %7072 = vmatprep.subr.bf16.mxu0 %v6219
        %7073 = vmatpush1.bf16.msra.mxu0 %v6218
        %7074 = vmatprep.subr.bf16.mxu0 %v6227
        %7075 = vmatpush1.bf16.msra.mxu0 %v6226
        %7076 = vmatprep.subr.bf16.mxu0 %v6235
        %7077 = vmatpush1.bf16.msra.mxu0 %v6234
        %7078 = vmatprep.subr.bf16.mxu0 %v6243
        %7079 = vmatpush1.bf16.msra.mxu0 %v6242
        %7080 = vmatprep.subr.bf16.mxu0 %v6251
        %7081 = vmatpush1.bf16.msra.mxu0 %v6250
        %7082 = vmatprep.subr.bf16.mxu0 %v6259
        %7083 = vmatpush1.bf16.msra.mxu0 %v6258
        %7084 = vmatprep.subr.bf16.mxu0 %v6267
        %7085 = vmatpush1.bf16.msra.mxu0 %v6266
        %7086 = vmatprep.subr.bf16.mxu0 %v6275
        %7087 = vmatpush1.bf16.msra.mxu0 %v6274
        %7088 = vmatprep.subr.bf16.mxu0 %v6283
        %7089 = vmatpush1.bf16.msra.mxu0 %v6282
        %7090 = vmatprep.subr.bf16.mxu0 %v6291
        %7091 = vmatpush1.bf16.msra.mxu0 %v6290
        %7092 = vmatprep.subr.bf16.mxu0 %v6299
        %7093 = vmatpush1.bf16.msra.mxu0 %v6298
        %7094 = vmatprep.mubr.bf16.mxu0 %v4673
        %7095 = vmatmul.mubr.bf16.gmra.mrb[0].mxu0 %v4672
        %v7096 = vpop.f32.mrb[0].mxu0
        %v7097 = vadd.f32 %v5055, %v7096
        %v7098 = vpop.f32.mrb[0].mxu0
        %v7099 = vadd.f32 %v5059, %v7098
        %v7100 = vpop.f32.mrb[0].mxu0
        %v7101 = vadd.f32 %v5055, %v7100
        %v7102 = vpop.f32.mrb[0].mxu0
        %v7103 = vadd.f32 %v5059, %v7102
        %7104 = vdwg.mxu0
        %7105 = vmatprep.subr.bf16.mxu0 %v6307
        %7106 = vmatpush1.bf16.msra.mxu0 %v6306
        %7107 = vmatprep.subr.bf16.mxu0 %v6315
        %7108 = vmatpush1.bf16.msra.mxu0 %v6314
        %7109 = vmatprep.subr.bf16.mxu0 %v6323
        %7110 = vmatpush1.bf16.msra.mxu0 %v6322
        %7111 = vmatprep.subr.bf16.mxu0 %v6331
        %7112 = vmatpush1.bf16.msra.mxu0 %v6330
        %7113 = vmatprep.subr.bf16.mxu0 %v6339
        %7114 = vmatpush1.bf16.msra.mxu0 %v6338
        %7115 = vmatprep.subr.bf16.mxu0 %v6347
        %7116 = vmatpush1.bf16.msra.mxu0 %v6346
        %7117 = vmatprep.subr.bf16.mxu0 %v6355
        %7118 = vmatpush1.bf16.msra.mxu0 %v6354
        %7119 = vmatprep.subr.bf16.mxu0 %v6363
        %7120 = vmatpush1.bf16.msra.mxu0 %v6362
        %7121 = vmatprep.subr.bf16.mxu0 %v6371
        %7122 = vmatpush1.bf16.msra.mxu0 %v6370
        %7123 = vmatprep.subr.bf16.mxu0 %v6379
        %7124 = vmatpush1.bf16.msra.mxu0 %v6378
        %7125 = vmatprep.subr.bf16.mxu0 %v6387
        %7126 = vmatpush1.bf16.msra.mxu0 %v6386
        %7127 = vmatprep.subr.bf16.mxu0 %v6395
        %7128 = vmatpush1.bf16.msra.mxu0 %v6394
        %7129 = vmatprep.subr.bf16.mxu0 %v6403
        %7130 = vmatpush1.bf16.msra.mxu0 %v6402
        %7131 = vmatprep.subr.bf16.mxu0 %v6411
        %7132 = vmatpush1.bf16.msra.mxu0 %v6410
        %7133 = vmatprep.subr.bf16.mxu0 %v6419
        %7134 = vmatpush1.bf16.msra.mxu0 %v6418
        %7135 = vmatprep.subr.bf16.mxu0 %v6427
        %7136 = vmatpush1.bf16.msra.mxu0 %v6426
        %7137 = vmatprep.mubr.bf16.mxu0 %v4675
        %7138 = vmatmul.mubr.bf16.gmra.mrb[0].mxu0 %v4674
        %v7139 = vpop.f32.mrb[0].mxu0
        %v7140 = vadd.f32 %v7097, %v7139
        %v7141 = vpop.f32.mrb[0].mxu0
        %v7142 = vadd.f32 %v7099, %v7141
        %v7143 = vpop.f32.mrb[0].mxu0
        %v7144 = vadd.f32 %v7101, %v7143
        %v7145 = vpop.f32.mrb[0].mxu0
        %v7146 = vadd.f32 %v7103, %v7145
        %7147 = vdwg.mxu0
        %7148 = vmatprep.subr.bf16.mxu0 %v6435
        %7149 = vmatpush1.bf16.msra.mxu0 %v6434
        %7150 = vmatprep.subr.bf16.mxu0 %v6443
        %7151 = vmatpush1.bf16.msra.mxu0 %v6442
        %7152 = vmatprep.subr.bf16.mxu0 %v6451
        %7153 = vmatpush1.bf16.msra.mxu0 %v6450
        %7154 = vmatprep.subr.bf16.mxu0 %v6459
        %7155 = vmatpush1.bf16.msra.mxu0 %v6458
        %7156 = vmatprep.subr.bf16.mxu0 %v6467
        %7157 = vmatpush1.bf16.msra.mxu0 %v6466
        %7158 = vmatprep.subr.bf16.mxu0 %v6475
        %7159 = vmatpush1.bf16.msra.mxu0 %v6474
        %7160 = vmatprep.subr.bf16.mxu0 %v6483
        %7161 = vmatpush1.bf16.msra.mxu0 %v6482
        %7162 = vmatprep.subr.bf16.mxu0 %v6491
        %7163 = vmatpush1.bf16.msra.mxu0 %v6490
        %7164 = vmatprep.subr.bf16.mxu0 %v6499
        %7165 = vmatpush1.bf16.msra.mxu0 %v6498
        %7166 = vmatprep.subr.bf16.mxu0 %v6507
        %7167 = vmatpush1.bf16.msra.mxu0 %v6506
        %7168 = vmatprep.subr.bf16.mxu0 %v6515
        %7169 = vmatpush1.bf16.msra.mxu0 %v6514
        %7170 = vmatprep.subr.bf16.mxu0 %v6523
        %7171 = vmatpush1.bf16.msra.mxu0 %v6522
        %7172 = vmatprep.subr.bf16.mxu0 %v6531
        %7173 = vmatpush1.bf16.msra.mxu0 %v6530
        %7174 = vmatprep.subr.bf16.mxu0 %v6919
        %7175 = vmatpush1.bf16.msra.mxu0 %v6916
        %7176 = vmatprep.subr.bf16.mxu0 0
        %7177 = vmatpush1.bf16.msra.mxu0 0
        %7178 = vmatprep.subr.bf16.mxu0 0
        %7179 = vmatpush1.bf16.msra.mxu0 0
        %7180 = vmatprep.mubr.bf16.mxu0 %v6906
        %7181 = vmatmul.mubr.bf16.gmra.mrb[0].mxu0 %v4676
        %v7182 = vpop.f32.mrb[0].mxu0
        %v7183 = vadd.f32 %v7140, %v7182
        %v7184 = vpop.f32.mrb[0].mxu0
        %v7185 = vadd.f32 %v7142, %v7184
        %v7186 = vpop.f32.mrb[0].mxu0
        %v7187 = vadd.f32 %v7144, %v7186
        %v7188 = vpop.f32.mrb[0].mxu0
        %v7189 = vadd.f32 %v7146, %v7188
        %7190 = vdwg.mxu0
        %7191 = vmatprep.subr.bf16.mxu0 %v6181
        %7192 = vmatpush1.bf16.msra.mxu0 %v6180
        %7193 = vmatprep.subr.bf16.mxu0 %v6189
        %7194 = vmatpush1.bf16.msra.mxu0 %v6188
        %7195 = vmatprep.subr.bf16.mxu0 %v6197
        %7196 = vmatpush1.bf16.msra.mxu0 %v6196
        %7197 = vmatprep.subr.bf16.mxu0 %v6205
        %7198 = vmatpush1.bf16.msra.mxu0 %v6204
        %7199 = vmatprep.subr.bf16.mxu0 %v6213
        %7200 = vmatpush1.bf16.msra.mxu0 %v6212
        %7201 = vmatprep.subr.bf16.mxu0 %v6221
        %7202 = vmatpush1.bf16.msra.mxu0 %v6220
        %7203 = vmatprep.subr.bf16.mxu0 %v6229
        %7204 = vmatpush1.bf16.msra.mxu0 %v6228
        %7205 = vmatprep.subr.bf16.mxu0 %v6237
        %7206 = vmatpush1.bf16.msra.mxu0 %v6236
        %7207 = vmatprep.subr.bf16.mxu0 %v6245
        %7208 = vmatpush1.bf16.msra.mxu0 %v6244
        %7209 = vmatprep.subr.bf16.mxu0 %v6253
        %7210 = vmatpush1.bf16.msra.mxu0 %v6252
        %7211 = vmatprep.subr.bf16.mxu0 %v6261
        %7212 = vmatpush1.bf16.msra.mxu0 %v6260
        %7213 = vmatprep.subr.bf16.mxu0 %v6269
        %7214 = vmatpush1.bf16.msra.mxu0 %v6268
        %7215 = vmatprep.subr.bf16.mxu0 %v6277
        %7216 = vmatpush1.bf16.msra.mxu0 %v6276
        %7217 = vmatprep.subr.bf16.mxu0 %v6285
        %7218 = vmatpush1.bf16.msra.mxu0 %v6284
        %7219 = vmatprep.subr.bf16.mxu0 %v6293
        %7220 = vmatpush1.bf16.msra.mxu0 %v6292
        %7221 = vmatprep.subr.bf16.mxu0 %v6301
        %7222 = vmatpush1.bf16.msra.mxu0 %v6300
        %7223 = vmatprep.mubr.bf16.mxu0 %v4673
        %7224 = vmatmul.mubr.bf16.gmra.mrb[0].mxu0 %v4672
        %v7225 = vpop.f32.mrb[0].mxu0
        %v7226 = vadd.f32 %v5063, %v7225
        %v7227 = vpop.f32.mrb[0].mxu0
        %v7228 = vadd.f32 %v5067, %v7227
        %v7229 = vpop.f32.mrb[0].mxu0
        %v7230 = vadd.f32 %v5063, %v7229
        %v7231 = vpop.f32.mrb[0].mxu0
        %v7232 = vadd.f32 %v5067, %v7231
        %7233 = vdwg.mxu0
        %7234 = vmatprep.subr.bf16.mxu0 %v6309
        %7235 = vmatpush1.bf16.msra.mxu0 %v6308
        %7236 = vmatprep.subr.bf16.mxu0 %v6317
        %7237 = vmatpush1.bf16.msra.mxu0 %v6316
        %7238 = vmatprep.subr.bf16.mxu0 %v6325
        %7239 = vmatpush1.bf16.msra.mxu0 %v6324
        %7240 = vmatprep.subr.bf16.mxu0 %v6333
        %7241 = vmatpush1.bf16.msra.mxu0 %v6332
        %7242 = vmatprep.subr.bf16.mxu0 %v6341
        %7243 = vmatpush1.bf16.msra.mxu0 %v6340
        %7244 = vmatprep.subr.bf16.mxu0 %v6349
        %7245 = vmatpush1.bf16.msra.mxu0 %v6348
        %7246 = vmatprep.subr.bf16.mxu0 %v6357
        %7247 = vmatpush1.bf16.msra.mxu0 %v6356
        %7248 = vmatprep.subr.bf16.mxu0 %v6365
        %7249 = vmatpush1.bf16.msra.mxu0 %v6364
        %7250 = vmatprep.subr.bf16.mxu0 %v6373
        %7251 = vmatpush1.bf16.msra.mxu0 %v6372
        %7252 = vmatprep.subr.bf16.mxu0 %v6381
        %7253 = vmatpush1.bf16.msra.mxu0 %v6380
        %7254 = vmatprep.subr.bf16.mxu0 %v6389
        %7255 = vmatpush1.bf16.msra.mxu0 %v6388
        %7256 = vmatprep.subr.bf16.mxu0 %v6397
        %7257 = vmatpush1.bf16.msra.mxu0 %v6396
        %7258 = vmatprep.subr.bf16.mxu0 %v6405
        %7259 = vmatpush1.bf16.msra.mxu0 %v6404
        %7260 = vmatprep.subr.bf16.mxu0 %v6413
        %7261 = vmatpush1.bf16.msra.mxu0 %v6412
        %7262 = vmatprep.subr.bf16.mxu0 %v6421
        %7263 = vmatpush1.bf16.msra.mxu0 %v6420
        %7264 = vmatprep.subr.bf16.mxu0 %v6429
        %7265 = vmatpush1.bf16.msra.mxu0 %v6428
        %7266 = vmatprep.mubr.bf16.mxu0 %v4675
        %7267 = vmatmul.mubr.bf16.gmra.mrb[0].mxu0 %v4674
        %v7268 = vpop.f32.mrb[0].mxu0
        %v7269 = vadd.f32 %v7226, %v7268
        %v7270 = vpop.f32.mrb[0].mxu0
        %v7271 = vadd.f32 %v7228, %v7270
        %v7272 = vpop.f32.mrb[0].mxu0
        %v7273 = vadd.f32 %v7230, %v7272
        %v7274 = vpop.f32.mrb[0].mxu0
        %v7275 = vadd.f32 %v7232, %v7274
        %7276 = vdwg.mxu0
        %7277 = vmatprep.subr.bf16.mxu0 %v6437
        %7278 = vmatpush1.bf16.msra.mxu0 %v6436
        %7279 = vmatprep.subr.bf16.mxu0 %v6445
        %7280 = vmatpush1.bf16.msra.mxu0 %v6444
        %7281 = vmatprep.subr.bf16.mxu0 %v6453
        %7282 = vmatpush1.bf16.msra.mxu0 %v6452
        %7283 = vmatprep.subr.bf16.mxu0 %v6461
        %7284 = vmatpush1.bf16.msra.mxu0 %v6460
        %7285 = vmatprep.subr.bf16.mxu0 %v6469
        %7286 = vmatpush1.bf16.msra.mxu0 %v6468
        %7287 = vmatprep.subr.bf16.mxu0 %v6477
        %7288 = vmatpush1.bf16.msra.mxu0 %v6476
        %7289 = vmatprep.subr.bf16.mxu0 %v6485
        %7290 = vmatpush1.bf16.msra.mxu0 %v6484
        %7291 = vmatprep.subr.bf16.mxu0 %v6493
        %7292 = vmatpush1.bf16.msra.mxu0 %v6492
        %7293 = vmatprep.subr.bf16.mxu0 %v6501
        %7294 = vmatpush1.bf16.msra.mxu0 %v6500
        %7295 = vmatprep.subr.bf16.mxu0 %v6509
        %7296 = vmatpush1.bf16.msra.mxu0 %v6508
        %7297 = vmatprep.subr.bf16.mxu0 %v6517
        %7298 = vmatpush1.bf16.msra.mxu0 %v6516
        %7299 = vmatprep.subr.bf16.mxu0 %v6525
        %7300 = vmatpush1.bf16.msra.mxu0 %v6524
        %7301 = vmatprep.subr.bf16.mxu0 %v6533
        %7302 = vmatpush1.bf16.msra.mxu0 %v6532
        %7303 = vmatprep.subr.bf16.mxu0 %v6925
        %7304 = vmatpush1.bf16.msra.mxu0 %v6922
        %7305 = vmatprep.subr.bf16.mxu0 0
        %7306 = vmatpush1.bf16.msra.mxu0 0
        %7307 = vmatprep.subr.bf16.mxu0 0
        %7308 = vmatpush1.bf16.msra.mxu0 0
        %7309 = vmatprep.mubr.bf16.mxu0 %v6906
        %7310 = vmatmul.mubr.bf16.gmra.mrb[0].mxu0 %v4676
        %v7311 = vpop.f32.mrb[0].mxu0
        %v7312 = vadd.f32 %v7269, %v7311
        %v7313 = vpop.f32.mrb[0].mxu0
        %v7314 = vadd.f32 %v7271, %v7313
        %v7315 = vpop.f32.mrb[0].mxu0
        %v7316 = vadd.f32 %v7273, %v7315
        %v7317 = vpop.f32.mrb[0].mxu0
        %v7318 = vadd.f32 %v7275, %v7317
        %7319 = vdwg.mxu0
        %7320 = vmatprep.subr.bf16.mxu0 %v6183
        %7321 = vmatpush1.bf16.msra.mxu0 %v6182
        %7322 = vmatprep.subr.bf16.mxu0 %v6191
        %7323 = vmatpush1.bf16.msra.mxu0 %v6190
        %7324 = vmatprep.subr.bf16.mxu0 %v6199
        %7325 = vmatpush1.bf16.msra.mxu0 %v6198
        %7326 = vmatprep.subr.bf16.mxu0 %v6207
        %7327 = vmatpush1.bf16.msra.mxu0 %v6206
        %7328 = vmatprep.subr.bf16.mxu0 %v6215
        %7329 = vmatpush1.bf16.msra.mxu0 %v6214
        %7330 = vmatprep.subr.bf16.mxu0 %v6223
        %7331 = vmatpush1.bf16.msra.mxu0 %v6222
        %7332 = vmatprep.subr.bf16.mxu0 %v6231
        %7333 = vmatpush1.bf16.msra.mxu0 %v6230
        %7334 = vmatprep.subr.bf16.mxu0 %v6239
        %7335 = vmatpush1.bf16.msra.mxu0 %v6238
        %7336 = vmatprep.subr.bf16.mxu0 %v6247
        %7337 = vmatpush1.bf16.msra.mxu0 %v6246
        %7338 = vmatprep.subr.bf16.mxu0 %v6255
        %7339 = vmatpush1.bf16.msra.mxu0 %v6254
        %7340 = vmatprep.subr.bf16.mxu0 %v6263
        %7341 = vmatpush1.bf16.msra.mxu0 %v6262
        %7342 = vmatprep.subr.bf16.mxu0 %v6271
        %7343 = vmatpush1.bf16.msra.mxu0 %v6270
        %7344 = vmatprep.subr.bf16.mxu0 %v6279
        %7345 = vmatpush1.bf16.msra.mxu0 %v6278
        %7346 = vmatprep.subr.bf16.mxu0 %v6287
        %7347 = vmatpush1.bf16.msra.mxu0 %v6286
        %7348 = vmatprep.subr.bf16.mxu0 %v6295
        %7349 = vmatpush1.bf16.msra.mxu0 %v6294
        %7350 = vmatprep.subr.bf16.mxu0 %v6303
        %7351 = vmatpush1.bf16.msra.mxu0 %v6302
        %7352 = vmatprep.mubr.bf16.mxu0 %v4673
        %7353 = vmatmul.mubr.bf16.gmra.mrb[0].mxu0 %v4672
        %v7354 = vpop.f32.mrb[0].mxu0
        %v7355 = vadd.f32 %v5071, %v7354
        %v7356 = vpop.f32.mrb[0].mxu0
        %v7357 = vadd.f32 %v5075, %v7356
        %v7358 = vpop.f32.mrb[0].mxu0
        %v7359 = vadd.f32 %v5071, %v7358
        %v7360 = vpop.f32.mrb[0].mxu0
        %v7361 = vadd.f32 %v5075, %v7360
        %7362 = vdwg.mxu0
        %7363 = vmatprep.subr.bf16.mxu0 %v6311
        %7364 = vmatpush1.bf16.msra.mxu0 %v6310
        %7365 = vmatprep.subr.bf16.mxu0 %v6319
        %7366 = vmatpush1.bf16.msra.mxu0 %v6318
        %7367 = vmatprep.subr.bf16.mxu0 %v6327
        %7368 = vmatpush1.bf16.msra.mxu0 %v6326
        %7369 = vmatprep.subr.bf16.mxu0 %v6335
        %7370 = vmatpush1.bf16.msra.mxu0 %v6334
        %7371 = vmatprep.subr.bf16.mxu0 %v6343
        %7372 = vmatpush1.bf16.msra.mxu0 %v6342
        %7373 = vmatprep.subr.bf16.mxu0 %v6351
        %7374 = vmatpush1.bf16.msra.mxu0 %v6350
        %7375 = vmatprep.subr.bf16.mxu0 %v6359
        %7376 = vmatpush1.bf16.msra.mxu0 %v6358
        %7377 = vmatprep.subr.bf16.mxu0 %v6367
        %7378 = vmatpush1.bf16.msra.mxu0 %v6366
        %7379 = vmatprep.subr.bf16.mxu0 %v6375
        %7380 = vmatpush1.bf16.msra.mxu0 %v6374
        %7381 = vmatprep.subr.bf16.mxu0 %v6383
        %7382 = vmatpush1.bf16.msra.mxu0 %v6382
        %7383 = vmatprep.subr.bf16.mxu0 %v6391
        %7384 = vmatpush1.bf16.msra.mxu0 %v6390
        %7385 = vmatprep.subr.bf16.mxu0 %v6399
        %7386 = vmatpush1.bf16.msra.mxu0 %v6398
        %7387 = vmatprep.subr.bf16.mxu0 %v6407
        %7388 = vmatpush1.bf16.msra.mxu0 %v6406
        %7389 = vmatprep.subr.bf16.mxu0 %v6415
        %7390 = vmatpush1.bf16.msra.mxu0 %v6414
        %7391 = vmatprep.subr.bf16.mxu0 %v6423
        %7392 = vmatpush1.bf16.msra.mxu0 %v6422
        %7393 = vmatprep.subr.bf16.mxu0 %v6431
        %7394 = vmatpush1.bf16.msra.mxu0 %v6430
        %7395 = vmatprep.mubr.bf16.mxu0 %v4675
        %7396 = vmatmul.mubr.bf16.gmra.mrb[0].mxu0 %v4674
        %v7397 = vpop.f32.mrb[0].mxu0
        %v7398 = vadd.f32 %v7355, %v7397
        %v7399 = vpop.f32.mrb[0].mxu0
        %v7400 = vadd.f32 %v7357, %v7399
        %v7401 = vpop.f32.mrb[0].mxu0
        %v7402 = vadd.f32 %v7359, %v7401
        %v7403 = vpop.f32.mrb[0].mxu0
        %v7404 = vadd.f32 %v7361, %v7403
        %7405 = vdwg.mxu0
        %7406 = vmatprep.subr.bf16.mxu0 %v6439
        %7407 = vmatpush1.bf16.msra.mxu0 %v6438
        %7408 = vmatprep.subr.bf16.mxu0 %v6447
        %7409 = vmatpush1.bf16.msra.mxu0 %v6446
        %7410 = vmatprep.subr.bf16.mxu0 %v6455
        %7411 = vmatpush1.bf16.msra.mxu0 %v6454
        %7412 = vmatprep.subr.bf16.mxu0 %v6463
        %7413 = vmatpush1.bf16.msra.mxu0 %v6462
        %7414 = vmatprep.subr.bf16.mxu0 %v6471
        %7415 = vmatpush1.bf16.msra.mxu0 %v6470
        %7416 = vmatprep.subr.bf16.mxu0 %v6479
        %7417 = vmatpush1.bf16.msra.mxu0 %v6478
        %7418 = vmatprep.subr.bf16.mxu0 %v6487
        %7419 = vmatpush1.bf16.msra.mxu0 %v6486
        %7420 = vmatprep.subr.bf16.mxu0 %v6495
        %7421 = vmatpush1.bf16.msra.mxu0 %v6494
        %7422 = vmatprep.subr.bf16.mxu0 %v6503
        %7423 = vmatpush1.bf16.msra.mxu0 %v6502
        %7424 = vmatprep.subr.bf16.mxu0 %v6511
        %7425 = vmatpush1.bf16.msra.mxu0 %v6510
        %7426 = vmatprep.subr.bf16.mxu0 %v6519
        %7427 = vmatpush1.bf16.msra.mxu0 %v6518
        %7428 = vmatprep.subr.bf16.mxu0 %v6527
        %7429 = vmatpush1.bf16.msra.mxu0 %v6526
        %7430 = vmatprep.subr.bf16.mxu0 %v6535
        %7431 = vmatpush1.bf16.msra.mxu0 %v6534
        %7432 = vmatprep.subr.bf16.mxu0 %v6931
        %7433 = vmatpush1.bf16.msra.mxu0 %v6928
        %7434 = vmatprep.subr.bf16.mxu0 0
        %7435 = vmatpush1.bf16.msra.mxu0 0
        %7436 = vmatprep.subr.bf16.mxu0 0
        %7437 = vmatpush1.bf16.msra.mxu0 0
        %7438 = vmatprep.mubr.bf16.mxu0 %v6906
        %7439 = vmatmul.mubr.bf16.gmra.mrb[0].mxu0 %v4676
        %v7440 = vpop.f32.mrb[0].mxu0
        %v7441 = vadd.f32 %v7398, %v7440
        %v7442 = vpop.f32.mrb[0].mxu0
        %v7443 = vadd.f32 %v7400, %v7442
        %v7444 = vpop.f32.mrb[0].mxu0
        %v7445 = vadd.f32 %v7402, %v7444
        %v7446 = vpop.f32.mrb[0].mxu0
        %v7447 = vadd.f32 %v7404, %v7446
        %7448 = vdwg.mxu0
        %v7449 = vpack.c.bf16 %v7058, %v7054
        %v7450 = vpack.c.bf16 %v7060, %v7056
        %v7451 = vpack.c.bf16 %v7187, %v7183
        %v7452 = vpack.c.bf16 %v7189, %v7185
        %v7453 = vpack.c.bf16 %v7316, %v7312
        %v7454 = vpack.c.bf16 %v7318, %v7314
        %v7455 = vpack.c.bf16 %v7445, %v7441
        %v7456 = vpack.c.bf16 %v7447, %v7443
        %7457 = vst [vmem:[#allocation2] sm:$0xff] %v7449
        %7458 = vst [vmem:[#allocation2 + $0x8] sm:$0xff] %v7450
        %7459 = vst [vmem:[#allocation2 + $0x10] sm:$0xff] %v7451
        %7460 = vst [vmem:[#allocation2 + $0x18] sm:$0xff] %v7452
        %7461 = vst [vmem:[#allocation2 + $0x20] sm:$0xff] %v7453
        %7462 = vst [vmem:[#allocation2 + $0x28] sm:$0xff] %v7454
        %7463 = vst [vmem:[#allocation2 + $0x30] sm:$0xff] %v7455
        %7464 = vst [vmem:[#allocation2 + $0x38] sm:$0xff] %v7456
        %v7465 = vld [vmem:[#allocation2] sm:$0xff]
        %v7466 = vld [vmem:[#allocation2 + $0x8] sm:$0xff]
        %v7467 = vld [vmem:[#allocation2 + $0x10] sm:$0xff]
        %v7468 = vld [vmem:[#allocation2 + $0x18] sm:$0xff]
        %v7469 = vld [vmem:[#allocation2 + $0x20] sm:$0xff]
        %v7470 = vld [vmem:[#allocation2 + $0x28] sm:$0xff]
        %v7471 = vld [vmem:[#allocation2 + $0x30] sm:$0xff]
        %v7472 = vld [vmem:[#allocation2 + $0x38] sm:$0xff]
        %v7473 = vld [vmem:[#allocation11] sm:$0xff]
        %v7474 = vld [vmem:[#allocation11 + $0x8] sm:$0xff]
        %v7475 = vld [vmem:[#allocation11 + $0x10] sm:$0xff]
        %v7476 = vld [vmem:[#allocation11 + $0x18] sm:$0xff]
        %v7477 = vld [vmem:[#allocation11 + $0x20] sm:$0xff]
        %v7478 = vld [vmem:[#allocation11 + $0x28] sm:$0xff]
        %v7479 = vld [vmem:[#allocation11 + $0x30] sm:$0xff]
        %v7480 = vld [vmem:[#allocation11 + $0x38] sm:$0xff]
        %v7481 = vld [vmem:[#allocation11 + $0x40] sm:$0xff]
        %v7482 = vld [vmem:[#allocation11 + $0x48] sm:$0xff]
        %v7483 = vld [vmem:[#allocation11 + $0x50] sm:$0xff]
        %v7484 = vld [vmem:[#allocation11 + $0x58] sm:$0xff]
        %v7485 = vld [vmem:[#allocation11 + $0x60] sm:$0xff]
        %v7486 = vld [vmem:[#allocation11 + $0x68] sm:$0xff]
        %v7487 = vld [vmem:[#allocation11 + $0x70] sm:$0xff]
        %v7488 = vld [vmem:[#allocation11 + $0x78] sm:$0xff]
        %v7489 = vld [vmem:[#allocation11 + $0x80] sm:$0xff]
        %v7490 = vld [vmem:[#allocation11 + $0x88] sm:$0xff]
        %v7491 = vld [vmem:[#allocation11 + $0x90] sm:$0xff]
        %v7492 = vld [vmem:[#allocation11 + $0x98] sm:$0xff]
        %v7493 = vld [vmem:[#allocation11 + $0xa0] sm:$0xff]
        %v7494 = vld [vmem:[#allocation11 + $0xa8] sm:$0xff]
        %v7495 = vld [vmem:[#allocation11 + $0xb0] sm:$0xff]
        %v7496 = vld [vmem:[#allocation11 + $0xb8] sm:$0xff]
        %v7497 = vld [vmem:[#allocation11 + $0xc0] sm:$0xff]
        %v7498 = vld [vmem:[#allocation11 + $0xc8] sm:$0xff]
        %v7499 = vld [vmem:[#allocation11 + $0xd0] sm:$0xff]
        %v7500 = vld [vmem:[#allocation11 + $0xd8] sm:$0xff]
        %v7501 = vld [vmem:[#allocation11 + $0xe0] sm:$0xff]
        %v7502 = vld [vmem:[#allocation11 + $0xe8] sm:$0xff]
        %v7503 = vld [vmem:[#allocation11 + $0xf0] sm:$0xff]
        %v7504 = vld [vmem:[#allocation11 + $0xf8] sm:$0xff]
        %v7505 = vld [vmem:[#allocation11 + $0x100] sm:$0xff]
        %v7506 = vld [vmem:[#allocation11 + $0x108] sm:$0xff]
        %v7507 = vld [vmem:[#allocation11 + $0x110] sm:$0xff]
        %v7508 = vld [vmem:[#allocation11 + $0x118] sm:$0xff]
        %v7509 = vld [vmem:[#allocation11 + $0x120] sm:$0xff]
        %v7510 = vld [vmem:[#allocation11 + $0x128] sm:$0xff]
        %v7511 = vld [vmem:[#allocation11 + $0x130] sm:$0xff]
        %v7512 = vld [vmem:[#allocation11 + $0x138] sm:$0xff]
        %v7513 = vld [vmem:[#allocation11 + $0x140] sm:$0xff]
        %v7514 = vld [vmem:[#allocation11 + $0x148] sm:$0xff]
        %v7515 = vld [vmem:[#allocation11 + $0x150] sm:$0xff]
        %v7516 = vld [vmem:[#allocation11 + $0x158] sm:$0xff]
        %v7517 = vld [vmem:[#allocation11 + $0x160] sm:$0xff]
        %v7518 = vld [vmem:[#allocation11 + $0x168] sm:$0xff]
        %v7519 = vld [vmem:[#allocation11 + $0x170] sm:$0xff]
        %v7520 = vld [vmem:[#allocation11 + $0x178] sm:$0xff]
        %v7521 = vld [vmem:[#allocation11 + $0x180] sm:$0xff]
        %v7522 = vld [vmem:[#allocation11 + $0x188] sm:$0xff]
        %v7523 = vld [vmem:[#allocation11 + $0x190] sm:$0xff]
        %v7524 = vld [vmem:[#allocation11 + $0x198] sm:$0xff]
        %v7525 = vld [vmem:[#allocation11 + $0x1a0] sm:$0xff]
        %v7526 = vld [vmem:[#allocation11 + $0x1a8] sm:$0xff]
        %v7527 = vld [vmem:[#allocation11 + $0x1b0] sm:$0xff]
        %v7528 = vld [vmem:[#allocation11 + $0x1b8] sm:$0xff]
        %v7529 = vld [vmem:[#allocation11 + $0x1c0] sm:$0xff]
        %v7530 = vld [vmem:[#allocation11 + $0x1c8] sm:$0xff]
        %v7531 = vld [vmem:[#allocation11 + $0x1d0] sm:$0xff]
        %v7532 = vld [vmem:[#allocation11 + $0x1d8] sm:$0xff]
        %v7533 = vld [vmem:[#allocation11 + $0x1e0] sm:$0xff]
        %v7534 = vld [vmem:[#allocation11 + $0x1e8] sm:$0xff]
        %v7535 = vld [vmem:[#allocation11 + $0x1f0] sm:$0xff]
        %v7536 = vld [vmem:[#allocation11 + $0x1f8] sm:$0xff]
        %v7537 = vld [vmem:[#allocation12] sm:$0xf]
        %v7539 = vlaneseq
        %v7540 = vshrl.u32 %v7539, 7
        %v7541 = vsub.s32 0, %v7540
        %v7542 = vrot.slane %v7537, %v7541
        %v7543 = vlaneseq
        %v7544 = vshrl.u32 %v7543, 7
        %v7545 = vsub.s32 1, %v7544
        %v7546 = vrot.slane %v7537, %v7545
        %v7547 = vlaneseq
        %v7548 = vshrl.u32 %v7547, 7
        %v7549 = vsub.s32 2, %v7548
        %v7550 = vrot.slane %v7537, %v7549
        %v7551 = vlaneseq
        %v7552 = vshrl.u32 %v7551, 7
        %v7553 = vsub.s32 3, %v7552
        %v7554 = vrot.slane %v7537, %v7553
        %v7623 = vunpack.c.l.b16 %v7473
        %v7624 = vunpack.c.h.b16 %v7473
        %v7625 = vunpack.c.l.b16 %v7474
        %v7626 = vunpack.c.h.b16 %v7474
        %v7627 = vunpack.c.l.b16 %v7475
        %v7628 = vunpack.c.h.b16 %v7475
        %v7629 = vunpack.c.l.b16 %v7476
        %v7630 = vunpack.c.h.b16 %v7476
        %v7631 = vunpack.c.l.b16 %v7477
        %v7632 = vunpack.c.h.b16 %v7477
        %v7633 = vunpack.c.l.b16 %v7478
        %v7634 = vunpack.c.h.b16 %v7478
        %v7635 = vunpack.c.l.b16 %v7479
        %v7636 = vunpack.c.h.b16 %v7479
        %v7637 = vunpack.c.l.b16 %v7480
        %v7638 = vunpack.c.h.b16 %v7480
        %v7639 = vunpack.c.l.b16 %v7481
        %v7640 = vunpack.c.h.b16 %v7481
        %v7641 = vunpack.c.l.b16 %v7482
        %v7642 = vunpack.c.h.b16 %v7482
        %v7643 = vunpack.c.l.b16 %v7483
        %v7644 = vunpack.c.h.b16 %v7483
        %v7645 = vunpack.c.l.b16 %v7484
        %v7646 = vunpack.c.h.b16 %v7484
        %v7647 = vunpack.c.l.b16 %v7485
        %v7648 = vunpack.c.h.b16 %v7485
        %v7649 = vunpack.c.l.b16 %v7486
        %v7650 = vunpack.c.h.b16 %v7486
        %v7651 = vunpack.c.l.b16 %v7487
        %v7652 = vunpack.c.h.b16 %v7487
        %v7653 = vunpack.c.l.b16 %v7488
        %v7654 = vunpack.c.h.b16 %v7488
        %v7655 = vunpack.c.l.b16 %v7489
        %v7656 = vunpack.c.h.b16 %v7489
        %v7657 = vunpack.c.l.b16 %v7490
        %v7658 = vunpack.c.h.b16 %v7490
        %v7659 = vunpack.c.l.b16 %v7491
        %v7660 = vunpack.c.h.b16 %v7491
        %v7661 = vunpack.c.l.b16 %v7492
        %v7662 = vunpack.c.h.b16 %v7492
        %v7663 = vunpack.c.l.b16 %v7493
        %v7664 = vunpack.c.h.b16 %v7493
        %v7665 = vunpack.c.l.b16 %v7494
        %v7666 = vunpack.c.h.b16 %v7494
        %v7667 = vunpack.c.l.b16 %v7495
        %v7668 = vunpack.c.h.b16 %v7495
        %v7669 = vunpack.c.l.b16 %v7496
        %v7670 = vunpack.c.h.b16 %v7496
        %v7671 = vunpack.c.l.b16 %v7497
        %v7672 = vunpack.c.h.b16 %v7497
        %v7673 = vunpack.c.l.b16 %v7498
        %v7674 = vunpack.c.h.b16 %v7498
        %v7675 = vunpack.c.l.b16 %v7499
        %v7676 = vunpack.c.h.b16 %v7499
        %v7677 = vunpack.c.l.b16 %v7500
        %v7678 = vunpack.c.h.b16 %v7500
        %v7679 = vunpack.c.l.b16 %v7501
        %v7680 = vunpack.c.h.b16 %v7501
        %v7681 = vunpack.c.l.b16 %v7502
        %v7682 = vunpack.c.h.b16 %v7502
        %v7683 = vunpack.c.l.b16 %v7503
        %v7684 = vunpack.c.h.b16 %v7503
        %v7685 = vunpack.c.l.b16 %v7504
        %v7686 = vunpack.c.h.b16 %v7504
        %v7687 = vunpack.c.l.b16 %v7505
        %v7688 = vunpack.c.h.b16 %v7505
        %v7689 = vunpack.c.l.b16 %v7506
        %v7690 = vunpack.c.h.b16 %v7506
        %v7691 = vunpack.c.l.b16 %v7507
        %v7692 = vunpack.c.h.b16 %v7507
        %v7693 = vunpack.c.l.b16 %v7508
        %v7694 = vunpack.c.h.b16 %v7508
        %v7695 = vunpack.c.l.b16 %v7509
        %v7696 = vunpack.c.h.b16 %v7509
        %v7697 = vunpack.c.l.b16 %v7510
        %v7698 = vunpack.c.h.b16 %v7510
        %v7699 = vunpack.c.l.b16 %v7511
        %v7700 = vunpack.c.h.b16 %v7511
        %v7701 = vunpack.c.l.b16 %v7512
        %v7702 = vunpack.c.h.b16 %v7512
        %v7703 = vunpack.c.l.b16 %v7513
        %v7704 = vunpack.c.h.b16 %v7513
        %v7705 = vunpack.c.l.b16 %v7514
        %v7706 = vunpack.c.h.b16 %v7514
        %v7707 = vunpack.c.l.b16 %v7515
        %v7708 = vunpack.c.h.b16 %v7515
        %v7709 = vunpack.c.l.b16 %v7516
        %v7710 = vunpack.c.h.b16 %v7516
        %v7711 = vunpack.c.l.b16 %v7517
        %v7712 = vunpack.c.h.b16 %v7517
        %v7713 = vunpack.c.l.b16 %v7518
        %v7714 = vunpack.c.h.b16 %v7518
        %v7715 = vunpack.c.l.b16 %v7519
        %v7716 = vunpack.c.h.b16 %v7519
        %v7717 = vunpack.c.l.b16 %v7520
        %v7718 = vunpack.c.h.b16 %v7520
        %v7719 = vunpack.c.l.b16 %v7521
        %v7720 = vunpack.c.h.b16 %v7521
        %v7721 = vunpack.c.l.b16 %v7522
        %v7722 = vunpack.c.h.b16 %v7522
        %v7723 = vunpack.c.l.b16 %v7523
        %v7724 = vunpack.c.h.b16 %v7523
        %v7725 = vunpack.c.l.b16 %v7524
        %v7726 = vunpack.c.h.b16 %v7524
        %v7727 = vunpack.c.l.b16 %v7525
        %v7728 = vunpack.c.h.b16 %v7525
        %v7729 = vunpack.c.l.b16 %v7526
        %v7730 = vunpack.c.h.b16 %v7526
        %v7731 = vunpack.c.l.b16 %v7527
        %v7732 = vunpack.c.h.b16 %v7527
        %v7733 = vunpack.c.l.b16 %v7528
        %v7734 = vunpack.c.h.b16 %v7528
        %v7735 = vunpack.c.l.b16 %v7529
        %v7736 = vunpack.c.h.b16 %v7529
        %v7737 = vunpack.c.l.b16 %v7530
        %v7738 = vunpack.c.h.b16 %v7530
        %v7739 = vunpack.c.l.b16 %v7531
        %v7740 = vunpack.c.h.b16 %v7531
        %v7741 = vunpack.c.l.b16 %v7532
        %v7742 = vunpack.c.h.b16 %v7532
        %v7743 = vunpack.c.l.b16 %v7533
        %v7744 = vunpack.c.h.b16 %v7533
        %v7745 = vunpack.c.l.b16 %v7534
        %v7746 = vunpack.c.h.b16 %v7534
        %v7747 = vunpack.c.l.b16 %v7535
        %v7748 = vunpack.c.h.b16 %v7535
        %v7749 = vunpack.c.l.b16 %v7536
        %v7750 = vunpack.c.h.b16 %v7536
        %v7751 = vpack.c.b16 %v7627, %v7623
        %v7752 = vpack.c.b16 %v7628, %v7624
        %v7753 = vpack.c.b16 %v7629, %v7625
        %v7754 = vpack.c.b16 %v7630, %v7626
        %v7755 = vpack.c.b16 %v7635, %v7631
        %v7756 = vpack.c.b16 %v7636, %v7632
        %v7757 = vpack.c.b16 %v7637, %v7633
        %v7758 = vpack.c.b16 %v7638, %v7634
        %v7759 = vpack.c.b16 %v7643, %v7639
        %v7760 = vpack.c.b16 %v7644, %v7640
        %v7761 = vpack.c.b16 %v7645, %v7641
        %v7762 = vpack.c.b16 %v7646, %v7642
        %v7763 = vpack.c.b16 %v7651, %v7647
        %v7764 = vpack.c.b16 %v7652, %v7648
        %v7765 = vpack.c.b16 %v7653, %v7649
        %v7766 = vpack.c.b16 %v7654, %v7650
        %v7767 = vpack.c.b16 %v7659, %v7655
        %v7768 = vpack.c.b16 %v7660, %v7656
        %v7769 = vpack.c.b16 %v7661, %v7657
        %v7770 = vpack.c.b16 %v7662, %v7658
        %v7771 = vpack.c.b16 %v7667, %v7663
        %v7772 = vpack.c.b16 %v7668, %v7664
        %v7773 = vpack.c.b16 %v7669, %v7665
        %v7774 = vpack.c.b16 %v7670, %v7666
        %v7775 = vpack.c.b16 %v7675, %v7671
        %v7776 = vpack.c.b16 %v7676, %v7672
        %v7777 = vpack.c.b16 %v7677, %v7673
        %v7778 = vpack.c.b16 %v7678, %v7674
        %v7779 = vpack.c.b16 %v7683, %v7679
        %v7780 = vpack.c.b16 %v7684, %v7680
        %v7781 = vpack.c.b16 %v7685, %v7681
        %v7782 = vpack.c.b16 %v7686, %v7682
        %v7783 = vpack.c.b16 %v7691, %v7687
        %v7784 = vpack.c.b16 %v7692, %v7688
        %v7785 = vpack.c.b16 %v7693, %v7689
        %v7786 = vpack.c.b16 %v7694, %v7690
        %v7787 = vpack.c.b16 %v7699, %v7695
        %v7788 = vpack.c.b16 %v7700, %v7696
        %v7789 = vpack.c.b16 %v7701, %v7697
        %v7790 = vpack.c.b16 %v7702, %v7698
        %v7791 = vpack.c.b16 %v7707, %v7703
        %v7792 = vpack.c.b16 %v7708, %v7704
        %v7793 = vpack.c.b16 %v7709, %v7705
        %v7794 = vpack.c.b16 %v7710, %v7706
        %v7795 = vpack.c.b16 %v7715, %v7711
        %v7796 = vpack.c.b16 %v7716, %v7712
        %v7797 = vpack.c.b16 %v7717, %v7713
        %v7798 = vpack.c.b16 %v7718, %v7714
        %v7799 = vpack.c.b16 %v7723, %v7719
        %v7800 = vpack.c.b16 %v7724, %v7720
        %v7801 = vpack.c.b16 %v7725, %v7721
        %v7802 = vpack.c.b16 %v7726, %v7722
        %v7803 = vpack.c.b16 %v7731, %v7727
        %v7804 = vpack.c.b16 %v7732, %v7728
        %v7805 = vpack.c.b16 %v7733, %v7729
        %v7806 = vpack.c.b16 %v7734, %v7730
        %v7807 = vpack.c.b16 %v7739, %v7735
        %v7808 = vpack.c.b16 %v7740, %v7736
        %v7809 = vpack.c.b16 %v7741, %v7737
        %v7810 = vpack.c.b16 %v7742, %v7738
        %v7811 = vpack.c.b16 %v7747, %v7743
        %v7812 = vpack.c.b16 %v7748, %v7744
        %v7813 = vpack.c.b16 %v7749, %v7745
        %v7814 = vpack.c.b16 %v7750, %v7746
        %7879 = vmatprep.subr.bf16.mxu0 %v7752
        %7880 = vmatpush1.bf16.msra.mxu0 %v7751
        %7881 = vmatprep.subr.bf16.mxu0 %v7756
        %7882 = vmatpush1.bf16.msra.mxu0 %v7755
        %7883 = vmatprep.subr.bf16.mxu0 %v7760
        %7884 = vmatpush1.bf16.msra.mxu0 %v7759
        %7885 = vmatprep.subr.bf16.mxu0 %v7764
        %7886 = vmatpush1.bf16.msra.mxu0 %v7763
        %7887 = vmatprep.subr.bf16.mxu0 %v7768
        %7888 = vmatpush1.bf16.msra.mxu0 %v7767
        %7889 = vmatprep.subr.bf16.mxu0 %v7772
        %7890 = vmatpush1.bf16.msra.mxu0 %v7771
        %7891 = vmatprep.subr.bf16.mxu0 %v7776
        %7892 = vmatpush1.bf16.msra.mxu0 %v7775
        %7893 = vmatprep.subr.bf16.mxu0 %v7780
        %7894 = vmatpush1.bf16.msra.mxu0 %v7779
        %7895 = vmatprep.subr.bf16.mxu0 %v7784
        %7896 = vmatpush1.bf16.msra.mxu0 %v7783
        %7897 = vmatprep.subr.bf16.mxu0 %v7788
        %7898 = vmatpush1.bf16.msra.mxu0 %v7787
        %7899 = vmatprep.subr.bf16.mxu0 %v7792
        %7900 = vmatpush1.bf16.msra.mxu0 %v7791
        %7901 = vmatprep.subr.bf16.mxu0 %v7796
        %7902 = vmatpush1.bf16.msra.mxu0 %v7795
        %7903 = vmatprep.subr.bf16.mxu0 %v7800
        %7904 = vmatpush1.bf16.msra.mxu0 %v7799
        %7905 = vmatprep.subr.bf16.mxu0 %v7804
        %7906 = vmatpush1.bf16.msra.mxu0 %v7803
        %7907 = vmatprep.subr.bf16.mxu0 %v7808
        %7908 = vmatpush1.bf16.msra.mxu0 %v7807
        %7909 = vmatprep.subr.bf16.mxu0 %v7812
        %7910 = vmatpush1.bf16.msra.mxu0 %v7811
        %7911 = vmatprep.mubr.bf16.mxu0 %v7466
        %7912 = vmatmul.mubr.bf16.gmra.mrb[0].mxu0 %v7465
        %v7913 = vpop.f32.mrb[0].mxu0
        %v7914 = vadd.f32 %v7542, %v7913
        %v7915 = vpop.f32.mrb[0].mxu0
        %v7916 = vadd.f32 %v7546, %v7915
        %v7917 = vpop.f32.mrb[0].mxu0
        %v7918 = vadd.f32 %v7542, %v7917
        %v7919 = vpop.f32.mrb[0].mxu0
        %v7920 = vadd.f32 %v7546, %v7919
        %7921 = vmatprep.mubr.bf16.mxu0 %v7468
        %7922 = vmatmul.mubr.bf16.gmra.mrb[0].mxu0 %v7467
        %v7923 = vpop.f32.mrb[0].mxu0
        %v7924 = vadd.f32 %v7542, %v7923
        %v7925 = vpop.f32.mrb[0].mxu0
        %v7926 = vadd.f32 %v7546, %v7925
        %v7927 = vpop.f32.mrb[0].mxu0
        %v7928 = vadd.f32 %v7542, %v7927
        %v7929 = vpop.f32.mrb[0].mxu0
        %v7930 = vadd.f32 %v7546, %v7929
        %7931 = vmatprep.mubr.bf16.mxu0 %v7470
        %7932 = vmatmul.mubr.bf16.gmra.mrb[0].mxu0 %v7469
        %v7933 = vpop.f32.mrb[0].mxu0
        %v7934 = vadd.f32 %v7542, %v7933
        %v7935 = vpop.f32.mrb[0].mxu0
        %v7936 = vadd.f32 %v7546, %v7935
        %v7937 = vpop.f32.mrb[0].mxu0
        %v7938 = vadd.f32 %v7542, %v7937
        %v7939 = vpop.f32.mrb[0].mxu0
        %v7940 = vadd.f32 %v7546, %v7939
        %7941 = vmatprep.mubr.bf16.mxu0 %v7472
        %7942 = vmatmul.mubr.bf16.gmra.mrb[0].mxu0 %v7471
        %v7943 = vpop.f32.mrb[0].mxu0
        %v7944 = vadd.f32 %v7542, %v7943
        %v7945 = vpop.f32.mrb[0].mxu0
        %v7946 = vadd.f32 %v7546, %v7945
        %v7947 = vpop.f32.mrb[0].mxu0
        %v7948 = vadd.f32 %v7542, %v7947
        %v7949 = vpop.f32.mrb[0].mxu0
        %v7950 = vadd.f32 %v7546, %v7949
        %7951 = vdwg.mxu0
        %7952 = vmatprep.subr.bf16.mxu0 %v7754
        %7953 = vmatpush1.bf16.msra.mxu0 %v7753
        %7954 = vmatprep.subr.bf16.mxu0 %v7758
        %7955 = vmatpush1.bf16.msra.mxu0 %v7757
        %7956 = vmatprep.subr.bf16.mxu0 %v7762
        %7957 = vmatpush1.bf16.msra.mxu0 %v7761
        %7958 = vmatprep.subr.bf16.mxu0 %v7766
        %7959 = vmatpush1.bf16.msra.mxu0 %v7765
        %7960 = vmatprep.subr.bf16.mxu0 %v7770
        %7961 = vmatpush1.bf16.msra.mxu0 %v7769
        %7962 = vmatprep.subr.bf16.mxu0 %v7774
        %7963 = vmatpush1.bf16.msra.mxu0 %v7773
        %7964 = vmatprep.subr.bf16.mxu0 %v7778
        %7965 = vmatpush1.bf16.msra.mxu0 %v7777
        %7966 = vmatprep.subr.bf16.mxu0 %v7782
        %7967 = vmatpush1.bf16.msra.mxu0 %v7781
        %7968 = vmatprep.subr.bf16.mxu0 %v7786
        %7969 = vmatpush1.bf16.msra.mxu0 %v7785
        %7970 = vmatprep.subr.bf16.mxu0 %v7790
        %7971 = vmatpush1.bf16.msra.mxu0 %v7789
        %7972 = vmatprep.subr.bf16.mxu0 %v7794
        %7973 = vmatpush1.bf16.msra.mxu0 %v7793
        %7974 = vmatprep.subr.bf16.mxu0 %v7798
        %7975 = vmatpush1.bf16.msra.mxu0 %v7797
        %7976 = vmatprep.subr.bf16.mxu0 %v7802
        %7977 = vmatpush1.bf16.msra.mxu0 %v7801
        %7978 = vmatprep.subr.bf16.mxu0 %v7806
        %7979 = vmatpush1.bf16.msra.mxu0 %v7805
        %7980 = vmatprep.subr.bf16.mxu0 %v7810
        %7981 = vmatpush1.bf16.msra.mxu0 %v7809
        %7982 = vmatprep.subr.bf16.mxu0 %v7814
        %7983 = vmatpush1.bf16.msra.mxu0 %v7813
        %7984 = vmatprep.mubr.bf16.mxu0 %v7466
        %7985 = vmatmul.mubr.bf16.gmra.mrb[0].mxu0 %v7465
        %v7986 = vpop.f32.mrb[0].mxu0
        %v7987 = vadd.f32 %v7550, %v7986
        %v7988 = vpop.f32.mrb[0].mxu0
        %v7989 = vadd.f32 %v7554, %v7988
        %v7990 = vpop.f32.mrb[0].mxu0
        %v7991 = vadd.f32 %v7550, %v7990
        %v7992 = vpop.f32.mrb[0].mxu0
        %v7993 = vadd.f32 %v7554, %v7992
        %7994 = vmatprep.mubr.bf16.mxu0 %v7468
        %7995 = vmatmul.mubr.bf16.gmra.mrb[0].mxu0 %v7467
        %v7996 = vpop.f32.mrb[0].mxu0
        %v7997 = vadd.f32 %v7550, %v7996
        %v7998 = vpop.f32.mrb[0].mxu0
        %v7999 = vadd.f32 %v7554, %v7998
        %v8000 = vpop.f32.mrb[0].mxu0
        %v8001 = vadd.f32 %v7550, %v8000
        %v8002 = vpop.f32.mrb[0].mxu0
        %v8003 = vadd.f32 %v7554, %v8002
        %8004 = vmatprep.mubr.bf16.mxu0 %v7470
        %8005 = vmatmul.mubr.bf16.gmra.mrb[0].mxu0 %v7469
        %v8006 = vpop.f32.mrb[0].mxu0
        %v8007 = vadd.f32 %v7550, %v8006
        %v8008 = vpop.f32.mrb[0].mxu0
        %v8009 = vadd.f32 %v7554, %v8008
        %v8010 = vpop.f32.mrb[0].mxu0
        %v8011 = vadd.f32 %v7550, %v8010
        %v8012 = vpop.f32.mrb[0].mxu0
        %v8013 = vadd.f32 %v7554, %v8012
        %8014 = vmatprep.mubr.bf16.mxu0 %v7472
        %8015 = vmatmul.mubr.bf16.gmra.mrb[0].mxu0 %v7471
        %v8016 = vpop.f32.mrb[0].mxu0
        %v8017 = vadd.f32 %v7550, %v8016
        %v8018 = vpop.f32.mrb[0].mxu0
        %v8019 = vadd.f32 %v7554, %v8018
        %v8020 = vpop.f32.mrb[0].mxu0
        %v8021 = vadd.f32 %v7550, %v8020
        %v8022 = vpop.f32.mrb[0].mxu0
        %v8023 = vadd.f32 %v7554, %v8022
        %8024 = vdwg.mxu0
        %v8025 = vpack.c.bf16 %v7918, %v7914
        %v8026 = vpack.c.bf16 %v7920, %v7916
        %v8027 = vpack.c.bf16 %v7991, %v7987
        %v8028 = vpack.c.bf16 %v7993, %v7989
        %v8029 = vpack.c.bf16 %v7928, %v7924
        %v8030 = vpack.c.bf16 %v7930, %v7926
        %v8031 = vpack.c.bf16 %v8001, %v7997
        %v8032 = vpack.c.bf16 %v8003, %v7999
        %v8033 = vpack.c.bf16 %v7938, %v7934
        %v8034 = vpack.c.bf16 %v7940, %v7936
        %v8035 = vpack.c.bf16 %v8011, %v8007
        %v8036 = vpack.c.bf16 %v8013, %v8009
        %v8037 = vpack.c.bf16 %v7948, %v7944
        %v8038 = vpack.c.bf16 %v7950, %v7946
        %v8039 = vpack.c.bf16 %v8021, %v8017
        %v8040 = vpack.c.bf16 %v8023, %v8019
        %8041 = vst [vmem:[#allocation3] sm:$0xff] %v8025
        %8042 = vst [vmem:[#allocation3 + $0x8] sm:$0xff] %v8029
        %8043 = vst [vmem:[#allocation3 + $0x10] sm:$0xff] %v8033
        %8044 = vst [vmem:[#allocation3 + $0x18] sm:$0xff] %v8037
        %8045 = vst [vmem:[#allocation3 + $0x20] sm:$0xff] %v8026
        %8046 = vst [vmem:[#allocation3 + $0x28] sm:$0xff] %v8030
        %8047 = vst [vmem:[#allocation3 + $0x30] sm:$0xff] %v8034
        %8048 = vst [vmem:[#allocation3 + $0x38] sm:$0xff] %v8038
        %8049 = vst [vmem:[#allocation3 + $0x40] sm:$0xff] %v8027
        %8050 = vst [vmem:[#allocation3 + $0x48] sm:$0xff] %v8031
        %8051 = vst [vmem:[#allocation3 + $0x50] sm:$0xff] %v8035
        %8052 = vst [vmem:[#allocation3 + $0x58] sm:$0xff] %v8039
        %8053 = vst [vmem:[#allocation3 + $0x60] sm:$0xff] %v8028
        %8054 = vst [vmem:[#allocation3 + $0x68] sm:$0xff] %v8032
        %8055 = vst [vmem:[#allocation3 + $0x70] sm:$0xff] %v8036
        %8056 = vst [vmem:[#allocation3 + $0x78] sm:$0xff] %v8040
        %v8057 = vld [vmem:[#allocation3] sm:$0xff]
        %v8058 = vld [vmem:[#allocation3 + $0x8] sm:$0xff]
        %v8059 = vld [vmem:[#allocation3 + $0x10] sm:$0xff]
        %v8060 = vld [vmem:[#allocation3 + $0x18] sm:$0xff]
        %v8061 = vld [vmem:[#allocation3 + $0x20] sm:$0xff]
        %v8062 = vld [vmem:[#allocation3 + $0x28] sm:$0xff]
        %v8063 = vld [vmem:[#allocation3 + $0x30] sm:$0xff]
        %v8064 = vld [vmem:[#allocation3 + $0x38] sm:$0xff]
        %v8065 = vld [vmem:[#allocation3 + $0x40] sm:$0xff]
        %v8066 = vld [vmem:[#allocation3 + $0x48] sm:$0xff]
        %v8067 = vld [vmem:[#allocation3 + $0x50] sm:$0xff]
        %v8068 = vld [vmem:[#allocation3 + $0x58] sm:$0xff]
        %v8069 = vld [vmem:[#allocation3 + $0x60] sm:$0xff]
        %v8070 = vld [vmem:[#allocation3 + $0x68] sm:$0xff]
        %v8071 = vld [vmem:[#allocation3 + $0x70] sm:$0xff]
        %v8072 = vld [vmem:[#allocation3 + $0x78] sm:$0xff]
        %v8073 = vld [vmem:[#allocation14] sm:$0xff]
        %v8074 = vld [vmem:[#allocation14 + $0x8] sm:$0xff]
        %v8075 = vld [vmem:[#allocation14 + $0x10] sm:$0xff]
        %v8076 = vld [vmem:[#allocation14 + $0x18] sm:$0xff]
        %v8077 = vld [vmem:[#allocation14 + $0x20] sm:$0xff]
        %v8078 = vld [vmem:[#allocation14 + $0x28] sm:$0xff]
        %v8079 = vld [vmem:[#allocation14 + $0x30] sm:$0xff]
        %v8080 = vld [vmem:[#allocation14 + $0x38] sm:$0xff]
        %v8081 = vld [vmem:[#allocation14 + $0x40] sm:$0xff]
        %v8082 = vld [vmem:[#allocation14 + $0x48] sm:$0xff]
        %v8083 = vld [vmem:[#allocation14 + $0x50] sm:$0xff]
        %v8084 = vld [vmem:[#allocation14 + $0x58] sm:$0xff]
        %v8085 = vld [vmem:[#allocation14 + $0x60] sm:$0xff]
        %v8086 = vld [vmem:[#allocation14 + $0x68] sm:$0xff]
        %v8087 = vld [vmem:[#allocation14 + $0x70] sm:$0xff]
        %v8088 = vld [vmem:[#allocation14 + $0x78] sm:$0xff]
        %v8089 = vld [vmem:[#allocation15] sm:$0x3]
        %v8091 = vlaneseq
        %v8092 = vshrl.u32 %v8091, 7
        %v8093 = vsub.s32 0, %v8092
        %v8094 = vrot.slane %v8089, %v8093
        %v8095 = vlaneseq
        %v8096 = vshrl.u32 %v8095, 7
        %v8097 = vsub.s32 1, %v8096
        %v8098 = vrot.slane %v8089, %v8097
        %v8117 = vunpack.c.l.b16 %v8073
        %v8118 = vunpack.c.h.b16 %v8073
        %v8119 = vunpack.c.l.b16 %v8074
        %v8120 = vunpack.c.h.b16 %v8074
        %v8121 = vunpack.c.l.b16 %v8075
        %v8122 = vunpack.c.h.b16 %v8075
        %v8123 = vunpack.c.l.b16 %v8076
        %v8124 = vunpack.c.h.b16 %v8076
        %v8125 = vunpack.c.l.b16 %v8077
        %v8126 = vunpack.c.h.b16 %v8077
        %v8127 = vunpack.c.l.b16 %v8078
        %v8128 = vunpack.c.h.b16 %v8078
        %v8129 = vunpack.c.l.b16 %v8079
        %v8130 = vunpack.c.h.b16 %v8079
        %v8131 = vunpack.c.l.b16 %v8080
        %v8132 = vunpack.c.h.b16 %v8080
        %v8133 = vunpack.c.l.b16 %v8081
        %v8134 = vunpack.c.h.b16 %v8081
        %v8135 = vunpack.c.l.b16 %v8082
        %v8136 = vunpack.c.h.b16 %v8082
        %v8137 = vunpack.c.l.b16 %v8083
        %v8138 = vunpack.c.h.b16 %v8083
        %v8139 = vunpack.c.l.b16 %v8084
        %v8140 = vunpack.c.h.b16 %v8084
        %v8141 = vunpack.c.l.b16 %v8085
        %v8142 = vunpack.c.h.b16 %v8085
        %v8143 = vunpack.c.l.b16 %v8086
        %v8144 = vunpack.c.h.b16 %v8086
        %v8145 = vunpack.c.l.b16 %v8087
        %v8146 = vunpack.c.h.b16 %v8087
        %v8147 = vunpack.c.l.b16 %v8088
        %v8148 = vunpack.c.h.b16 %v8088
        %v8149 = vpack.c.b16 %v8119, %v8117
        %v8150 = vpack.c.b16 %v8120, %v8118
        %v8151 = vpack.c.b16 %v8123, %v8121
        %v8152 = vpack.c.b16 %v8124, %v8122
        %v8153 = vpack.c.b16 %v8127, %v8125
        %v8154 = vpack.c.b16 %v8128, %v8126
        %v8155 = vpack.c.b16 %v8131, %v8129
        %v8156 = vpack.c.b16 %v8132, %v8130
        %v8157 = vpack.c.b16 %v8135, %v8133
        %v8158 = vpack.c.b16 %v8136, %v8134
        %v8159 = vpack.c.b16 %v8139, %v8137
        %v8160 = vpack.c.b16 %v8140, %v8138
        %v8161 = vpack.c.b16 %v8143, %v8141
        %v8162 = vpack.c.b16 %v8144, %v8142
        %v8163 = vpack.c.b16 %v8147, %v8145
        %v8164 = vpack.c.b16 %v8148, %v8146
        %8181 = vmatprep.subr.bf16.mxu0 %v8150
        %8182 = vmatpush1.bf16.msra.mxu0 %v8149
        %8183 = vmatprep.subr.bf16.mxu0 %v8152
        %8184 = vmatpush1.bf16.msra.mxu0 %v8151
        %8185 = vmatprep.subr.bf16.mxu0 %v8154
        %8186 = vmatpush1.bf16.msra.mxu0 %v8153
        %8187 = vmatprep.subr.bf16.mxu0 %v8156
        %8188 = vmatpush1.bf16.msra.mxu0 %v8155
        %8189 = vmatprep.subr.bf16.mxu0 %v8158
        %8190 = vmatpush1.bf16.msra.mxu0 %v8157
        %8191 = vmatprep.subr.bf16.mxu0 %v8160
        %8192 = vmatpush1.bf16.msra.mxu0 %v8159
        %8193 = vmatprep.subr.bf16.mxu0 %v8162
        %8194 = vmatpush1.bf16.msra.mxu0 %v8161
        %8195 = vmatprep.subr.bf16.mxu0 %v8164
        %8196 = vmatpush1.bf16.msra.mxu0 %v8163
        %8197 = vmatprep.subr.bf16.mxu0 0
        %8198 = vmatpush1.bf16.msra.mxu0 0
        %8199 = vmatprep.subr.bf16.mxu0 0
        %8200 = vmatpush1.bf16.msra.mxu0 0
        %8201 = vmatprep.subr.bf16.mxu0 0
        %8202 = vmatpush1.bf16.msra.mxu0 0
        %8203 = vmatprep.subr.bf16.mxu0 0
        %8204 = vmatpush1.bf16.msra.mxu0 0
        %8205 = vmatprep.subr.bf16.mxu0 0
        %8206 = vmatpush1.bf16.msra.mxu0 0
        %8207 = vmatprep.subr.bf16.mxu0 0
        %8208 = vmatpush1.bf16.msra.mxu0 0
        %8209 = vmatprep.subr.bf16.mxu0 0
        %8210 = vmatpush1.bf16.msra.mxu0 0
        %8211 = vmatprep.subr.bf16.mxu0 0
        %8212 = vmatpush1.bf16.msra.mxu0 0
        %8213 = vmatprep.mubr.bf16.mxu0 0
        %8214 = vmatmul.mubr.bf16.gmra.mrb[0].mxu0 %v8057
        %v8215 = vpop.f32.mrb[0].mxu0
        %v8216 = vadd.f32 %v8094, %v8215
        %v8217 = vpop.f32.mrb[0].mxu0
        %v8218 = vadd.f32 %v8098, %v8217
        %v8219 = vpop.f32.mrb[0].mxu0
        %v8220 = vadd.f32 %v8094, %v8219
        %v8221 = vpop.f32.mrb[0].mxu0
        %v8222 = vadd.f32 %v8098, %v8221
        %8223 = vmatprep.mubr.bf16.mxu0 0
        %8224 = vmatmul.mubr.bf16.gmra.mrb[0].mxu0 %v8058
        %v8225 = vpop.f32.mrb[0].mxu0
        %v8226 = vadd.f32 %v8094, %v8225
        %v8227 = vpop.f32.mrb[0].mxu0
        %v8228 = vadd.f32 %v8098, %v8227
        %v8229 = vpop.f32.mrb[0].mxu0
        %v8230 = vadd.f32 %v8094, %v8229
        %v8231 = vpop.f32.mrb[0].mxu0
        %v8232 = vadd.f32 %v8098, %v8231
        %8233 = vmatprep.mubr.bf16.mxu0 0
        %8234 = vmatmul.mubr.bf16.gmra.mrb[0].mxu0 %v8059
        %v8235 = vpop.f32.mrb[0].mxu0
        %v8236 = vadd.f32 %v8094, %v8235
        %v8237 = vpop.f32.mrb[0].mxu0
        %v8238 = vadd.f32 %v8098, %v8237
        %v8239 = vpop.f32.mrb[0].mxu0
        %v8240 = vadd.f32 %v8094, %v8239
        %v8241 = vpop.f32.mrb[0].mxu0
        %v8242 = vadd.f32 %v8098, %v8241
        %8243 = vmatprep.mubr.bf16.mxu0 0
        %8244 = vmatmul.mubr.bf16.gmra.mrb[0].mxu0 %v8060
        %v8245 = vpop.f32.mrb[0].mxu0
        %v8246 = vadd.f32 %v8094, %v8245
        %v8247 = vpop.f32.mrb[0].mxu0
        %v8248 = vadd.f32 %v8098, %v8247
        %v8249 = vpop.f32.mrb[0].mxu0
        %v8250 = vadd.f32 %v8094, %v8249
        %v8251 = vpop.f32.mrb[0].mxu0
        %v8252 = vadd.f32 %v8098, %v8251
        %8253 = vmatprep.mubr.bf16.mxu0 0
        %8254 = vmatmul.mubr.bf16.gmra.mrb[0].mxu0 %v8061
        %v8255 = vpop.f32.mrb[0].mxu0
        %v8256 = vadd.f32 %v8094, %v8255
        %v8257 = vpop.f32.mrb[0].mxu0
        %v8258 = vadd.f32 %v8098, %v8257
        %v8259 = vpop.f32.mrb[0].mxu0
        %v8260 = vadd.f32 %v8094, %v8259
        %v8261 = vpop.f32.mrb[0].mxu0
        %v8262 = vadd.f32 %v8098, %v8261
        %8263 = vmatprep.mubr.bf16.mxu0 0
        %8264 = vmatmul.mubr.bf16.gmra.mrb[0].mxu0 %v8062
        %v8265 = vpop.f32.mrb[0].mxu0
        %v8266 = vadd.f32 %v8094, %v8265
        %v8267 = vpop.f32.mrb[0].mxu0
        %v8268 = vadd.f32 %v8098, %v8267
        %v8269 = vpop.f32.mrb[0].mxu0
        %v8270 = vadd.f32 %v8094, %v8269
        %v8271 = vpop.f32.mrb[0].mxu0
        %v8272 = vadd.f32 %v8098, %v8271
        %8273 = vmatprep.mubr.bf16.mxu0 0
        %8274 = vmatmul.mubr.bf16.gmra.mrb[0].mxu0 %v8063
        %v8275 = vpop.f32.mrb[0].mxu0
        %v8276 = vadd.f32 %v8094, %v8275
        %v8277 = vpop.f32.mrb[0].mxu0
        %v8278 = vadd.f32 %v8098, %v8277
        %v8279 = vpop.f32.mrb[0].mxu0
        %v8280 = vadd.f32 %v8094, %v8279
        %v8281 = vpop.f32.mrb[0].mxu0
        %v8282 = vadd.f32 %v8098, %v8281
        %8283 = vmatprep.mubr.bf16.mxu0 0
        %8284 = vmatmul.mubr.bf16.gmra.mrb[0].mxu0 %v8064
        %v8285 = vpop.f32.mrb[0].mxu0
        %v8286 = vadd.f32 %v8094, %v8285
        %v8287 = vpop.f32.mrb[0].mxu0
        %v8288 = vadd.f32 %v8098, %v8287
        %v8289 = vpop.f32.mrb[0].mxu0
        %v8290 = vadd.f32 %v8094, %v8289
        %v8291 = vpop.f32.mrb[0].mxu0
        %v8292 = vadd.f32 %v8098, %v8291
        %8293 = vmatprep.mubr.bf16.mxu0 0
        %8294 = vmatmul.mubr.bf16.gmra.mrb[0].mxu0 %v8065
        %v8295 = vpop.f32.mrb[0].mxu0
        %v8296 = vadd.f32 %v8094, %v8295
        %v8297 = vpop.f32.mrb[0].mxu0
        %v8298 = vadd.f32 %v8098, %v8297
        %v8299 = vpop.f32.mrb[0].mxu0
        %v8300 = vadd.f32 %v8094, %v8299
        %v8301 = vpop.f32.mrb[0].mxu0
        %v8302 = vadd.f32 %v8098, %v8301
        %8303 = vmatprep.mubr.bf16.mxu0 0
        %8304 = vmatmul.mubr.bf16.gmra.mrb[0].mxu0 %v8066
        %v8305 = vpop.f32.mrb[0].mxu0
        %v8306 = vadd.f32 %v8094, %v8305
        %v8307 = vpop.f32.mrb[0].mxu0
        %v8308 = vadd.f32 %v8098, %v8307
        %v8309 = vpop.f32.mrb[0].mxu0
        %v8310 = vadd.f32 %v8094, %v8309
        %v8311 = vpop.f32.mrb[0].mxu0
        %v8312 = vadd.f32 %v8098, %v8311
        %8313 = vmatprep.mubr.bf16.mxu0 0
        %8314 = vmatmul.mubr.bf16.gmra.mrb[0].mxu0 %v8067
        %v8315 = vpop.f32.mrb[0].mxu0
        %v8316 = vadd.f32 %v8094, %v8315
        %v8317 = vpop.f32.mrb[0].mxu0
        %v8318 = vadd.f32 %v8098, %v8317
        %v8319 = vpop.f32.mrb[0].mxu0
        %v8320 = vadd.f32 %v8094, %v8319
        %v8321 = vpop.f32.mrb[0].mxu0
        %v8322 = vadd.f32 %v8098, %v8321
        %8323 = vmatprep.mubr.bf16.mxu0 0
        %8324 = vmatmul.mubr.bf16.gmra.mrb[0].mxu0 %v8068
        %v8325 = vpop.f32.mrb[0].mxu0
        %v8326 = vadd.f32 %v8094, %v8325
        %v8327 = vpop.f32.mrb[0].mxu0
        %v8328 = vadd.f32 %v8098, %v8327
        %v8329 = vpop.f32.mrb[0].mxu0
        %v8330 = vadd.f32 %v8094, %v8329
        %v8331 = vpop.f32.mrb[0].mxu0
        %v8332 = vadd.f32 %v8098, %v8331
        %8333 = vmatprep.mubr.bf16.mxu0 0
        %8334 = vmatmul.mubr.bf16.gmra.mrb[0].mxu0 %v8069
        %v8335 = vpop.f32.mrb[0].mxu0
        %v8336 = vadd.f32 %v8094, %v8335
        %v8337 = vpop.f32.mrb[0].mxu0
        %v8338 = vadd.f32 %v8098, %v8337
        %v8339 = vpop.f32.mrb[0].mxu0
        %v8340 = vadd.f32 %v8094, %v8339
        %v8341 = vpop.f32.mrb[0].mxu0
        %v8342 = vadd.f32 %v8098, %v8341
        %8343 = vmatprep.mubr.bf16.mxu0 0
        %8344 = vmatmul.mubr.bf16.gmra.mrb[0].mxu0 %v8070
        %v8345 = vpop.f32.mrb[0].mxu0
        %v8346 = vadd.f32 %v8094, %v8345
        %v8347 = vpop.f32.mrb[0].mxu0
        %v8348 = vadd.f32 %v8098, %v8347
        %v8349 = vpop.f32.mrb[0].mxu0
        %v8350 = vadd.f32 %v8094, %v8349
        %v8351 = vpop.f32.mrb[0].mxu0
        %v8352 = vadd.f32 %v8098, %v8351
        %8353 = vmatprep.mubr.bf16.mxu0 0
        %8354 = vmatmul.mubr.bf16.gmra.mrb[0].mxu0 %v8071
        %v8355 = vpop.f32.mrb[0].mxu0
        %v8356 = vadd.f32 %v8094, %v8355
        %v8357 = vpop.f32.mrb[0].mxu0
        %v8358 = vadd.f32 %v8098, %v8357
        %v8359 = vpop.f32.mrb[0].mxu0
        %v8360 = vadd.f32 %v8094, %v8359
        %v8361 = vpop.f32.mrb[0].mxu0
        %v8362 = vadd.f32 %v8098, %v8361
        %8363 = vmatprep.mubr.bf16.mxu0 0
        %8364 = vmatmul.mubr.bf16.gmra.mrb[0].mxu0 %v8072
        %v8365 = vpop.f32.mrb[0].mxu0
        %v8366 = vadd.f32 %v8094, %v8365
        %v8367 = vpop.f32.mrb[0].mxu0
        %v8368 = vadd.f32 %v8098, %v8367
        %v8369 = vpop.f32.mrb[0].mxu0
        %v8370 = vadd.f32 %v8094, %v8369
        %v8371 = vpop.f32.mrb[0].mxu0
        %v8372 = vadd.f32 %v8098, %v8371
        %8373 = vdwg.mxu0
        %v8374 = vpack.c.bf16 %v8220, %v8216
        %v8375 = vpack.c.bf16 %v8222, %v8218
        %v8376 = vpack.c.bf16 %v8230, %v8226
        %v8377 = vpack.c.bf16 %v8232, %v8228
        %v8378 = vpack.c.bf16 %v8240, %v8236
        %v8379 = vpack.c.bf16 %v8242, %v8238
        %v8380 = vpack.c.bf16 %v8250, %v8246
        %v8381 = vpack.c.bf16 %v8252, %v8248
        %v8382 = vpack.c.bf16 %v8260, %v8256
        %v8383 = vpack.c.bf16 %v8262, %v8258
        %v8384 = vpack.c.bf16 %v8270, %v8266
        %v8385 = vpack.c.bf16 %v8272, %v8268
        %v8386 = vpack.c.bf16 %v8280, %v8276
        %v8387 = vpack.c.bf16 %v8282, %v8278
        %v8388 = vpack.c.bf16 %v8290, %v8286
        %v8389 = vpack.c.bf16 %v8292, %v8288
        %v8390 = vpack.c.bf16 %v8300, %v8296
        %v8391 = vpack.c.bf16 %v8302, %v8298
        %v8392 = vpack.c.bf16 %v8310, %v8306
        %v8393 = vpack.c.bf16 %v8312, %v8308
        %v8394 = vpack.c.bf16 %v8320, %v8316
        %v8395 = vpack.c.bf16 %v8322, %v8318
        %v8396 = vpack.c.bf16 %v8330, %v8326
        %v8397 = vpack.c.bf16 %v8332, %v8328
        %v8398 = vpack.c.bf16 %v8340, %v8336
        %v8399 = vpack.c.bf16 %v8342, %v8338
        %v8400 = vpack.c.bf16 %v8350, %v8346
        %v8401 = vpack.c.bf16 %v8352, %v8348
        %v8402 = vpack.c.bf16 %v8360, %v8356
        %v8403 = vpack.c.bf16 %v8362, %v8358
        %v8404 = vpack.c.bf16 %v8370, %v8366
        %v8405 = vpack.c.bf16 %v8372, %v8368
        %v8406 = vld [vmem:[%s9] sm:$0xf]
        %v8407 = vld [vmem:[%s9 + $0x4] sm:$0xf]
        %v8408 = vld [vmem:[%s9 + $0x8] sm:$0xf]
        %v8409 = vld [vmem:[%s9 + $0xc] sm:$0xf]
        %v8410 = vld [vmem:[%s9 + $0x10] sm:$0xf]
        %v8411 = vld [vmem:[%s9 + $0x14] sm:$0xf]
        %v8412 = vld [vmem:[%s9 + $0x18] sm:$0xf]
        %v8413 = vld [vmem:[%s9 + $0x1c] sm:$0xf]
        %v8414 = vld [vmem:[%s9 + $0x20] sm:$0xf]
        %v8415 = vld [vmem:[%s9 + $0x24] sm:$0xf]
        %v8416 = vld [vmem:[%s9 + $0x28] sm:$0xf]
        %v8417 = vld [vmem:[%s9 + $0x2c] sm:$0xf]
        %v8418 = vld [vmem:[%s9 + $0x30] sm:$0xf]
        %v8419 = vld [vmem:[%s9 + $0x34] sm:$0xf]
        %v8420 = vld [vmem:[%s9 + $0x38] sm:$0xf]
        %v8421 = vld [vmem:[%s9 + $0x3c] sm:$0xf]
        %v8422 = vld [vmem:[%s9 + $0x40] sm:$0xf]
        %v8423 = vld [vmem:[%s9 + $0x44] sm:$0xf]
        %v8424 = vld [vmem:[%s9 + $0x48] sm:$0xf]
        %v8425 = vld [vmem:[%s9 + $0x4c] sm:$0xf]
        %v8426 = vld [vmem:[%s9 + $0x50] sm:$0xf]
        %v8427 = vld [vmem:[%s9 + $0x54] sm:$0xf]
        %v8428 = vld [vmem:[%s9 + $0x58] sm:$0xf]
        %v8429 = vld [vmem:[%s9 + $0x5c] sm:$0xf]
        %v8430 = vld [vmem:[%s9 + $0x60] sm:$0xf]
        %v8431 = vld [vmem:[%s9 + $0x64] sm:$0xf]
        %v8432 = vld [vmem:[%s9 + $0x68] sm:$0xf]
        %v8433 = vld [vmem:[%s9 + $0x6c] sm:$0xf]
        %v8434 = vld [vmem:[%s9 + $0x70] sm:$0xf]
        %v8435 = vld [vmem:[%s9 + $0x74] sm:$0xf]
        %v8436 = vld [vmem:[%s9 + $0x78] sm:$0xf]
        %v8437 = vld [vmem:[%s9 + $0x7c] sm:$0xf]
        %v8438 = vld [vmem:[#allocation17] sm:$0x1]
        %v8440 = vlaneseq
        %v8441 = vshrl.u32 %v8440, 7
        %v8442 = vsub.s32 0, %v8441
        %v8443 = vrot.slane %v8438, %v8442
        %v8477 = vunpack.c.l.b16 %v8406
        %v8478 = vunpack.c.l.b16 %v8407
        %v8479 = vunpack.c.l.b16 %v8408
        %v8480 = vunpack.c.l.b16 %v8409
        %v8481 = vunpack.c.l.b16 %v8410
        %v8482 = vunpack.c.l.b16 %v8411
        %v8483 = vunpack.c.l.b16 %v8412
        %v8484 = vunpack.c.l.b16 %v8413
        %v8485 = vunpack.c.l.b16 %v8414
        %v8486 = vunpack.c.l.b16 %v8415
        %v8487 = vunpack.c.l.b16 %v8416
        %v8488 = vunpack.c.l.b16 %v8417
        %v8489 = vunpack.c.l.b16 %v8418
        %v8490 = vunpack.c.l.b16 %v8419
        %v8491 = vunpack.c.l.b16 %v8420
        %v8492 = vunpack.c.l.b16 %v8421
        %v8493 = vunpack.c.l.b16 %v8422
        %v8494 = vunpack.c.l.b16 %v8423
        %v8495 = vunpack.c.l.b16 %v8424
        %v8496 = vunpack.c.l.b16 %v8425
        %v8497 = vunpack.c.l.b16 %v8426
        %v8498 = vunpack.c.l.b16 %v8427
        %v8499 = vunpack.c.l.b16 %v8428
        %v8500 = vunpack.c.l.b16 %v8429
        %v8501 = vunpack.c.l.b16 %v8430
        %v8502 = vunpack.c.l.b16 %v8431
        %v8503 = vunpack.c.l.b16 %v8432
        %v8504 = vunpack.c.l.b16 %v8433
        %v8505 = vunpack.c.l.b16 %v8434
        %v8506 = vunpack.c.l.b16 %v8435
        %v8507 = vunpack.c.l.b16 %v8436
        %v8508 = vunpack.c.l.b16 %v8437
        %v8509 = vpack.c.b16 %v8478, %v8477
        %v8510 = vpack.c.b16 %v8480, %v8479
        %v8511 = vpack.c.b16 %v8482, %v8481
        %v8512 = vpack.c.b16 %v8484, %v8483
        %v8513 = vpack.c.b16 %v8486, %v8485
        %v8514 = vpack.c.b16 %v8488, %v8487
        %v8515 = vpack.c.b16 %v8490, %v8489
        %v8516 = vpack.c.b16 %v8492, %v8491
        %v8517 = vpack.c.b16 %v8494, %v8493
        %v8518 = vpack.c.b16 %v8496, %v8495
        %v8519 = vpack.c.b16 %v8498, %v8497
        %v8520 = vpack.c.b16 %v8500, %v8499
        %v8521 = vpack.c.b16 %v8502, %v8501
        %v8522 = vpack.c.b16 %v8504, %v8503
        %v8523 = vpack.c.b16 %v8506, %v8505
        %v8524 = vpack.c.b16 %v8508, %v8507
        %8541 = vmatprep.subr.bf16.mxu0 0
        %8542 = vmatpush1.bf16.msra.mxu0 %v8509
        %8543 = vmatprep.subr.bf16.mxu0 0
        %8544 = vmatpush1.bf16.msra.mxu0 %v8510
        %8545 = vmatprep.subr.bf16.mxu0 0
        %8546 = vmatpush1.bf16.msra.mxu0 %v8511
        %8547 = vmatprep.subr.bf16.mxu0 0
        %8548 = vmatpush1.bf16.msra.mxu0 %v8512
        %8549 = vmatprep.subr.bf16.mxu0 0
        %8550 = vmatpush1.bf16.msra.mxu0 %v8513
        %8551 = vmatprep.subr.bf16.mxu0 0
        %8552 = vmatpush1.bf16.msra.mxu0 %v8514
        %8553 = vmatprep.subr.bf16.mxu0 0
        %8554 = vmatpush1.bf16.msra.mxu0 %v8515
        %8555 = vmatprep.subr.bf16.mxu0 0
        %8556 = vmatpush1.bf16.msra.mxu0 %v8516
        %8557 = vmatprep.subr.bf16.mxu0 0
        %8558 = vmatpush1.bf16.msra.mxu0 %v8517
        %8559 = vmatprep.subr.bf16.mxu0 0
        %8560 = vmatpush1.bf16.msra.mxu0 %v8518
        %8561 = vmatprep.subr.bf16.mxu0 0
        %8562 = vmatpush1.bf16.msra.mxu0 %v8519
        %8563 = vmatprep.subr.bf16.mxu0 0
        %8564 = vmatpush1.bf16.msra.mxu0 %v8520
        %8565 = vmatprep.subr.bf16.mxu0 0
        %8566 = vmatpush1.bf16.msra.mxu0 %v8521
        %8567 = vmatprep.subr.bf16.mxu0 0
        %8568 = vmatpush1.bf16.msra.mxu0 %v8522
        %8569 = vmatprep.subr.bf16.mxu0 0
        %8570 = vmatpush1.bf16.msra.mxu0 %v8523
        %8571 = vmatprep.subr.bf16.mxu0 0
        %8572 = vmatpush1.bf16.msra.mxu0 %v8524
        %8573 = vmatprep.mubr.bf16.mxu0 %v8375
        %8574 = vmatmul.mubr.bf16.gmra.mrb[0].mxu0 %v8374
        %v8575 = vpop.f32.mrb[0].mxu0
        %v8576 = vadd.f32 %v8443, %v8575
        %v8577 = vpop.f32.mrb[0].mxu0
        %v8578 = vpop.f32.mrb[0].mxu0
        %v8579 = vadd.f32 %v8443, %v8578
        %v8580 = vpop.f32.mrb[0].mxu0
        %8581 = vmatprep.mubr.bf16.mxu0 %v8377
        %8582 = vmatmul.mubr.bf16.gmra.mrb[0].mxu0 %v8376
        %v8583 = vpop.f32.mrb[0].mxu0
        %v8584 = vadd.f32 %v8443, %v8583
        %v8585 = vpop.f32.mrb[0].mxu0
        %v8586 = vpop.f32.mrb[0].mxu0
        %v8587 = vadd.f32 %v8443, %v8586
        %v8588 = vpop.f32.mrb[0].mxu0
        %8589 = vmatprep.mubr.bf16.mxu0 %v8379
        %8590 = vmatmul.mubr.bf16.gmra.mrb[0].mxu0 %v8378
        %v8591 = vpop.f32.mrb[0].mxu0
        %v8592 = vadd.f32 %v8443, %v8591
        %v8593 = vpop.f32.mrb[0].mxu0
        %v8594 = vpop.f32.mrb[0].mxu0
        %v8595 = vadd.f32 %v8443, %v8594
        %v8596 = vpop.f32.mrb[0].mxu0
        %8597 = vmatprep.mubr.bf16.mxu0 %v8381
        %8598 = vmatmul.mubr.bf16.gmra.mrb[0].mxu0 %v8380
        %v8599 = vpop.f32.mrb[0].mxu0
        %v8600 = vadd.f32 %v8443, %v8599
        %v8601 = vpop.f32.mrb[0].mxu0
        %v8602 = vpop.f32.mrb[0].mxu0
        %v8603 = vadd.f32 %v8443, %v8602
        %v8604 = vpop.f32.mrb[0].mxu0
        %8605 = vmatprep.mubr.bf16.mxu0 %v8383
        %8606 = vmatmul.mubr.bf16.gmra.mrb[0].mxu0 %v8382
        %v8607 = vpop.f32.mrb[0].mxu0
        %v8608 = vadd.f32 %v8443, %v8607
        %v8609 = vpop.f32.mrb[0].mxu0
        %v8610 = vpop.f32.mrb[0].mxu0
        %v8611 = vadd.f32 %v8443, %v8610
        %v8612 = vpop.f32.mrb[0].mxu0
        %8613 = vmatprep.mubr.bf16.mxu0 %v8385
        %8614 = vmatmul.mubr.bf16.gmra.mrb[0].mxu0 %v8384
        %v8615 = vpop.f32.mrb[0].mxu0
        %v8616 = vadd.f32 %v8443, %v8615
        %v8617 = vpop.f32.mrb[0].mxu0
        %v8618 = vpop.f32.mrb[0].mxu0
        %v8619 = vadd.f32 %v8443, %v8618
        %v8620 = vpop.f32.mrb[0].mxu0
        %8621 = vmatprep.mubr.bf16.mxu0 %v8387
        %8622 = vmatmul.mubr.bf16.gmra.mrb[0].mxu0 %v8386
        %v8623 = vpop.f32.mrb[0].mxu0
        %v8624 = vadd.f32 %v8443, %v8623
        %v8625 = vpop.f32.mrb[0].mxu0
        %v8626 = vpop.f32.mrb[0].mxu0
        %v8627 = vadd.f32 %v8443, %v8626
        %v8628 = vpop.f32.mrb[0].mxu0
        %8629 = vmatprep.mubr.bf16.mxu0 %v8389
        %8630 = vmatmul.mubr.bf16.gmra.mrb[0].mxu0 %v8388
        %v8631 = vpop.f32.mrb[0].mxu0
        %v8632 = vadd.f32 %v8443, %v8631
        %v8633 = vpop.f32.mrb[0].mxu0
        %v8634 = vpop.f32.mrb[0].mxu0
        %v8635 = vadd.f32 %v8443, %v8634
        %v8636 = vpop.f32.mrb[0].mxu0
        %8637 = vmatprep.mubr.bf16.mxu0 %v8391
        %8638 = vmatmul.mubr.bf16.gmra.mrb[0].mxu0 %v8390
        %v8639 = vpop.f32.mrb[0].mxu0
        %v8640 = vadd.f32 %v8443, %v8639
        %v8641 = vpop.f32.mrb[0].mxu0
        %v8642 = vpop.f32.mrb[0].mxu0
        %v8643 = vadd.f32 %v8443, %v8642
        %v8644 = vpop.f32.mrb[0].mxu0
        %8645 = vmatprep.mubr.bf16.mxu0 %v8393
        %8646 = vmatmul.mubr.bf16.gmra.mrb[0].mxu0 %v8392
        %v8647 = vpop.f32.mrb[0].mxu0
        %v8648 = vadd.f32 %v8443, %v8647
        %v8649 = vpop.f32.mrb[0].mxu0
        %v8650 = vpop.f32.mrb[0].mxu0
        %v8651 = vadd.f32 %v8443, %v8650
        %v8652 = vpop.f32.mrb[0].mxu0
        %8653 = vmatprep.mubr.bf16.mxu0 %v8395
        %8654 = vmatmul.mubr.bf16.gmra.mrb[0].mxu0 %v8394
        %v8655 = vpop.f32.mrb[0].mxu0
        %v8656 = vadd.f32 %v8443, %v8655
        %v8657 = vpop.f32.mrb[0].mxu0
        %v8658 = vpop.f32.mrb[0].mxu0
        %v8659 = vadd.f32 %v8443, %v8658
        %v8660 = vpop.f32.mrb[0].mxu0
        %8661 = vmatprep.mubr.bf16.mxu0 %v8397
        %8662 = vmatmul.mubr.bf16.gmra.mrb[0].mxu0 %v8396
        %v8663 = vpop.f32.mrb[0].mxu0
        %v8664 = vadd.f32 %v8443, %v8663
        %v8665 = vpop.f32.mrb[0].mxu0
        %v8666 = vpop.f32.mrb[0].mxu0
        %v8667 = vadd.f32 %v8443, %v8666
        %v8668 = vpop.f32.mrb[0].mxu0
        %8669 = vmatprep.mubr.bf16.mxu0 %v8399
        %8670 = vmatmul.mubr.bf16.gmra.mrb[0].mxu0 %v8398
        %v8671 = vpop.f32.mrb[0].mxu0
        %v8672 = vadd.f32 %v8443, %v8671
        %v8673 = vpop.f32.mrb[0].mxu0
        %v8674 = vpop.f32.mrb[0].mxu0
        %v8675 = vadd.f32 %v8443, %v8674
        %v8676 = vpop.f32.mrb[0].mxu0
        %8677 = vmatprep.mubr.bf16.mxu0 %v8401
        %8678 = vmatmul.mubr.bf16.gmra.mrb[0].mxu0 %v8400
        %v8679 = vpop.f32.mrb[0].mxu0
        %v8680 = vadd.f32 %v8443, %v8679
        %v8681 = vpop.f32.mrb[0].mxu0
        %v8682 = vpop.f32.mrb[0].mxu0
        %v8683 = vadd.f32 %v8443, %v8682
        %v8684 = vpop.f32.mrb[0].mxu0
        %8685 = vmatprep.mubr.bf16.mxu0 %v8403
        %8686 = vmatmul.mubr.bf16.gmra.mrb[0].mxu0 %v8402
        %v8687 = vpop.f32.mrb[0].mxu0
        %v8688 = vadd.f32 %v8443, %v8687
        %v8689 = vpop.f32.mrb[0].mxu0
        %v8690 = vpop.f32.mrb[0].mxu0
        %v8691 = vadd.f32 %v8443, %v8690
        %v8692 = vpop.f32.mrb[0].mxu0
        %8693 = vmatprep.mubr.bf16.mxu0 %v8405
        %8694 = vmatmul.mubr.bf16.gmra.mrb[0].mxu0 %v8404
        %v8695 = vpop.f32.mrb[0].mxu0
        %v8696 = vadd.f32 %v8443, %v8695
        %v8697 = vpop.f32.mrb[0].mxu0
        %v8698 = vpop.f32.mrb[0].mxu0
        %v8699 = vadd.f32 %v8443, %v8698
        %v8700 = vpop.f32.mrb[0].mxu0
        %8701 = vdwg.mxu0
        %v8702 = vxor.u32 %v8576, 2147483648
        %v8703 = vxor.u32 %v8579, 2147483648
        %v8704 = vxor.u32 %v8584, 2147483648
        %v8705 = vxor.u32 %v8587, 2147483648
        %v8706 = vxor.u32 %v8592, 2147483648
        %v8707 = vxor.u32 %v8595, 2147483648
        %v8708 = vxor.u32 %v8600, 2147483648
        %v8709 = vxor.u32 %v8603, 2147483648
        %v8710 = vxor.u32 %v8608, 2147483648
        %v8711 = vxor.u32 %v8611, 2147483648
        %v8712 = vxor.u32 %v8616, 2147483648
        %v8713 = vxor.u32 %v8619, 2147483648
        %v8714 = vxor.u32 %v8624, 2147483648
        %v8715 = vxor.u32 %v8627, 2147483648
        %v8716 = vxor.u32 %v8632, 2147483648
        %v8717 = vxor.u32 %v8635, 2147483648
        %v8718 = vxor.u32 %v8640, 2147483648
        %v8719 = vxor.u32 %v8643, 2147483648
        %v8720 = vxor.u32 %v8648, 2147483648
        %v8721 = vxor.u32 %v8651, 2147483648
        %v8722 = vxor.u32 %v8656, 2147483648
        %v8723 = vxor.u32 %v8659, 2147483648
        %v8724 = vxor.u32 %v8664, 2147483648
        %v8725 = vxor.u32 %v8667, 2147483648
        %v8726 = vxor.u32 %v8672, 2147483648
        %v8727 = vxor.u32 %v8675, 2147483648
        %v8728 = vxor.u32 %v8680, 2147483648
        %v8729 = vxor.u32 %v8683, 2147483648
        %v8730 = vxor.u32 %v8688, 2147483648
        %v8731 = vxor.u32 %v8691, 2147483648
        %v8732 = vxor.u32 %v8696, 2147483648
        %v8733 = vxor.u32 %v8699, 2147483648
        %v8734 = vmul.f32 %v8702, 1.442695
        %v8735 = vpow.pop %v8734
        %v8736 = vmul.f32 %v8703, 1.442695
        %v8737 = vpow.pop %v8736
        %v8738 = vmul.f32 %v8704, 1.442695
        %v8739 = vpow.pop %v8738
        %v8740 = vmul.f32 %v8705, 1.442695
        %v8741 = vpow.pop %v8740
        %v8742 = vmul.f32 %v8706, 1.442695
        %v8743 = vpow.pop %v8742
        %v8744 = vmul.f32 %v8707, 1.442695
        %v8745 = vpow.pop %v8744
        %v8746 = vmul.f32 %v8708, 1.442695
        %v8747 = vpow.pop %v8746
        %v8748 = vmul.f32 %v8709, 1.442695
        %v8749 = vpow.pop %v8748
        %v8750 = vmul.f32 %v8710, 1.442695
        %v8751 = vpow.pop %v8750
        %v8752 = vmul.f32 %v8711, 1.442695
        %v8753 = vpow.pop %v8752
        %v8754 = vmul.f32 %v8712, 1.442695
        %v8755 = vpow.pop %v8754
        %v8756 = vmul.f32 %v8713, 1.442695
        %v8757 = vpow.pop %v8756
        %v8758 = vmul.f32 %v8714, 1.442695
        %v8759 = vpow.pop %v8758
        %v8760 = vmul.f32 %v8715, 1.442695
        %v8761 = vpow.pop %v8760
        %v8762 = vmul.f32 %v8716, 1.442695
        %v8763 = vpow.pop %v8762
        %v8764 = vmul.f32 %v8717, 1.442695
        %v8765 = vpow.pop %v8764
        %v8766 = vmul.f32 %v8718, 1.442695
        %v8767 = vpow.pop %v8766
        %v8768 = vmul.f32 %v8719, 1.442695
        %v8769 = vpow.pop %v8768
        %v8770 = vmul.f32 %v8720, 1.442695
        %v8771 = vpow.pop %v8770
        %v8772 = vmul.f32 %v8721, 1.442695
        %v8773 = vpow.pop %v8772
        %v8774 = vmul.f32 %v8722, 1.442695
        %v8775 = vpow.pop %v8774
        %v8776 = vmul.f32 %v8723, 1.442695
        %v8777 = vpow.pop %v8776
        %v8778 = vmul.f32 %v8724, 1.442695
        %v8779 = vpow.pop %v8778
        %v8780 = vmul.f32 %v8725, 1.442695
        %v8781 = vpow.pop %v8780
        %v8782 = vmul.f32 %v8726, 1.442695
        %v8783 = vpow.pop %v8782
        %v8784 = vmul.f32 %v8727, 1.442695
        %v8785 = vpow.pop %v8784
        %v8786 = vmul.f32 %v8728, 1.442695
        %v8787 = vpow.pop %v8786
        %v8788 = vmul.f32 %v8729, 1.442695
        %v8789 = vpow.pop %v8788
        %v8790 = vmul.f32 %v8730, 1.442695
        %v8791 = vpow.pop %v8790
        %v8792 = vmul.f32 %v8731, 1.442695
        %v8793 = vpow.pop %v8792
        %v8794 = vmul.f32 %v8732, 1.442695
        %v8795 = vpow.pop %v8794
        %v8796 = vmul.f32 %v8733, 1.442695
        %v8797 = vpow.pop %v8796
        %v8798 = vadd.f32 %v8735, 1.0
        %v8799 = vadd.f32 %v8737, 1.0
        %v8800 = vadd.f32 %v8739, 1.0
        %v8801 = vadd.f32 %v8741, 1.0
        %v8802 = vadd.f32 %v8743, 1.0
        %v8803 = vadd.f32 %v8745, 1.0
        %v8804 = vadd.f32 %v8747, 1.0
        %v8805 = vadd.f32 %v8749, 1.0
        %v8806 = vadd.f32 %v8751, 1.0
        %v8807 = vadd.f32 %v8753, 1.0
        %v8808 = vadd.f32 %v8755, 1.0
        %v8809 = vadd.f32 %v8757, 1.0
        %v8810 = vadd.f32 %v8759, 1.0
        %v8811 = vadd.f32 %v8761, 1.0
        %v8812 = vadd.f32 %v8763, 1.0
        %v8813 = vadd.f32 %v8765, 1.0
        %v8814 = vadd.f32 %v8767, 1.0
        %v8815 = vadd.f32 %v8769, 1.0
        %v8816 = vadd.f32 %v8771, 1.0
        %v8817 = vadd.f32 %v8773, 1.0
        %v8818 = vadd.f32 %v8775, 1.0
        %v8819 = vadd.f32 %v8777, 1.0
        %v8820 = vadd.f32 %v8779, 1.0
        %v8821 = vadd.f32 %v8781, 1.0
        %v8822 = vadd.f32 %v8783, 1.0
        %v8823 = vadd.f32 %v8785, 1.0
        %v8824 = vadd.f32 %v8787, 1.0
        %v8825 = vadd.f32 %v8789, 1.0
        %v8826 = vadd.f32 %v8791, 1.0
        %v8827 = vadd.f32 %v8793, 1.0
        %v8828 = vadd.f32 %v8795, 1.0
        %v8829 = vadd.f32 %v8797, 1.0
        %v8830 = vrcp.pop %v8798
        %v8831 = vmul.f32 1.0, %v8830
        %v8832 = vrcp.pop %v8799
        %v8833 = vmul.f32 1.0, %v8832
        %v8834 = vrcp.pop %v8800
        %v8835 = vmul.f32 1.0, %v8834
        %v8836 = vrcp.pop %v8801
        %v8837 = vmul.f32 1.0, %v8836
        %v8838 = vrcp.pop %v8802
        %v8839 = vmul.f32 1.0, %v8838
        %v8840 = vrcp.pop %v8803
        %v8841 = vmul.f32 1.0, %v8840
        %v8842 = vrcp.pop %v8804
        %v8843 = vmul.f32 1.0, %v8842
        %v8844 = vrcp.pop %v8805
        %v8845 = vmul.f32 1.0, %v8844
        %v8846 = vrcp.pop %v8806
        %v8847 = vmul.f32 1.0, %v8846
        %v8848 = vrcp.pop %v8807
        %v8849 = vmul.f32 1.0, %v8848
        %v8850 = vrcp.pop %v8808
        %v8851 = vmul.f32 1.0, %v8850
        %v8852 = vrcp.pop %v8809
        %v8853 = vmul.f32 1.0, %v8852
        %v8854 = vrcp.pop %v8810
        %v8855 = vmul.f32 1.0, %v8854
        %v8856 = vrcp.pop %v8811
        %v8857 = vmul.f32 1.0, %v8856
        %v8858 = vrcp.pop %v8812
        %v8859 = vmul.f32 1.0, %v8858
        %v8860 = vrcp.pop %v8813
        %v8861 = vmul.f32 1.0, %v8860
        %v8862 = vrcp.pop %v8814
        %v8863 = vmul.f32 1.0, %v8862
        %v8864 = vrcp.pop %v8815
        %v8865 = vmul.f32 1.0, %v8864
        %v8866 = vrcp.pop %v8816
        %v8867 = vmul.f32 1.0, %v8866
        %v8868 = vrcp.pop %v8817
        %v8869 = vmul.f32 1.0, %v8868
        %v8870 = vrcp.pop %v8818
        %v8871 = vmul.f32 1.0, %v8870
        %v8872 = vrcp.pop %v8819
        %v8873 = vmul.f32 1.0, %v8872
        %v8874 = vrcp.pop %v8820
        %v8875 = vmul.f32 1.0, %v8874
        %v8876 = vrcp.pop %v8821
        %v8877 = vmul.f32 1.0, %v8876
        %v8878 = vrcp.pop %v8822
        %v8879 = vmul.f32 1.0, %v8878
        %v8880 = vrcp.pop %v8823
        %v8881 = vmul.f32 1.0, %v8880
        %v8882 = vrcp.pop %v8824
        %v8883 = vmul.f32 1.0, %v8882
        %v8884 = vrcp.pop %v8825
        %v8885 = vmul.f32 1.0, %v8884
        %v8886 = vrcp.pop %v8826
        %v8887 = vmul.f32 1.0, %v8886
        %v8888 = vrcp.pop %v8827
        %v8889 = vmul.f32 1.0, %v8888
        %v8890 = vrcp.pop %v8828
        %v8891 = vmul.f32 1.0, %v8890
        %v8892 = vrcp.pop %v8829
        %v8893 = vmul.f32 1.0, %v8892
        %vm8894 = vcmask 130048
        %8895 = vst.msk [vmem:[%s512] sm:$0xff] %vm8894, %v8831
        %8896 = vst.msk [vmem:[%s512 + $0x8] sm:$0xff] %vm8894, %v8833
        %8897 = vst.msk [vmem:[%s512 + $0x10] sm:$0xff] %vm8894, %v8835
        %8898 = vst.msk [vmem:[%s512 + $0x18] sm:$0xff] %vm8894, %v8837
        %8899 = vst.msk [vmem:[%s512 + $0x20] sm:$0xff] %vm8894, %v8839
        %8900 = vst.msk [vmem:[%s512 + $0x28] sm:$0xff] %vm8894, %v8841
        %8901 = vst.msk [vmem:[%s512 + $0x30] sm:$0xff] %vm8894, %v8843
        %8902 = vst.msk [vmem:[%s512 + $0x38] sm:$0xff] %vm8894, %v8845
        %8903 = vst.msk [vmem:[%s512 + $0x40] sm:$0xff] %vm8894, %v8847
        %8904 = vst.msk [vmem:[%s512 + $0x48] sm:$0xff] %vm8894, %v8849
        %8905 = vst.msk [vmem:[%s512 + $0x50] sm:$0xff] %vm8894, %v8851
        %8906 = vst.msk [vmem:[%s512 + $0x58] sm:$0xff] %vm8894, %v8853
        %8907 = vst.msk [vmem:[%s512 + $0x60] sm:$0xff] %vm8894, %v8855
        %8908 = vst.msk [vmem:[%s512 + $0x68] sm:$0xff] %vm8894, %v8857
        %8909 = vst.msk [vmem:[%s512 + $0x70] sm:$0xff] %vm8894, %v8859
        %8910 = vst.msk [vmem:[%s512 + $0x78] sm:$0xff] %vm8894, %v8861
        %8911 = vst.msk [vmem:[%s512 + $0x80] sm:$0xff] %vm8894, %v8863
        %8912 = vst.msk [vmem:[%s512 + $0x88] sm:$0xff] %vm8894, %v8865
        %8913 = vst.msk [vmem:[%s512 + $0x90] sm:$0xff] %vm8894, %v8867
        %8914 = vst.msk [vmem:[%s512 + $0x98] sm:$0xff] %vm8894, %v8869
        %8915 = vst.msk [vmem:[%s512 + $0xa0] sm:$0xff] %vm8894, %v8871
        %8916 = vst.msk [vmem:[%s512 + $0xa8] sm:$0xff] %vm8894, %v8873
        %8917 = vst.msk [vmem:[%s512 + $0xb0] sm:$0xff] %vm8894, %v8875
        %8918 = vst.msk [vmem:[%s512 + $0xb8] sm:$0xff] %vm8894, %v8877
        %8919 = vst.msk [vmem:[%s512 + $0xc0] sm:$0xff] %vm8894, %v8879
        %8920 = vst.msk [vmem:[%s512 + $0xc8] sm:$0xff] %vm8894, %v8881
        %8921 = vst.msk [vmem:[%s512 + $0xd0] sm:$0xff] %vm8894, %v8883
        %8922 = vst.msk [vmem:[%s512 + $0xd8] sm:$0xff] %vm8894, %v8885
        %8923 = vst.msk [vmem:[%s512 + $0xe0] sm:$0xff] %vm8894, %v8887
        %8924 = vst.msk [vmem:[%s512 + $0xe8] sm:$0xff] %vm8894, %v8889
        %8925 = vst.msk [vmem:[%s512 + $0xf0] sm:$0xff] %vm8894, %v8891
        %8926 = vst.msk [vmem:[%s512 + $0xf8] sm:$0xff] %vm8894, %v8893
        %s8927 = smul.u32 32, %s27
        %p8928 = scmp.lt.s32.totalorder %s8927, 63
        %s8929 = scalar_select %p8928, %s8927, 63
        %s8930 = smul.addr %s8929, 8
        %s8931 = scalar_lea.vmem %s11, %s8930
        // Predicated region
        $region101: #{decoder_forward.1} parent=63 // pred_check
          %p8932 = pneg %p281
        $region102: #{decoder_forward.1} parent=63 // pred_check_branch
          %8934 = sbr.rel (%p8932) target = $region104
        $region103: #{decoder_forward.1} parent=63 // pred_region
          %s8935 = smul.u32 32, %s27
        $region104: #{decoder_forward.1} parent=63 // pred_fallthru
          _
      $region64: #{decoder_forward.1} parent=5 // pred_fallthru
        _
      %p8936 = scmp.le.s32.totalorder 2, %s22
      // Predicated region
      $region105: #{decoder_forward.1} parent=5 // pred_check
        %p8937 = pneg %p8936
      $region106: #{decoder_forward.1} parent=5 // pred_check_branch
        %8939 = sbr.rel (%p8937) target = $region108
      $region107: #{decoder_forward.1} parent=5 // pred_region
        %s8940 = ssub.s32 %s22, 2
        // Predicated region
        $region109: #{decoder_forward.1} parent=107 // pred_check
          %p8941 = pneg %p287
        $region110: #{decoder_forward.1} parent=107 // pred_check_branch
          %8943 = sbr.rel (%p8941) target = $region112
        $region111: #{decoder_forward.1} parent=107 // pred_region
          %s8944 = smul.u32 32, %s28
          %p8945 = scmp.lt.s32.totalorder %s8944, 63
          %s8946 = scalar_select %p8945, %s8944, 63
          %s8947 = smul.addr %s8946, 8
          %s8948 = scalar_lea.vmem %s11, %s8947
        $region112: #{decoder_forward.1} parent=107 // pred_fallthru
          _
      $region108: #{decoder_forward.1} parent=5 // pred_fallthru
        _
    $region6: #{decoder_forward.1} parent=1 // loop_footer
      %s26 = sadd.s32 1, %s22
    $region7: #{decoder_forward.1} parent=1 // loop_footer_branch
      %21 = sbr.rel target = $region3
    $region8: #{decoder_forward.1} parent=1 // loop_exit
      _
    %8949 = vsyncpa [#allocation5], 1
    %s8950 = scalar_lea.sflag [#allocation5], 1
    %8951 = vsyncpa %s8950, 1
    %8952 = vsyncpa [#allocation7], 1
    %8953 = vsyncpa [#allocation10], 1
    %8954 = vsyncpa [#allocation13], 1
    %8955 = vsyncpa [#allocation16], 1

</llo_original>
